<compile_context>
chip_gen: v5e
topology: v5e:2x2
jax: 0.10.0
libtpu: 0.0.40
codegen_flags: <defaults>
</compile_context>

<pallas_src>
import jax
import jax.numpy as jnp
from jax.experimental import pallas as pl
from jax.experimental.pallas import tpu as pltpu


# --------------------------------------------------------------------------- #
# Kernel
# --------------------------------------------------------------------------- #
def gated_linear_kernel(x_ref, w1_ref, wg_ref, params_ref, o_ref, acc_ref):
    k = pl.program_id(1)

    @pl.when(k == 0)
    def _():
        acc_ref[...] = jnp.zeros_like(acc_ref)

    # Partial first matmul for this K tile.  The activation tile is cast to the
    # weight dtype (bf16) *inside* the kernel (no wrapper-side HBM round trip);
    # accumulation stays in f32 via preferred_element_type.
    acc_ref[...] += jnp.dot(x_ref[...].astype(w1_ref.dtype), w1_ref[...],
                            preferred_element_type=jnp.float32)

    @pl.when(k == pl.num_programs(1) - 1)
    def _():
        b1 = params_ref[0:1, :]
        bg = params_ref[1:2, :]
        gamma = params_ref[2:3, :]
        beta = params_ref[3:4, :]

        # h = x @ W1 + b1, kept in the f32 accumulator in place.
        acc_ref[...] += b1
        h = acc_ref[...]

        # Gating matmul (operands in weight dtype, f32 accumulation).
        g = jnp.dot(h.astype(wg_ref.dtype), wg_ref[...],
                    preferred_element_type=jnp.float32) + bg

        # y = h * sigmoid(g); write back into the accumulator to keep the number
        # of live (tile_b, out_f) f32 buffers small (they spill past the vregs).
        acc_ref[...] = h * jax.nn.sigmoid(g)
        y = acc_ref[...]

        # LayerNorm (eps=1e-6) over features, single-pass mean / mean-of-squares
        # (one fewer cross-lane reduction than the two-pass form).
        n = y.shape[-1]
        inv_n = 1.0 / n
        mean = jnp.sum(y, axis=-1, keepdims=True) * inv_n
        msq = jnp.sum(y * y, axis=-1, keepdims=True) * inv_n
        var = jnp.maximum(msq - mean * mean, 0.0)
        o_ref[...] = ((y - mean) * jax.lax.rsqrt(var + 1e-6) * gamma
                      + beta).astype(o_ref.dtype)


# --------------------------------------------------------------------------- #
# Wrapper
# --------------------------------------------------------------------------- #
def _round_up(v, m):
    return ((v + m - 1) // m) * m


def _device_kind():
    try:
        return jax.devices()[0].device_kind.lower()
    except Exception:
        return ""


def _vmem_capacity_bytes():
    try:
        return int(pltpu.get_tpu_info().vmem_capacity_bytes)
    except Exception:
        pass
    kind = _device_kind()
    if "v7" in kind:
        return 64 << 20
    return 128 << 20   # v5e / v6e


def gated_linear(x, w1, b1, wg, bg, gamma, beta, *,
                 tile_b=None, tile_k=None,
                 compute_dtype=jnp.bfloat16, out_dtype=None):
    """x: (B, in_f); w1: (in_f, out_f); wg: (out_f, out_f); bias/LN params: (1, out_f).

    tile_b: batch tile; default 512 on v6e (128 MiB VMEM), 256 otherwise;
            rounded to a multiple of 16 (bf16 sublane packing).
    tile_k: reduction tile over in_features (None => whole in_f resident per
            step).  If set, must be a multiple of 128 dividing in_f; prefer
            multiples of 256 on v6e/v7x (256-deep MXU).
    compute_dtype: matmul operand dtype (bf16 recommended; accumulation is f32).
    out_dtype: output dtype (default: x.dtype; bf16 halves output writeback).
    """
    B, in_f = x.shape
    out_f = w1.shape[1]
    out_dtype = x.dtype if out_dtype is None else out_dtype

    cap = _vmem_capacity_bytes()
    kind = _device_kind()

    # --- batch tiling (MXU-shaped; bf16 sublane packing => multiple of 16) ---
    if tile_b is None:
        tile_b = 512 if ("v6" in kind and cap > (64 << 20)) else 256
    tile_b = min(tile_b, _round_up(B, 16))
    tile_b = _round_up(tile_b, 16)
    B_pad = _round_up(B, tile_b)
    if B_pad != B:
        x = jnp.pad(x, ((0, B_pad - B), (0, 0)))

    # --- K (in_features) tiling ---
    if tile_k is None:
        tile_k = in_f                      # W1 fully resident, invariant block
    assert in_f % tile_k == 0, "tile_k must divide in_features"
    if tile_k != in_f:
        assert tile_k % 128 == 0, "tile_k must be a multiple of 128"

    nb = B_pad // tile_b
    nk = in_f // tile_k
    w1_invariant = (nk == 1)

    # Weights pre-cast once (reused across calls); x stays in its source dtype
    # and is cast in-kernel.
    w1c = w1.astype(compute_dtype)
    wgc = wg.astype(compute_dtype)
    params = jnp.concatenate([b1, bg, gamma, beta], axis=0).astype(jnp.float32)  # (4, out_f)

    # --- VMEM budget (honest estimate incl. epilogue f32 temporaries) ---
    isz_x = jnp.dtype(x.dtype).itemsize
    isz_c = jnp.dtype(compute_dtype).itemsize
    isz_o = jnp.dtype(out_dtype).itemsize
    vmem_bytes = (
        2 * tile_b * tile_k * isz_x                      # x tile (double-buffered)
        + (1 if w1_invariant else 2) * tile_k * out_f * isz_c  # W1
        + 1 * out_f * out_f * isz_c                      # Wg (single-buffered)
        + 1 * 4 * out_f * 4                              # packed params (f32)
        + 2 * tile_b * out_f * isz_o                     # output tile
        + tile_b * out_f * 4                             # f32 accumulator scratch
        + 4 * tile_b * out_f * 4                         # epilogue f32 temporaries
    )
    if cap <= (64 << 20):
        # v7x-class: leave headroom for Pallas-internal scratch / semaphores.
        ceiling = 52 << 20
    else:
        # v5e / v6e: 128 MiB physical; allow well past the default scoped limit.
        ceiling = min(int(0.8 * cap), 100 << 20)
    vmem_limit = int(min(max(32 << 20, int(1.25 * vmem_bytes) + (4 << 20)), ceiling))

    out_shape = jax.ShapeDtypeStruct((B_pad, out_f), out_dtype)

    def _build(single_buffer):
        def inv_spec(shape):
            # Grid-invariant operand: fetched once; single buffer slot if allowed.
            if single_buffer:
                return pl.BlockSpec(shape, lambda i, k: (0, 0),
                                    pipeline_mode=pl.Buffered(1))
            return pl.BlockSpec(shape, lambda i, k: (0, 0))

        if w1_invariant:
            w1_spec = inv_spec((tile_k, out_f))
        else:
            w1_spec = pl.BlockSpec((tile_k, out_f), lambda i, k: (k, 0))

        in_specs = [
            pl.BlockSpec((tile_b, tile_k), lambda i, k: (i, k)),   # x tile
            w1_spec,                                               # W1
            inv_spec((out_f, out_f)),                              # Wg
            inv_spec((4, out_f)),                                  # b1/bg/gamma/beta
        ]
        out_specs = pl.BlockSpec((tile_b, out_f), lambda i, k: (i, 0))

        return pl.pallas_call(
            gated_linear_kernel,
            out_shape=out_shape,
            grid_spec=pltpu.PrefetchScalarGridSpec(
                num_scalar_prefetch=0,
                grid=(nb, nk),
                in_specs=in_specs,
                out_specs=out_specs,
                scratch_shapes=[pltpu.VMEM((tile_b, out_f), jnp.float32)],
            ),
            compiler_params=pltpu.CompilerParams(
                dimension_semantics=("parallel", "arbitrary"),
                vmem_limit_bytes=vmem_limit,
            ),
        )

    try:
        out = _build(True)(x, w1c, wgc, params)
    except Exception:
        # Fallback for JAX builds without pipeline_mode / Buffered(1) support.
        out = _build(False)(x, w1c, wgc, params)

    return out[:B] if B_pad != B else out


def gated_linear_ref(x, w1, b1, wg, bg, gamma, beta):
    """Full-f32 reference matching the PyTorch module semantics."""
    f32 = jnp.float32
    hi = jax.lax.Precision.HIGHEST
    h = jnp.dot(x.astype(f32), w1.astype(f32), precision=hi) + b1
    g = jnp.dot(h, wg.astype(f32), precision=hi) + bg
    y = h * jax.nn.sigmoid(g)
    mean = jnp.mean(y, axis=-1, keepdims=True)
    var = jnp.mean((y - mean) ** 2, axis=-1, keepdims=True)
    return (y - mean) * jax.lax.rsqrt(var + 1e-6) * gamma + beta


if __name__ == "__main__":
    # MXU-shaped small demo: 2 batch tiles of 256 rows, K and N aligned to 256.
    B, IN_F, OUT_F = 512, 256, 256

    key = jax.random.PRNGKey(0)
    kx, kw1, kb1, kwg, kbg = jax.random.split(key, 5)

    x = jax.random.normal(kx, (B, IN_F), dtype=jnp.float32)

    # Deterministic parameter init (Kaiming-uniform-ish scale, shapes match
    # nn.Linear, stored pre-transposed as (in, out)).
    lim1 = 1.0 / IN_F ** 0.5
    limg = 1.0 / OUT_F ** 0.5
    w1 = jax.random.uniform(kw1, (IN_F, OUT_F), jnp.float32, -lim1, lim1)
    b1 = jax.random.uniform(kb1, (1, OUT_F), jnp.float32, -lim1, lim1)
    wg = jax.random.uniform(kwg, (OUT_F, OUT_F), jnp.float32, -limg, limg)
    bg = jax.random.uniform(kbg, (1, OUT_F), jnp.float32, -limg, limg)
    gamma = jnp.ones((1, OUT_F), jnp.float32)   # LayerNorm weight init
    beta = jnp.zeros((1, OUT_F), jnp.float32)   # LayerNorm bias init

    ref = gated_linear_ref(x, w1, b1, wg, bg, gamma, beta)

    # Main (bf16-operand) path: full-K per step, invariant W1/Wg single-buffered.
    out = gated_linear(x, w1, b1, wg, bg, gamma, beta)
    out = jax.block_until_ready(out)
    assert out.shape == (B, OUT_F)
    # Tolerance reflects bf16 matmul operands on ~N(0,1)-scale LayerNorm outputs.
    assert jnp.allclose(out.astype(jnp.float32), ref, atol=1e-1, rtol=1e-1), \
        "bf16-path mismatch vs reference"

    # f32-operand path with K split in two: exercises the reduction grid axis +
    # f32 accumulator and gives a tighter semantic check of the fused op.
    out_f32 = gated_linear(x, w1, b1, wg, bg, gamma, beta,
                           tile_k=128, compute_dtype=jnp.float32)
    out_f32 = jax.block_until_ready(out_f32)
    assert jnp.allclose(out_f32, ref, atol=2e-3, rtol=2e-3), \
        "f32-path mismatch vs reference"

    print("KERNEL_OK")
</pallas_src>

<mosaic_0001>
module attributes {stable_mosaic.version = 11 : i64} {
  func.func @gated_linear_kernel(%arg0: i32, %arg1: i32, %arg2: memref<256x256xf32, #tpu.memory_space<vmem>>, %arg3: memref<256x256xbf16, #tpu.memory_space<vmem>>, %arg4: memref<256x256xbf16, #tpu.memory_space<vmem>>, %arg5: memref<4x256xf32, #tpu.memory_space<vmem>>, %arg6: memref<256x256xf32, #tpu.memory_space<vmem>>, %arg7: memref<256x256xf32, #tpu.memory_space<vmem>>) attributes {dimension_semantics = [#tpu.dimension_semantics<parallel>, #tpu.dimension_semantics<arbitrary>], iteration_bounds = array<i64: 2, 1>, scalar_prefetch = 0 : i64, scratch_operands = 1 : i64, tpu.core_type = #tpu.core_type<tc>, window_params = [{transform_indices = @transform_0, window_bounds = array<i64: 256, 256>}, {pipeline_mode = #tpu.pipeline_mode<synchronous>, transform_indices = @transform_1, window_bounds = array<i64: 256, 256>}, {pipeline_mode = #tpu.pipeline_mode<synchronous>, transform_indices = @transform_2, window_bounds = array<i64: 256, 256>}, {pipeline_mode = #tpu.pipeline_mode<synchronous>, transform_indices = @transform_3, window_bounds = array<i64: 4, 256>}, {transform_indices = @transform_4, window_bounds = array<i64: 256, 256>}]} {
    %c0_i32 = arith.constant 0 : i32
    %0 = arith.cmpi eq, %arg1, %c0_i32 : i32
    %1 = arith.extui %0 : i1 to i32
    %c0_i32_0 = arith.constant 0 : i32
    %2 = arith.cmpi ne, %1, %c0_i32_0 : i32
    scf.if %2 {
      %cst_10 = arith.constant 0.000000e+00 : f32
      %13 = vector.broadcast %cst_10 : f32 to vector<256x256xf32>
      %c0_11 = arith.constant 0 : index
      %c0_12 = arith.constant 0 : index
      %14 = vector.load %arg7[%c0_11, %c0_12] : memref<256x256xf32, #tpu.memory_space<vmem>>, vector<256x256xf32>
      tpu.vector_store %arg7[%c0_11, %c0_12], %13 {strides = array<i32>} : memref<256x256xf32, #tpu.memory_space<vmem>>, vector<256x256xf32>,
    } else {
    }
    %c0 = arith.constant 0 : index
    %c0_1 = arith.constant 0 : index
    %3 = vector.load %arg7[%c0, %c0_1] : memref<256x256xf32, #tpu.memory_space<vmem>>, vector<256x256xf32>
    %c0_2 = arith.constant 0 : index
    %c0_3 = arith.constant 0 : index
    %4 = vector.load %arg2[%c0_2, %c0_3] : memref<256x256xf32, #tpu.memory_space<vmem>>, vector<256x256xf32>
    %5 = arith.truncf %4 : vector<256x256xf32> to vector<256x256xbf16>
    %c0_4 = arith.constant 0 : index
    %c0_5 = arith.constant 0 : index
    %6 = vector.load %arg3[%c0_4, %c0_5] : memref<256x256xbf16, #tpu.memory_space<vmem>>, vector<256x256xbf16>
    %cst = arith.constant dense<0.000000e+00> : vector<256x256xf32>
    %7 = tpu.matmul %5, %6, %cst {dimension_numbers = #tpu.dot_dimension_numbers<[1], [0], [0], [1], [0, 0, 1, 1], [], []>} : vector<256x256xbf16>, vector<256x256xbf16>, vector<256x256xf32> -> vector<256x256xf32>
    %8 = arith.addf %3, %7 : vector<256x256xf32>
    %c0_6 = arith.constant 0 : index
    %c0_7 = arith.constant 0 : index
    %9 = vector.load %arg7[%c0_6, %c0_7] : memref<256x256xf32, #tpu.memory_space<vmem>>, vector<256x256xf32>
    tpu.vector_store %arg7[%c0_6, %c0_7], %8 {strides = array<i32>} : memref<256x256xf32, #tpu.memory_space<vmem>>, vector<256x256xf32>,
    %c0_i32_8 = arith.constant 0 : i32
    %10 = arith.cmpi eq, %arg1, %c0_i32_8 : i32
    %11 = arith.extui %10 : i1 to i32
    %c0_i32_9 = arith.constant 0 : i32
    %12 = arith.cmpi ne, %11, %c0_i32_9 : i32
    scf.if %12 {
      %c0_10 = arith.constant 0 : index
      %c0_11 = arith.constant 0 : index
      %13 = vector.load %arg5[%c0_10, %c0_11] : memref<4x256xf32, #tpu.memory_space<vmem>>, vector<1x256xf32>
      %c1 = arith.constant 1 : index
      %c0_12 = arith.constant 0 : index
      %14 = vector.load %arg5[%c1, %c0_12] : memref<4x256xf32, #tpu.memory_space<vmem>>, vector<1x256xf32>
      %c2 = arith.constant 2 : index
      %c0_13 = arith.constant 0 : index
      %15 = vector.load %arg5[%c2, %c0_13] : memref<4x256xf32, #tpu.memory_space<vmem>>, vector<1x256xf32>
      %c3 = arith.constant 3 : index
      %c0_14 = arith.constant 0 : index
      %16 = vector.load %arg5[%c3, %c0_14] : memref<4x256xf32, #tpu.memory_space<vmem>>, vector<1x256xf32>
      %c0_15 = arith.constant 0 : index
      %c0_16 = arith.constant 0 : index
      %17 = vector.load %arg7[%c0_15, %c0_16] : memref<256x256xf32, #tpu.memory_space<vmem>>, vector<256x256xf32>
      %18 = vector.broadcast %13 : vector<1x256xf32> to vector<256x256xf32>
      %19 = arith.addf %17, %18 : vector<256x256xf32>
      %c0_17 = arith.constant 0 : index
      %c0_18 = arith.constant 0 : index
      %20 = vector.load %arg7[%c0_17, %c0_18] : memref<256x256xf32, #tpu.memory_space<vmem>>, vector<256x256xf32>
      tpu.vector_store %arg7[%c0_17, %c0_18], %19 {strides = array<i32>} : memref<256x256xf32, #tpu.memory_space<vmem>>, vector<256x256xf32>,
      %c0_19 = arith.constant 0 : index
      %c0_20 = arith.constant 0 : index
      %21 = vector.load %arg7[%c0_19, %c0_20] : memref<256x256xf32, #tpu.memory_space<vmem>>, vector<256x256xf32>
      %22 = arith.truncf %21 : vector<256x256xf32> to vector<256x256xbf16>
      %c0_21 = arith.constant 0 : index
      %c0_22 = arith.constant 0 : index
      %23 = vector.load %arg4[%c0_21, %c0_22] : memref<256x256xbf16, #tpu.memory_space<vmem>>, vector<256x256xbf16>
      %cst_23 = arith.constant dense<0.000000e+00> : vector<256x256xf32>
      %24 = tpu.matmul %22, %23, %cst_23 {dimension_numbers = #tpu.dot_dimension_numbers<[1], [0], [0], [1], [0, 0, 1, 1], [], []>} : vector<256x256xbf16>, vector<256x256xbf16>, vector<256x256xf32> -> vector<256x256xf32>
      %25 = vector.broadcast %14 : vector<1x256xf32> to vector<256x256xf32>
      %26 = arith.addf %24, %25 : vector<256x256xf32>
      %27 = arith.negf %26 : vector<256x256xf32>
      %28 = math.exp %27 : vector<256x256xf32>
      %cst_24 = arith.constant 1.000000e+00 : f32
      %29 = vector.broadcast %cst_24 : f32 to vector<256x256xf32>
      %30 = arith.addf %29, %28 : vector<256x256xf32>
      %31 = arith.divf %29, %30 : vector<256x256xf32>
      %32 = arith.mulf %21, %31 : vector<256x256xf32>
      %c0_25 = arith.constant 0 : index
      %c0_26 = arith.constant 0 : index
      %33 = vector.load %arg7[%c0_25, %c0_26] : memref<256x256xf32, #tpu.memory_space<vmem>>, vector<256x256xf32>
      tpu.vector_store %arg7[%c0_25, %c0_26], %32 {strides = array<i32>} : memref<256x256xf32, #tpu.memory_space<vmem>>, vector<256x256xf32>,
      %c0_27 = arith.constant 0 : index
      %c0_28 = arith.constant 0 : index
      %34 = vector.load %arg7[%c0_27, %c0_28] : memref<256x256xf32, #tpu.memory_space<vmem>>, vector<256x256xf32>
      %cst_29 = arith.constant dense<0.000000e+00> : vector<256xf32>
      %35 = vector.multi_reduction <add>, %34, %cst_29 [1] : vector<256x256xf32> to vector<256xf32>
      %36 = vector.shape_cast %35 : vector<256xf32> to vector<256x1xf32>
      %cst_30 = arith.constant 3.906250e-03 : f32
      %37 = vector.broadcast %cst_30 : f32 to vector<256x1xf32>
      %38 = arith.mulf %36, %37 : vector<256x1xf32>
      %39 = arith.mulf %34, %34 : vector<256x256xf32>
      %cst_31 = arith.constant dense<0.000000e+00> : vector<256xf32>
      %40 = vector.multi_reduction <add>, %39, %cst_31 [1] : vector<256x256xf32> to vector<256xf32>
      %41 = vector.shape_cast %40 : vector<256xf32> to vector<256x1xf32>
      %cst_32 = arith.constant 3.906250e-03 : f32
      %42 = vector.broadcast %cst_32 : f32 to vector<256x1xf32>
      %43 = arith.mulf %41, %42 : vector<256x1xf32>
      %44 = arith.mulf %38, %38 : vector<256x1xf32>
      %45 = arith.subf %43, %44 : vector<256x1xf32>
      %cst_33 = arith.constant 0.000000e+00 : f32
      %46 = vector.broadcast %cst_33 : f32 to vector<256x1xf32>
      %47 = arith.maximumf %45, %46 : vector<256x1xf32>
      %48 = vector.broadcast %38 : vector<256x1xf32> to vector<256x256xf32>
      %49 = arith.subf %34, %48 : vector<256x256xf32>
      %cst_34 = arith.constant 9.99999997E-7 : f32
      %50 = vector.broadcast %cst_34 : f32 to vector<256x1xf32>
      %51 = arith.addf %47, %50 : vector<256x1xf32>
      %52 = math.rsqrt %51 : vector<256x1xf32>
      %53 = vector.broadcast %52 : vector<256x1xf32> to vector<256x256xf32>
      %54 = arith.mulf %49, %53 : vector<256x256xf32>
      %55 = vector.broadcast %15 : vector<1x256xf32> to vector<256x256xf32>
      %56 = arith.mulf %54, %55 : vector<256x256xf32>
      %57 = vector.broadcast %16 : vector<1x256xf32> to vector<256x256xf32>
      %58 = arith.addf %56, %57 : vector<256x256xf32>
      %c0_35 = arith.constant 0 : index
      %c0_36 = arith.constant 0 : index
      %59 = vector.load %arg6[%c0_35, %c0_36] : memref<256x256xf32, #tpu.memory_space<vmem>>, vector<256x256xf32>
      tpu.vector_store %arg6[%c0_35, %c0_36], %58 {strides = array<i32>} : memref<256x256xf32, #tpu.memory_space<vmem>>, vector<256x256xf32>,
    } else {
    }
    return
  }
  func.func @transform_0(%arg0: i32, %arg1: i32) -> (i32, i32) {
    %c0_i32 = arith.constant 0 : i32
    return %arg0, %arg1 : i32, i32
  }
  func.func @transform_1(%arg0: i32, %arg1: i32) -> (i32, i32) {
    %c0_i32 = arith.constant 0 : i32
    %c0_i32_0 = arith.constant 0 : i32
    %c0_i32_1 = arith.constant 0 : i32
    return %c0_i32, %c0_i32_0 : i32, i32
  }
  func.func @transform_2(%arg0: i32, %arg1: i32) -> (i32, i32) {
    %c0_i32 = arith.constant 0 : i32
    %c0_i32_0 = arith.constant 0 : i32
    %c0_i32_1 = arith.constant 0 : i32
    return %c0_i32, %c0_i32_0 : i32, i32
  }
  func.func @transform_3(%arg0: i32, %arg1: i32) -> (i32, i32) {
    %c0_i32 = arith.constant 0 : i32
    %c0_i32_0 = arith.constant 0 : i32
    %c0_i32_1 = arith.constant 0 : i32
    return %c0_i32, %c0_i32_0 : i32, i32
  }
  func.func @transform_4(%arg0: i32, %arg1: i32) -> (i32, i32) {
    %c0_i32 = arith.constant 0 : i32
    %c0_i32_0 = arith.constant 0 : i32
    return %arg0, %c0_i32 : i32, i32
  }
}

module attributes {stable_mosaic.version = 11 : i64} {
  func.func @gated_linear_kernel(%arg0: i32, %arg1: i32, %arg2: memref<256x256xf32, #tpu.memory_space<vmem>>, %arg3: memref<256x256xbf16, #tpu.memory_space<vmem>>, %arg4: memref<256x256xbf16, #tpu.memory_space<vmem>>, %arg5: memref<4x256xf32, #tpu.memory_space<vmem>>, %arg6: memref<256x256xf32, #tpu.memory_space<vmem>>, %arg7: memref<256x256xf32, #tpu.memory_space<vmem>>) attributes {dimension_semantics = [#tpu.dimension_semantics<parallel>, #tpu.dimension_semantics<arbitrary>], iteration_bounds = array<i64: 2, 1>, scalar_prefetch = 0 : i64, scratch_operands = 1 : i64, tpu.core_type = #tpu.core_type<tc>, window_params = [{transform_indices = @transform_0, window_bounds = array<i64: 256, 256>}, {pipeline_mode = #tpu.pipeline_mode<synchronous>, transform_indices = @transform_1, window_bounds = array<i64: 256, 256>}, {pipeline_mode = #tpu.pipeline_mode<synchronous>, transform_indices = @transform_2, window_bounds = array<i64: 256, 256>}, {pipeline_mode = #tpu.pipeline_mode<synchronous>, transform_indices = @transform_3, window_bounds = array<i64: 4, 256>}, {transform_indices = @transform_4, window_bounds = array<i64: 256, 256>}]} {
    %c0_i32 = arith.constant 0 : i32
    %0 = arith.cmpi eq, %arg1, %c0_i32 : i32
    %1 = arith.extui %0 : i1 to i32
    %c0_i32_0 = arith.constant 0 : i32
    %2 = arith.cmpi ne, %1, %c0_i32_0 : i32
    scf.if %2 {
      %cst_10 = arith.constant 0.000000e+00 : f32
      %13 = vector.broadcast %cst_10 : f32 to vector<256x256xf32>
      %c0_11 = arith.constant 0 : index
      %c0_12 = arith.constant 0 : index
      %14 = vector.load %arg7[%c0_11, %c0_12] : memref<256x256xf32, #tpu.memory_space<vmem>>, vector<256x256xf32>
      tpu.vector_store %arg7[%c0_11, %c0_12], %13 {strides = array<i32>} : memref<256x256xf32, #tpu.memory_space<vmem>>, vector<256x256xf32>,
    } else {
    }
    %c0 = arith.constant 0 : index
    %c0_1 = arith.constant 0 : index
    %3 = vector.load %arg7[%c0, %c0_1] : memref<256x256xf32, #tpu.memory_space<vmem>>, vector<256x256xf32>
    %c0_2 = arith.constant 0 : index
    %c0_3 = arith.constant 0 : index
    %4 = vector.load %arg2[%c0_2, %c0_3] : memref<256x256xf32, #tpu.memory_space<vmem>>, vector<256x256xf32>
    %5 = arith.truncf %4 : vector<256x256xf32> to vector<256x256xbf16>
    %c0_4 = arith.constant 0 : index
    %c0_5 = arith.constant 0 : index
    %6 = vector.load %arg3[%c0_4, %c0_5] : memref<256x256xbf16, #tpu.memory_space<vmem>>, vector<256x256xbf16>
    %cst = arith.constant dense<0.000000e+00> : vector<256x256xf32>
    %7 = tpu.matmul %5, %6, %cst {dimension_numbers = #tpu.dot_dimension_numbers<[1], [0], [0], [1], [0, 0, 1, 1], [], []>} : vector<256x256xbf16>, vector<256x256xbf16>, vector<256x256xf32> -> vector<256x256xf32>
    %8 = arith.addf %3, %7 : vector<256x256xf32>
    %c0_6 = arith.constant 0 : index
    %c0_7 = arith.constant 0 : index
    %9 = vector.load %arg7[%c0_6, %c0_7] : memref<256x256xf32, #tpu.memory_space<vmem>>, vector<256x256xf32>
    tpu.vector_store %arg7[%c0_6, %c0_7], %8 {strides = array<i32>} : memref<256x256xf32, #tpu.memory_space<vmem>>, vector<256x256xf32>,
    %c0_i32_8 = arith.constant 0 : i32
    %10 = arith.cmpi eq, %arg1, %c0_i32_8 : i32
    %11 = arith.extui %10 : i1 to i32
    %c0_i32_9 = arith.constant 0 : i32
    %12 = arith.cmpi ne, %11, %c0_i32_9 : i32
    scf.if %12 {
      %c0_10 = arith.constant 0 : index
      %c0_11 = arith.constant 0 : index
      %13 = vector.load %arg5[%c0_10, %c0_11] : memref<4x256xf32, #tpu.memory_space<vmem>>, vector<1x256xf32>
      %c1 = arith.constant 1 : index
      %c0_12 = arith.constant 0 : index
      %14 = vector.load %arg5[%c1, %c0_12] : memref<4x256xf32, #tpu.memory_space<vmem>>, vector<1x256xf32>
      %c2 = arith.constant 2 : index
      %c0_13 = arith.constant 0 : index
      %15 = vector.load %arg5[%c2, %c0_13] : memref<4x256xf32, #tpu.memory_space<vmem>>, vector<1x256xf32>
      %c3 = arith.constant 3 : index
      %c0_14 = arith.constant 0 : index
      %16 = vector.load %arg5[%c3, %c0_14] : memref<4x256xf32, #tpu.memory_space<vmem>>, vector<1x256xf32>
      %c0_15 = arith.constant 0 : index
      %c0_16 = arith.constant 0 : index
      %17 = vector.load %arg7[%c0_15, %c0_16] : memref<256x256xf32, #tpu.memory_space<vmem>>, vector<256x256xf32>
      %18 = vector.broadcast %13 : vector<1x256xf32> to vector<256x256xf32>
      %19 = arith.addf %17, %18 : vector<256x256xf32>
      %c0_17 = arith.constant 0 : index
      %c0_18 = arith.constant 0 : index
      %20 = vector.load %arg7[%c0_17, %c0_18] : memref<256x256xf32, #tpu.memory_space<vmem>>, vector<256x256xf32>
      tpu.vector_store %arg7[%c0_17, %c0_18], %19 {strides = array<i32>} : memref<256x256xf32, #tpu.memory_space<vmem>>, vector<256x256xf32>,
      %c0_19 = arith.constant 0 : index
      %c0_20 = arith.constant 0 : index
      %21 = vector.load %arg7[%c0_19, %c0_20] : memref<256x256xf32, #tpu.memory_space<vmem>>, vector<256x256xf32>
      %22 = arith.truncf %21 : vector<256x256xf32> to vector<256x256xbf16>
      %c0_21 = arith.constant 0 : index
      %c0_22 = arith.constant 0 : index
      %23 = vector.load %arg4[%c0_21, %c0_22] : memref<256x256xbf16, #tpu.memory_space<vmem>>, vector<256x256xbf16>
      %cst_23 = arith.constant dense<0.000000e+00> : vector<256x256xf32>
      %24 = tpu.matmul %22, %23, %cst_23 {dimension_numbers = #tpu.dot_dimension_numbers<[1], [0], [0], [1], [0, 0, 1, 1], [], []>} : vector<256x256xbf16>, vector<256x256xbf16>, vector<256x256xf32> -> vector<256x256xf32>
      %25 = vector.broadcast %14 : vector<1x256xf32> to vector<256x256xf32>
      %26 = arith.addf %24, %25 : vector<256x256xf32>
      %27 = arith.negf %26 : vector<256x256xf32>
      %28 = math.exp %27 : vector<256x256xf32>
      %cst_24 = arith.constant 1.000000e+00 : f32
      %29 = vector.broadcast %cst_24 : f32 to vector<256x256xf32>
      %30 = arith.addf %29, %28 : vector<256x256xf32>
      %31 = arith.divf %29, %30 : vector<256x256xf32>
      %32 = arith.mulf %21, %31 : vector<256x256xf32>
      %c0_25 = arith.constant 0 : index
      %c0_26 = arith.constant 0 : index
      %33 = vector.load %arg7[%c0_25, %c0_26] : memref<256x256xf32, #tpu.memory_space<vmem>>, vector<256x256xf32>
      tpu.vector_store %arg7[%c0_25, %c0_26], %32 {strides = array<i32>} : memref<256x256xf32, #tpu.memory_space<vmem>>, vector<256x256xf32>,
      %c0_27 = arith.constant 0 : index
      %c0_28 = arith.constant 0 : index
      %34 = vector.load %arg7[%c0_27, %c0_28] : memref<256x256xf32, #tpu.memory_space<vmem>>, vector<256x256xf32>
      %cst_29 = arith.constant dense<0.000000e+00> : vector<256xf32>
      %35 = vector.multi_reduction <add>, %34, %cst_29 [1] : vector<256x256xf32> to vector<256xf32>
      %36 = vector.shape_cast %35 : vector<256xf32> to vector<256x1xf32>
      %cst_30 = arith.constant 3.906250e-03 : f32
      %37 = vector.broadcast %cst_30 : f32 to vector<256x1xf32>
      %38 = arith.mulf %36, %37 : vector<256x1xf32>
      %39 = arith.mulf %34, %34 : vector<256x256xf32>
      %cst_31 = arith.constant dense<0.000000e+00> : vector<256xf32>
      %40 = vector.multi_reduction <add>, %39, %cst_31 [1] : vector<256x256xf32> to vector<256xf32>
      %41 = vector.shape_cast %40 : vector<256xf32> to vector<256x1xf32>
      %cst_32 = arith.constant 3.906250e-03 : f32
      %42 = vector.broadcast %cst_32 : f32 to vector<256x1xf32>
      %43 = arith.mulf %41, %42 : vector<256x1xf32>
      %44 = arith.mulf %38, %38 : vector<256x1xf32>
      %45 = arith.subf %43, %44 : vector<256x1xf32>
      %cst_33 = arith.constant 0.000000e+00 : f32
      %46 = vector.broadcast %cst_33 : f32 to vector<256x1xf32>
      %47 = arith.maximumf %45, %46 : vector<256x1xf32>
      %48 = vector.broadcast %38 : vector<256x1xf32> to vector<256x256xf32>
      %49 = arith.subf %34, %48 : vector<256x256xf32>
      %cst_34 = arith.constant 9.99999997E-7 : f32
      %50 = vector.broadcast %cst_34 : f32 to vector<256x1xf32>
      %51 = arith.addf %47, %50 : vector<256x1xf32>
      %52 = math.rsqrt %51 : vector<256x1xf32>
      %53 = vector.broadcast %52 : vector<256x1xf32> to vector<256x256xf32>
      %54 = arith.mulf %49, %53 : vector<256x256xf32>
      %55 = vector.broadcast %15 : vector<1x256xf32> to vector<256x256xf32>
      %56 = arith.mulf %54, %55 : vector<256x256xf32>
      %57 = vector.broadcast %16 : vector<1x256xf32> to vector<256x256xf32>
      %58 = arith.addf %56, %57 : vector<256x256xf32>
      %c0_35 = arith.constant 0 : index
      %c0_36 = arith.constant 0 : index
      %59 = vector.load %arg6[%c0_35, %c0_36] : memref<256x256xf32, #tpu.memory_space<vmem>>, vector<256x256xf32>
      tpu.vector_store %arg6[%c0_35, %c0_36], %58 {strides = array<i32>} : memref<256x256xf32, #tpu.memory_space<vmem>>, vector<256x256xf32>,
    } else {
    }
    return
  }
  func.func @transform_0(%arg0: i32, %arg1: i32) -> (i32, i32) {
    %c0_i32 = arith.constant 0 : i32
    return %arg0, %arg1 : i32, i32
  }
  func.func @transform_1(%arg0: i32, %arg1: i32) -> (i32, i32) {
    %c0_i32 = arith.constant 0 : i32
    %c0_i32_0 = arith.constant 0 : i32
    %c0_i32_1 = arith.constant 0 : i32
    return %c0_i32, %c0_i32_0 : i32, i32
  }
  func.func @transform_2(%arg0: i32, %arg1: i32) -> (i32, i32) {
    %c0_i32 = arith.constant 0 : i32
    %c0_i32_0 = arith.constant 0 : i32
    %c0_i32_1 = arith.constant 0 : i32
    return %c0_i32, %c0_i32_0 : i32, i32
  }
  func.func @transform_3(%arg0: i32, %arg1: i32) -> (i32, i32) {
    %c0_i32 = arith.constant 0 : i32
    %c0_i32_0 = arith.constant 0 : i32
    %c0_i32_1 = arith.constant 0 : i32
    return %c0_i32, %c0_i32_0 : i32, i32
  }
  func.func @transform_4(%arg0: i32, %arg1: i32) -> (i32, i32) {
    %c0_i32 = arith.constant 0 : i32
    %c0_i32_0 = arith.constant 0 : i32
    return %arg0, %c0_i32 : i32, i32
  }
}

</mosaic_0001>

<llo_original>
// kernel: tpu_custom_call.1
$region0: #{tpu_custom_call.1}
  #allocation0 [shape = 'u32[]', space=smem, size = 0x4, offset = 0x4, fixed_abs, tag = 'smem constant byte address 0x4 - core index']
  #allocation1 [shape = 'u32[72,128]{1,0:T(1,128)}', space=vmem, size = 0x9000, scoped, tag = 'internal scratch']
  #allocation2 [shape = 'f32[256,256]{1,0:T(8,128)}', space=vmem, size = 0x40000, scoped, tag = 'scratch operand']
  %s0 = inlined_call_operand.hbm [shape: f32[512,256], index: 0, kind: input, shape index: {}]
  %s1 = inlined_call_operand.hbm [shape: bf16[256,256], index: 1, kind: input, shape index: {}]
  %s2 = inlined_call_operand.hbm [shape: bf16[256,256], index: 2, kind: input, shape index: {}]
  %s3 = inlined_call_operand.hbm [shape: f32[4,256], index: 3, kind: input, shape index: {}]
  %s4 = inlined_call_operand.hbm [shape: f32[512,256], index: 4, kind: output, shape index: {}]
  %s5 = sld [smem:[#allocation0]]
  $region73: #{tpu_custom_call.1} parent=0
    _
  %s7 = ssub.s32 1, %s5
  %s8 = scalar_select 0, %s7, %s5
  $region1: #{tpu_custom_call.1} parent=0
    #allocation3 [shape = 'u8[524288]{0}', space=vmem, size = 0x80000, scoped, tag = 'input window, operand 0']
    #allocation4 [shape = 's32[2]{0}', space=sflag, size = 0x8, scoped, tag = 'scoped memory for tpu_custom_call.1']
    #allocation5 [shape = 's32[2]{0}', space=sflag, size = 0x8, scoped, tag = 'scoped memory for tpu_custom_call.1']
    #allocation6 [shape = 'u8[131072]{0}', space=vmem, size = 0x20000, scoped, tag = 'input window, operand 1, single buffered']
    #allocation7 [shape = 's32[1]{0}', space=sflag, size = 0x4, scoped, tag = 'scoped memory for tpu_custom_call.1']
    #allocation8 [shape = 'u8[131072]{0}', space=vmem, size = 0x20000, scoped, tag = 'input window, operand 2, single buffered']
    #allocation9 [shape = 'u8[4096]{0}', space=vmem, size = 0x1000, scoped, tag = 'input window, operand 3, single buffered']
    #allocation10 [shape = 's32[1]{0}', space=sflag, size = 0x4, scoped, tag = 'scoped memory for tpu_custom_call.1']
    #allocation11 [shape = 'u8[524288]{0}', space=vmem, size = 0x80000, scoped, tag = 'output window, operand 0']
    %9 = vsyncpa [#allocation4], 0
    %s10 = scalar_lea.sflag [#allocation4], 1
    %11 = vsyncpa %s10, 0
    %12 = vsyncpa [#allocation7], 0
    %13 = vsyncpa [#allocation10], 0
    %14 = vsyncpa [#allocation5], 0
    %s15 = scalar_lea.sflag [#allocation5], 1
    %16 = vsyncpa %s15, 0
    loop: start=0, step=1, limit=4
    $region2: #{tpu_custom_call.1} parent=1 // loop_pre_header
      _
    $region3: #{tpu_custom_call.1} parent=1 // loop_header
      %s18 = sphi 0, %s22
      %p19 = scmp.ge.s32.totalorder %s18, 4
      %s25 = sphi 0, %s37
      %s26 = sphi 0, %s33
      %s27 = sphi 0, %s25
      %s28 = sphi 0, %s26
      %s29 = sphi 0, %s27
      %s30 = sphi 0, %s28
      %s42 = sphi 0, %s44
      %s45 = sphi 0, %s42
      %s46 = sphi 0, %s45
      %s62 = sphi 0, %s46
      %s66 = sphi 0, %s66
      %s68 = sphi 0, %s66
      %s69 = sphi 0, %s68
      %s83 = sphi 0, %s69
      %s87 = sphi 0, %s87
      %s89 = sphi 0, %s87
      %s90 = sphi 0, %s89
      %s104 = sphi 0, %s90
      %s108 = sphi 0, %s108
      %s110 = sphi 0, %s108
      %s111 = sphi 0, %s110
      %s125 = sphi 0, %s111
      %s131 = sphi 0, %s133
      %s134 = sphi 0, %s131
      %s135 = sphi 0, %s134
      %s151 = sphi 0, %s135
    $region4: #{tpu_custom_call.1} parent=1 // loop_header_branch
      %21 = sbr.rel (%p19) target = $region8
    $region5: #{tpu_custom_call.1} parent=1 // loop_body
      %s23 = ssub.s32 %s18, 1
      %s24 = ssub.s32 %s18, 2
      %s31 = sadd.s32 1, %s26
      %p32 = scmp.ge.s32.totalorder %s31, 1
      %s33 = scalar_select %p32, 0, %s31
      %s34 = sadd.s32 1, %s25
      %s35 = scalar_select %p32, %s34, %s25
      %p36 = scmp.ge.s32.totalorder %s35, 2
      %s37 = scalar_select %p36, 0, %s35
      %s38 = ssub.s32 %s25, %s37
      %s39 = ssub.s32 %s26, %s33
      %s40 = sor.u32 %s38, %s39
      %p41 = scmp.eq.s32.totalorder %s40, 0
      %s43 = sadd.s32 %s42, 1
      %s44 = scalar_select %p41, %s42, %s43
      %p47 = pneg %p41
      %p48 = scmp.eq.s32.totalorder %s18, 1
      %p49 = por %p47, %p48
      %p50 = scmp.ne.s32.totalorder %s42, %s45
      %p51 = scmp.eq.s32.totalorder %s18, 0
      %p52 = por %p50, %p51
      %p53 = scmp.ne.s32.totalorder %s42, %s45
      %p54 = scmp.eq.s32.totalorder %s23, 1
      %p55 = por %p53, %p54
      %p56 = scmp.ne.s32.totalorder %s45, %s46
      %p57 = scmp.eq.s32.totalorder %s23, 0
      %p58 = por %p56, %p57
      %p59 = scmp.ne.s32.totalorder %s45, %s46
      %p60 = scmp.eq.s32.totalorder %s24, 1
      %p61 = por %p59, %p60
      %p63 = scmp.ne.s32.totalorder %s46, %s62
      %p64 = scmp.eq.s32.totalorder %s24, 0
      %p65 = por %p63, %p64
      %s67 = sadd.s32 %s66, 1
      %p70 = scmp.eq.s32.totalorder %s18, 1
      %p71 = scmp.ne.s32.totalorder %s66, %s68
      %p72 = scmp.eq.s32.totalorder %s18, 0
      %p73 = por %p71, %p72
      %p74 = scmp.ne.s32.totalorder %s66, %s68
      %p75 = scmp.eq.s32.totalorder %s23, 1
      %p76 = por %p74, %p75
      %p77 = scmp.ne.s32.totalorder %s68, %s69
      %p78 = scmp.eq.s32.totalorder %s23, 0
      %p79 = por %p77, %p78
      %p80 = scmp.ne.s32.totalorder %s68, %s69
      %p81 = scmp.eq.s32.totalorder %s24, 1
      %p82 = por %p80, %p81
      %p84 = scmp.ne.s32.totalorder %s69, %s83
      %p85 = scmp.eq.s32.totalorder %s24, 0
      %p86 = por %p84, %p85
      %s88 = sadd.s32 %s87, 1
      %p91 = scmp.eq.s32.totalorder %s18, 1
      %p92 = scmp.ne.s32.totalorder %s87, %s89
      %p93 = scmp.eq.s32.totalorder %s18, 0
      %p94 = por %p92, %p93
      %p95 = scmp.ne.s32.totalorder %s87, %s89
      %p96 = scmp.eq.s32.totalorder %s23, 1
      %p97 = por %p95, %p96
      %p98 = scmp.ne.s32.totalorder %s89, %s90
      %p99 = scmp.eq.s32.totalorder %s23, 0
      %p100 = por %p98, %p99
      %p101 = scmp.ne.s32.totalorder %s89, %s90
      %p102 = scmp.eq.s32.totalorder %s24, 1
      %p103 = por %p101, %p102
      %p105 = scmp.ne.s32.totalorder %s90, %s104
      %p106 = scmp.eq.s32.totalorder %s24, 0
      %p107 = por %p105, %p106
      %s109 = sadd.s32 %s108, 1
      %p112 = scmp.eq.s32.totalorder %s18, 1
      %p113 = scmp.ne.s32.totalorder %s108, %s110
      %p114 = scmp.eq.s32.totalorder %s18, 0
      %p115 = por %p113, %p114
      %p116 = scmp.ne.s32.totalorder %s108, %s110
      %p117 = scmp.eq.s32.totalorder %s23, 1
      %p118 = por %p116, %p117
      %p119 = scmp.ne.s32.totalorder %s110, %s111
      %p120 = scmp.eq.s32.totalorder %s23, 0
      %p121 = por %p119, %p120
      %p122 = scmp.ne.s32.totalorder %s110, %s111
      %p123 = scmp.eq.s32.totalorder %s24, 1
      %p124 = por %p122, %p123
      %p126 = scmp.ne.s32.totalorder %s111, %s125
      %p127 = scmp.eq.s32.totalorder %s24, 0
      %p128 = por %p126, %p127
      %s129 = ssub.s32 %s25, %s37
      %p130 = scmp.eq.s32.totalorder %s129, 0
      %s132 = sadd.s32 %s131, 1
      %s133 = scalar_select %p130, %s131, %s132
      %p136 = pneg %p130
      %p137 = scmp.eq.s32.totalorder %s18, 1
      %p138 = por %p136, %p137
      %p139 = scmp.ne.s32.totalorder %s131, %s134
      %p140 = scmp.eq.s32.totalorder %s18, 0
      %p141 = por %p139, %p140
      %p142 = scmp.ne.s32.totalorder %s131, %s134
      %p143 = scmp.eq.s32.totalorder %s23, 1
      %p144 = por %p142, %p143
      %p145 = scmp.ne.s32.totalorder %s134, %s135
      %p146 = scmp.eq.s32.totalorder %s23, 0
      %p147 = por %p145, %p146
      %p148 = scmp.ne.s32.totalorder %s134, %s135
      %p149 = scmp.eq.s32.totalorder %s24, 1
      %p150 = por %p148, %p149
      %p152 = scmp.ne.s32.totalorder %s135, %s151
      %p153 = scmp.eq.s32.totalorder %s24, 0
      %p154 = por %p152, %p153
      %p155 = scmp.le.s32.totalorder 1, %s18
      %p156 = scmp.lt.s32.totalorder %s18, 3
      %p157 = pnand %p155, %p156
      %p158 = pneg %p157
      // Predicated region
      $region9: #{tpu_custom_call.1} parent=5 // pred_check
        _
      $region10: #{tpu_custom_call.1} parent=5 // pred_check_branch
        %160 = sbr.rel (%p157) target = $region12
      $region11: #{tpu_custom_call.1} parent=5 // pred_region
        %s161 = ssub.s32 %s18, 1
        // Predicated region
        $region13: #{tpu_custom_call.1} parent=11 // pred_check
          %p162 = pneg %p79
        $region14: #{tpu_custom_call.1} parent=11 // pred_check_branch
          %164 = sbr.rel (%p162) target = $region16
        $region15: #{tpu_custom_call.1} parent=11 // pred_region
          %166 = vsyncadd [#allocation7], 0
          %s167 = sshll.u32 %s1, 4
          %s168 = int_to_ptr.hbm [resolvable:$true] %s167
          %s169 = sshll.u32 [#allocation6], 4
          %s170 = int_to_ptr.vmem [resolvable:$true] %s169
          %175 = dma.hbm_to_vmem [thread:$0]  %s168, 4096, %s170, [#allocation7], 128, 128, 8
        $region16: #{tpu_custom_call.1} parent=11 // pred_fallthru
          _
        // Predicated region
        $region17: #{tpu_custom_call.1} parent=11 // pred_check
          %p176 = pneg %p100
        $region18: #{tpu_custom_call.1} parent=11 // pred_check_branch
          %178 = sbr.rel (%p176) target = $region20
        $region19: #{tpu_custom_call.1} parent=11 // pred_region
          %180 = vsyncadd [#allocation7], 0
          %s181 = sshll.u32 %s2, 4
          %s182 = int_to_ptr.hbm [resolvable:$true] %s181
          %s183 = sshll.u32 [#allocation8], 4
          %s184 = int_to_ptr.vmem [resolvable:$true] %s183
          %189 = dma.hbm_to_vmem [thread:$0]  %s182, 4096, %s184, [#allocation7], 128, 128, 8
        $region20: #{tpu_custom_call.1} parent=11 // pred_fallthru
          _
        // Predicated region
        $region21: #{tpu_custom_call.1} parent=11 // pred_check
          %p190 = pneg %p121
        $region22: #{tpu_custom_call.1} parent=11 // pred_check_branch
          %192 = sbr.rel (%p190) target = $region24
        $region23: #{tpu_custom_call.1} parent=11 // pred_region
          %194 = vsyncadd [#allocation10], 0
          %s196 = sshll.u32 %s3, 4
          %s197 = int_to_ptr.hbm [resolvable:$true] %s196
          %s198 = sshll.u32 [#allocation9], 4
          %s199 = int_to_ptr.vmem [resolvable:$true] %s198
          %201 = dma.hbm_to_vmem [thread:$0]  %s197, 128, %s199, [#allocation10]
        $region24: #{tpu_custom_call.1} parent=11 // pred_fallthru
          _
      $region12: #{tpu_custom_call.1} parent=5 // pred_fallthru
        _
      %p202 = scmp.lt.s32.totalorder %s18, 2
      // Predicated region
      $region25: #{tpu_custom_call.1} parent=5 // pred_check
        %p203 = pneg %p202
      $region26: #{tpu_custom_call.1} parent=5 // pred_check_branch
        %205 = sbr.rel (%p203) target = $region28
      $region27: #{tpu_custom_call.1} parent=5 // pred_region
        // Predicated region
        $region29: #{tpu_custom_call.1} parent=27 // pred_check
          %p206 = pneg %p52
        $region30: #{tpu_custom_call.1} parent=27 // pred_check_branch
          %208 = sbr.rel (%p206) target = $region32
        $region31: #{tpu_custom_call.1} parent=27 // pred_region
          %s209 = sand.u32 %s42, 1
          %s210 = scalar_lea.sflag [#allocation4], %s209
          %s211 = sand.u32 %s42, 1
          %s212 = smul.addr %s211, 512
          %s213 = scalar_lea.vmem [#allocation3], %s212
          %s214 = smul.u32 32, %s25
          %s215 = smul.u32 2, %s26
          %217 = vsyncadd %s210, 0
          %s218 = smul.addr %s214, 2
          %s219 = sadd.s32 %s215, %s218
          %s220 = smul.addr %s219, 8
          %s221 = scalar_lea.hbm %s0, %s220
          %s222 = sshll.u32 %s221, 4
          %s223 = int_to_ptr.hbm [resolvable:$true] %s222
          %s224 = sshll.u32 %s213, 4
          %s225 = int_to_ptr.vmem [resolvable:$true] %s224
          %230 = dma.hbm_to_vmem [thread:$0]  %s223, 8192, %s225, %s210, 256, 256, 16
        $region32: #{tpu_custom_call.1} parent=27 // pred_fallthru
          _
      $region28: #{tpu_custom_call.1} parent=5 // pred_fallthru
        _
      %p231 = scmp.le.s32.totalorder 1, %s18
      %p232 = scmp.lt.s32.totalorder %s18, 3
      %p233 = pnand %p231, %p232
      %p234 = pneg %p233
      // Predicated region
      $region33: #{tpu_custom_call.1} parent=5 // pred_check
        _
      $region34: #{tpu_custom_call.1} parent=5 // pred_check_branch
        %236 = sbr.rel (%p233) target = $region36
      $region35: #{tpu_custom_call.1} parent=5 // pred_region
        %s237 = ssub.s32 %s18, 1
        %s238 = sand.u32 %s45, 1
        %s239 = scalar_lea.sflag [#allocation4], %s238
        %s240 = sand.u32 %s45, 1
        %s241 = smul.addr %s240, 512
        %s242 = scalar_lea.vmem [#allocation3], %s241
        // Predicated region
        $region37: #{tpu_custom_call.1} parent=35 // pred_check
          %p243 = pneg %p58
        $region38: #{tpu_custom_call.1} parent=35 // pred_check_branch
          %245 = sbr.rel (%p243) target = $region40
        $region39: #{tpu_custom_call.1} parent=35 // pred_region
          %247 = dma.done %s239, 8192
        $region40: #{tpu_custom_call.1} parent=35 // pred_fallthru
          _
        // Predicated region
        $region41: #{tpu_custom_call.1} parent=35 // pred_check
          %p248 = pneg %p79
        $region42: #{tpu_custom_call.1} parent=35 // pred_check_branch
          %250 = sbr.rel (%p248) target = $region44
        $region43: #{tpu_custom_call.1} parent=35 // pred_region
          %252 = dma.done [#allocation7], 4096
        $region44: #{tpu_custom_call.1} parent=35 // pred_fallthru
          _
        // Predicated region
        $region45: #{tpu_custom_call.1} parent=35 // pred_check
          %p253 = pneg %p100
        $region46: #{tpu_custom_call.1} parent=35 // pred_check_branch
          %255 = sbr.rel (%p253) target = $region48
        $region47: #{tpu_custom_call.1} parent=35 // pred_region
          %257 = dma.done [#allocation7], 4096
        $region48: #{tpu_custom_call.1} parent=35 // pred_fallthru
          _
        // Predicated region
        $region49: #{tpu_custom_call.1} parent=35 // pred_check
          %p258 = pneg %p121
        $region50: #{tpu_custom_call.1} parent=35 // pred_check_branch
          %260 = sbr.rel (%p258) target = $region52
        $region51: #{tpu_custom_call.1} parent=35 // pred_region
          %262 = dma.done [#allocation10], 128
        $region52: #{tpu_custom_call.1} parent=35 // pred_fallthru
          _
        %s263 = sand.u32 %s45, 1
        %s264 = scalar_lea.sflag [#allocation4], %s263
        %s265 = sand.u32 %s45, 1
        %s266 = smul.addr %s265, 512
        %s267 = scalar_lea.vmem [#allocation3], %s266
        %p268 = pneg %p58
        %p269 = pneg %p55
        %p270 = pneg %p79
        %p271 = pneg %p76
        %p272 = pneg %p100
        %p273 = pneg %p97
        %p274 = pneg %p121
        %p275 = pneg %p118
        %p276 = pneg %p147
        %p277 = pneg %p144
        %s278 = sand.u32 %s134, 1
        %s279 = scalar_lea.sflag [#allocation5], %s278
        %s280 = sand.u32 %s134, 1
        %s281 = smul.addr %s280, 512
        %s282 = scalar_lea.vmem [#allocation11], %s281
        %s283 = smul.u32 32, %s27
        %s284 = smul.u32 2, %s28
        %s285 = smul.u32 32, %s27
        %p286 = scmp.eq.s32.totalorder %s28, 0
        // Predicated region
        $region53: #{tpu_custom_call.1} parent=35 // pred_check
          %p287 = pneg %p286
        $region54: #{tpu_custom_call.1} parent=35 // pred_check_branch
          %289 = sbr.rel (%p287) target = $region56
        $region55: #{tpu_custom_call.1} parent=35 // pred_region
          %290 = vst [vmem:[#allocation2] sm:$0xff] 0.0
          %291 = vst [vmem:[#allocation2 + $0x8] sm:$0xff] 0.0
          %292 = vst [vmem:[#allocation2 + $0x10] sm:$0xff] 0.0
          %293 = vst [vmem:[#allocation2 + $0x18] sm:$0xff] 0.0
          %294 = vst [vmem:[#allocation2 + $0x20] sm:$0xff] 0.0
          %295 = vst [vmem:[#allocation2 + $0x28] sm:$0xff] 0.0
          %296 = vst [vmem:[#allocation2 + $0x30] sm:$0xff] 0.0
          %297 = vst [vmem:[#allocation2 + $0x38] sm:$0xff] 0.0
          %298 = vst [vmem:[#allocation2 + $0x40] sm:$0xff] 0.0
          %299 = vst [vmem:[#allocation2 + $0x48] sm:$0xff] 0.0
          %300 = vst [vmem:[#allocation2 + $0x50] sm:$0xff] 0.0
          %301 = vst [vmem:[#allocation2 + $0x58] sm:$0xff] 0.0
          %302 = vst [vmem:[#allocation2 + $0x60] sm:$0xff] 0.0
          %303 = vst [vmem:[#allocation2 + $0x68] sm:$0xff] 0.0
          %304 = vst [vmem:[#allocation2 + $0x70] sm:$0xff] 0.0
          %305 = vst [vmem:[#allocation2 + $0x78] sm:$0xff] 0.0
          %306 = vst [vmem:[#allocation2 + $0x80] sm:$0xff] 0.0
          %307 = vst [vmem:[#allocation2 + $0x88] sm:$0xff] 0.0
          %308 = vst [vmem:[#allocation2 + $0x90] sm:$0xff] 0.0
          %309 = vst [vmem:[#allocation2 + $0x98] sm:$0xff] 0.0
          %310 = vst [vmem:[#allocation2 + $0xa0] sm:$0xff] 0.0
          %311 = vst [vmem:[#allocation2 + $0xa8] sm:$0xff] 0.0
          %312 = vst [vmem:[#allocation2 + $0xb0] sm:$0xff] 0.0
          %313 = vst [vmem:[#allocation2 + $0xb8] sm:$0xff] 0.0
          %314 = vst [vmem:[#allocation2 + $0xc0] sm:$0xff] 0.0
          %315 = vst [vmem:[#allocation2 + $0xc8] sm:$0xff] 0.0
          %316 = vst [vmem:[#allocation2 + $0xd0] sm:$0xff] 0.0
          %317 = vst [vmem:[#allocation2 + $0xd8] sm:$0xff] 0.0
          %318 = vst [vmem:[#allocation2 + $0xe0] sm:$0xff] 0.0
          %319 = vst [vmem:[#allocation2 + $0xe8] sm:$0xff] 0.0
          %320 = vst [vmem:[#allocation2 + $0xf0] sm:$0xff] 0.0
          %321 = vst [vmem:[#allocation2 + $0xf8] sm:$0xff] 0.0
          %322 = vst [vmem:[#allocation2 + $0x100] sm:$0xff] 0.0
          %323 = vst [vmem:[#allocation2 + $0x108] sm:$0xff] 0.0
          %324 = vst [vmem:[#allocation2 + $0x110] sm:$0xff] 0.0
          %325 = vst [vmem:[#allocation2 + $0x118] sm:$0xff] 0.0
          %326 = vst [vmem:[#allocation2 + $0x120] sm:$0xff] 0.0
          %327 = vst [vmem:[#allocation2 + $0x128] sm:$0xff] 0.0
          %328 = vst [vmem:[#allocation2 + $0x130] sm:$0xff] 0.0
          %329 = vst [vmem:[#allocation2 + $0x138] sm:$0xff] 0.0
          %330 = vst [vmem:[#allocation2 + $0x140] sm:$0xff] 0.0
          %331 = vst [vmem:[#allocation2 + $0x148] sm:$0xff] 0.0
          %332 = vst [vmem:[#allocation2 + $0x150] sm:$0xff] 0.0
          %333 = vst [vmem:[#allocation2 + $0x158] sm:$0xff] 0.0
          %334 = vst [vmem:[#allocation2 + $0x160] sm:$0xff] 0.0
          %335 = vst [vmem:[#allocation2 + $0x168] sm:$0xff] 0.0
          %336 = vst [vmem:[#allocation2 + $0x170] sm:$0xff] 0.0
          %337 = vst [vmem:[#allocation2 + $0x178] sm:$0xff] 0.0
          %338 = vst [vmem:[#allocation2 + $0x180] sm:$0xff] 0.0
          %339 = vst [vmem:[#allocation2 + $0x188] sm:$0xff] 0.0
          %340 = vst [vmem:[#allocation2 + $0x190] sm:$0xff] 0.0
          %341 = vst [vmem:[#allocation2 + $0x198] sm:$0xff] 0.0
          %342 = vst [vmem:[#allocation2 + $0x1a0] sm:$0xff] 0.0
          %343 = vst [vmem:[#allocation2 + $0x1a8] sm:$0xff] 0.0
          %344 = vst [vmem:[#allocation2 + $0x1b0] sm:$0xff] 0.0
          %345 = vst [vmem:[#allocation2 + $0x1b8] sm:$0xff] 0.0
          %346 = vst [vmem:[#allocation2 + $0x1c0] sm:$0xff] 0.0
          %347 = vst [vmem:[#allocation2 + $0x1c8] sm:$0xff] 0.0
          %348 = vst [vmem:[#allocation2 + $0x1d0] sm:$0xff] 0.0
          %349 = vst [vmem:[#allocation2 + $0x1d8] sm:$0xff] 0.0
          %350 = vst [vmem:[#allocation2 + $0x1e0] sm:$0xff] 0.0
          %351 = vst [vmem:[#allocation2 + $0x1e8] sm:$0xff] 0.0
          %352 = vst [vmem:[#allocation2 + $0x1f0] sm:$0xff] 0.0
          %353 = vst [vmem:[#allocation2 + $0x1f8] sm:$0xff] 0.0
        $region56: #{tpu_custom_call.1} parent=35 // pred_fallthru
          _
        %v354 = vld [vmem:[#allocation2] sm:$0xff]
        %v355 = vld [vmem:[#allocation2 + $0x8] sm:$0xff]
        %v356 = vld [vmem:[#allocation2 + $0x10] sm:$0xff]
        %v357 = vld [vmem:[#allocation2 + $0x18] sm:$0xff]
        %v358 = vld [vmem:[#allocation2 + $0x20] sm:$0xff]
        %v359 = vld [vmem:[#allocation2 + $0x28] sm:$0xff]
        %v360 = vld [vmem:[#allocation2 + $0x30] sm:$0xff]
        %v361 = vld [vmem:[#allocation2 + $0x38] sm:$0xff]
        %v362 = vld [vmem:[#allocation2 + $0x40] sm:$0xff]
        %v363 = vld [vmem:[#allocation2 + $0x48] sm:$0xff]
        %v364 = vld [vmem:[#allocation2 + $0x50] sm:$0xff]
        %v365 = vld [vmem:[#allocation2 + $0x58] sm:$0xff]
        %v366 = vld [vmem:[#allocation2 + $0x60] sm:$0xff]
        %v367 = vld [vmem:[#allocation2 + $0x68] sm:$0xff]
        %v368 = vld [vmem:[#allocation2 + $0x70] sm:$0xff]
        %v369 = vld [vmem:[#allocation2 + $0x78] sm:$0xff]
        %v370 = vld [vmem:[#allocation2 + $0x80] sm:$0xff]
        %v371 = vld [vmem:[#allocation2 + $0x88] sm:$0xff]
        %v372 = vld [vmem:[#allocation2 + $0x90] sm:$0xff]
        %v373 = vld [vmem:[#allocation2 + $0x98] sm:$0xff]
        %v374 = vld [vmem:[#allocation2 + $0xa0] sm:$0xff]
        %v375 = vld [vmem:[#allocation2 + $0xa8] sm:$0xff]
        %v376 = vld [vmem:[#allocation2 + $0xb0] sm:$0xff]
        %v377 = vld [vmem:[#allocation2 + $0xb8] sm:$0xff]
        %v378 = vld [vmem:[#allocation2 + $0xc0] sm:$0xff]
        %v379 = vld [vmem:[#allocation2 + $0xc8] sm:$0xff]
        %v380 = vld [vmem:[#allocation2 + $0xd0] sm:$0xff]
        %v381 = vld [vmem:[#allocation2 + $0xd8] sm:$0xff]
        %v382 = vld [vmem:[#allocation2 + $0xe0] sm:$0xff]
        %v383 = vld [vmem:[#allocation2 + $0xe8] sm:$0xff]
        %v384 = vld [vmem:[#allocation2 + $0xf0] sm:$0xff]
        %v385 = vld [vmem:[#allocation2 + $0xf8] sm:$0xff]
        %v386 = vld [vmem:[#allocation2 + $0x100] sm:$0xff]
        %v387 = vld [vmem:[#allocation2 + $0x108] sm:$0xff]
        %v388 = vld [vmem:[#allocation2 + $0x110] sm:$0xff]
        %v389 = vld [vmem:[#allocation2 + $0x118] sm:$0xff]
        %v390 = vld [vmem:[#allocation2 + $0x120] sm:$0xff]
        %v391 = vld [vmem:[#allocation2 + $0x128] sm:$0xff]
        %v392 = vld [vmem:[#allocation2 + $0x130] sm:$0xff]
        %v393 = vld [vmem:[#allocation2 + $0x138] sm:$0xff]
        %v394 = vld [vmem:[#allocation2 + $0x140] sm:$0xff]
        %v395 = vld [vmem:[#allocation2 + $0x148] sm:$0xff]
        %v396 = vld [vmem:[#allocation2 + $0x150] sm:$0xff]
        %v397 = vld [vmem:[#allocation2 + $0x158] sm:$0xff]
        %v398 = vld [vmem:[#allocation2 + $0x160] sm:$0xff]
        %v399 = vld [vmem:[#allocation2 + $0x168] sm:$0xff]
        %v400 = vld [vmem:[#allocation2 + $0x170] sm:$0xff]
        %v401 = vld [vmem:[#allocation2 + $0x178] sm:$0xff]
        %v402 = vld [vmem:[#allocation2 + $0x180] sm:$0xff]
        %v403 = vld [vmem:[#allocation2 + $0x188] sm:$0xff]
        %v404 = vld [vmem:[#allocation2 + $0x190] sm:$0xff]
        %v405 = vld [vmem:[#allocation2 + $0x198] sm:$0xff]
        %v406 = vld [vmem:[#allocation2 + $0x1a0] sm:$0xff]
        %v407 = vld [vmem:[#allocation2 + $0x1a8] sm:$0xff]
        %v408 = vld [vmem:[#allocation2 + $0x1b0] sm:$0xff]
        %v409 = vld [vmem:[#allocation2 + $0x1b8] sm:$0xff]
        %v410 = vld [vmem:[#allocation2 + $0x1c0] sm:$0xff]
        %v411 = vld [vmem:[#allocation2 + $0x1c8] sm:$0xff]
        %v412 = vld [vmem:[#allocation2 + $0x1d0] sm:$0xff]
        %v413 = vld [vmem:[#allocation2 + $0x1d8] sm:$0xff]
        %v414 = vld [vmem:[#allocation2 + $0x1e0] sm:$0xff]
        %v415 = vld [vmem:[#allocation2 + $0x1e8] sm:$0xff]
        %v416 = vld [vmem:[#allocation2 + $0x1f0] sm:$0xff]
        %v417 = vld [vmem:[#allocation2 + $0x1f8] sm:$0xff]
        %v418 = vld [vmem:[%s242] sm:$0xff]
        %v419 = vld [vmem:[%s242 + $0x8] sm:$0xff]
        %v420 = vld [vmem:[%s242 + $0x10] sm:$0xff]
        %v421 = vld [vmem:[%s242 + $0x18] sm:$0xff]
        %v422 = vld [vmem:[%s242 + $0x20] sm:$0xff]
        %v423 = vld [vmem:[%s242 + $0x28] sm:$0xff]
        %v424 = vld [vmem:[%s242 + $0x30] sm:$0xff]
        %v425 = vld [vmem:[%s242 + $0x38] sm:$0xff]
        %v426 = vld [vmem:[%s242 + $0x40] sm:$0xff]
        %v427 = vld [vmem:[%s242 + $0x48] sm:$0xff]
        %v428 = vld [vmem:[%s242 + $0x50] sm:$0xff]
        %v429 = vld [vmem:[%s242 + $0x58] sm:$0xff]
        %v430 = vld [vmem:[%s242 + $0x60] sm:$0xff]
        %v431 = vld [vmem:[%s242 + $0x68] sm:$0xff]
        %v432 = vld [vmem:[%s242 + $0x70] sm:$0xff]
        %v433 = vld [vmem:[%s242 + $0x78] sm:$0xff]
        %v434 = vld [vmem:[%s242 + $0x80] sm:$0xff]
        %v435 = vld [vmem:[%s242 + $0x88] sm:$0xff]
        %v436 = vld [vmem:[%s242 + $0x90] sm:$0xff]
        %v437 = vld [vmem:[%s242 + $0x98] sm:$0xff]
        %v438 = vld [vmem:[%s242 + $0xa0] sm:$0xff]
        %v439 = vld [vmem:[%s242 + $0xa8] sm:$0xff]
        %v440 = vld [vmem:[%s242 + $0xb0] sm:$0xff]
        %v441 = vld [vmem:[%s242 + $0xb8] sm:$0xff]
        %v442 = vld [vmem:[%s242 + $0xc0] sm:$0xff]
        %v443 = vld [vmem:[%s242 + $0xc8] sm:$0xff]
        %v444 = vld [vmem:[%s242 + $0xd0] sm:$0xff]
        %v445 = vld [vmem:[%s242 + $0xd8] sm:$0xff]
        %v446 = vld [vmem:[%s242 + $0xe0] sm:$0xff]
        %v447 = vld [vmem:[%s242 + $0xe8] sm:$0xff]
        %v448 = vld [vmem:[%s242 + $0xf0] sm:$0xff]
        %v449 = vld [vmem:[%s242 + $0xf8] sm:$0xff]
        %v450 = vld [vmem:[%s242 + $0x100] sm:$0xff]
        %v451 = vld [vmem:[%s242 + $0x108] sm:$0xff]
        %v452 = vld [vmem:[%s242 + $0x110] sm:$0xff]
        %v453 = vld [vmem:[%s242 + $0x118] sm:$0xff]
        %v454 = vld [vmem:[%s242 + $0x120] sm:$0xff]
        %v455 = vld [vmem:[%s242 + $0x128] sm:$0xff]
        %v456 = vld [vmem:[%s242 + $0x130] sm:$0xff]
        %v457 = vld [vmem:[%s242 + $0x138] sm:$0xff]
        %v458 = vld [vmem:[%s242 + $0x140] sm:$0xff]
        %v459 = vld [vmem:[%s242 + $0x148] sm:$0xff]
        %v460 = vld [vmem:[%s242 + $0x150] sm:$0xff]
        %v461 = vld [vmem:[%s242 + $0x158] sm:$0xff]
        %v462 = vld [vmem:[%s242 + $0x160] sm:$0xff]
        %v463 = vld [vmem:[%s242 + $0x168] sm:$0xff]
        %v464 = vld [vmem:[%s242 + $0x170] sm:$0xff]
        %v465 = vld [vmem:[%s242 + $0x178] sm:$0xff]
        %v466 = vld [vmem:[%s242 + $0x180] sm:$0xff]
        %v467 = vld [vmem:[%s242 + $0x188] sm:$0xff]
        %v468 = vld [vmem:[%s242 + $0x190] sm:$0xff]
        %v469 = vld [vmem:[%s242 + $0x198] sm:$0xff]
        %v470 = vld [vmem:[%s242 + $0x1a0] sm:$0xff]
        %v471 = vld [vmem:[%s242 + $0x1a8] sm:$0xff]
        %v472 = vld [vmem:[%s242 + $0x1b0] sm:$0xff]
        %v473 = vld [vmem:[%s242 + $0x1b8] sm:$0xff]
        %v474 = vld [vmem:[%s242 + $0x1c0] sm:$0xff]
        %v475 = vld [vmem:[%s242 + $0x1c8] sm:$0xff]
        %v476 = vld [vmem:[%s242 + $0x1d0] sm:$0xff]
        %v477 = vld [vmem:[%s242 + $0x1d8] sm:$0xff]
        %v478 = vld [vmem:[%s242 + $0x1e0] sm:$0xff]
        %v479 = vld [vmem:[%s242 + $0x1e8] sm:$0xff]
        %v480 = vld [vmem:[%s242 + $0x1f0] sm:$0xff]
        %v481 = vld [vmem:[%s242 + $0x1f8] sm:$0xff]
        %v482 = vpack.c.bf16 %v420, %v418
        %v483 = vpack.c.bf16 %v421, %v419
        %v484 = vpack.c.bf16 %v424, %v422
        %v485 = vpack.c.bf16 %v425, %v423
        %v486 = vpack.c.bf16 %v428, %v426
        %v487 = vpack.c.bf16 %v429, %v427
        %v488 = vpack.c.bf16 %v432, %v430
        %v489 = vpack.c.bf16 %v433, %v431
        %v490 = vpack.c.bf16 %v436, %v434
        %v491 = vpack.c.bf16 %v437, %v435
        %v492 = vpack.c.bf16 %v440, %v438
        %v493 = vpack.c.bf16 %v441, %v439
        %v494 = vpack.c.bf16 %v444, %v442
        %v495 = vpack.c.bf16 %v445, %v443
        %v496 = vpack.c.bf16 %v448, %v446
        %v497 = vpack.c.bf16 %v449, %v447
        %v498 = vpack.c.bf16 %v452, %v450
        %v499 = vpack.c.bf16 %v453, %v451
        %v500 = vpack.c.bf16 %v456, %v454
        %v501 = vpack.c.bf16 %v457, %v455
        %v502 = vpack.c.bf16 %v460, %v458
        %v503 = vpack.c.bf16 %v461, %v459
        %v504 = vpack.c.bf16 %v464, %v462
        %v505 = vpack.c.bf16 %v465, %v463
        %v506 = vpack.c.bf16 %v468, %v466
        %v507 = vpack.c.bf16 %v469, %v467
        %v508 = vpack.c.bf16 %v472, %v470
        %v509 = vpack.c.bf16 %v473, %v471
        %v510 = vpack.c.bf16 %v476, %v474
        %v511 = vpack.c.bf16 %v477, %v475
        %v512 = vpack.c.bf16 %v480, %v478
        %v513 = vpack.c.bf16 %v481, %v479
        %v514 = vld [vmem:[#allocation6] sm:$0xff]
        %v515 = vld [vmem:[#allocation6 + $0x8] sm:$0xff]
        %v516 = vld [vmem:[#allocation6 + $0x10] sm:$0xff]
        %v517 = vld [vmem:[#allocation6 + $0x18] sm:$0xff]
        %v518 = vld [vmem:[#allocation6 + $0x20] sm:$0xff]
        %v519 = vld [vmem:[#allocation6 + $0x28] sm:$0xff]
        %v520 = vld [vmem:[#allocation6 + $0x30] sm:$0xff]
        %v521 = vld [vmem:[#allocation6 + $0x38] sm:$0xff]
        %v522 = vld [vmem:[#allocation6 + $0x40] sm:$0xff]
        %v523 = vld [vmem:[#allocation6 + $0x48] sm:$0xff]
        %v524 = vld [vmem:[#allocation6 + $0x50] sm:$0xff]
        %v525 = vld [vmem:[#allocation6 + $0x58] sm:$0xff]
        %v526 = vld [vmem:[#allocation6 + $0x60] sm:$0xff]
        %v527 = vld [vmem:[#allocation6 + $0x68] sm:$0xff]
        %v528 = vld [vmem:[#allocation6 + $0x70] sm:$0xff]
        %v529 = vld [vmem:[#allocation6 + $0x78] sm:$0xff]
        %v530 = vld [vmem:[#allocation6 + $0x80] sm:$0xff]
        %v531 = vld [vmem:[#allocation6 + $0x88] sm:$0xff]
        %v532 = vld [vmem:[#allocation6 + $0x90] sm:$0xff]
        %v533 = vld [vmem:[#allocation6 + $0x98] sm:$0xff]
        %v534 = vld [vmem:[#allocation6 + $0xa0] sm:$0xff]
        %v535 = vld [vmem:[#allocation6 + $0xa8] sm:$0xff]
        %v536 = vld [vmem:[#allocation6 + $0xb0] sm:$0xff]
        %v537 = vld [vmem:[#allocation6 + $0xb8] sm:$0xff]
        %v538 = vld [vmem:[#allocation6 + $0xc0] sm:$0xff]
        %v539 = vld [vmem:[#allocation6 + $0xc8] sm:$0xff]
        %v540 = vld [vmem:[#allocation6 + $0xd0] sm:$0xff]
        %v541 = vld [vmem:[#allocation6 + $0xd8] sm:$0xff]
        %v542 = vld [vmem:[#allocation6 + $0xe0] sm:$0xff]
        %v543 = vld [vmem:[#allocation6 + $0xe8] sm:$0xff]
        %v544 = vld [vmem:[#allocation6 + $0xf0] sm:$0xff]
        %v545 = vld [vmem:[#allocation6 + $0xf8] sm:$0xff]
        %v578 = vunpack.c.l.b16 %v514
        %v579 = vunpack.c.h.b16 %v514
        %v580 = vunpack.c.l.b16 %v515
        %v581 = vunpack.c.h.b16 %v515
        %v582 = vunpack.c.l.b16 %v516
        %v583 = vunpack.c.h.b16 %v516
        %v584 = vunpack.c.l.b16 %v517
        %v585 = vunpack.c.h.b16 %v517
        %v586 = vunpack.c.l.b16 %v518
        %v587 = vunpack.c.h.b16 %v518
        %v588 = vunpack.c.l.b16 %v519
        %v589 = vunpack.c.h.b16 %v519
        %v590 = vunpack.c.l.b16 %v520
        %v591 = vunpack.c.h.b16 %v520
        %v592 = vunpack.c.l.b16 %v521
        %v593 = vunpack.c.h.b16 %v521
        %v594 = vunpack.c.l.b16 %v522
        %v595 = vunpack.c.h.b16 %v522
        %v596 = vunpack.c.l.b16 %v523
        %v597 = vunpack.c.h.b16 %v523
        %v598 = vunpack.c.l.b16 %v524
        %v599 = vunpack.c.h.b16 %v524
        %v600 = vunpack.c.l.b16 %v525
        %v601 = vunpack.c.h.b16 %v525
        %v602 = vunpack.c.l.b16 %v526
        %v603 = vunpack.c.h.b16 %v526
        %v604 = vunpack.c.l.b16 %v527
        %v605 = vunpack.c.h.b16 %v527
        %v606 = vunpack.c.l.b16 %v528
        %v607 = vunpack.c.h.b16 %v528
        %v608 = vunpack.c.l.b16 %v529
        %v609 = vunpack.c.h.b16 %v529
        %v610 = vunpack.c.l.b16 %v530
        %v611 = vunpack.c.h.b16 %v530
        %v612 = vunpack.c.l.b16 %v531
        %v613 = vunpack.c.h.b16 %v531
        %v614 = vunpack.c.l.b16 %v532
        %v615 = vunpack.c.h.b16 %v532
        %v616 = vunpack.c.l.b16 %v533
        %v617 = vunpack.c.h.b16 %v533
        %v618 = vunpack.c.l.b16 %v534
        %v619 = vunpack.c.h.b16 %v534
        %v620 = vunpack.c.l.b16 %v535
        %v621 = vunpack.c.h.b16 %v535
        %v622 = vunpack.c.l.b16 %v536
        %v623 = vunpack.c.h.b16 %v536
        %v624 = vunpack.c.l.b16 %v537
        %v625 = vunpack.c.h.b16 %v537
        %v626 = vunpack.c.l.b16 %v538
        %v627 = vunpack.c.h.b16 %v538
        %v628 = vunpack.c.l.b16 %v539
        %v629 = vunpack.c.h.b16 %v539
        %v630 = vunpack.c.l.b16 %v540
        %v631 = vunpack.c.h.b16 %v540
        %v632 = vunpack.c.l.b16 %v541
        %v633 = vunpack.c.h.b16 %v541
        %v634 = vunpack.c.l.b16 %v542
        %v635 = vunpack.c.h.b16 %v542
        %v636 = vunpack.c.l.b16 %v543
        %v637 = vunpack.c.h.b16 %v543
        %v638 = vunpack.c.l.b16 %v544
        %v639 = vunpack.c.h.b16 %v544
        %v640 = vunpack.c.l.b16 %v545
        %v641 = vunpack.c.h.b16 %v545
        %v642 = vpack.c.b16 %v580, %v578
        %v643 = vpack.c.b16 %v581, %v579
        %v644 = vpack.c.b16 %v584, %v582
        %v645 = vpack.c.b16 %v585, %v583
        %v646 = vpack.c.b16 %v588, %v586
        %v647 = vpack.c.b16 %v589, %v587
        %v648 = vpack.c.b16 %v592, %v590
        %v649 = vpack.c.b16 %v593, %v591
        %v650 = vpack.c.b16 %v596, %v594
        %v651 = vpack.c.b16 %v597, %v595
        %v652 = vpack.c.b16 %v600, %v598
        %v653 = vpack.c.b16 %v601, %v599
        %v654 = vpack.c.b16 %v604, %v602
        %v655 = vpack.c.b16 %v605, %v603
        %v656 = vpack.c.b16 %v608, %v606
        %v657 = vpack.c.b16 %v609, %v607
        %v658 = vpack.c.b16 %v612, %v610
        %v659 = vpack.c.b16 %v613, %v611
        %v660 = vpack.c.b16 %v616, %v614
        %v661 = vpack.c.b16 %v617, %v615
        %v662 = vpack.c.b16 %v620, %v618
        %v663 = vpack.c.b16 %v621, %v619
        %v664 = vpack.c.b16 %v624, %v622
        %v665 = vpack.c.b16 %v625, %v623
        %v666 = vpack.c.b16 %v628, %v626
        %v667 = vpack.c.b16 %v629, %v627
        %v668 = vpack.c.b16 %v632, %v630
        %v669 = vpack.c.b16 %v633, %v631
        %v670 = vpack.c.b16 %v636, %v634
        %v671 = vpack.c.b16 %v637, %v635
        %v672 = vpack.c.b16 %v640, %v638
        %v673 = vpack.c.b16 %v641, %v639
        %706 = vmatpush.bf16.msra.mxu0 %v656
        %707 = vmatpush.bf16.msra.mxu0 %v654
        %708 = vmatpush.bf16.msra.mxu0 %v652
        %709 = vmatpush.bf16.msra.mxu0 %v650
        %710 = vmatpush.bf16.msra.mxu0 %v648
        %711 = vmatpush.bf16.msra.mxu0 %v646
        %712 = vmatpush.bf16.msra.mxu0 %v644
        %713 = vmatpush.bf16.msra.mxu0 %v642
        %714 = vmatmul.bf16.gmra.mxu0 %v482
        %v715 = vpop.f32.mrf.mxu0
        %v716 = vadd.f32 0.0, %v715
        %v717 = vpop.f32.mrf.mxu0
        %v718 = vadd.f32 0.0, %v717
        %719 = vmatmul.bf16.gmra.mxu0 %v484
        %v720 = vpop.f32.mrf.mxu0
        %v721 = vadd.f32 0.0, %v720
        %v722 = vpop.f32.mrf.mxu0
        %v723 = vadd.f32 0.0, %v722
        %724 = vmatmul.bf16.gmra.mxu0 %v486
        %v725 = vpop.f32.mrf.mxu0
        %v726 = vadd.f32 0.0, %v725
        %v727 = vpop.f32.mrf.mxu0
        %v728 = vadd.f32 0.0, %v727
        %729 = vmatmul.bf16.gmra.mxu0 %v488
        %v730 = vpop.f32.mrf.mxu0
        %v731 = vadd.f32 0.0, %v730
        %v732 = vpop.f32.mrf.mxu0
        %v733 = vadd.f32 0.0, %v732
        %734 = vmatmul.bf16.gmra.mxu0 %v490
        %v735 = vpop.f32.mrf.mxu0
        %v736 = vadd.f32 0.0, %v735
        %v737 = vpop.f32.mrf.mxu0
        %v738 = vadd.f32 0.0, %v737
        %739 = vmatmul.bf16.gmra.mxu0 %v492
        %v740 = vpop.f32.mrf.mxu0
        %v741 = vadd.f32 0.0, %v740
        %v742 = vpop.f32.mrf.mxu0
        %v743 = vadd.f32 0.0, %v742
        %744 = vmatmul.bf16.gmra.mxu0 %v494
        %v745 = vpop.f32.mrf.mxu0
        %v746 = vadd.f32 0.0, %v745
        %v747 = vpop.f32.mrf.mxu0
        %v748 = vadd.f32 0.0, %v747
        %749 = vmatmul.bf16.gmra.mxu0 %v496
        %v750 = vpop.f32.mrf.mxu0
        %v751 = vadd.f32 0.0, %v750
        %v752 = vpop.f32.mrf.mxu0
        %v753 = vadd.f32 0.0, %v752
        %754 = vmatmul.bf16.gmra.mxu0 %v498
        %v755 = vpop.f32.mrf.mxu0
        %v756 = vadd.f32 0.0, %v755
        %v757 = vpop.f32.mrf.mxu0
        %v758 = vadd.f32 0.0, %v757
        %759 = vmatmul.bf16.gmra.mxu0 %v500
        %v760 = vpop.f32.mrf.mxu0
        %v761 = vadd.f32 0.0, %v760
        %v762 = vpop.f32.mrf.mxu0
        %v763 = vadd.f32 0.0, %v762
        %764 = vmatmul.bf16.gmra.mxu0 %v502
        %v765 = vpop.f32.mrf.mxu0
        %v766 = vadd.f32 0.0, %v765
        %v767 = vpop.f32.mrf.mxu0
        %v768 = vadd.f32 0.0, %v767
        %769 = vmatmul.bf16.gmra.mxu0 %v504
        %v770 = vpop.f32.mrf.mxu0
        %v771 = vadd.f32 0.0, %v770
        %v772 = vpop.f32.mrf.mxu0
        %v773 = vadd.f32 0.0, %v772
        %774 = vmatmul.bf16.gmra.mxu0 %v506
        %v775 = vpop.f32.mrf.mxu0
        %v776 = vadd.f32 0.0, %v775
        %v777 = vpop.f32.mrf.mxu0
        %v778 = vadd.f32 0.0, %v777
        %779 = vmatmul.bf16.gmra.mxu0 %v508
        %v780 = vpop.f32.mrf.mxu0
        %v781 = vadd.f32 0.0, %v780
        %v782 = vpop.f32.mrf.mxu0
        %v783 = vadd.f32 0.0, %v782
        %784 = vmatmul.bf16.gmra.mxu0 %v510
        %v785 = vpop.f32.mrf.mxu0
        %v786 = vadd.f32 0.0, %v785
        %v787 = vpop.f32.mrf.mxu0
        %v788 = vadd.f32 0.0, %v787
        %789 = vmatmul.bf16.gmra.mxu0 %v512
        %v790 = vpop.f32.mrf.mxu0
        %v791 = vadd.f32 0.0, %v790
        %v792 = vpop.f32.mrf.mxu0
        %v793 = vadd.f32 0.0, %v792
        %794 = vdwg.mxu0
        %795 = vmatpush.bf16.msra.mxu0 %v672
        %796 = vmatpush.bf16.msra.mxu0 %v670
        %797 = vmatpush.bf16.msra.mxu0 %v668
        %798 = vmatpush.bf16.msra.mxu0 %v666
        %799 = vmatpush.bf16.msra.mxu0 %v664
        %800 = vmatpush.bf16.msra.mxu0 %v662
        %801 = vmatpush.bf16.msra.mxu0 %v660
        %802 = vmatpush.bf16.msra.mxu0 %v658
        %803 = vmatmul.bf16.gmra.mxu0 %v483
        %v804 = vpop.f32.mrf.mxu0
        %v805 = vadd.f32 %v716, %v804
        %v806 = vpop.f32.mrf.mxu0
        %v807 = vadd.f32 %v718, %v806
        %808 = vmatmul.bf16.gmra.mxu0 %v485
        %v809 = vpop.f32.mrf.mxu0
        %v810 = vadd.f32 %v721, %v809
        %v811 = vpop.f32.mrf.mxu0
        %v812 = vadd.f32 %v723, %v811
        %813 = vmatmul.bf16.gmra.mxu0 %v487
        %v814 = vpop.f32.mrf.mxu0
        %v815 = vadd.f32 %v726, %v814
        %v816 = vpop.f32.mrf.mxu0
        %v817 = vadd.f32 %v728, %v816
        %818 = vmatmul.bf16.gmra.mxu0 %v489
        %v819 = vpop.f32.mrf.mxu0
        %v820 = vadd.f32 %v731, %v819
        %v821 = vpop.f32.mrf.mxu0
        %v822 = vadd.f32 %v733, %v821
        %823 = vmatmul.bf16.gmra.mxu0 %v491
        %v824 = vpop.f32.mrf.mxu0
        %v825 = vadd.f32 %v736, %v824
        %v826 = vpop.f32.mrf.mxu0
        %v827 = vadd.f32 %v738, %v826
        %828 = vmatmul.bf16.gmra.mxu0 %v493
        %v829 = vpop.f32.mrf.mxu0
        %v830 = vadd.f32 %v741, %v829
        %v831 = vpop.f32.mrf.mxu0
        %v832 = vadd.f32 %v743, %v831
        %833 = vmatmul.bf16.gmra.mxu0 %v495
        %v834 = vpop.f32.mrf.mxu0
        %v835 = vadd.f32 %v746, %v834
        %v836 = vpop.f32.mrf.mxu0
        %v837 = vadd.f32 %v748, %v836
        %838 = vmatmul.bf16.gmra.mxu0 %v497
        %v839 = vpop.f32.mrf.mxu0
        %v840 = vadd.f32 %v751, %v839
        %v841 = vpop.f32.mrf.mxu0
        %v842 = vadd.f32 %v753, %v841
        %843 = vmatmul.bf16.gmra.mxu0 %v499
        %v844 = vpop.f32.mrf.mxu0
        %v845 = vadd.f32 %v756, %v844
        %v846 = vpop.f32.mrf.mxu0
        %v847 = vadd.f32 %v758, %v846
        %848 = vmatmul.bf16.gmra.mxu0 %v501
        %v849 = vpop.f32.mrf.mxu0
        %v850 = vadd.f32 %v761, %v849
        %v851 = vpop.f32.mrf.mxu0
        %v852 = vadd.f32 %v763, %v851
        %853 = vmatmul.bf16.gmra.mxu0 %v503
        %v854 = vpop.f32.mrf.mxu0
        %v855 = vadd.f32 %v766, %v854
        %v856 = vpop.f32.mrf.mxu0
        %v857 = vadd.f32 %v768, %v856
        %858 = vmatmul.bf16.gmra.mxu0 %v505
        %v859 = vpop.f32.mrf.mxu0
        %v860 = vadd.f32 %v771, %v859
        %v861 = vpop.f32.mrf.mxu0
        %v862 = vadd.f32 %v773, %v861
        %863 = vmatmul.bf16.gmra.mxu0 %v507
        %v864 = vpop.f32.mrf.mxu0
        %v865 = vadd.f32 %v776, %v864
        %v866 = vpop.f32.mrf.mxu0
        %v867 = vadd.f32 %v778, %v866
        %868 = vmatmul.bf16.gmra.mxu0 %v509
        %v869 = vpop.f32.mrf.mxu0
        %v870 = vadd.f32 %v781, %v869
        %v871 = vpop.f32.mrf.mxu0
        %v872 = vadd.f32 %v783, %v871
        %873 = vmatmul.bf16.gmra.mxu0 %v511
        %v874 = vpop.f32.mrf.mxu0
        %v875 = vadd.f32 %v786, %v874
        %v876 = vpop.f32.mrf.mxu0
        %v877 = vadd.f32 %v788, %v876
        %878 = vmatmul.bf16.gmra.mxu0 %v513
        %v879 = vpop.f32.mrf.mxu0
        %v880 = vadd.f32 %v791, %v879
        %v881 = vpop.f32.mrf.mxu0
        %v882 = vadd.f32 %v793, %v881
        %883 = vdwg.mxu0
        %884 = vmatpush.bf16.msra.mxu0 %v657
        %885 = vmatpush.bf16.msra.mxu0 %v655
        %886 = vmatpush.bf16.msra.mxu0 %v653
        %887 = vmatpush.bf16.msra.mxu0 %v651
        %888 = vmatpush.bf16.msra.mxu0 %v649
        %889 = vmatpush.bf16.msra.mxu0 %v647
        %890 = vmatpush.bf16.msra.mxu0 %v645
        %891 = vmatpush.bf16.msra.mxu0 %v643
        %892 = vmatmul.bf16.gmra.mxu0 %v482
        %v893 = vpop.f32.mrf.mxu0
        %v894 = vadd.f32 0.0, %v893
        %v895 = vpop.f32.mrf.mxu0
        %v896 = vadd.f32 0.0, %v895
        %897 = vmatmul.bf16.gmra.mxu0 %v484
        %v898 = vpop.f32.mrf.mxu0
        %v899 = vadd.f32 0.0, %v898
        %v900 = vpop.f32.mrf.mxu0
        %v901 = vadd.f32 0.0, %v900
        %902 = vmatmul.bf16.gmra.mxu0 %v486
        %v903 = vpop.f32.mrf.mxu0
        %v904 = vadd.f32 0.0, %v903
        %v905 = vpop.f32.mrf.mxu0
        %v906 = vadd.f32 0.0, %v905
        %907 = vmatmul.bf16.gmra.mxu0 %v488
        %v908 = vpop.f32.mrf.mxu0
        %v909 = vadd.f32 0.0, %v908
        %v910 = vpop.f32.mrf.mxu0
        %v911 = vadd.f32 0.0, %v910
        %912 = vmatmul.bf16.gmra.mxu0 %v490
        %v913 = vpop.f32.mrf.mxu0
        %v914 = vadd.f32 0.0, %v913
        %v915 = vpop.f32.mrf.mxu0
        %v916 = vadd.f32 0.0, %v915
        %917 = vmatmul.bf16.gmra.mxu0 %v492
        %v918 = vpop.f32.mrf.mxu0
        %v919 = vadd.f32 0.0, %v918
        %v920 = vpop.f32.mrf.mxu0
        %v921 = vadd.f32 0.0, %v920
        %922 = vmatmul.bf16.gmra.mxu0 %v494
        %v923 = vpop.f32.mrf.mxu0
        %v924 = vadd.f32 0.0, %v923
        %v925 = vpop.f32.mrf.mxu0
        %v926 = vadd.f32 0.0, %v925
        %927 = vmatmul.bf16.gmra.mxu0 %v496
        %v928 = vpop.f32.mrf.mxu0
        %v929 = vadd.f32 0.0, %v928
        %v930 = vpop.f32.mrf.mxu0
        %v931 = vadd.f32 0.0, %v930
        %932 = vmatmul.bf16.gmra.mxu0 %v498
        %v933 = vpop.f32.mrf.mxu0
        %v934 = vadd.f32 0.0, %v933
        %v935 = vpop.f32.mrf.mxu0
        %v936 = vadd.f32 0.0, %v935
        %937 = vmatmul.bf16.gmra.mxu0 %v500
        %v938 = vpop.f32.mrf.mxu0
        %v939 = vadd.f32 0.0, %v938
        %v940 = vpop.f32.mrf.mxu0
        %v941 = vadd.f32 0.0, %v940
        %942 = vmatmul.bf16.gmra.mxu0 %v502
        %v943 = vpop.f32.mrf.mxu0
        %v944 = vadd.f32 0.0, %v943
        %v945 = vpop.f32.mrf.mxu0
        %v946 = vadd.f32 0.0, %v945
        %947 = vmatmul.bf16.gmra.mxu0 %v504
        %v948 = vpop.f32.mrf.mxu0
        %v949 = vadd.f32 0.0, %v948
        %v950 = vpop.f32.mrf.mxu0
        %v951 = vadd.f32 0.0, %v950
        %952 = vmatmul.bf16.gmra.mxu0 %v506
        %v953 = vpop.f32.mrf.mxu0
        %v954 = vadd.f32 0.0, %v953
        %v955 = vpop.f32.mrf.mxu0
        %v956 = vadd.f32 0.0, %v955
        %957 = vmatmul.bf16.gmra.mxu0 %v508
        %v958 = vpop.f32.mrf.mxu0
        %v959 = vadd.f32 0.0, %v958
        %v960 = vpop.f32.mrf.mxu0
        %v961 = vadd.f32 0.0, %v960
        %962 = vmatmul.bf16.gmra.mxu0 %v510
        %v963 = vpop.f32.mrf.mxu0
        %v964 = vadd.f32 0.0, %v963
        %v965 = vpop.f32.mrf.mxu0
        %v966 = vadd.f32 0.0, %v965
        %967 = vmatmul.bf16.gmra.mxu0 %v512
        %v968 = vpop.f32.mrf.mxu0
        %v969 = vadd.f32 0.0, %v968
        %v970 = vpop.f32.mrf.mxu0
        %v971 = vadd.f32 0.0, %v970
        %972 = vdwg.mxu0
        %973 = vmatpush.bf16.msra.mxu0 %v673
        %974 = vmatpush.bf16.msra.mxu0 %v671
        %975 = vmatpush.bf16.msra.mxu0 %v669
        %976 = vmatpush.bf16.msra.mxu0 %v667
        %977 = vmatpush.bf16.msra.mxu0 %v665
        %978 = vmatpush.bf16.msra.mxu0 %v663
        %979 = vmatpush.bf16.msra.mxu0 %v661
        %980 = vmatpush.bf16.msra.mxu0 %v659
        %981 = vmatmul.bf16.gmra.mxu0 %v483
        %v982 = vpop.f32.mrf.mxu0
        %v983 = vadd.f32 %v894, %v982
        %v984 = vpop.f32.mrf.mxu0
        %v985 = vadd.f32 %v896, %v984
        %986 = vmatmul.bf16.gmra.mxu0 %v485
        %v987 = vpop.f32.mrf.mxu0
        %v988 = vadd.f32 %v899, %v987
        %v989 = vpop.f32.mrf.mxu0
        %v990 = vadd.f32 %v901, %v989
        %991 = vmatmul.bf16.gmra.mxu0 %v487
        %v992 = vpop.f32.mrf.mxu0
        %v993 = vadd.f32 %v904, %v992
        %v994 = vpop.f32.mrf.mxu0
        %v995 = vadd.f32 %v906, %v994
        %996 = vmatmul.bf16.gmra.mxu0 %v489
        %v997 = vpop.f32.mrf.mxu0
        %v998 = vadd.f32 %v909, %v997
        %v999 = vpop.f32.mrf.mxu0
        %v1000 = vadd.f32 %v911, %v999
        %1001 = vmatmul.bf16.gmra.mxu0 %v491
        %v1002 = vpop.f32.mrf.mxu0
        %v1003 = vadd.f32 %v914, %v1002
        %v1004 = vpop.f32.mrf.mxu0
        %v1005 = vadd.f32 %v916, %v1004
        %1006 = vmatmul.bf16.gmra.mxu0 %v493
        %v1007 = vpop.f32.mrf.mxu0
        %v1008 = vadd.f32 %v919, %v1007
        %v1009 = vpop.f32.mrf.mxu0
        %v1010 = vadd.f32 %v921, %v1009
        %1011 = vmatmul.bf16.gmra.mxu0 %v495
        %v1012 = vpop.f32.mrf.mxu0
        %v1013 = vadd.f32 %v924, %v1012
        %v1014 = vpop.f32.mrf.mxu0
        %v1015 = vadd.f32 %v926, %v1014
        %1016 = vmatmul.bf16.gmra.mxu0 %v497
        %v1017 = vpop.f32.mrf.mxu0
        %v1018 = vadd.f32 %v929, %v1017
        %v1019 = vpop.f32.mrf.mxu0
        %v1020 = vadd.f32 %v931, %v1019
        %1021 = vmatmul.bf16.gmra.mxu0 %v499
        %v1022 = vpop.f32.mrf.mxu0
        %v1023 = vadd.f32 %v934, %v1022
        %v1024 = vpop.f32.mrf.mxu0
        %v1025 = vadd.f32 %v936, %v1024
        %1026 = vmatmul.bf16.gmra.mxu0 %v501
        %v1027 = vpop.f32.mrf.mxu0
        %v1028 = vadd.f32 %v939, %v1027
        %v1029 = vpop.f32.mrf.mxu0
        %v1030 = vadd.f32 %v941, %v1029
        %1031 = vmatmul.bf16.gmra.mxu0 %v503
        %v1032 = vpop.f32.mrf.mxu0
        %v1033 = vadd.f32 %v944, %v1032
        %v1034 = vpop.f32.mrf.mxu0
        %v1035 = vadd.f32 %v946, %v1034
        %1036 = vmatmul.bf16.gmra.mxu0 %v505
        %v1037 = vpop.f32.mrf.mxu0
        %v1038 = vadd.f32 %v949, %v1037
        %v1039 = vpop.f32.mrf.mxu0
        %v1040 = vadd.f32 %v951, %v1039
        %1041 = vmatmul.bf16.gmra.mxu0 %v507
        %v1042 = vpop.f32.mrf.mxu0
        %v1043 = vadd.f32 %v954, %v1042
        %v1044 = vpop.f32.mrf.mxu0
        %v1045 = vadd.f32 %v956, %v1044
        %1046 = vmatmul.bf16.gmra.mxu0 %v509
        %v1047 = vpop.f32.mrf.mxu0
        %v1048 = vadd.f32 %v959, %v1047
        %v1049 = vpop.f32.mrf.mxu0
        %v1050 = vadd.f32 %v961, %v1049
        %1051 = vmatmul.bf16.gmra.mxu0 %v511
        %v1052 = vpop.f32.mrf.mxu0
        %v1053 = vadd.f32 %v964, %v1052
        %v1054 = vpop.f32.mrf.mxu0
        %v1055 = vadd.f32 %v966, %v1054
        %1056 = vmatmul.bf16.gmra.mxu0 %v513
        %v1057 = vpop.f32.mrf.mxu0
        %v1058 = vadd.f32 %v969, %v1057
        %v1059 = vpop.f32.mrf.mxu0
        %v1060 = vadd.f32 %v971, %v1059
        %1061 = vdwg.mxu0
        %v1062 = vadd.f32 %v354, %v805
        %v1063 = vadd.f32 %v355, %v983
        %v1064 = vadd.f32 %v356, %v807
        %v1065 = vadd.f32 %v357, %v985
        %v1066 = vadd.f32 %v358, %v810
        %v1067 = vadd.f32 %v359, %v988
        %v1068 = vadd.f32 %v360, %v812
        %v1069 = vadd.f32 %v361, %v990
        %v1070 = vadd.f32 %v362, %v815
        %v1071 = vadd.f32 %v363, %v993
        %v1072 = vadd.f32 %v364, %v817
        %v1073 = vadd.f32 %v365, %v995
        %v1074 = vadd.f32 %v366, %v820
        %v1075 = vadd.f32 %v367, %v998
        %v1076 = vadd.f32 %v368, %v822
        %v1077 = vadd.f32 %v369, %v1000
        %v1078 = vadd.f32 %v370, %v825
        %v1079 = vadd.f32 %v371, %v1003
        %v1080 = vadd.f32 %v372, %v827
        %v1081 = vadd.f32 %v373, %v1005
        %v1082 = vadd.f32 %v374, %v830
        %v1083 = vadd.f32 %v375, %v1008
        %v1084 = vadd.f32 %v376, %v832
        %v1085 = vadd.f32 %v377, %v1010
        %v1086 = vadd.f32 %v378, %v835
        %v1087 = vadd.f32 %v379, %v1013
        %v1088 = vadd.f32 %v380, %v837
        %v1089 = vadd.f32 %v381, %v1015
        %v1090 = vadd.f32 %v382, %v840
        %v1091 = vadd.f32 %v383, %v1018
        %v1092 = vadd.f32 %v384, %v842
        %v1093 = vadd.f32 %v385, %v1020
        %v1094 = vadd.f32 %v386, %v845
        %v1095 = vadd.f32 %v387, %v1023
        %v1096 = vadd.f32 %v388, %v847
        %v1097 = vadd.f32 %v389, %v1025
        %v1098 = vadd.f32 %v390, %v850
        %v1099 = vadd.f32 %v391, %v1028
        %v1100 = vadd.f32 %v392, %v852
        %v1101 = vadd.f32 %v393, %v1030
        %v1102 = vadd.f32 %v394, %v855
        %v1103 = vadd.f32 %v395, %v1033
        %v1104 = vadd.f32 %v396, %v857
        %v1105 = vadd.f32 %v397, %v1035
        %v1106 = vadd.f32 %v398, %v860
        %v1107 = vadd.f32 %v399, %v1038
        %v1108 = vadd.f32 %v400, %v862
        %v1109 = vadd.f32 %v401, %v1040
        %v1110 = vadd.f32 %v402, %v865
        %v1111 = vadd.f32 %v403, %v1043
        %v1112 = vadd.f32 %v404, %v867
        %v1113 = vadd.f32 %v405, %v1045
        %v1114 = vadd.f32 %v406, %v870
        %v1115 = vadd.f32 %v407, %v1048
        %v1116 = vadd.f32 %v408, %v872
        %v1117 = vadd.f32 %v409, %v1050
        %v1118 = vadd.f32 %v410, %v875
        %v1119 = vadd.f32 %v411, %v1053
        %v1120 = vadd.f32 %v412, %v877
        %v1121 = vadd.f32 %v413, %v1055
        %v1122 = vadd.f32 %v414, %v880
        %v1123 = vadd.f32 %v415, %v1058
        %v1124 = vadd.f32 %v416, %v882
        %v1125 = vadd.f32 %v417, %v1060
        %1126 = vst [vmem:[#allocation2] sm:$0xff] %v1062
        %1127 = vst [vmem:[#allocation2 + $0x8] sm:$0xff] %v1063
        %1128 = vst [vmem:[#allocation2 + $0x10] sm:$0xff] %v1064
        %1129 = vst [vmem:[#allocation2 + $0x18] sm:$0xff] %v1065
        %1130 = vst [vmem:[#allocation2 + $0x20] sm:$0xff] %v1066
        %1131 = vst [vmem:[#allocation2 + $0x28] sm:$0xff] %v1067
        %1132 = vst [vmem:[#allocation2 + $0x30] sm:$0xff] %v1068
        %1133 = vst [vmem:[#allocation2 + $0x38] sm:$0xff] %v1069
        %1134 = vst [vmem:[#allocation2 + $0x40] sm:$0xff] %v1070
        %1135 = vst [vmem:[#allocation2 + $0x48] sm:$0xff] %v1071
        %1136 = vst [vmem:[#allocation2 + $0x50] sm:$0xff] %v1072
        %1137 = vst [vmem:[#allocation2 + $0x58] sm:$0xff] %v1073
        %1138 = vst [vmem:[#allocation2 + $0x60] sm:$0xff] %v1074
        %1139 = vst [vmem:[#allocation2 + $0x68] sm:$0xff] %v1075
        %1140 = vst [vmem:[#allocation2 + $0x70] sm:$0xff] %v1076
        %1141 = vst [vmem:[#allocation2 + $0x78] sm:$0xff] %v1077
        %1142 = vst [vmem:[#allocation2 + $0x80] sm:$0xff] %v1078
        %1143 = vst [vmem:[#allocation2 + $0x88] sm:$0xff] %v1079
        %1144 = vst [vmem:[#allocation2 + $0x90] sm:$0xff] %v1080
        %1145 = vst [vmem:[#allocation2 + $0x98] sm:$0xff] %v1081
        %1146 = vst [vmem:[#allocation2 + $0xa0] sm:$0xff] %v1082
        %1147 = vst [vmem:[#allocation2 + $0xa8] sm:$0xff] %v1083
        %1148 = vst [vmem:[#allocation2 + $0xb0] sm:$0xff] %v1084
        %1149 = vst [vmem:[#allocation2 + $0xb8] sm:$0xff] %v1085
        %1150 = vst [vmem:[#allocation2 + $0xc0] sm:$0xff] %v1086
        %1151 = vst [vmem:[#allocation2 + $0xc8] sm:$0xff] %v1087
        %1152 = vst [vmem:[#allocation2 + $0xd0] sm:$0xff] %v1088
        %1153 = vst [vmem:[#allocation2 + $0xd8] sm:$0xff] %v1089
        %1154 = vst [vmem:[#allocation2 + $0xe0] sm:$0xff] %v1090
        %1155 = vst [vmem:[#allocation2 + $0xe8] sm:$0xff] %v1091
        %1156 = vst [vmem:[#allocation2 + $0xf0] sm:$0xff] %v1092
        %1157 = vst [vmem:[#allocation2 + $0xf8] sm:$0xff] %v1093
        %1158 = vst [vmem:[#allocation2 + $0x100] sm:$0xff] %v1094
        %1159 = vst [vmem:[#allocation2 + $0x108] sm:$0xff] %v1095
        %1160 = vst [vmem:[#allocation2 + $0x110] sm:$0xff] %v1096
        %1161 = vst [vmem:[#allocation2 + $0x118] sm:$0xff] %v1097
        %1162 = vst [vmem:[#allocation2 + $0x120] sm:$0xff] %v1098
        %1163 = vst [vmem:[#allocation2 + $0x128] sm:$0xff] %v1099
        %1164 = vst [vmem:[#allocation2 + $0x130] sm:$0xff] %v1100
        %1165 = vst [vmem:[#allocation2 + $0x138] sm:$0xff] %v1101
        %1166 = vst [vmem:[#allocation2 + $0x140] sm:$0xff] %v1102
        %1167 = vst [vmem:[#allocation2 + $0x148] sm:$0xff] %v1103
        %1168 = vst [vmem:[#allocation2 + $0x150] sm:$0xff] %v1104
        %1169 = vst [vmem:[#allocation2 + $0x158] sm:$0xff] %v1105
        %1170 = vst [vmem:[#allocation2 + $0x160] sm:$0xff] %v1106
        %1171 = vst [vmem:[#allocation2 + $0x168] sm:$0xff] %v1107
        %1172 = vst [vmem:[#allocation2 + $0x170] sm:$0xff] %v1108
        %1173 = vst [vmem:[#allocation2 + $0x178] sm:$0xff] %v1109
        %1174 = vst [vmem:[#allocation2 + $0x180] sm:$0xff] %v1110
        %1175 = vst [vmem:[#allocation2 + $0x188] sm:$0xff] %v1111
        %1176 = vst [vmem:[#allocation2 + $0x190] sm:$0xff] %v1112
        %1177 = vst [vmem:[#allocation2 + $0x198] sm:$0xff] %v1113
        %1178 = vst [vmem:[#allocation2 + $0x1a0] sm:$0xff] %v1114
        %1179 = vst [vmem:[#allocation2 + $0x1a8] sm:$0xff] %v1115
        %1180 = vst [vmem:[#allocation2 + $0x1b0] sm:$0xff] %v1116
        %1181 = vst [vmem:[#allocation2 + $0x1b8] sm:$0xff] %v1117
        %1182 = vst [vmem:[#allocation2 + $0x1c0] sm:$0xff] %v1118
        %1183 = vst [vmem:[#allocation2 + $0x1c8] sm:$0xff] %v1119
        %1184 = vst [vmem:[#allocation2 + $0x1d0] sm:$0xff] %v1120
        %1185 = vst [vmem:[#allocation2 + $0x1d8] sm:$0xff] %v1121
        %1186 = vst [vmem:[#allocation2 + $0x1e0] sm:$0xff] %v1122
        %1187 = vst [vmem:[#allocation2 + $0x1e8] sm:$0xff] %v1123
        %1188 = vst [vmem:[#allocation2 + $0x1f0] sm:$0xff] %v1124
        %1189 = vst [vmem:[#allocation2 + $0x1f8] sm:$0xff] %v1125
        // Predicated region
        $region57: #{tpu_custom_call.1} parent=35 // pred_check
          %p1190 = pneg %p286
        $region58: #{tpu_custom_call.1} parent=35 // pred_check_branch
          %1192 = sbr.rel (%p1190) target = $region60
        $region59: #{tpu_custom_call.1} parent=35 // pred_region
          %v1193 = vld [vmem:[#allocation9] ss:$4 sm:$0x3]
          %s1194 = scalar_lea.vmem [#allocation9], 1
          %v1195 = vld [vmem:[%s1194] ss:$4 sm:$0x3]
          %s1196 = scalar_lea.vmem [#allocation9], 2
          %v1197 = vld [vmem:[%s1196] ss:$4 sm:$0x3]
          %s1198 = scalar_lea.vmem [#allocation9], 3
          %v1199 = vld [vmem:[%s1198] ss:$4 sm:$0x3]
          %v1200 = vld [vmem:[#allocation2] sm:$0xff]
          %v1201 = vld [vmem:[#allocation2 + $0x8] sm:$0xff]
          %v1202 = vld [vmem:[#allocation2 + $0x10] sm:$0xff]
          %v1203 = vld [vmem:[#allocation2 + $0x18] sm:$0xff]
          %v1204 = vld [vmem:[#allocation2 + $0x20] sm:$0xff]
          %v1205 = vld [vmem:[#allocation2 + $0x28] sm:$0xff]
          %v1206 = vld [vmem:[#allocation2 + $0x30] sm:$0xff]
          %v1207 = vld [vmem:[#allocation2 + $0x38] sm:$0xff]
          %v1208 = vld [vmem:[#allocation2 + $0x40] sm:$0xff]
          %v1209 = vld [vmem:[#allocation2 + $0x48] sm:$0xff]
          %v1210 = vld [vmem:[#allocation2 + $0x50] sm:$0xff]
          %v1211 = vld [vmem:[#allocation2 + $0x58] sm:$0xff]
          %v1212 = vld [vmem:[#allocation2 + $0x60] sm:$0xff]
          %v1213 = vld [vmem:[#allocation2 + $0x68] sm:$0xff]
          %v1214 = vld [vmem:[#allocation2 + $0x70] sm:$0xff]
          %v1215 = vld [vmem:[#allocation2 + $0x78] sm:$0xff]
          %v1216 = vld [vmem:[#allocation2 + $0x80] sm:$0xff]
          %v1217 = vld [vmem:[#allocation2 + $0x88] sm:$0xff]
          %v1218 = vld [vmem:[#allocation2 + $0x90] sm:$0xff]
          %v1219 = vld [vmem:[#allocation2 + $0x98] sm:$0xff]
          %v1220 = vld [vmem:[#allocation2 + $0xa0] sm:$0xff]
          %v1221 = vld [vmem:[#allocation2 + $0xa8] sm:$0xff]
          %v1222 = vld [vmem:[#allocation2 + $0xb0] sm:$0xff]
          %v1223 = vld [vmem:[#allocation2 + $0xb8] sm:$0xff]
          %v1224 = vld [vmem:[#allocation2 + $0xc0] sm:$0xff]
          %v1225 = vld [vmem:[#allocation2 + $0xc8] sm:$0xff]
          %v1226 = vld [vmem:[#allocation2 + $0xd0] sm:$0xff]
          %v1227 = vld [vmem:[#allocation2 + $0xd8] sm:$0xff]
          %v1228 = vld [vmem:[#allocation2 + $0xe0] sm:$0xff]
          %v1229 = vld [vmem:[#allocation2 + $0xe8] sm:$0xff]
          %v1230 = vld [vmem:[#allocation2 + $0xf0] sm:$0xff]
          %v1231 = vld [vmem:[#allocation2 + $0xf8] sm:$0xff]
          %v1232 = vld [vmem:[#allocation2 + $0x100] sm:$0xff]
          %v1233 = vld [vmem:[#allocation2 + $0x108] sm:$0xff]
          %v1234 = vld [vmem:[#allocation2 + $0x110] sm:$0xff]
          %v1235 = vld [vmem:[#allocation2 + $0x118] sm:$0xff]
          %v1236 = vld [vmem:[#allocation2 + $0x120] sm:$0xff]
          %v1237 = vld [vmem:[#allocation2 + $0x128] sm:$0xff]
          %v1238 = vld [vmem:[#allocation2 + $0x130] sm:$0xff]
          %v1239 = vld [vmem:[#allocation2 + $0x138] sm:$0xff]
          %v1240 = vld [vmem:[#allocation2 + $0x140] sm:$0xff]
          %v1241 = vld [vmem:[#allocation2 + $0x148] sm:$0xff]
          %v1242 = vld [vmem:[#allocation2 + $0x150] sm:$0xff]
          %v1243 = vld [vmem:[#allocation2 + $0x158] sm:$0xff]
          %v1244 = vld [vmem:[#allocation2 + $0x160] sm:$0xff]
          %v1245 = vld [vmem:[#allocation2 + $0x168] sm:$0xff]
          %v1246 = vld [vmem:[#allocation2 + $0x170] sm:$0xff]
          %v1247 = vld [vmem:[#allocation2 + $0x178] sm:$0xff]
          %v1248 = vld [vmem:[#allocation2 + $0x180] sm:$0xff]
          %v1249 = vld [vmem:[#allocation2 + $0x188] sm:$0xff]
          %v1250 = vld [vmem:[#allocation2 + $0x190] sm:$0xff]
          %v1251 = vld [vmem:[#allocation2 + $0x198] sm:$0xff]
          %v1252 = vld [vmem:[#allocation2 + $0x1a0] sm:$0xff]
          %v1253 = vld [vmem:[#allocation2 + $0x1a8] sm:$0xff]
          %v1254 = vld [vmem:[#allocation2 + $0x1b0] sm:$0xff]
          %v1255 = vld [vmem:[#allocation2 + $0x1b8] sm:$0xff]
          %v1256 = vld [vmem:[#allocation2 + $0x1c0] sm:$0xff]
          %v1257 = vld [vmem:[#allocation2 + $0x1c8] sm:$0xff]
          %v1258 = vld [vmem:[#allocation2 + $0x1d0] sm:$0xff]
          %v1259 = vld [vmem:[#allocation2 + $0x1d8] sm:$0xff]
          %v1260 = vld [vmem:[#allocation2 + $0x1e0] sm:$0xff]
          %v1261 = vld [vmem:[#allocation2 + $0x1e8] sm:$0xff]
          %v1262 = vld [vmem:[#allocation2 + $0x1f0] sm:$0xff]
          %v1263 = vld [vmem:[#allocation2 + $0x1f8] sm:$0xff]
          %v1265 = vperm.slane %v1193, 0
          %v1266 = vperm.slane %v1193, 1
          %v1269 = vadd.f32 %v1200, %v1265
          %v1270 = vadd.f32 %v1201, %v1266
          %v1271 = vadd.f32 %v1202, %v1265
          %v1272 = vadd.f32 %v1203, %v1266
          %v1273 = vadd.f32 %v1204, %v1265
          %v1274 = vadd.f32 %v1205, %v1266
          %v1275 = vadd.f32 %v1206, %v1265
          %v1276 = vadd.f32 %v1207, %v1266
          %v1277 = vadd.f32 %v1208, %v1265
          %v1278 = vadd.f32 %v1209, %v1266
          %v1279 = vadd.f32 %v1210, %v1265
          %v1280 = vadd.f32 %v1211, %v1266
          %v1281 = vadd.f32 %v1212, %v1265
          %v1282 = vadd.f32 %v1213, %v1266
          %v1283 = vadd.f32 %v1214, %v1265
          %v1284 = vadd.f32 %v1215, %v1266
          %v1285 = vadd.f32 %v1216, %v1265
          %v1286 = vadd.f32 %v1217, %v1266
          %v1287 = vadd.f32 %v1218, %v1265
          %v1288 = vadd.f32 %v1219, %v1266
          %v1289 = vadd.f32 %v1220, %v1265
          %v1290 = vadd.f32 %v1221, %v1266
          %v1291 = vadd.f32 %v1222, %v1265
          %v1292 = vadd.f32 %v1223, %v1266
          %v1293 = vadd.f32 %v1224, %v1265
          %v1294 = vadd.f32 %v1225, %v1266
          %v1295 = vadd.f32 %v1226, %v1265
          %v1296 = vadd.f32 %v1227, %v1266
          %v1297 = vadd.f32 %v1228, %v1265
          %v1298 = vadd.f32 %v1229, %v1266
          %v1299 = vadd.f32 %v1230, %v1265
          %v1300 = vadd.f32 %v1231, %v1266
          %v1301 = vadd.f32 %v1232, %v1265
          %v1302 = vadd.f32 %v1233, %v1266
          %v1303 = vadd.f32 %v1234, %v1265
          %v1304 = vadd.f32 %v1235, %v1266
          %v1305 = vadd.f32 %v1236, %v1265
          %v1306 = vadd.f32 %v1237, %v1266
          %v1307 = vadd.f32 %v1238, %v1265
          %v1308 = vadd.f32 %v1239, %v1266
          %v1309 = vadd.f32 %v1240, %v1265
          %v1310 = vadd.f32 %v1241, %v1266
          %v1311 = vadd.f32 %v1242, %v1265
          %v1312 = vadd.f32 %v1243, %v1266
          %v1313 = vadd.f32 %v1244, %v1265
          %v1314 = vadd.f32 %v1245, %v1266
          %v1315 = vadd.f32 %v1246, %v1265
          %v1316 = vadd.f32 %v1247, %v1266
          %v1317 = vadd.f32 %v1248, %v1265
          %v1318 = vadd.f32 %v1249, %v1266
          %v1319 = vadd.f32 %v1250, %v1265
          %v1320 = vadd.f32 %v1251, %v1266
          %v1321 = vadd.f32 %v1252, %v1265
          %v1322 = vadd.f32 %v1253, %v1266
          %v1323 = vadd.f32 %v1254, %v1265
          %v1324 = vadd.f32 %v1255, %v1266
          %v1325 = vadd.f32 %v1256, %v1265
          %v1326 = vadd.f32 %v1257, %v1266
          %v1327 = vadd.f32 %v1258, %v1265
          %v1328 = vadd.f32 %v1259, %v1266
          %v1329 = vadd.f32 %v1260, %v1265
          %v1330 = vadd.f32 %v1261, %v1266
          %v1331 = vadd.f32 %v1262, %v1265
          %v1332 = vadd.f32 %v1263, %v1266
          %1333 = vst [vmem:[#allocation2] sm:$0xff] %v1269
          %1334 = vst [vmem:[#allocation2 + $0x8] sm:$0xff] %v1270
          %1335 = vst [vmem:[#allocation2 + $0x10] sm:$0xff] %v1271
          %1336 = vst [vmem:[#allocation2 + $0x18] sm:$0xff] %v1272
          %1337 = vst [vmem:[#allocation2 + $0x20] sm:$0xff] %v1273
          %1338 = vst [vmem:[#allocation2 + $0x28] sm:$0xff] %v1274
          %1339 = vst [vmem:[#allocation2 + $0x30] sm:$0xff] %v1275
          %1340 = vst [vmem:[#allocation2 + $0x38] sm:$0xff] %v1276
          %1341 = vst [vmem:[#allocation2 + $0x40] sm:$0xff] %v1277
          %1342 = vst [vmem:[#allocation2 + $0x48] sm:$0xff] %v1278
          %1343 = vst [vmem:[#allocation2 + $0x50] sm:$0xff] %v1279
          %1344 = vst [vmem:[#allocation2 + $0x58] sm:$0xff] %v1280
          %1345 = vst [vmem:[#allocation2 + $0x60] sm:$0xff] %v1281
          %1346 = vst [vmem:[#allocation2 + $0x68] sm:$0xff] %v1282
          %1347 = vst [vmem:[#allocation2 + $0x70] sm:$0xff] %v1283
          %1348 = vst [vmem:[#allocation2 + $0x78] sm:$0xff] %v1284
          %1349 = vst [vmem:[#allocation2 + $0x80] sm:$0xff] %v1285
          %1350 = vst [vmem:[#allocation2 + $0x88] sm:$0xff] %v1286
          %1351 = vst [vmem:[#allocation2 + $0x90] sm:$0xff] %v1287
          %1352 = vst [vmem:[#allocation2 + $0x98] sm:$0xff] %v1288
          %1353 = vst [vmem:[#allocation2 + $0xa0] sm:$0xff] %v1289
          %1354 = vst [vmem:[#allocation2 + $0xa8] sm:$0xff] %v1290
          %1355 = vst [vmem:[#allocation2 + $0xb0] sm:$0xff] %v1291
          %1356 = vst [vmem:[#allocation2 + $0xb8] sm:$0xff] %v1292
          %1357 = vst [vmem:[#allocation2 + $0xc0] sm:$0xff] %v1293
          %1358 = vst [vmem:[#allocation2 + $0xc8] sm:$0xff] %v1294
          %1359 = vst [vmem:[#allocation2 + $0xd0] sm:$0xff] %v1295
          %1360 = vst [vmem:[#allocation2 + $0xd8] sm:$0xff] %v1296
          %1361 = vst [vmem:[#allocation2 + $0xe0] sm:$0xff] %v1297
          %1362 = vst [vmem:[#allocation2 + $0xe8] sm:$0xff] %v1298
          %1363 = vst [vmem:[#allocation2 + $0xf0] sm:$0xff] %v1299
          %1364 = vst [vmem:[#allocation2 + $0xf8] sm:$0xff] %v1300
          %1365 = vst [vmem:[#allocation2 + $0x100] sm:$0xff] %v1301
          %1366 = vst [vmem:[#allocation2 + $0x108] sm:$0xff] %v1302
          %1367 = vst [vmem:[#allocation2 + $0x110] sm:$0xff] %v1303
          %1368 = vst [vmem:[#allocation2 + $0x118] sm:$0xff] %v1304
          %1369 = vst [vmem:[#allocation2 + $0x120] sm:$0xff] %v1305
          %1370 = vst [vmem:[#allocation2 + $0x128] sm:$0xff] %v1306
          %1371 = vst [vmem:[#allocation2 + $0x130] sm:$0xff] %v1307
          %1372 = vst [vmem:[#allocation2 + $0x138] sm:$0xff] %v1308
          %1373 = vst [vmem:[#allocation2 + $0x140] sm:$0xff] %v1309
          %1374 = vst [vmem:[#allocation2 + $0x148] sm:$0xff] %v1310
          %1375 = vst [vmem:[#allocation2 + $0x150] sm:$0xff] %v1311
          %1376 = vst [vmem:[#allocation2 + $0x158] sm:$0xff] %v1312
          %1377 = vst [vmem:[#allocation2 + $0x160] sm:$0xff] %v1313
          %1378 = vst [vmem:[#allocation2 + $0x168] sm:$0xff] %v1314
          %1379 = vst [vmem:[#allocation2 + $0x170] sm:$0xff] %v1315
          %1380 = vst [vmem:[#allocation2 + $0x178] sm:$0xff] %v1316
          %1381 = vst [vmem:[#allocation2 + $0x180] sm:$0xff] %v1317
          %1382 = vst [vmem:[#allocation2 + $0x188] sm:$0xff] %v1318
          %1383 = vst [vmem:[#allocation2 + $0x190] sm:$0xff] %v1319
          %1384 = vst [vmem:[#allocation2 + $0x198] sm:$0xff] %v1320
          %1385 = vst [vmem:[#allocation2 + $0x1a0] sm:$0xff] %v1321
          %1386 = vst [vmem:[#allocation2 + $0x1a8] sm:$0xff] %v1322
          %1387 = vst [vmem:[#allocation2 + $0x1b0] sm:$0xff] %v1323
          %1388 = vst [vmem:[#allocation2 + $0x1b8] sm:$0xff] %v1324
          %1389 = vst [vmem:[#allocation2 + $0x1c0] sm:$0xff] %v1325
          %1390 = vst [vmem:[#allocation2 + $0x1c8] sm:$0xff] %v1326
          %1391 = vst [vmem:[#allocation2 + $0x1d0] sm:$0xff] %v1327
          %1392 = vst [vmem:[#allocation2 + $0x1d8] sm:$0xff] %v1328
          %1393 = vst [vmem:[#allocation2 + $0x1e0] sm:$0xff] %v1329
          %1394 = vst [vmem:[#allocation2 + $0x1e8] sm:$0xff] %v1330
          %1395 = vst [vmem:[#allocation2 + $0x1f0] sm:$0xff] %v1331
          %1396 = vst [vmem:[#allocation2 + $0x1f8] sm:$0xff] %v1332
          %v1397 = vld [vmem:[#allocation2] sm:$0xff]
          %v1398 = vld [vmem:[#allocation2 + $0x8] sm:$0xff]
          %v1399 = vld [vmem:[#allocation2 + $0x10] sm:$0xff]
          %v1400 = vld [vmem:[#allocation2 + $0x18] sm:$0xff]
          %v1401 = vld [vmem:[#allocation2 + $0x20] sm:$0xff]
          %v1402 = vld [vmem:[#allocation2 + $0x28] sm:$0xff]
          %v1403 = vld [vmem:[#allocation2 + $0x30] sm:$0xff]
          %v1404 = vld [vmem:[#allocation2 + $0x38] sm:$0xff]
          %v1405 = vld [vmem:[#allocation2 + $0x40] sm:$0xff]
          %v1406 = vld [vmem:[#allocation2 + $0x48] sm:$0xff]
          %v1407 = vld [vmem:[#allocation2 + $0x50] sm:$0xff]
          %v1408 = vld [vmem:[#allocation2 + $0x58] sm:$0xff]
          %v1409 = vld [vmem:[#allocation2 + $0x60] sm:$0xff]
          %v1410 = vld [vmem:[#allocation2 + $0x68] sm:$0xff]
          %v1411 = vld [vmem:[#allocation2 + $0x70] sm:$0xff]
          %v1412 = vld [vmem:[#allocation2 + $0x78] sm:$0xff]
          %v1413 = vld [vmem:[#allocation2 + $0x80] sm:$0xff]
          %v1414 = vld [vmem:[#allocation2 + $0x88] sm:$0xff]
          %v1415 = vld [vmem:[#allocation2 + $0x90] sm:$0xff]
          %v1416 = vld [vmem:[#allocation2 + $0x98] sm:$0xff]
          %v1417 = vld [vmem:[#allocation2 + $0xa0] sm:$0xff]
          %v1418 = vld [vmem:[#allocation2 + $0xa8] sm:$0xff]
          %v1419 = vld [vmem:[#allocation2 + $0xb0] sm:$0xff]
          %v1420 = vld [vmem:[#allocation2 + $0xb8] sm:$0xff]
          %v1421 = vld [vmem:[#allocation2 + $0xc0] sm:$0xff]
          %v1422 = vld [vmem:[#allocation2 + $0xc8] sm:$0xff]
          %v1423 = vld [vmem:[#allocation2 + $0xd0] sm:$0xff]
          %v1424 = vld [vmem:[#allocation2 + $0xd8] sm:$0xff]
          %v1425 = vld [vmem:[#allocation2 + $0xe0] sm:$0xff]
          %v1426 = vld [vmem:[#allocation2 + $0xe8] sm:$0xff]
          %v1427 = vld [vmem:[#allocation2 + $0xf0] sm:$0xff]
          %v1428 = vld [vmem:[#allocation2 + $0xf8] sm:$0xff]
          %v1429 = vld [vmem:[#allocation2 + $0x100] sm:$0xff]
          %v1430 = vld [vmem:[#allocation2 + $0x108] sm:$0xff]
          %v1431 = vld [vmem:[#allocation2 + $0x110] sm:$0xff]
          %v1432 = vld [vmem:[#allocation2 + $0x118] sm:$0xff]
          %v1433 = vld [vmem:[#allocation2 + $0x120] sm:$0xff]
          %v1434 = vld [vmem:[#allocation2 + $0x128] sm:$0xff]
          %v1435 = vld [vmem:[#allocation2 + $0x130] sm:$0xff]
          %v1436 = vld [vmem:[#allocation2 + $0x138] sm:$0xff]
          %v1437 = vld [vmem:[#allocation2 + $0x140] sm:$0xff]
          %v1438 = vld [vmem:[#allocation2 + $0x148] sm:$0xff]
          %v1439 = vld [vmem:[#allocation2 + $0x150] sm:$0xff]
          %v1440 = vld [vmem:[#allocation2 + $0x158] sm:$0xff]
          %v1441 = vld [vmem:[#allocation2 + $0x160] sm:$0xff]
          %v1442 = vld [vmem:[#allocation2 + $0x168] sm:$0xff]
          %v1443 = vld [vmem:[#allocation2 + $0x170] sm:$0xff]
          %v1444 = vld [vmem:[#allocation2 + $0x178] sm:$0xff]
          %v1445 = vld [vmem:[#allocation2 + $0x180] sm:$0xff]
          %v1446 = vld [vmem:[#allocation2 + $0x188] sm:$0xff]
          %v1447 = vld [vmem:[#allocation2 + $0x190] sm:$0xff]
          %v1448 = vld [vmem:[#allocation2 + $0x198] sm:$0xff]
          %v1449 = vld [vmem:[#allocation2 + $0x1a0] sm:$0xff]
          %v1450 = vld [vmem:[#allocation2 + $0x1a8] sm:$0xff]
          %v1451 = vld [vmem:[#allocation2 + $0x1b0] sm:$0xff]
          %v1452 = vld [vmem:[#allocation2 + $0x1b8] sm:$0xff]
          %v1453 = vld [vmem:[#allocation2 + $0x1c0] sm:$0xff]
          %v1454 = vld [vmem:[#allocation2 + $0x1c8] sm:$0xff]
          %v1455 = vld [vmem:[#allocation2 + $0x1d0] sm:$0xff]
          %v1456 = vld [vmem:[#allocation2 + $0x1d8] sm:$0xff]
          %v1457 = vld [vmem:[#allocation2 + $0x1e0] sm:$0xff]
          %v1458 = vld [vmem:[#allocation2 + $0x1e8] sm:$0xff]
          %v1459 = vld [vmem:[#allocation2 + $0x1f0] sm:$0xff]
          %v1460 = vld [vmem:[#allocation2 + $0x1f8] sm:$0xff]
          %v1461 = vpack.c.bf16 %v1399, %v1397
          %v1462 = vpack.c.bf16 %v1400, %v1398
          %v1463 = vpack.c.bf16 %v1403, %v1401
          %v1464 = vpack.c.bf16 %v1404, %v1402
          %v1465 = vpack.c.bf16 %v1407, %v1405
          %v1466 = vpack.c.bf16 %v1408, %v1406
          %v1467 = vpack.c.bf16 %v1411, %v1409
          %v1468 = vpack.c.bf16 %v1412, %v1410
          %v1469 = vpack.c.bf16 %v1415, %v1413
          %v1470 = vpack.c.bf16 %v1416, %v1414
          %v1471 = vpack.c.bf16 %v1419, %v1417
          %v1472 = vpack.c.bf16 %v1420, %v1418
          %v1473 = vpack.c.bf16 %v1423, %v1421
          %v1474 = vpack.c.bf16 %v1424, %v1422
          %v1475 = vpack.c.bf16 %v1427, %v1425
          %v1476 = vpack.c.bf16 %v1428, %v1426
          %v1477 = vpack.c.bf16 %v1431, %v1429
          %v1478 = vpack.c.bf16 %v1432, %v1430
          %v1479 = vpack.c.bf16 %v1435, %v1433
          %v1480 = vpack.c.bf16 %v1436, %v1434
          %v1481 = vpack.c.bf16 %v1439, %v1437
          %v1482 = vpack.c.bf16 %v1440, %v1438
          %v1483 = vpack.c.bf16 %v1443, %v1441
          %v1484 = vpack.c.bf16 %v1444, %v1442
          %v1485 = vpack.c.bf16 %v1447, %v1445
          %v1486 = vpack.c.bf16 %v1448, %v1446
          %v1487 = vpack.c.bf16 %v1451, %v1449
          %v1488 = vpack.c.bf16 %v1452, %v1450
          %v1489 = vpack.c.bf16 %v1455, %v1453
          %v1490 = vpack.c.bf16 %v1456, %v1454
          %v1491 = vpack.c.bf16 %v1459, %v1457
          %v1492 = vpack.c.bf16 %v1460, %v1458
          %v1493 = vld [vmem:[#allocation8] sm:$0xff]
          %v1494 = vld [vmem:[#allocation8 + $0x8] sm:$0xff]
          %v1495 = vld [vmem:[#allocation8 + $0x10] sm:$0xff]
          %v1496 = vld [vmem:[#allocation8 + $0x18] sm:$0xff]
          %v1497 = vld [vmem:[#allocation8 + $0x20] sm:$0xff]
          %v1498 = vld [vmem:[#allocation8 + $0x28] sm:$0xff]
          %v1499 = vld [vmem:[#allocation8 + $0x30] sm:$0xff]
          %v1500 = vld [vmem:[#allocation8 + $0x38] sm:$0xff]
          %v1501 = vld [vmem:[#allocation8 + $0x40] sm:$0xff]
          %v1502 = vld [vmem:[#allocation8 + $0x48] sm:$0xff]
          %v1503 = vld [vmem:[#allocation8 + $0x50] sm:$0xff]
          %v1504 = vld [vmem:[#allocation8 + $0x58] sm:$0xff]
          %v1505 = vld [vmem:[#allocation8 + $0x60] sm:$0xff]
          %v1506 = vld [vmem:[#allocation8 + $0x68] sm:$0xff]
          %v1507 = vld [vmem:[#allocation8 + $0x70] sm:$0xff]
          %v1508 = vld [vmem:[#allocation8 + $0x78] sm:$0xff]
          %v1509 = vld [vmem:[#allocation8 + $0x80] sm:$0xff]
          %v1510 = vld [vmem:[#allocation8 + $0x88] sm:$0xff]
          %v1511 = vld [vmem:[#allocation8 + $0x90] sm:$0xff]
          %v1512 = vld [vmem:[#allocation8 + $0x98] sm:$0xff]
          %v1513 = vld [vmem:[#allocation8 + $0xa0] sm:$0xff]
          %v1514 = vld [vmem:[#allocation8 + $0xa8] sm:$0xff]
          %v1515 = vld [vmem:[#allocation8 + $0xb0] sm:$0xff]
          %v1516 = vld [vmem:[#allocation8 + $0xb8] sm:$0xff]
          %v1517 = vld [vmem:[#allocation8 + $0xc0] sm:$0xff]
          %v1518 = vld [vmem:[#allocation8 + $0xc8] sm:$0xff]
          %v1519 = vld [vmem:[#allocation8 + $0xd0] sm:$0xff]
          %v1520 = vld [vmem:[#allocation8 + $0xd8] sm:$0xff]
          %v1521 = vld [vmem:[#allocation8 + $0xe0] sm:$0xff]
          %v1522 = vld [vmem:[#allocation8 + $0xe8] sm:$0xff]
          %v1523 = vld [vmem:[#allocation8 + $0xf0] sm:$0xff]
          %v1524 = vld [vmem:[#allocation8 + $0xf8] sm:$0xff]
          %v1526 = vperm.slane %v1195, 0
          %v1527 = vperm.slane %v1195, 1
          %v1562 = vunpack.c.l.b16 %v1493
          %v1563 = vunpack.c.h.b16 %v1493
          %v1564 = vunpack.c.l.b16 %v1494
          %v1565 = vunpack.c.h.b16 %v1494
          %v1566 = vunpack.c.l.b16 %v1495
          %v1567 = vunpack.c.h.b16 %v1495
          %v1568 = vunpack.c.l.b16 %v1496
          %v1569 = vunpack.c.h.b16 %v1496
          %v1570 = vunpack.c.l.b16 %v1497
          %v1571 = vunpack.c.h.b16 %v1497
          %v1572 = vunpack.c.l.b16 %v1498
          %v1573 = vunpack.c.h.b16 %v1498
          %v1574 = vunpack.c.l.b16 %v1499
          %v1575 = vunpack.c.h.b16 %v1499
          %v1576 = vunpack.c.l.b16 %v1500
          %v1577 = vunpack.c.h.b16 %v1500
          %v1578 = vunpack.c.l.b16 %v1501
          %v1579 = vunpack.c.h.b16 %v1501
          %v1580 = vunpack.c.l.b16 %v1502
          %v1581 = vunpack.c.h.b16 %v1502
          %v1582 = vunpack.c.l.b16 %v1503
          %v1583 = vunpack.c.h.b16 %v1503
          %v1584 = vunpack.c.l.b16 %v1504
          %v1585 = vunpack.c.h.b16 %v1504
          %v1586 = vunpack.c.l.b16 %v1505
          %v1587 = vunpack.c.h.b16 %v1505
          %v1588 = vunpack.c.l.b16 %v1506
          %v1589 = vunpack.c.h.b16 %v1506
          %v1590 = vunpack.c.l.b16 %v1507
          %v1591 = vunpack.c.h.b16 %v1507
          %v1592 = vunpack.c.l.b16 %v1508
          %v1593 = vunpack.c.h.b16 %v1508
          %v1594 = vunpack.c.l.b16 %v1509
          %v1595 = vunpack.c.h.b16 %v1509
          %v1596 = vunpack.c.l.b16 %v1510
          %v1597 = vunpack.c.h.b16 %v1510
          %v1598 = vunpack.c.l.b16 %v1511
          %v1599 = vunpack.c.h.b16 %v1511
          %v1600 = vunpack.c.l.b16 %v1512
          %v1601 = vunpack.c.h.b16 %v1512
          %v1602 = vunpack.c.l.b16 %v1513
          %v1603 = vunpack.c.h.b16 %v1513
          %v1604 = vunpack.c.l.b16 %v1514
          %v1605 = vunpack.c.h.b16 %v1514
          %v1606 = vunpack.c.l.b16 %v1515
          %v1607 = vunpack.c.h.b16 %v1515
          %v1608 = vunpack.c.l.b16 %v1516
          %v1609 = vunpack.c.h.b16 %v1516
          %v1610 = vunpack.c.l.b16 %v1517
          %v1611 = vunpack.c.h.b16 %v1517
          %v1612 = vunpack.c.l.b16 %v1518
          %v1613 = vunpack.c.h.b16 %v1518
          %v1614 = vunpack.c.l.b16 %v1519
          %v1615 = vunpack.c.h.b16 %v1519
          %v1616 = vunpack.c.l.b16 %v1520
          %v1617 = vunpack.c.h.b16 %v1520
          %v1618 = vunpack.c.l.b16 %v1521
          %v1619 = vunpack.c.h.b16 %v1521
          %v1620 = vunpack.c.l.b16 %v1522
          %v1621 = vunpack.c.h.b16 %v1522
          %v1622 = vunpack.c.l.b16 %v1523
          %v1623 = vunpack.c.h.b16 %v1523
          %v1624 = vunpack.c.l.b16 %v1524
          %v1625 = vunpack.c.h.b16 %v1524
          %v1626 = vpack.c.b16 %v1564, %v1562
          %v1627 = vpack.c.b16 %v1565, %v1563
          %v1628 = vpack.c.b16 %v1568, %v1566
          %v1629 = vpack.c.b16 %v1569, %v1567
          %v1630 = vpack.c.b16 %v1572, %v1570
          %v1631 = vpack.c.b16 %v1573, %v1571
          %v1632 = vpack.c.b16 %v1576, %v1574
          %v1633 = vpack.c.b16 %v1577, %v1575
          %v1634 = vpack.c.b16 %v1580, %v1578
          %v1635 = vpack.c.b16 %v1581, %v1579
          %v1636 = vpack.c.b16 %v1584, %v1582
          %v1637 = vpack.c.b16 %v1585, %v1583
          %v1638 = vpack.c.b16 %v1588, %v1586
          %v1639 = vpack.c.b16 %v1589, %v1587
          %v1640 = vpack.c.b16 %v1592, %v1590
          %v1641 = vpack.c.b16 %v1593, %v1591
          %v1642 = vpack.c.b16 %v1596, %v1594
          %v1643 = vpack.c.b16 %v1597, %v1595
          %v1644 = vpack.c.b16 %v1600, %v1598
          %v1645 = vpack.c.b16 %v1601, %v1599
          %v1646 = vpack.c.b16 %v1604, %v1602
          %v1647 = vpack.c.b16 %v1605, %v1603
          %v1648 = vpack.c.b16 %v1608, %v1606
          %v1649 = vpack.c.b16 %v1609, %v1607
          %v1650 = vpack.c.b16 %v1612, %v1610
          %v1651 = vpack.c.b16 %v1613, %v1611
          %v1652 = vpack.c.b16 %v1616, %v1614
          %v1653 = vpack.c.b16 %v1617, %v1615
          %v1654 = vpack.c.b16 %v1620, %v1618
          %v1655 = vpack.c.b16 %v1621, %v1619
          %v1656 = vpack.c.b16 %v1624, %v1622
          %v1657 = vpack.c.b16 %v1625, %v1623
          %1690 = vmatpush.bf16.msra.mxu0 %v1640
          %1691 = vmatpush.bf16.msra.mxu0 %v1638
          %1692 = vmatpush.bf16.msra.mxu0 %v1636
          %1693 = vmatpush.bf16.msra.mxu0 %v1634
          %1694 = vmatpush.bf16.msra.mxu0 %v1632
          %1695 = vmatpush.bf16.msra.mxu0 %v1630
          %1696 = vmatpush.bf16.msra.mxu0 %v1628
          %1697 = vmatpush.bf16.msra.mxu0 %v1626
          %1698 = vmatmul.bf16.gmra.mxu0 %v1461
          %v1699 = vpop.f32.mrf.mxu0
          %v1700 = vadd.f32 %v1526, %v1699
          %v1701 = vpop.f32.mrf.mxu0
          %v1702 = vadd.f32 %v1526, %v1701
          %1703 = vmatmul.bf16.gmra.mxu0 %v1463
          %v1704 = vpop.f32.mrf.mxu0
          %v1705 = vadd.f32 %v1526, %v1704
          %v1706 = vpop.f32.mrf.mxu0
          %v1707 = vadd.f32 %v1526, %v1706
          %1708 = vmatmul.bf16.gmra.mxu0 %v1465
          %v1709 = vpop.f32.mrf.mxu0
          %v1710 = vadd.f32 %v1526, %v1709
          %v1711 = vpop.f32.mrf.mxu0
          %v1712 = vadd.f32 %v1526, %v1711
          %1713 = vmatmul.bf16.gmra.mxu0 %v1467
          %v1714 = vpop.f32.mrf.mxu0
          %v1715 = vadd.f32 %v1526, %v1714
          %v1716 = vpop.f32.mrf.mxu0
          %v1717 = vadd.f32 %v1526, %v1716
          %1718 = vmatmul.bf16.gmra.mxu0 %v1469
          %v1719 = vpop.f32.mrf.mxu0
          %v1720 = vadd.f32 %v1526, %v1719
          %v1721 = vpop.f32.mrf.mxu0
          %v1722 = vadd.f32 %v1526, %v1721
          %1723 = vmatmul.bf16.gmra.mxu0 %v1471
          %v1724 = vpop.f32.mrf.mxu0
          %v1725 = vadd.f32 %v1526, %v1724
          %v1726 = vpop.f32.mrf.mxu0
          %v1727 = vadd.f32 %v1526, %v1726
          %1728 = vmatmul.bf16.gmra.mxu0 %v1473
          %v1729 = vpop.f32.mrf.mxu0
          %v1730 = vadd.f32 %v1526, %v1729
          %v1731 = vpop.f32.mrf.mxu0
          %v1732 = vadd.f32 %v1526, %v1731
          %1733 = vmatmul.bf16.gmra.mxu0 %v1475
          %v1734 = vpop.f32.mrf.mxu0
          %v1735 = vadd.f32 %v1526, %v1734
          %v1736 = vpop.f32.mrf.mxu0
          %v1737 = vadd.f32 %v1526, %v1736
          %1738 = vmatmul.bf16.gmra.mxu0 %v1477
          %v1739 = vpop.f32.mrf.mxu0
          %v1740 = vadd.f32 %v1526, %v1739
          %v1741 = vpop.f32.mrf.mxu0
          %v1742 = vadd.f32 %v1526, %v1741
          %1743 = vmatmul.bf16.gmra.mxu0 %v1479
          %v1744 = vpop.f32.mrf.mxu0
          %v1745 = vadd.f32 %v1526, %v1744
          %v1746 = vpop.f32.mrf.mxu0
          %v1747 = vadd.f32 %v1526, %v1746
          %1748 = vmatmul.bf16.gmra.mxu0 %v1481
          %v1749 = vpop.f32.mrf.mxu0
          %v1750 = vadd.f32 %v1526, %v1749
          %v1751 = vpop.f32.mrf.mxu0
          %v1752 = vadd.f32 %v1526, %v1751
          %1753 = vmatmul.bf16.gmra.mxu0 %v1483
          %v1754 = vpop.f32.mrf.mxu0
          %v1755 = vadd.f32 %v1526, %v1754
          %v1756 = vpop.f32.mrf.mxu0
          %v1757 = vadd.f32 %v1526, %v1756
          %1758 = vmatmul.bf16.gmra.mxu0 %v1485
          %v1759 = vpop.f32.mrf.mxu0
          %v1760 = vadd.f32 %v1526, %v1759
          %v1761 = vpop.f32.mrf.mxu0
          %v1762 = vadd.f32 %v1526, %v1761
          %1763 = vmatmul.bf16.gmra.mxu0 %v1487
          %v1764 = vpop.f32.mrf.mxu0
          %v1765 = vadd.f32 %v1526, %v1764
          %v1766 = vpop.f32.mrf.mxu0
          %v1767 = vadd.f32 %v1526, %v1766
          %1768 = vmatmul.bf16.gmra.mxu0 %v1489
          %v1769 = vpop.f32.mrf.mxu0
          %v1770 = vadd.f32 %v1526, %v1769
          %v1771 = vpop.f32.mrf.mxu0
          %v1772 = vadd.f32 %v1526, %v1771
          %1773 = vmatmul.bf16.gmra.mxu0 %v1491
          %v1774 = vpop.f32.mrf.mxu0
          %v1775 = vadd.f32 %v1526, %v1774
          %v1776 = vpop.f32.mrf.mxu0
          %v1777 = vadd.f32 %v1526, %v1776
          %1778 = vdwg.mxu0
          %1779 = vmatpush.bf16.msra.mxu0 %v1656
          %1780 = vmatpush.bf16.msra.mxu0 %v1654
          %1781 = vmatpush.bf16.msra.mxu0 %v1652
          %1782 = vmatpush.bf16.msra.mxu0 %v1650
          %1783 = vmatpush.bf16.msra.mxu0 %v1648
          %1784 = vmatpush.bf16.msra.mxu0 %v1646
          %1785 = vmatpush.bf16.msra.mxu0 %v1644
          %1786 = vmatpush.bf16.msra.mxu0 %v1642
          %1787 = vmatmul.bf16.gmra.mxu0 %v1462
          %v1788 = vpop.f32.mrf.mxu0
          %v1789 = vadd.f32 %v1700, %v1788
          %v1790 = vpop.f32.mrf.mxu0
          %v1791 = vadd.f32 %v1702, %v1790
          %1792 = vmatmul.bf16.gmra.mxu0 %v1464
          %v1793 = vpop.f32.mrf.mxu0
          %v1794 = vadd.f32 %v1705, %v1793
          %v1795 = vpop.f32.mrf.mxu0
          %v1796 = vadd.f32 %v1707, %v1795
          %1797 = vmatmul.bf16.gmra.mxu0 %v1466
          %v1798 = vpop.f32.mrf.mxu0
          %v1799 = vadd.f32 %v1710, %v1798
          %v1800 = vpop.f32.mrf.mxu0
          %v1801 = vadd.f32 %v1712, %v1800
          %1802 = vmatmul.bf16.gmra.mxu0 %v1468
          %v1803 = vpop.f32.mrf.mxu0
          %v1804 = vadd.f32 %v1715, %v1803
          %v1805 = vpop.f32.mrf.mxu0
          %v1806 = vadd.f32 %v1717, %v1805
          %1807 = vmatmul.bf16.gmra.mxu0 %v1470
          %v1808 = vpop.f32.mrf.mxu0
          %v1809 = vadd.f32 %v1720, %v1808
          %v1810 = vpop.f32.mrf.mxu0
          %v1811 = vadd.f32 %v1722, %v1810
          %1812 = vmatmul.bf16.gmra.mxu0 %v1472
          %v1813 = vpop.f32.mrf.mxu0
          %v1814 = vadd.f32 %v1725, %v1813
          %v1815 = vpop.f32.mrf.mxu0
          %v1816 = vadd.f32 %v1727, %v1815
          %1817 = vmatmul.bf16.gmra.mxu0 %v1474
          %v1818 = vpop.f32.mrf.mxu0
          %v1819 = vadd.f32 %v1730, %v1818
          %v1820 = vpop.f32.mrf.mxu0
          %v1821 = vadd.f32 %v1732, %v1820
          %1822 = vmatmul.bf16.gmra.mxu0 %v1476
          %v1823 = vpop.f32.mrf.mxu0
          %v1824 = vadd.f32 %v1735, %v1823
          %v1825 = vpop.f32.mrf.mxu0
          %v1826 = vadd.f32 %v1737, %v1825
          %1827 = vmatmul.bf16.gmra.mxu0 %v1478
          %v1828 = vpop.f32.mrf.mxu0
          %v1829 = vadd.f32 %v1740, %v1828
          %v1830 = vpop.f32.mrf.mxu0
          %v1831 = vadd.f32 %v1742, %v1830
          %1832 = vmatmul.bf16.gmra.mxu0 %v1480
          %v1833 = vpop.f32.mrf.mxu0
          %v1834 = vadd.f32 %v1745, %v1833
          %v1835 = vpop.f32.mrf.mxu0
          %v1836 = vadd.f32 %v1747, %v1835
          %1837 = vmatmul.bf16.gmra.mxu0 %v1482
          %v1838 = vpop.f32.mrf.mxu0
          %v1839 = vadd.f32 %v1750, %v1838
          %v1840 = vpop.f32.mrf.mxu0
          %v1841 = vadd.f32 %v1752, %v1840
          %1842 = vmatmul.bf16.gmra.mxu0 %v1484
          %v1843 = vpop.f32.mrf.mxu0
          %v1844 = vadd.f32 %v1755, %v1843
          %v1845 = vpop.f32.mrf.mxu0
          %v1846 = vadd.f32 %v1757, %v1845
          %1847 = vmatmul.bf16.gmra.mxu0 %v1486
          %v1848 = vpop.f32.mrf.mxu0
          %v1849 = vadd.f32 %v1760, %v1848
          %v1850 = vpop.f32.mrf.mxu0
          %v1851 = vadd.f32 %v1762, %v1850
          %1852 = vmatmul.bf16.gmra.mxu0 %v1488
          %v1853 = vpop.f32.mrf.mxu0
          %v1854 = vadd.f32 %v1765, %v1853
          %v1855 = vpop.f32.mrf.mxu0
          %v1856 = vadd.f32 %v1767, %v1855
          %1857 = vmatmul.bf16.gmra.mxu0 %v1490
          %v1858 = vpop.f32.mrf.mxu0
          %v1859 = vadd.f32 %v1770, %v1858
          %v1860 = vpop.f32.mrf.mxu0
          %v1861 = vadd.f32 %v1772, %v1860
          %1862 = vmatmul.bf16.gmra.mxu0 %v1492
          %v1863 = vpop.f32.mrf.mxu0
          %v1864 = vadd.f32 %v1775, %v1863
          %v1865 = vpop.f32.mrf.mxu0
          %v1866 = vadd.f32 %v1777, %v1865
          %1867 = vdwg.mxu0
          %1868 = vmatpush.bf16.msra.mxu0 %v1641
          %1869 = vmatpush.bf16.msra.mxu0 %v1639
          %1870 = vmatpush.bf16.msra.mxu0 %v1637
          %1871 = vmatpush.bf16.msra.mxu0 %v1635
          %1872 = vmatpush.bf16.msra.mxu0 %v1633
          %1873 = vmatpush.bf16.msra.mxu0 %v1631
          %1874 = vmatpush.bf16.msra.mxu0 %v1629
          %1875 = vmatpush.bf16.msra.mxu0 %v1627
          %1876 = vmatmul.bf16.gmra.mxu0 %v1461
          %v1877 = vpop.f32.mrf.mxu0
          %v1878 = vadd.f32 %v1527, %v1877
          %v1879 = vpop.f32.mrf.mxu0
          %v1880 = vadd.f32 %v1527, %v1879
          %1881 = vmatmul.bf16.gmra.mxu0 %v1463
          %v1882 = vpop.f32.mrf.mxu0
          %v1883 = vadd.f32 %v1527, %v1882
          %v1884 = vpop.f32.mrf.mxu0
          %v1885 = vadd.f32 %v1527, %v1884
          %1886 = vmatmul.bf16.gmra.mxu0 %v1465
          %v1887 = vpop.f32.mrf.mxu0
          %v1888 = vadd.f32 %v1527, %v1887
          %v1889 = vpop.f32.mrf.mxu0
          %v1890 = vadd.f32 %v1527, %v1889
          %1891 = vmatmul.bf16.gmra.mxu0 %v1467
          %v1892 = vpop.f32.mrf.mxu0
          %v1893 = vadd.f32 %v1527, %v1892
          %v1894 = vpop.f32.mrf.mxu0
          %v1895 = vadd.f32 %v1527, %v1894
          %1896 = vmatmul.bf16.gmra.mxu0 %v1469
          %v1897 = vpop.f32.mrf.mxu0
          %v1898 = vadd.f32 %v1527, %v1897
          %v1899 = vpop.f32.mrf.mxu0
          %v1900 = vadd.f32 %v1527, %v1899
          %1901 = vmatmul.bf16.gmra.mxu0 %v1471
          %v1902 = vpop.f32.mrf.mxu0
          %v1903 = vadd.f32 %v1527, %v1902
          %v1904 = vpop.f32.mrf.mxu0
          %v1905 = vadd.f32 %v1527, %v1904
          %1906 = vmatmul.bf16.gmra.mxu0 %v1473
          %v1907 = vpop.f32.mrf.mxu0
          %v1908 = vadd.f32 %v1527, %v1907
          %v1909 = vpop.f32.mrf.mxu0
          %v1910 = vadd.f32 %v1527, %v1909
          %1911 = vmatmul.bf16.gmra.mxu0 %v1475
          %v1912 = vpop.f32.mrf.mxu0
          %v1913 = vadd.f32 %v1527, %v1912
          %v1914 = vpop.f32.mrf.mxu0
          %v1915 = vadd.f32 %v1527, %v1914
          %1916 = vmatmul.bf16.gmra.mxu0 %v1477
          %v1917 = vpop.f32.mrf.mxu0
          %v1918 = vadd.f32 %v1527, %v1917
          %v1919 = vpop.f32.mrf.mxu0
          %v1920 = vadd.f32 %v1527, %v1919
          %1921 = vmatmul.bf16.gmra.mxu0 %v1479
          %v1922 = vpop.f32.mrf.mxu0
          %v1923 = vadd.f32 %v1527, %v1922
          %v1924 = vpop.f32.mrf.mxu0
          %v1925 = vadd.f32 %v1527, %v1924
          %1926 = vmatmul.bf16.gmra.mxu0 %v1481
          %v1927 = vpop.f32.mrf.mxu0
          %v1928 = vadd.f32 %v1527, %v1927
          %v1929 = vpop.f32.mrf.mxu0
          %v1930 = vadd.f32 %v1527, %v1929
          %1931 = vmatmul.bf16.gmra.mxu0 %v1483
          %v1932 = vpop.f32.mrf.mxu0
          %v1933 = vadd.f32 %v1527, %v1932
          %v1934 = vpop.f32.mrf.mxu0
          %v1935 = vadd.f32 %v1527, %v1934
          %1936 = vmatmul.bf16.gmra.mxu0 %v1485
          %v1937 = vpop.f32.mrf.mxu0
          %v1938 = vadd.f32 %v1527, %v1937
          %v1939 = vpop.f32.mrf.mxu0
          %v1940 = vadd.f32 %v1527, %v1939
          %1941 = vmatmul.bf16.gmra.mxu0 %v1487
          %v1942 = vpop.f32.mrf.mxu0
          %v1943 = vadd.f32 %v1527, %v1942
          %v1944 = vpop.f32.mrf.mxu0
          %v1945 = vadd.f32 %v1527, %v1944
          %1946 = vmatmul.bf16.gmra.mxu0 %v1489
          %v1947 = vpop.f32.mrf.mxu0
          %v1948 = vadd.f32 %v1527, %v1947
          %v1949 = vpop.f32.mrf.mxu0
          %v1950 = vadd.f32 %v1527, %v1949
          %1951 = vmatmul.bf16.gmra.mxu0 %v1491
          %v1952 = vpop.f32.mrf.mxu0
          %v1953 = vadd.f32 %v1527, %v1952
          %v1954 = vpop.f32.mrf.mxu0
          %v1955 = vadd.f32 %v1527, %v1954
          %1956 = vdwg.mxu0
          %1957 = vmatpush.bf16.msra.mxu0 %v1657
          %1958 = vmatpush.bf16.msra.mxu0 %v1655
          %1959 = vmatpush.bf16.msra.mxu0 %v1653
          %1960 = vmatpush.bf16.msra.mxu0 %v1651
          %1961 = vmatpush.bf16.msra.mxu0 %v1649
          %1962 = vmatpush.bf16.msra.mxu0 %v1647
          %1963 = vmatpush.bf16.msra.mxu0 %v1645
          %1964 = vmatpush.bf16.msra.mxu0 %v1643
          %1965 = vmatmul.bf16.gmra.mxu0 %v1462
          %v1966 = vpop.f32.mrf.mxu0
          %v1967 = vadd.f32 %v1878, %v1966
          %v1968 = vpop.f32.mrf.mxu0
          %v1969 = vadd.f32 %v1880, %v1968
          %1970 = vmatmul.bf16.gmra.mxu0 %v1464
          %v1971 = vpop.f32.mrf.mxu0
          %v1972 = vadd.f32 %v1883, %v1971
          %v1973 = vpop.f32.mrf.mxu0
          %v1974 = vadd.f32 %v1885, %v1973
          %1975 = vmatmul.bf16.gmra.mxu0 %v1466
          %v1976 = vpop.f32.mrf.mxu0
          %v1977 = vadd.f32 %v1888, %v1976
          %v1978 = vpop.f32.mrf.mxu0
          %v1979 = vadd.f32 %v1890, %v1978
          %1980 = vmatmul.bf16.gmra.mxu0 %v1468
          %v1981 = vpop.f32.mrf.mxu0
          %v1982 = vadd.f32 %v1893, %v1981
          %v1983 = vpop.f32.mrf.mxu0
          %v1984 = vadd.f32 %v1895, %v1983
          %1985 = vmatmul.bf16.gmra.mxu0 %v1470
          %v1986 = vpop.f32.mrf.mxu0
          %v1987 = vadd.f32 %v1898, %v1986
          %v1988 = vpop.f32.mrf.mxu0
          %v1989 = vadd.f32 %v1900, %v1988
          %1990 = vmatmul.bf16.gmra.mxu0 %v1472
          %v1991 = vpop.f32.mrf.mxu0
          %v1992 = vadd.f32 %v1903, %v1991
          %v1993 = vpop.f32.mrf.mxu0
          %v1994 = vadd.f32 %v1905, %v1993
          %1995 = vmatmul.bf16.gmra.mxu0 %v1474
          %v1996 = vpop.f32.mrf.mxu0
          %v1997 = vadd.f32 %v1908, %v1996
          %v1998 = vpop.f32.mrf.mxu0
          %v1999 = vadd.f32 %v1910, %v1998
          %2000 = vmatmul.bf16.gmra.mxu0 %v1476
          %v2001 = vpop.f32.mrf.mxu0
          %v2002 = vadd.f32 %v1913, %v2001
          %v2003 = vpop.f32.mrf.mxu0
          %v2004 = vadd.f32 %v1915, %v2003
          %2005 = vmatmul.bf16.gmra.mxu0 %v1478
          %v2006 = vpop.f32.mrf.mxu0
          %v2007 = vadd.f32 %v1918, %v2006
          %v2008 = vpop.f32.mrf.mxu0
          %v2009 = vadd.f32 %v1920, %v2008
          %2010 = vmatmul.bf16.gmra.mxu0 %v1480
          %v2011 = vpop.f32.mrf.mxu0
          %v2012 = vadd.f32 %v1923, %v2011
          %v2013 = vpop.f32.mrf.mxu0
          %v2014 = vadd.f32 %v1925, %v2013
          %2015 = vmatmul.bf16.gmra.mxu0 %v1482
          %v2016 = vpop.f32.mrf.mxu0
          %v2017 = vadd.f32 %v1928, %v2016
          %v2018 = vpop.f32.mrf.mxu0
          %v2019 = vadd.f32 %v1930, %v2018
          %2020 = vmatmul.bf16.gmra.mxu0 %v1484
          %v2021 = vpop.f32.mrf.mxu0
          %v2022 = vadd.f32 %v1933, %v2021
          %v2023 = vpop.f32.mrf.mxu0
          %v2024 = vadd.f32 %v1935, %v2023
          %2025 = vmatmul.bf16.gmra.mxu0 %v1486
          %v2026 = vpop.f32.mrf.mxu0
          %v2027 = vadd.f32 %v1938, %v2026
          %v2028 = vpop.f32.mrf.mxu0
          %v2029 = vadd.f32 %v1940, %v2028
          %2030 = vmatmul.bf16.gmra.mxu0 %v1488
          %v2031 = vpop.f32.mrf.mxu0
          %v2032 = vadd.f32 %v1943, %v2031
          %v2033 = vpop.f32.mrf.mxu0
          %v2034 = vadd.f32 %v1945, %v2033
          %2035 = vmatmul.bf16.gmra.mxu0 %v1490
          %v2036 = vpop.f32.mrf.mxu0
          %v2037 = vadd.f32 %v1948, %v2036
          %v2038 = vpop.f32.mrf.mxu0
          %v2039 = vadd.f32 %v1950, %v2038
          %2040 = vmatmul.bf16.gmra.mxu0 %v1492
          %v2041 = vpop.f32.mrf.mxu0
          %v2042 = vadd.f32 %v1953, %v2041
          %v2043 = vpop.f32.mrf.mxu0
          %v2044 = vadd.f32 %v1955, %v2043
          %2045 = vdwg.mxu0
          %v2046 = vxor.u32 %v1789, 2147483648
          %v2047 = vxor.u32 %v1967, 2147483648
          %v2048 = vxor.u32 %v1791, 2147483648
          %v2049 = vxor.u32 %v1969, 2147483648
          %v2050 = vxor.u32 %v1794, 2147483648
          %v2051 = vxor.u32 %v1972, 2147483648
          %v2052 = vxor.u32 %v1796, 2147483648
          %v2053 = vxor.u32 %v1974, 2147483648
          %v2054 = vxor.u32 %v1799, 2147483648
          %v2055 = vxor.u32 %v1977, 2147483648
          %v2056 = vxor.u32 %v1801, 2147483648
          %v2057 = vxor.u32 %v1979, 2147483648
          %v2058 = vxor.u32 %v1804, 2147483648
          %v2059 = vxor.u32 %v1982, 2147483648
          %v2060 = vxor.u32 %v1806, 2147483648
          %v2061 = vxor.u32 %v1984, 2147483648
          %v2062 = vxor.u32 %v1809, 2147483648
          %v2063 = vxor.u32 %v1987, 2147483648
          %v2064 = vxor.u32 %v1811, 2147483648
          %v2065 = vxor.u32 %v1989, 2147483648
          %v2066 = vxor.u32 %v1814, 2147483648
          %v2067 = vxor.u32 %v1992, 2147483648
          %v2068 = vxor.u32 %v1816, 2147483648
          %v2069 = vxor.u32 %v1994, 2147483648
          %v2070 = vxor.u32 %v1819, 2147483648
          %v2071 = vxor.u32 %v1997, 2147483648
          %v2072 = vxor.u32 %v1821, 2147483648
          %v2073 = vxor.u32 %v1999, 2147483648
          %v2074 = vxor.u32 %v1824, 2147483648
          %v2075 = vxor.u32 %v2002, 2147483648
          %v2076 = vxor.u32 %v1826, 2147483648
          %v2077 = vxor.u32 %v2004, 2147483648
          %v2078 = vxor.u32 %v1829, 2147483648
          %v2079 = vxor.u32 %v2007, 2147483648
          %v2080 = vxor.u32 %v1831, 2147483648
          %v2081 = vxor.u32 %v2009, 2147483648
          %v2082 = vxor.u32 %v1834, 2147483648
          %v2083 = vxor.u32 %v2012, 2147483648
          %v2084 = vxor.u32 %v1836, 2147483648
          %v2085 = vxor.u32 %v2014, 2147483648
          %v2086 = vxor.u32 %v1839, 2147483648
          %v2087 = vxor.u32 %v2017, 2147483648
          %v2088 = vxor.u32 %v1841, 2147483648
          %v2089 = vxor.u32 %v2019, 2147483648
          %v2090 = vxor.u32 %v1844, 2147483648
          %v2091 = vxor.u32 %v2022, 2147483648
          %v2092 = vxor.u32 %v1846, 2147483648
          %v2093 = vxor.u32 %v2024, 2147483648
          %v2094 = vxor.u32 %v1849, 2147483648
          %v2095 = vxor.u32 %v2027, 2147483648
          %v2096 = vxor.u32 %v1851, 2147483648
          %v2097 = vxor.u32 %v2029, 2147483648
          %v2098 = vxor.u32 %v1854, 2147483648
          %v2099 = vxor.u32 %v2032, 2147483648
          %v2100 = vxor.u32 %v1856, 2147483648
          %v2101 = vxor.u32 %v2034, 2147483648
          %v2102 = vxor.u32 %v1859, 2147483648
          %v2103 = vxor.u32 %v2037, 2147483648
          %v2104 = vxor.u32 %v1861, 2147483648
          %v2105 = vxor.u32 %v2039, 2147483648
          %v2106 = vxor.u32 %v1864, 2147483648
          %v2107 = vxor.u32 %v2042, 2147483648
          %v2108 = vxor.u32 %v1866, 2147483648
          %v2109 = vxor.u32 %v2044, 2147483648
          %v2110 = vmul.f32 %v2046, 1.442695
          %v2111 = vpow.pop %v2110
          %v2112 = vmul.f32 %v2047, 1.442695
          %v2113 = vpow.pop %v2112
          %v2114 = vmul.f32 %v2048, 1.442695
          %v2115 = vpow.pop %v2114
          %v2116 = vmul.f32 %v2049, 1.442695
          %v2117 = vpow.pop %v2116
          %v2118 = vmul.f32 %v2050, 1.442695
          %v2119 = vpow.pop %v2118
          %v2120 = vmul.f32 %v2051, 1.442695
          %v2121 = vpow.pop %v2120
          %v2122 = vmul.f32 %v2052, 1.442695
          %v2123 = vpow.pop %v2122
          %v2124 = vmul.f32 %v2053, 1.442695
          %v2125 = vpow.pop %v2124
          %v2126 = vmul.f32 %v2054, 1.442695
          %v2127 = vpow.pop %v2126
          %v2128 = vmul.f32 %v2055, 1.442695
          %v2129 = vpow.pop %v2128
          %v2130 = vmul.f32 %v2056, 1.442695
          %v2131 = vpow.pop %v2130
          %v2132 = vmul.f32 %v2057, 1.442695
          %v2133 = vpow.pop %v2132
          %v2134 = vmul.f32 %v2058, 1.442695
          %v2135 = vpow.pop %v2134
          %v2136 = vmul.f32 %v2059, 1.442695
          %v2137 = vpow.pop %v2136
          %v2138 = vmul.f32 %v2060, 1.442695
          %v2139 = vpow.pop %v2138
          %v2140 = vmul.f32 %v2061, 1.442695
          %v2141 = vpow.pop %v2140
          %v2142 = vmul.f32 %v2062, 1.442695
          %v2143 = vpow.pop %v2142
          %v2144 = vmul.f32 %v2063, 1.442695
          %v2145 = vpow.pop %v2144
          %v2146 = vmul.f32 %v2064, 1.442695
          %v2147 = vpow.pop %v2146
          %v2148 = vmul.f32 %v2065, 1.442695
          %v2149 = vpow.pop %v2148
          %v2150 = vmul.f32 %v2066, 1.442695
          %v2151 = vpow.pop %v2150
          %v2152 = vmul.f32 %v2067, 1.442695
          %v2153 = vpow.pop %v2152
          %v2154 = vmul.f32 %v2068, 1.442695
          %v2155 = vpow.pop %v2154
          %v2156 = vmul.f32 %v2069, 1.442695
          %v2157 = vpow.pop %v2156
          %v2158 = vmul.f32 %v2070, 1.442695
          %v2159 = vpow.pop %v2158
          %v2160 = vmul.f32 %v2071, 1.442695
          %v2161 = vpow.pop %v2160
          %v2162 = vmul.f32 %v2072, 1.442695
          %v2163 = vpow.pop %v2162
          %v2164 = vmul.f32 %v2073, 1.442695
          %v2165 = vpow.pop %v2164
          %v2166 = vmul.f32 %v2074, 1.442695
          %v2167 = vpow.pop %v2166
          %v2168 = vmul.f32 %v2075, 1.442695
          %v2169 = vpow.pop %v2168
          %v2170 = vmul.f32 %v2076, 1.442695
          %v2171 = vpow.pop %v2170
          %v2172 = vmul.f32 %v2077, 1.442695
          %v2173 = vpow.pop %v2172
          %v2174 = vmul.f32 %v2078, 1.442695
          %v2175 = vpow.pop %v2174
          %v2176 = vmul.f32 %v2079, 1.442695
          %v2177 = vpow.pop %v2176
          %v2178 = vmul.f32 %v2080, 1.442695
          %v2179 = vpow.pop %v2178
          %v2180 = vmul.f32 %v2081, 1.442695
          %v2181 = vpow.pop %v2180
          %v2182 = vmul.f32 %v2082, 1.442695
          %v2183 = vpow.pop %v2182
          %v2184 = vmul.f32 %v2083, 1.442695
          %v2185 = vpow.pop %v2184
          %v2186 = vmul.f32 %v2084, 1.442695
          %v2187 = vpow.pop %v2186
          %v2188 = vmul.f32 %v2085, 1.442695
          %v2189 = vpow.pop %v2188
          %v2190 = vmul.f32 %v2086, 1.442695
          %v2191 = vpow.pop %v2190
          %v2192 = vmul.f32 %v2087, 1.442695
          %v2193 = vpow.pop %v2192
          %v2194 = vmul.f32 %v2088, 1.442695
          %v2195 = vpow.pop %v2194
          %v2196 = vmul.f32 %v2089, 1.442695
          %v2197 = vpow.pop %v2196
          %v2198 = vmul.f32 %v2090, 1.442695
          %v2199 = vpow.pop %v2198
          %v2200 = vmul.f32 %v2091, 1.442695
          %v2201 = vpow.pop %v2200
          %v2202 = vmul.f32 %v2092, 1.442695
          %v2203 = vpow.pop %v2202
          %v2204 = vmul.f32 %v2093, 1.442695
          %v2205 = vpow.pop %v2204
          %v2206 = vmul.f32 %v2094, 1.442695
          %v2207 = vpow.pop %v2206
          %v2208 = vmul.f32 %v2095, 1.442695
          %v2209 = vpow.pop %v2208
          %v2210 = vmul.f32 %v2096, 1.442695
          %v2211 = vpow.pop %v2210
          %v2212 = vmul.f32 %v2097, 1.442695
          %v2213 = vpow.pop %v2212
          %v2214 = vmul.f32 %v2098, 1.442695
          %v2215 = vpow.pop %v2214
          %v2216 = vmul.f32 %v2099, 1.442695
          %v2217 = vpow.pop %v2216
          %v2218 = vmul.f32 %v2100, 1.442695
          %v2219 = vpow.pop %v2218
          %v2220 = vmul.f32 %v2101, 1.442695
          %v2221 = vpow.pop %v2220
          %v2222 = vmul.f32 %v2102, 1.442695
          %v2223 = vpow.pop %v2222
          %v2224 = vmul.f32 %v2103, 1.442695
          %v2225 = vpow.pop %v2224
          %v2226 = vmul.f32 %v2104, 1.442695
          %v2227 = vpow.pop %v2226
          %v2228 = vmul.f32 %v2105, 1.442695
          %v2229 = vpow.pop %v2228
          %v2230 = vmul.f32 %v2106, 1.442695
          %v2231 = vpow.pop %v2230
          %v2232 = vmul.f32 %v2107, 1.442695
          %v2233 = vpow.pop %v2232
          %v2234 = vmul.f32 %v2108, 1.442695
          %v2235 = vpow.pop %v2234
          %v2236 = vmul.f32 %v2109, 1.442695
          %v2237 = vpow.pop %v2236
          %v2238 = vadd.f32 %v2111, 1.0
          %v2239 = vadd.f32 %v2113, 1.0
          %v2240 = vadd.f32 %v2115, 1.0
          %v2241 = vadd.f32 %v2117, 1.0
          %v2242 = vadd.f32 %v2119, 1.0
          %v2243 = vadd.f32 %v2121, 1.0
          %v2244 = vadd.f32 %v2123, 1.0
          %v2245 = vadd.f32 %v2125, 1.0
          %v2246 = vadd.f32 %v2127, 1.0
          %v2247 = vadd.f32 %v2129, 1.0
          %v2248 = vadd.f32 %v2131, 1.0
          %v2249 = vadd.f32 %v2133, 1.0
          %v2250 = vadd.f32 %v2135, 1.0
          %v2251 = vadd.f32 %v2137, 1.0
          %v2252 = vadd.f32 %v2139, 1.0
          %v2253 = vadd.f32 %v2141, 1.0
          %v2254 = vadd.f32 %v2143, 1.0
          %v2255 = vadd.f32 %v2145, 1.0
          %v2256 = vadd.f32 %v2147, 1.0
          %v2257 = vadd.f32 %v2149, 1.0
          %v2258 = vadd.f32 %v2151, 1.0
          %v2259 = vadd.f32 %v2153, 1.0
          %v2260 = vadd.f32 %v2155, 1.0
          %v2261 = vadd.f32 %v2157, 1.0
          %v2262 = vadd.f32 %v2159, 1.0
          %v2263 = vadd.f32 %v2161, 1.0
          %v2264 = vadd.f32 %v2163, 1.0
          %v2265 = vadd.f32 %v2165, 1.0
          %v2266 = vadd.f32 %v2167, 1.0
          %v2267 = vadd.f32 %v2169, 1.0
          %v2268 = vadd.f32 %v2171, 1.0
          %v2269 = vadd.f32 %v2173, 1.0
          %v2270 = vadd.f32 %v2175, 1.0
          %v2271 = vadd.f32 %v2177, 1.0
          %v2272 = vadd.f32 %v2179, 1.0
          %v2273 = vadd.f32 %v2181, 1.0
          %v2274 = vadd.f32 %v2183, 1.0
          %v2275 = vadd.f32 %v2185, 1.0
          %v2276 = vadd.f32 %v2187, 1.0
          %v2277 = vadd.f32 %v2189, 1.0
          %v2278 = vadd.f32 %v2191, 1.0
          %v2279 = vadd.f32 %v2193, 1.0
          %v2280 = vadd.f32 %v2195, 1.0
          %v2281 = vadd.f32 %v2197, 1.0
          %v2282 = vadd.f32 %v2199, 1.0
          %v2283 = vadd.f32 %v2201, 1.0
          %v2284 = vadd.f32 %v2203, 1.0
          %v2285 = vadd.f32 %v2205, 1.0
          %v2286 = vadd.f32 %v2207, 1.0
          %v2287 = vadd.f32 %v2209, 1.0
          %v2288 = vadd.f32 %v2211, 1.0
          %v2289 = vadd.f32 %v2213, 1.0
          %v2290 = vadd.f32 %v2215, 1.0
          %v2291 = vadd.f32 %v2217, 1.0
          %v2292 = vadd.f32 %v2219, 1.0
          %v2293 = vadd.f32 %v2221, 1.0
          %v2294 = vadd.f32 %v2223, 1.0
          %v2295 = vadd.f32 %v2225, 1.0
          %v2296 = vadd.f32 %v2227, 1.0
          %v2297 = vadd.f32 %v2229, 1.0
          %v2298 = vadd.f32 %v2231, 1.0
          %v2299 = vadd.f32 %v2233, 1.0
          %v2300 = vadd.f32 %v2235, 1.0
          %v2301 = vadd.f32 %v2237, 1.0
          %v2302 = vrcp.pop %v2238
          %v2303 = vmul.f32 %v2238, %v2302
          %v2304 = vsub.f32 1.0, %v2303
          %v2305 = vmul.f32 %v2302, %v2304
          %v2306 = vadd.f32 %v2302, %v2305
          %vm2307 = vweird.f32 %v2238
          %vm2308 = vweird.f32 %v2302
          %vm2309 = vmor %vm2307, %vm2308
          %v2310 = vsel %vm2309, %v2302, %v2306
          %v2311 = vand.u32 2147483647, %v2238
          %vm2312 = vcmp.eq.f32.partialorder %v2311, 8.507059e+37
          %v2313 = vand.u32 %v2238, 2147483648
          %v2314 = vor.u32 1.1754944e-38, %v2313
          %v2315 = vsel %vm2312, %v2314, %v2310
          %v2316 = vmul.f32 1.0, %v2315
          %v2317 = vrcp.pop %v2239
          %v2318 = vmul.f32 %v2239, %v2317
          %v2319 = vsub.f32 1.0, %v2318
          %v2320 = vmul.f32 %v2317, %v2319
          %v2321 = vadd.f32 %v2317, %v2320
          %vm2322 = vweird.f32 %v2239
          %vm2323 = vweird.f32 %v2317
          %vm2324 = vmor %vm2322, %vm2323
          %v2325 = vsel %vm2324, %v2317, %v2321
          %v2326 = vand.u32 2147483647, %v2239
          %vm2327 = vcmp.eq.f32.partialorder %v2326, 8.507059e+37
          %v2328 = vand.u32 %v2239, 2147483648
          %v2329 = vor.u32 1.1754944e-38, %v2328
          %v2330 = vsel %vm2327, %v2329, %v2325
          %v2331 = vmul.f32 1.0, %v2330
          %v2332 = vrcp.pop %v2240
          %v2333 = vmul.f32 %v2240, %v2332
          %v2334 = vsub.f32 1.0, %v2333
          %v2335 = vmul.f32 %v2332, %v2334
          %v2336 = vadd.f32 %v2332, %v2335
          %vm2337 = vweird.f32 %v2240
          %vm2338 = vweird.f32 %v2332
          %vm2339 = vmor %vm2337, %vm2338
          %v2340 = vsel %vm2339, %v2332, %v2336
          %v2341 = vand.u32 2147483647, %v2240
          %vm2342 = vcmp.eq.f32.partialorder %v2341, 8.507059e+37
          %v2343 = vand.u32 %v2240, 2147483648
          %v2344 = vor.u32 1.1754944e-38, %v2343
          %v2345 = vsel %vm2342, %v2344, %v2340
          %v2346 = vmul.f32 1.0, %v2345
          %v2347 = vrcp.pop %v2241
          %v2348 = vmul.f32 %v2241, %v2347
          %v2349 = vsub.f32 1.0, %v2348
          %v2350 = vmul.f32 %v2347, %v2349
          %v2351 = vadd.f32 %v2347, %v2350
          %vm2352 = vweird.f32 %v2241
          %vm2353 = vweird.f32 %v2347
          %vm2354 = vmor %vm2352, %vm2353
          %v2355 = vsel %vm2354, %v2347, %v2351
          %v2356 = vand.u32 2147483647, %v2241
          %vm2357 = vcmp.eq.f32.partialorder %v2356, 8.507059e+37
          %v2358 = vand.u32 %v2241, 2147483648
          %v2359 = vor.u32 1.1754944e-38, %v2358
          %v2360 = vsel %vm2357, %v2359, %v2355
          %v2361 = vmul.f32 1.0, %v2360
          %v2362 = vrcp.pop %v2242
          %v2363 = vmul.f32 %v2242, %v2362
          %v2364 = vsub.f32 1.0, %v2363
          %v2365 = vmul.f32 %v2362, %v2364
          %v2366 = vadd.f32 %v2362, %v2365
          %vm2367 = vweird.f32 %v2242
          %vm2368 = vweird.f32 %v2362
          %vm2369 = vmor %vm2367, %vm2368
          %v2370 = vsel %vm2369, %v2362, %v2366
          %v2371 = vand.u32 2147483647, %v2242
          %vm2372 = vcmp.eq.f32.partialorder %v2371, 8.507059e+37
          %v2373 = vand.u32 %v2242, 2147483648
          %v2374 = vor.u32 1.1754944e-38, %v2373
          %v2375 = vsel %vm2372, %v2374, %v2370
          %v2376 = vmul.f32 1.0, %v2375
          %v2377 = vrcp.pop %v2243
          %v2378 = vmul.f32 %v2243, %v2377
          %v2379 = vsub.f32 1.0, %v2378
          %v2380 = vmul.f32 %v2377, %v2379
          %v2381 = vadd.f32 %v2377, %v2380
          %vm2382 = vweird.f32 %v2243
          %vm2383 = vweird.f32 %v2377
          %vm2384 = vmor %vm2382, %vm2383
          %v2385 = vsel %vm2384, %v2377, %v2381
          %v2386 = vand.u32 2147483647, %v2243
          %vm2387 = vcmp.eq.f32.partialorder %v2386, 8.507059e+37
          %v2388 = vand.u32 %v2243, 2147483648
          %v2389 = vor.u32 1.1754944e-38, %v2388
          %v2390 = vsel %vm2387, %v2389, %v2385
          %v2391 = vmul.f32 1.0, %v2390
          %v2392 = vrcp.pop %v2244
          %v2393 = vmul.f32 %v2244, %v2392
          %v2394 = vsub.f32 1.0, %v2393
          %v2395 = vmul.f32 %v2392, %v2394
          %v2396 = vadd.f32 %v2392, %v2395
          %vm2397 = vweird.f32 %v2244
          %vm2398 = vweird.f32 %v2392
          %vm2399 = vmor %vm2397, %vm2398
          %v2400 = vsel %vm2399, %v2392, %v2396
          %v2401 = vand.u32 2147483647, %v2244
          %vm2402 = vcmp.eq.f32.partialorder %v2401, 8.507059e+37
          %v2403 = vand.u32 %v2244, 2147483648
          %v2404 = vor.u32 1.1754944e-38, %v2403
          %v2405 = vsel %vm2402, %v2404, %v2400
          %v2406 = vmul.f32 1.0, %v2405
          %v2407 = vrcp.pop %v2245
          %v2408 = vmul.f32 %v2245, %v2407
          %v2409 = vsub.f32 1.0, %v2408
          %v2410 = vmul.f32 %v2407, %v2409
          %v2411 = vadd.f32 %v2407, %v2410
          %vm2412 = vweird.f32 %v2245
          %vm2413 = vweird.f32 %v2407
          %vm2414 = vmor %vm2412, %vm2413
          %v2415 = vsel %vm2414, %v2407, %v2411
          %v2416 = vand.u32 2147483647, %v2245
          %vm2417 = vcmp.eq.f32.partialorder %v2416, 8.507059e+37
          %v2418 = vand.u32 %v2245, 2147483648
          %v2419 = vor.u32 1.1754944e-38, %v2418
          %v2420 = vsel %vm2417, %v2419, %v2415
          %v2421 = vmul.f32 1.0, %v2420
          %v2422 = vrcp.pop %v2246
          %v2423 = vmul.f32 %v2246, %v2422
          %v2424 = vsub.f32 1.0, %v2423
          %v2425 = vmul.f32 %v2422, %v2424
          %v2426 = vadd.f32 %v2422, %v2425
          %vm2427 = vweird.f32 %v2246
          %vm2428 = vweird.f32 %v2422
          %vm2429 = vmor %vm2427, %vm2428
          %v2430 = vsel %vm2429, %v2422, %v2426
          %v2431 = vand.u32 2147483647, %v2246
          %vm2432 = vcmp.eq.f32.partialorder %v2431, 8.507059e+37
          %v2433 = vand.u32 %v2246, 2147483648
          %v2434 = vor.u32 1.1754944e-38, %v2433
          %v2435 = vsel %vm2432, %v2434, %v2430
          %v2436 = vmul.f32 1.0, %v2435
          %v2437 = vrcp.pop %v2247
          %v2438 = vmul.f32 %v2247, %v2437
          %v2439 = vsub.f32 1.0, %v2438
          %v2440 = vmul.f32 %v2437, %v2439
          %v2441 = vadd.f32 %v2437, %v2440
          %vm2442 = vweird.f32 %v2247
          %vm2443 = vweird.f32 %v2437
          %vm2444 = vmor %vm2442, %vm2443
          %v2445 = vsel %vm2444, %v2437, %v2441
          %v2446 = vand.u32 2147483647, %v2247
          %vm2447 = vcmp.eq.f32.partialorder %v2446, 8.507059e+37
          %v2448 = vand.u32 %v2247, 2147483648
          %v2449 = vor.u32 1.1754944e-38, %v2448
          %v2450 = vsel %vm2447, %v2449, %v2445
          %v2451 = vmul.f32 1.0, %v2450
          %v2452 = vrcp.pop %v2248
          %v2453 = vmul.f32 %v2248, %v2452
          %v2454 = vsub.f32 1.0, %v2453
          %v2455 = vmul.f32 %v2452, %v2454
          %v2456 = vadd.f32 %v2452, %v2455
          %vm2457 = vweird.f32 %v2248
          %vm2458 = vweird.f32 %v2452
          %vm2459 = vmor %vm2457, %vm2458
          %v2460 = vsel %vm2459, %v2452, %v2456
          %v2461 = vand.u32 2147483647, %v2248
          %vm2462 = vcmp.eq.f32.partialorder %v2461, 8.507059e+37
          %v2463 = vand.u32 %v2248, 2147483648
          %v2464 = vor.u32 1.1754944e-38, %v2463
          %v2465 = vsel %vm2462, %v2464, %v2460
          %v2466 = vmul.f32 1.0, %v2465
          %v2467 = vrcp.pop %v2249
          %v2468 = vmul.f32 %v2249, %v2467
          %v2469 = vsub.f32 1.0, %v2468
          %v2470 = vmul.f32 %v2467, %v2469
          %v2471 = vadd.f32 %v2467, %v2470
          %vm2472 = vweird.f32 %v2249
          %vm2473 = vweird.f32 %v2467
          %vm2474 = vmor %vm2472, %vm2473
          %v2475 = vsel %vm2474, %v2467, %v2471
          %v2476 = vand.u32 2147483647, %v2249
          %vm2477 = vcmp.eq.f32.partialorder %v2476, 8.507059e+37
          %v2478 = vand.u32 %v2249, 2147483648
          %v2479 = vor.u32 1.1754944e-38, %v2478
          %v2480 = vsel %vm2477, %v2479, %v2475
          %v2481 = vmul.f32 1.0, %v2480
          %v2482 = vrcp.pop %v2250
          %v2483 = vmul.f32 %v2250, %v2482
          %v2484 = vsub.f32 1.0, %v2483
          %v2485 = vmul.f32 %v2482, %v2484
          %v2486 = vadd.f32 %v2482, %v2485
          %vm2487 = vweird.f32 %v2250
          %vm2488 = vweird.f32 %v2482
          %vm2489 = vmor %vm2487, %vm2488
          %v2490 = vsel %vm2489, %v2482, %v2486
          %v2491 = vand.u32 2147483647, %v2250
          %vm2492 = vcmp.eq.f32.partialorder %v2491, 8.507059e+37
          %v2493 = vand.u32 %v2250, 2147483648
          %v2494 = vor.u32 1.1754944e-38, %v2493
          %v2495 = vsel %vm2492, %v2494, %v2490
          %v2496 = vmul.f32 1.0, %v2495
          %v2497 = vrcp.pop %v2251
          %v2498 = vmul.f32 %v2251, %v2497
          %v2499 = vsub.f32 1.0, %v2498
          %v2500 = vmul.f32 %v2497, %v2499
          %v2501 = vadd.f32 %v2497, %v2500
          %vm2502 = vweird.f32 %v2251
          %vm2503 = vweird.f32 %v2497
          %vm2504 = vmor %vm2502, %vm2503
          %v2505 = vsel %vm2504, %v2497, %v2501
          %v2506 = vand.u32 2147483647, %v2251
          %vm2507 = vcmp.eq.f32.partialorder %v2506, 8.507059e+37
          %v2508 = vand.u32 %v2251, 2147483648
          %v2509 = vor.u32 1.1754944e-38, %v2508
          %v2510 = vsel %vm2507, %v2509, %v2505
          %v2511 = vmul.f32 1.0, %v2510
          %v2512 = vrcp.pop %v2252
          %v2513 = vmul.f32 %v2252, %v2512
          %v2514 = vsub.f32 1.0, %v2513
          %v2515 = vmul.f32 %v2512, %v2514
          %v2516 = vadd.f32 %v2512, %v2515
          %vm2517 = vweird.f32 %v2252
          %vm2518 = vweird.f32 %v2512
          %vm2519 = vmor %vm2517, %vm2518
          %v2520 = vsel %vm2519, %v2512, %v2516
          %v2521 = vand.u32 2147483647, %v2252
          %vm2522 = vcmp.eq.f32.partialorder %v2521, 8.507059e+37
          %v2523 = vand.u32 %v2252, 2147483648
          %v2524 = vor.u32 1.1754944e-38, %v2523
          %v2525 = vsel %vm2522, %v2524, %v2520
          %v2526 = vmul.f32 1.0, %v2525
          %v2527 = vrcp.pop %v2253
          %v2528 = vmul.f32 %v2253, %v2527
          %v2529 = vsub.f32 1.0, %v2528
          %v2530 = vmul.f32 %v2527, %v2529
          %v2531 = vadd.f32 %v2527, %v2530
          %vm2532 = vweird.f32 %v2253
          %vm2533 = vweird.f32 %v2527
          %vm2534 = vmor %vm2532, %vm2533
          %v2535 = vsel %vm2534, %v2527, %v2531
          %v2536 = vand.u32 2147483647, %v2253
          %vm2537 = vcmp.eq.f32.partialorder %v2536, 8.507059e+37
          %v2538 = vand.u32 %v2253, 2147483648
          %v2539 = vor.u32 1.1754944e-38, %v2538
          %v2540 = vsel %vm2537, %v2539, %v2535
          %v2541 = vmul.f32 1.0, %v2540
          %v2542 = vrcp.pop %v2254
          %v2543 = vmul.f32 %v2254, %v2542
          %v2544 = vsub.f32 1.0, %v2543
          %v2545 = vmul.f32 %v2542, %v2544
          %v2546 = vadd.f32 %v2542, %v2545
          %vm2547 = vweird.f32 %v2254
          %vm2548 = vweird.f32 %v2542
          %vm2549 = vmor %vm2547, %vm2548
          %v2550 = vsel %vm2549, %v2542, %v2546
          %v2551 = vand.u32 2147483647, %v2254
          %vm2552 = vcmp.eq.f32.partialorder %v2551, 8.507059e+37
          %v2553 = vand.u32 %v2254, 2147483648
          %v2554 = vor.u32 1.1754944e-38, %v2553
          %v2555 = vsel %vm2552, %v2554, %v2550
          %v2556 = vmul.f32 1.0, %v2555
          %v2557 = vrcp.pop %v2255
          %v2558 = vmul.f32 %v2255, %v2557
          %v2559 = vsub.f32 1.0, %v2558
          %v2560 = vmul.f32 %v2557, %v2559
          %v2561 = vadd.f32 %v2557, %v2560
          %vm2562 = vweird.f32 %v2255
          %vm2563 = vweird.f32 %v2557
          %vm2564 = vmor %vm2562, %vm2563
          %v2565 = vsel %vm2564, %v2557, %v2561
          %v2566 = vand.u32 2147483647, %v2255
          %vm2567 = vcmp.eq.f32.partialorder %v2566, 8.507059e+37
          %v2568 = vand.u32 %v2255, 2147483648
          %v2569 = vor.u32 1.1754944e-38, %v2568
          %v2570 = vsel %vm2567, %v2569, %v2565
          %v2571 = vmul.f32 1.0, %v2570
          %v2572 = vrcp.pop %v2256
          %v2573 = vmul.f32 %v2256, %v2572
          %v2574 = vsub.f32 1.0, %v2573
          %v2575 = vmul.f32 %v2572, %v2574
          %v2576 = vadd.f32 %v2572, %v2575
          %vm2577 = vweird.f32 %v2256
          %vm2578 = vweird.f32 %v2572
          %vm2579 = vmor %vm2577, %vm2578
          %v2580 = vsel %vm2579, %v2572, %v2576
          %v2581 = vand.u32 2147483647, %v2256
          %vm2582 = vcmp.eq.f32.partialorder %v2581, 8.507059e+37
          %v2583 = vand.u32 %v2256, 2147483648
          %v2584 = vor.u32 1.1754944e-38, %v2583
          %v2585 = vsel %vm2582, %v2584, %v2580
          %v2586 = vmul.f32 1.0, %v2585
          %v2587 = vrcp.pop %v2257
          %v2588 = vmul.f32 %v2257, %v2587
          %v2589 = vsub.f32 1.0, %v2588
          %v2590 = vmul.f32 %v2587, %v2589
          %v2591 = vadd.f32 %v2587, %v2590
          %vm2592 = vweird.f32 %v2257
          %vm2593 = vweird.f32 %v2587
          %vm2594 = vmor %vm2592, %vm2593
          %v2595 = vsel %vm2594, %v2587, %v2591
          %v2596 = vand.u32 2147483647, %v2257
          %vm2597 = vcmp.eq.f32.partialorder %v2596, 8.507059e+37
          %v2598 = vand.u32 %v2257, 2147483648
          %v2599 = vor.u32 1.1754944e-38, %v2598
          %v2600 = vsel %vm2597, %v2599, %v2595
          %v2601 = vmul.f32 1.0, %v2600
          %v2602 = vrcp.pop %v2258
          %v2603 = vmul.f32 %v2258, %v2602
          %v2604 = vsub.f32 1.0, %v2603
          %v2605 = vmul.f32 %v2602, %v2604
          %v2606 = vadd.f32 %v2602, %v2605
          %vm2607 = vweird.f32 %v2258
          %vm2608 = vweird.f32 %v2602
          %vm2609 = vmor %vm2607, %vm2608
          %v2610 = vsel %vm2609, %v2602, %v2606
          %v2611 = vand.u32 2147483647, %v2258
          %vm2612 = vcmp.eq.f32.partialorder %v2611, 8.507059e+37
          %v2613 = vand.u32 %v2258, 2147483648
          %v2614 = vor.u32 1.1754944e-38, %v2613
          %v2615 = vsel %vm2612, %v2614, %v2610
          %v2616 = vmul.f32 1.0, %v2615
          %v2617 = vrcp.pop %v2259
          %v2618 = vmul.f32 %v2259, %v2617
          %v2619 = vsub.f32 1.0, %v2618
          %v2620 = vmul.f32 %v2617, %v2619
          %v2621 = vadd.f32 %v2617, %v2620
          %vm2622 = vweird.f32 %v2259
          %vm2623 = vweird.f32 %v2617
          %vm2624 = vmor %vm2622, %vm2623
          %v2625 = vsel %vm2624, %v2617, %v2621
          %v2626 = vand.u32 2147483647, %v2259
          %vm2627 = vcmp.eq.f32.partialorder %v2626, 8.507059e+37
          %v2628 = vand.u32 %v2259, 2147483648
          %v2629 = vor.u32 1.1754944e-38, %v2628
          %v2630 = vsel %vm2627, %v2629, %v2625
          %v2631 = vmul.f32 1.0, %v2630
          %v2632 = vrcp.pop %v2260
          %v2633 = vmul.f32 %v2260, %v2632
          %v2634 = vsub.f32 1.0, %v2633
          %v2635 = vmul.f32 %v2632, %v2634
          %v2636 = vadd.f32 %v2632, %v2635
          %vm2637 = vweird.f32 %v2260
          %vm2638 = vweird.f32 %v2632
          %vm2639 = vmor %vm2637, %vm2638
          %v2640 = vsel %vm2639, %v2632, %v2636
          %v2641 = vand.u32 2147483647, %v2260
          %vm2642 = vcmp.eq.f32.partialorder %v2641, 8.507059e+37
          %v2643 = vand.u32 %v2260, 2147483648
          %v2644 = vor.u32 1.1754944e-38, %v2643
          %v2645 = vsel %vm2642, %v2644, %v2640
          %v2646 = vmul.f32 1.0, %v2645
          %v2647 = vrcp.pop %v2261
          %v2648 = vmul.f32 %v2261, %v2647
          %v2649 = vsub.f32 1.0, %v2648
          %v2650 = vmul.f32 %v2647, %v2649
          %v2651 = vadd.f32 %v2647, %v2650
          %vm2652 = vweird.f32 %v2261
          %vm2653 = vweird.f32 %v2647
          %vm2654 = vmor %vm2652, %vm2653
          %v2655 = vsel %vm2654, %v2647, %v2651
          %v2656 = vand.u32 2147483647, %v2261
          %vm2657 = vcmp.eq.f32.partialorder %v2656, 8.507059e+37
          %v2658 = vand.u32 %v2261, 2147483648
          %v2659 = vor.u32 1.1754944e-38, %v2658
          %v2660 = vsel %vm2657, %v2659, %v2655
          %v2661 = vmul.f32 1.0, %v2660
          %v2662 = vrcp.pop %v2262
          %v2663 = vmul.f32 %v2262, %v2662
          %v2664 = vsub.f32 1.0, %v2663
          %v2665 = vmul.f32 %v2662, %v2664
          %v2666 = vadd.f32 %v2662, %v2665
          %vm2667 = vweird.f32 %v2262
          %vm2668 = vweird.f32 %v2662
          %vm2669 = vmor %vm2667, %vm2668
          %v2670 = vsel %vm2669, %v2662, %v2666
          %v2671 = vand.u32 2147483647, %v2262
          %vm2672 = vcmp.eq.f32.partialorder %v2671, 8.507059e+37
          %v2673 = vand.u32 %v2262, 2147483648
          %v2674 = vor.u32 1.1754944e-38, %v2673
          %v2675 = vsel %vm2672, %v2674, %v2670
          %v2676 = vmul.f32 1.0, %v2675
          %v2677 = vrcp.pop %v2263
          %v2678 = vmul.f32 %v2263, %v2677
          %v2679 = vsub.f32 1.0, %v2678
          %v2680 = vmul.f32 %v2677, %v2679
          %v2681 = vadd.f32 %v2677, %v2680
          %vm2682 = vweird.f32 %v2263
          %vm2683 = vweird.f32 %v2677
          %vm2684 = vmor %vm2682, %vm2683
          %v2685 = vsel %vm2684, %v2677, %v2681
          %v2686 = vand.u32 2147483647, %v2263
          %vm2687 = vcmp.eq.f32.partialorder %v2686, 8.507059e+37
          %v2688 = vand.u32 %v2263, 2147483648
          %v2689 = vor.u32 1.1754944e-38, %v2688
          %v2690 = vsel %vm2687, %v2689, %v2685
          %v2691 = vmul.f32 1.0, %v2690
          %v2692 = vrcp.pop %v2264
          %v2693 = vmul.f32 %v2264, %v2692
          %v2694 = vsub.f32 1.0, %v2693
          %v2695 = vmul.f32 %v2692, %v2694
          %v2696 = vadd.f32 %v2692, %v2695
          %vm2697 = vweird.f32 %v2264
          %vm2698 = vweird.f32 %v2692
          %vm2699 = vmor %vm2697, %vm2698
          %v2700 = vsel %vm2699, %v2692, %v2696
          %v2701 = vand.u32 2147483647, %v2264
          %vm2702 = vcmp.eq.f32.partialorder %v2701, 8.507059e+37
          %v2703 = vand.u32 %v2264, 2147483648
          %v2704 = vor.u32 1.1754944e-38, %v2703
          %v2705 = vsel %vm2702, %v2704, %v2700
          %v2706 = vmul.f32 1.0, %v2705
          %v2707 = vrcp.pop %v2265
          %v2708 = vmul.f32 %v2265, %v2707
          %v2709 = vsub.f32 1.0, %v2708
          %v2710 = vmul.f32 %v2707, %v2709
          %v2711 = vadd.f32 %v2707, %v2710
          %vm2712 = vweird.f32 %v2265
          %vm2713 = vweird.f32 %v2707
          %vm2714 = vmor %vm2712, %vm2713
          %v2715 = vsel %vm2714, %v2707, %v2711
          %v2716 = vand.u32 2147483647, %v2265
          %vm2717 = vcmp.eq.f32.partialorder %v2716, 8.507059e+37
          %v2718 = vand.u32 %v2265, 2147483648
          %v2719 = vor.u32 1.1754944e-38, %v2718
          %v2720 = vsel %vm2717, %v2719, %v2715
          %v2721 = vmul.f32 1.0, %v2720
          %v2722 = vrcp.pop %v2266
          %v2723 = vmul.f32 %v2266, %v2722
          %v2724 = vsub.f32 1.0, %v2723
          %v2725 = vmul.f32 %v2722, %v2724
          %v2726 = vadd.f32 %v2722, %v2725
          %vm2727 = vweird.f32 %v2266
          %vm2728 = vweird.f32 %v2722
          %vm2729 = vmor %vm2727, %vm2728
          %v2730 = vsel %vm2729, %v2722, %v2726
          %v2731 = vand.u32 2147483647, %v2266
          %vm2732 = vcmp.eq.f32.partialorder %v2731, 8.507059e+37
          %v2733 = vand.u32 %v2266, 2147483648
          %v2734 = vor.u32 1.1754944e-38, %v2733
          %v2735 = vsel %vm2732, %v2734, %v2730
          %v2736 = vmul.f32 1.0, %v2735
          %v2737 = vrcp.pop %v2267
          %v2738 = vmul.f32 %v2267, %v2737
          %v2739 = vsub.f32 1.0, %v2738
          %v2740 = vmul.f32 %v2737, %v2739
          %v2741 = vadd.f32 %v2737, %v2740
          %vm2742 = vweird.f32 %v2267
          %vm2743 = vweird.f32 %v2737
          %vm2744 = vmor %vm2742, %vm2743
          %v2745 = vsel %vm2744, %v2737, %v2741
          %v2746 = vand.u32 2147483647, %v2267
          %vm2747 = vcmp.eq.f32.partialorder %v2746, 8.507059e+37
          %v2748 = vand.u32 %v2267, 2147483648
          %v2749 = vor.u32 1.1754944e-38, %v2748
          %v2750 = vsel %vm2747, %v2749, %v2745
          %v2751 = vmul.f32 1.0, %v2750
          %v2752 = vrcp.pop %v2268
          %v2753 = vmul.f32 %v2268, %v2752
          %v2754 = vsub.f32 1.0, %v2753
          %v2755 = vmul.f32 %v2752, %v2754
          %v2756 = vadd.f32 %v2752, %v2755
          %vm2757 = vweird.f32 %v2268
          %vm2758 = vweird.f32 %v2752
          %vm2759 = vmor %vm2757, %vm2758
          %v2760 = vsel %vm2759, %v2752, %v2756
          %v2761 = vand.u32 2147483647, %v2268
          %vm2762 = vcmp.eq.f32.partialorder %v2761, 8.507059e+37
          %v2763 = vand.u32 %v2268, 2147483648
          %v2764 = vor.u32 1.1754944e-38, %v2763
          %v2765 = vsel %vm2762, %v2764, %v2760
          %v2766 = vmul.f32 1.0, %v2765
          %v2767 = vrcp.pop %v2269
          %v2768 = vmul.f32 %v2269, %v2767
          %v2769 = vsub.f32 1.0, %v2768
          %v2770 = vmul.f32 %v2767, %v2769
          %v2771 = vadd.f32 %v2767, %v2770
          %vm2772 = vweird.f32 %v2269
          %vm2773 = vweird.f32 %v2767
          %vm2774 = vmor %vm2772, %vm2773
          %v2775 = vsel %vm2774, %v2767, %v2771
          %v2776 = vand.u32 2147483647, %v2269
          %vm2777 = vcmp.eq.f32.partialorder %v2776, 8.507059e+37
          %v2778 = vand.u32 %v2269, 2147483648
          %v2779 = vor.u32 1.1754944e-38, %v2778
          %v2780 = vsel %vm2777, %v2779, %v2775
          %v2781 = vmul.f32 1.0, %v2780
          %v2782 = vrcp.pop %v2270
          %v2783 = vmul.f32 %v2270, %v2782
          %v2784 = vsub.f32 1.0, %v2783
          %v2785 = vmul.f32 %v2782, %v2784
          %v2786 = vadd.f32 %v2782, %v2785
          %vm2787 = vweird.f32 %v2270
          %vm2788 = vweird.f32 %v2782
          %vm2789 = vmor %vm2787, %vm2788
          %v2790 = vsel %vm2789, %v2782, %v2786
          %v2791 = vand.u32 2147483647, %v2270
          %vm2792 = vcmp.eq.f32.partialorder %v2791, 8.507059e+37
          %v2793 = vand.u32 %v2270, 2147483648
          %v2794 = vor.u32 1.1754944e-38, %v2793
          %v2795 = vsel %vm2792, %v2794, %v2790
          %v2796 = vmul.f32 1.0, %v2795
          %v2797 = vrcp.pop %v2271
          %v2798 = vmul.f32 %v2271, %v2797
          %v2799 = vsub.f32 1.0, %v2798
          %v2800 = vmul.f32 %v2797, %v2799
          %v2801 = vadd.f32 %v2797, %v2800
          %vm2802 = vweird.f32 %v2271
          %vm2803 = vweird.f32 %v2797
          %vm2804 = vmor %vm2802, %vm2803
          %v2805 = vsel %vm2804, %v2797, %v2801
          %v2806 = vand.u32 2147483647, %v2271
          %vm2807 = vcmp.eq.f32.partialorder %v2806, 8.507059e+37
          %v2808 = vand.u32 %v2271, 2147483648
          %v2809 = vor.u32 1.1754944e-38, %v2808
          %v2810 = vsel %vm2807, %v2809, %v2805
          %v2811 = vmul.f32 1.0, %v2810
          %v2812 = vrcp.pop %v2272
          %v2813 = vmul.f32 %v2272, %v2812
          %v2814 = vsub.f32 1.0, %v2813
          %v2815 = vmul.f32 %v2812, %v2814
          %v2816 = vadd.f32 %v2812, %v2815
          %vm2817 = vweird.f32 %v2272
          %vm2818 = vweird.f32 %v2812
          %vm2819 = vmor %vm2817, %vm2818
          %v2820 = vsel %vm2819, %v2812, %v2816
          %v2821 = vand.u32 2147483647, %v2272
          %vm2822 = vcmp.eq.f32.partialorder %v2821, 8.507059e+37
          %v2823 = vand.u32 %v2272, 2147483648
          %v2824 = vor.u32 1.1754944e-38, %v2823
          %v2825 = vsel %vm2822, %v2824, %v2820
          %v2826 = vmul.f32 1.0, %v2825
          %v2827 = vrcp.pop %v2273
          %v2828 = vmul.f32 %v2273, %v2827
          %v2829 = vsub.f32 1.0, %v2828
          %v2830 = vmul.f32 %v2827, %v2829
          %v2831 = vadd.f32 %v2827, %v2830
          %vm2832 = vweird.f32 %v2273
          %vm2833 = vweird.f32 %v2827
          %vm2834 = vmor %vm2832, %vm2833
          %v2835 = vsel %vm2834, %v2827, %v2831
          %v2836 = vand.u32 2147483647, %v2273
          %vm2837 = vcmp.eq.f32.partialorder %v2836, 8.507059e+37
          %v2838 = vand.u32 %v2273, 2147483648
          %v2839 = vor.u32 1.1754944e-38, %v2838
          %v2840 = vsel %vm2837, %v2839, %v2835
          %v2841 = vmul.f32 1.0, %v2840
          %v2842 = vrcp.pop %v2274
          %v2843 = vmul.f32 %v2274, %v2842
          %v2844 = vsub.f32 1.0, %v2843
          %v2845 = vmul.f32 %v2842, %v2844
          %v2846 = vadd.f32 %v2842, %v2845
          %vm2847 = vweird.f32 %v2274
          %vm2848 = vweird.f32 %v2842
          %vm2849 = vmor %vm2847, %vm2848
          %v2850 = vsel %vm2849, %v2842, %v2846
          %v2851 = vand.u32 2147483647, %v2274
          %vm2852 = vcmp.eq.f32.partialorder %v2851, 8.507059e+37
          %v2853 = vand.u32 %v2274, 2147483648
          %v2854 = vor.u32 1.1754944e-38, %v2853
          %v2855 = vsel %vm2852, %v2854, %v2850
          %v2856 = vmul.f32 1.0, %v2855
          %v2857 = vrcp.pop %v2275
          %v2858 = vmul.f32 %v2275, %v2857
          %v2859 = vsub.f32 1.0, %v2858
          %v2860 = vmul.f32 %v2857, %v2859
          %v2861 = vadd.f32 %v2857, %v2860
          %vm2862 = vweird.f32 %v2275
          %vm2863 = vweird.f32 %v2857
          %vm2864 = vmor %vm2862, %vm2863
          %v2865 = vsel %vm2864, %v2857, %v2861
          %v2866 = vand.u32 2147483647, %v2275
          %vm2867 = vcmp.eq.f32.partialorder %v2866, 8.507059e+37
          %v2868 = vand.u32 %v2275, 2147483648
          %v2869 = vor.u32 1.1754944e-38, %v2868
          %v2870 = vsel %vm2867, %v2869, %v2865
          %v2871 = vmul.f32 1.0, %v2870
          %v2872 = vrcp.pop %v2276
          %v2873 = vmul.f32 %v2276, %v2872
          %v2874 = vsub.f32 1.0, %v2873
          %v2875 = vmul.f32 %v2872, %v2874
          %v2876 = vadd.f32 %v2872, %v2875
          %vm2877 = vweird.f32 %v2276
          %vm2878 = vweird.f32 %v2872
          %vm2879 = vmor %vm2877, %vm2878
          %v2880 = vsel %vm2879, %v2872, %v2876
          %v2881 = vand.u32 2147483647, %v2276
          %vm2882 = vcmp.eq.f32.partialorder %v2881, 8.507059e+37
          %v2883 = vand.u32 %v2276, 2147483648
          %v2884 = vor.u32 1.1754944e-38, %v2883
          %v2885 = vsel %vm2882, %v2884, %v2880
          %v2886 = vmul.f32 1.0, %v2885
          %v2887 = vrcp.pop %v2277
          %v2888 = vmul.f32 %v2277, %v2887
          %v2889 = vsub.f32 1.0, %v2888
          %v2890 = vmul.f32 %v2887, %v2889
          %v2891 = vadd.f32 %v2887, %v2890
          %vm2892 = vweird.f32 %v2277
          %vm2893 = vweird.f32 %v2887
          %vm2894 = vmor %vm2892, %vm2893
          %v2895 = vsel %vm2894, %v2887, %v2891
          %v2896 = vand.u32 2147483647, %v2277
          %vm2897 = vcmp.eq.f32.partialorder %v2896, 8.507059e+37
          %v2898 = vand.u32 %v2277, 2147483648
          %v2899 = vor.u32 1.1754944e-38, %v2898
          %v2900 = vsel %vm2897, %v2899, %v2895
          %v2901 = vmul.f32 1.0, %v2900
          %v2902 = vrcp.pop %v2278
          %v2903 = vmul.f32 %v2278, %v2902
          %v2904 = vsub.f32 1.0, %v2903
          %v2905 = vmul.f32 %v2902, %v2904
          %v2906 = vadd.f32 %v2902, %v2905
          %vm2907 = vweird.f32 %v2278
          %vm2908 = vweird.f32 %v2902
          %vm2909 = vmor %vm2907, %vm2908
          %v2910 = vsel %vm2909, %v2902, %v2906
          %v2911 = vand.u32 2147483647, %v2278
          %vm2912 = vcmp.eq.f32.partialorder %v2911, 8.507059e+37
          %v2913 = vand.u32 %v2278, 2147483648
          %v2914 = vor.u32 1.1754944e-38, %v2913
          %v2915 = vsel %vm2912, %v2914, %v2910
          %v2916 = vmul.f32 1.0, %v2915
          %v2917 = vrcp.pop %v2279
          %v2918 = vmul.f32 %v2279, %v2917
          %v2919 = vsub.f32 1.0, %v2918
          %v2920 = vmul.f32 %v2917, %v2919
          %v2921 = vadd.f32 %v2917, %v2920
          %vm2922 = vweird.f32 %v2279
          %vm2923 = vweird.f32 %v2917
          %vm2924 = vmor %vm2922, %vm2923
          %v2925 = vsel %vm2924, %v2917, %v2921
          %v2926 = vand.u32 2147483647, %v2279
          %vm2927 = vcmp.eq.f32.partialorder %v2926, 8.507059e+37
          %v2928 = vand.u32 %v2279, 2147483648
          %v2929 = vor.u32 1.1754944e-38, %v2928
          %v2930 = vsel %vm2927, %v2929, %v2925
          %v2931 = vmul.f32 1.0, %v2930
          %v2932 = vrcp.pop %v2280
          %v2933 = vmul.f32 %v2280, %v2932
          %v2934 = vsub.f32 1.0, %v2933
          %v2935 = vmul.f32 %v2932, %v2934
          %v2936 = vadd.f32 %v2932, %v2935
          %vm2937 = vweird.f32 %v2280
          %vm2938 = vweird.f32 %v2932
          %vm2939 = vmor %vm2937, %vm2938
          %v2940 = vsel %vm2939, %v2932, %v2936
          %v2941 = vand.u32 2147483647, %v2280
          %vm2942 = vcmp.eq.f32.partialorder %v2941, 8.507059e+37
          %v2943 = vand.u32 %v2280, 2147483648
          %v2944 = vor.u32 1.1754944e-38, %v2943
          %v2945 = vsel %vm2942, %v2944, %v2940
          %v2946 = vmul.f32 1.0, %v2945
          %v2947 = vrcp.pop %v2281
          %v2948 = vmul.f32 %v2281, %v2947
          %v2949 = vsub.f32 1.0, %v2948
          %v2950 = vmul.f32 %v2947, %v2949
          %v2951 = vadd.f32 %v2947, %v2950
          %vm2952 = vweird.f32 %v2281
          %vm2953 = vweird.f32 %v2947
          %vm2954 = vmor %vm2952, %vm2953
          %v2955 = vsel %vm2954, %v2947, %v2951
          %v2956 = vand.u32 2147483647, %v2281
          %vm2957 = vcmp.eq.f32.partialorder %v2956, 8.507059e+37
          %v2958 = vand.u32 %v2281, 2147483648
          %v2959 = vor.u32 1.1754944e-38, %v2958
          %v2960 = vsel %vm2957, %v2959, %v2955
          %v2961 = vmul.f32 1.0, %v2960
          %v2962 = vrcp.pop %v2282
          %v2963 = vmul.f32 %v2282, %v2962
          %v2964 = vsub.f32 1.0, %v2963
          %v2965 = vmul.f32 %v2962, %v2964
          %v2966 = vadd.f32 %v2962, %v2965
          %vm2967 = vweird.f32 %v2282
          %vm2968 = vweird.f32 %v2962
          %vm2969 = vmor %vm2967, %vm2968
          %v2970 = vsel %vm2969, %v2962, %v2966
          %v2971 = vand.u32 2147483647, %v2282
          %vm2972 = vcmp.eq.f32.partialorder %v2971, 8.507059e+37
          %v2973 = vand.u32 %v2282, 2147483648
          %v2974 = vor.u32 1.1754944e-38, %v2973
          %v2975 = vsel %vm2972, %v2974, %v2970
          %v2976 = vmul.f32 1.0, %v2975
          %v2977 = vrcp.pop %v2283
          %v2978 = vmul.f32 %v2283, %v2977
          %v2979 = vsub.f32 1.0, %v2978
          %v2980 = vmul.f32 %v2977, %v2979
          %v2981 = vadd.f32 %v2977, %v2980
          %vm2982 = vweird.f32 %v2283
          %vm2983 = vweird.f32 %v2977
          %vm2984 = vmor %vm2982, %vm2983
          %v2985 = vsel %vm2984, %v2977, %v2981
          %v2986 = vand.u32 2147483647, %v2283
          %vm2987 = vcmp.eq.f32.partialorder %v2986, 8.507059e+37
          %v2988 = vand.u32 %v2283, 2147483648
          %v2989 = vor.u32 1.1754944e-38, %v2988
          %v2990 = vsel %vm2987, %v2989, %v2985
          %v2991 = vmul.f32 1.0, %v2990
          %v2992 = vrcp.pop %v2284
          %v2993 = vmul.f32 %v2284, %v2992
          %v2994 = vsub.f32 1.0, %v2993
          %v2995 = vmul.f32 %v2992, %v2994
          %v2996 = vadd.f32 %v2992, %v2995
          %vm2997 = vweird.f32 %v2284
          %vm2998 = vweird.f32 %v2992
          %vm2999 = vmor %vm2997, %vm2998
          %v3000 = vsel %vm2999, %v2992, %v2996
          %v3001 = vand.u32 2147483647, %v2284
          %vm3002 = vcmp.eq.f32.partialorder %v3001, 8.507059e+37
          %v3003 = vand.u32 %v2284, 2147483648
          %v3004 = vor.u32 1.1754944e-38, %v3003
          %v3005 = vsel %vm3002, %v3004, %v3000
          %v3006 = vmul.f32 1.0, %v3005
          %v3007 = vrcp.pop %v2285
          %v3008 = vmul.f32 %v2285, %v3007
          %v3009 = vsub.f32 1.0, %v3008
          %v3010 = vmul.f32 %v3007, %v3009
          %v3011 = vadd.f32 %v3007, %v3010
          %vm3012 = vweird.f32 %v2285
          %vm3013 = vweird.f32 %v3007
          %vm3014 = vmor %vm3012, %vm3013
          %v3015 = vsel %vm3014, %v3007, %v3011
          %v3016 = vand.u32 2147483647, %v2285
          %vm3017 = vcmp.eq.f32.partialorder %v3016, 8.507059e+37
          %v3018 = vand.u32 %v2285, 2147483648
          %v3019 = vor.u32 1.1754944e-38, %v3018
          %v3020 = vsel %vm3017, %v3019, %v3015
          %v3021 = vmul.f32 1.0, %v3020
          %v3022 = vrcp.pop %v2286
          %v3023 = vmul.f32 %v2286, %v3022
          %v3024 = vsub.f32 1.0, %v3023
          %v3025 = vmul.f32 %v3022, %v3024
          %v3026 = vadd.f32 %v3022, %v3025
          %vm3027 = vweird.f32 %v2286
          %vm3028 = vweird.f32 %v3022
          %vm3029 = vmor %vm3027, %vm3028
          %v3030 = vsel %vm3029, %v3022, %v3026
          %v3031 = vand.u32 2147483647, %v2286
          %vm3032 = vcmp.eq.f32.partialorder %v3031, 8.507059e+37
          %v3033 = vand.u32 %v2286, 2147483648
          %v3034 = vor.u32 1.1754944e-38, %v3033
          %v3035 = vsel %vm3032, %v3034, %v3030
          %v3036 = vmul.f32 1.0, %v3035
          %v3037 = vrcp.pop %v2287
          %v3038 = vmul.f32 %v2287, %v3037
          %v3039 = vsub.f32 1.0, %v3038
          %v3040 = vmul.f32 %v3037, %v3039
          %v3041 = vadd.f32 %v3037, %v3040
          %vm3042 = vweird.f32 %v2287
          %vm3043 = vweird.f32 %v3037
          %vm3044 = vmor %vm3042, %vm3043
          %v3045 = vsel %vm3044, %v3037, %v3041
          %v3046 = vand.u32 2147483647, %v2287
          %vm3047 = vcmp.eq.f32.partialorder %v3046, 8.507059e+37
          %v3048 = vand.u32 %v2287, 2147483648
          %v3049 = vor.u32 1.1754944e-38, %v3048
          %v3050 = vsel %vm3047, %v3049, %v3045
          %v3051 = vmul.f32 1.0, %v3050
          %v3052 = vrcp.pop %v2288
          %v3053 = vmul.f32 %v2288, %v3052
          %v3054 = vsub.f32 1.0, %v3053
          %v3055 = vmul.f32 %v3052, %v3054
          %v3056 = vadd.f32 %v3052, %v3055
          %vm3057 = vweird.f32 %v2288
          %vm3058 = vweird.f32 %v3052
          %vm3059 = vmor %vm3057, %vm3058
          %v3060 = vsel %vm3059, %v3052, %v3056
          %v3061 = vand.u32 2147483647, %v2288
          %vm3062 = vcmp.eq.f32.partialorder %v3061, 8.507059e+37
          %v3063 = vand.u32 %v2288, 2147483648
          %v3064 = vor.u32 1.1754944e-38, %v3063
          %v3065 = vsel %vm3062, %v3064, %v3060
          %v3066 = vmul.f32 1.0, %v3065
          %v3067 = vrcp.pop %v2289
          %v3068 = vmul.f32 %v2289, %v3067
          %v3069 = vsub.f32 1.0, %v3068
          %v3070 = vmul.f32 %v3067, %v3069
          %v3071 = vadd.f32 %v3067, %v3070
          %vm3072 = vweird.f32 %v2289
          %vm3073 = vweird.f32 %v3067
          %vm3074 = vmor %vm3072, %vm3073
          %v3075 = vsel %vm3074, %v3067, %v3071
          %v3076 = vand.u32 2147483647, %v2289
          %vm3077 = vcmp.eq.f32.partialorder %v3076, 8.507059e+37
          %v3078 = vand.u32 %v2289, 2147483648
          %v3079 = vor.u32 1.1754944e-38, %v3078
          %v3080 = vsel %vm3077, %v3079, %v3075
          %v3081 = vmul.f32 1.0, %v3080
          %v3082 = vrcp.pop %v2290
          %v3083 = vmul.f32 %v2290, %v3082
          %v3084 = vsub.f32 1.0, %v3083
          %v3085 = vmul.f32 %v3082, %v3084
          %v3086 = vadd.f32 %v3082, %v3085
          %vm3087 = vweird.f32 %v2290
          %vm3088 = vweird.f32 %v3082
          %vm3089 = vmor %vm3087, %vm3088
          %v3090 = vsel %vm3089, %v3082, %v3086
          %v3091 = vand.u32 2147483647, %v2290
          %vm3092 = vcmp.eq.f32.partialorder %v3091, 8.507059e+37
          %v3093 = vand.u32 %v2290, 2147483648
          %v3094 = vor.u32 1.1754944e-38, %v3093
          %v3095 = vsel %vm3092, %v3094, %v3090
          %v3096 = vmul.f32 1.0, %v3095
          %v3097 = vrcp.pop %v2291
          %v3098 = vmul.f32 %v2291, %v3097
          %v3099 = vsub.f32 1.0, %v3098
          %v3100 = vmul.f32 %v3097, %v3099
          %v3101 = vadd.f32 %v3097, %v3100
          %vm3102 = vweird.f32 %v2291
          %vm3103 = vweird.f32 %v3097
          %vm3104 = vmor %vm3102, %vm3103
          %v3105 = vsel %vm3104, %v3097, %v3101
          %v3106 = vand.u32 2147483647, %v2291
          %vm3107 = vcmp.eq.f32.partialorder %v3106, 8.507059e+37
          %v3108 = vand.u32 %v2291, 2147483648
          %v3109 = vor.u32 1.1754944e-38, %v3108
          %v3110 = vsel %vm3107, %v3109, %v3105
          %v3111 = vmul.f32 1.0, %v3110
          %v3112 = vrcp.pop %v2292
          %v3113 = vmul.f32 %v2292, %v3112
          %v3114 = vsub.f32 1.0, %v3113
          %v3115 = vmul.f32 %v3112, %v3114
          %v3116 = vadd.f32 %v3112, %v3115
          %vm3117 = vweird.f32 %v2292
          %vm3118 = vweird.f32 %v3112
          %vm3119 = vmor %vm3117, %vm3118
          %v3120 = vsel %vm3119, %v3112, %v3116
          %v3121 = vand.u32 2147483647, %v2292
          %vm3122 = vcmp.eq.f32.partialorder %v3121, 8.507059e+37
          %v3123 = vand.u32 %v2292, 2147483648
          %v3124 = vor.u32 1.1754944e-38, %v3123
          %v3125 = vsel %vm3122, %v3124, %v3120
          %v3126 = vmul.f32 1.0, %v3125
          %v3127 = vrcp.pop %v2293
          %v3128 = vmul.f32 %v2293, %v3127
          %v3129 = vsub.f32 1.0, %v3128
          %v3130 = vmul.f32 %v3127, %v3129
          %v3131 = vadd.f32 %v3127, %v3130
          %vm3132 = vweird.f32 %v2293
          %vm3133 = vweird.f32 %v3127
          %vm3134 = vmor %vm3132, %vm3133
          %v3135 = vsel %vm3134, %v3127, %v3131
          %v3136 = vand.u32 2147483647, %v2293
          %vm3137 = vcmp.eq.f32.partialorder %v3136, 8.507059e+37
          %v3138 = vand.u32 %v2293, 2147483648
          %v3139 = vor.u32 1.1754944e-38, %v3138
          %v3140 = vsel %vm3137, %v3139, %v3135
          %v3141 = vmul.f32 1.0, %v3140
          %v3142 = vrcp.pop %v2294
          %v3143 = vmul.f32 %v2294, %v3142
          %v3144 = vsub.f32 1.0, %v3143
          %v3145 = vmul.f32 %v3142, %v3144
          %v3146 = vadd.f32 %v3142, %v3145
          %vm3147 = vweird.f32 %v2294
          %vm3148 = vweird.f32 %v3142
          %vm3149 = vmor %vm3147, %vm3148
          %v3150 = vsel %vm3149, %v3142, %v3146
          %v3151 = vand.u32 2147483647, %v2294
          %vm3152 = vcmp.eq.f32.partialorder %v3151, 8.507059e+37
          %v3153 = vand.u32 %v2294, 2147483648
          %v3154 = vor.u32 1.1754944e-38, %v3153
          %v3155 = vsel %vm3152, %v3154, %v3150
          %v3156 = vmul.f32 1.0, %v3155
          %v3157 = vrcp.pop %v2295
          %v3158 = vmul.f32 %v2295, %v3157
          %v3159 = vsub.f32 1.0, %v3158
          %v3160 = vmul.f32 %v3157, %v3159
          %v3161 = vadd.f32 %v3157, %v3160
          %vm3162 = vweird.f32 %v2295
          %vm3163 = vweird.f32 %v3157
          %vm3164 = vmor %vm3162, %vm3163
          %v3165 = vsel %vm3164, %v3157, %v3161
          %v3166 = vand.u32 2147483647, %v2295
          %vm3167 = vcmp.eq.f32.partialorder %v3166, 8.507059e+37
          %v3168 = vand.u32 %v2295, 2147483648
          %v3169 = vor.u32 1.1754944e-38, %v3168
          %v3170 = vsel %vm3167, %v3169, %v3165
          %v3171 = vmul.f32 1.0, %v3170
          %v3172 = vrcp.pop %v2296
          %v3173 = vmul.f32 %v2296, %v3172
          %v3174 = vsub.f32 1.0, %v3173
          %v3175 = vmul.f32 %v3172, %v3174
          %v3176 = vadd.f32 %v3172, %v3175
          %vm3177 = vweird.f32 %v2296
          %vm3178 = vweird.f32 %v3172
          %vm3179 = vmor %vm3177, %vm3178
          %v3180 = vsel %vm3179, %v3172, %v3176
          %v3181 = vand.u32 2147483647, %v2296
          %vm3182 = vcmp.eq.f32.partialorder %v3181, 8.507059e+37
          %v3183 = vand.u32 %v2296, 2147483648
          %v3184 = vor.u32 1.1754944e-38, %v3183
          %v3185 = vsel %vm3182, %v3184, %v3180
          %v3186 = vmul.f32 1.0, %v3185
          %v3187 = vrcp.pop %v2297
          %v3188 = vmul.f32 %v2297, %v3187
          %v3189 = vsub.f32 1.0, %v3188
          %v3190 = vmul.f32 %v3187, %v3189
          %v3191 = vadd.f32 %v3187, %v3190
          %vm3192 = vweird.f32 %v2297
          %vm3193 = vweird.f32 %v3187
          %vm3194 = vmor %vm3192, %vm3193
          %v3195 = vsel %vm3194, %v3187, %v3191
          %v3196 = vand.u32 2147483647, %v2297
          %vm3197 = vcmp.eq.f32.partialorder %v3196, 8.507059e+37
          %v3198 = vand.u32 %v2297, 2147483648
          %v3199 = vor.u32 1.1754944e-38, %v3198
          %v3200 = vsel %vm3197, %v3199, %v3195
          %v3201 = vmul.f32 1.0, %v3200
          %v3202 = vrcp.pop %v2298
          %v3203 = vmul.f32 %v2298, %v3202
          %v3204 = vsub.f32 1.0, %v3203
          %v3205 = vmul.f32 %v3202, %v3204
          %v3206 = vadd.f32 %v3202, %v3205
          %vm3207 = vweird.f32 %v2298
          %vm3208 = vweird.f32 %v3202
          %vm3209 = vmor %vm3207, %vm3208
          %v3210 = vsel %vm3209, %v3202, %v3206
          %v3211 = vand.u32 2147483647, %v2298
          %vm3212 = vcmp.eq.f32.partialorder %v3211, 8.507059e+37
          %v3213 = vand.u32 %v2298, 2147483648
          %v3214 = vor.u32 1.1754944e-38, %v3213
          %v3215 = vsel %vm3212, %v3214, %v3210
          %v3216 = vmul.f32 1.0, %v3215
          %v3217 = vrcp.pop %v2299
          %v3218 = vmul.f32 %v2299, %v3217
          %v3219 = vsub.f32 1.0, %v3218
          %v3220 = vmul.f32 %v3217, %v3219
          %v3221 = vadd.f32 %v3217, %v3220
          %vm3222 = vweird.f32 %v2299
          %vm3223 = vweird.f32 %v3217
          %vm3224 = vmor %vm3222, %vm3223
          %v3225 = vsel %vm3224, %v3217, %v3221
          %v3226 = vand.u32 2147483647, %v2299
          %vm3227 = vcmp.eq.f32.partialorder %v3226, 8.507059e+37
          %v3228 = vand.u32 %v2299, 2147483648
          %v3229 = vor.u32 1.1754944e-38, %v3228
          %v3230 = vsel %vm3227, %v3229, %v3225
          %v3231 = vmul.f32 1.0, %v3230
          %v3232 = vrcp.pop %v2300
          %v3233 = vmul.f32 %v2300, %v3232
          %v3234 = vsub.f32 1.0, %v3233
          %v3235 = vmul.f32 %v3232, %v3234
          %v3236 = vadd.f32 %v3232, %v3235
          %vm3237 = vweird.f32 %v2300
          %vm3238 = vweird.f32 %v3232
          %vm3239 = vmor %vm3237, %vm3238
          %v3240 = vsel %vm3239, %v3232, %v3236
          %v3241 = vand.u32 2147483647, %v2300
          %vm3242 = vcmp.eq.f32.partialorder %v3241, 8.507059e+37
          %v3243 = vand.u32 %v2300, 2147483648
          %v3244 = vor.u32 1.1754944e-38, %v3243
          %v3245 = vsel %vm3242, %v3244, %v3240
          %v3246 = vmul.f32 1.0, %v3245
          %v3247 = vrcp.pop %v2301
          %v3248 = vmul.f32 %v2301, %v3247
          %v3249 = vsub.f32 1.0, %v3248
          %v3250 = vmul.f32 %v3247, %v3249
          %v3251 = vadd.f32 %v3247, %v3250
          %vm3252 = vweird.f32 %v2301
          %vm3253 = vweird.f32 %v3247
          %vm3254 = vmor %vm3252, %vm3253
          %v3255 = vsel %vm3254, %v3247, %v3251
          %v3256 = vand.u32 2147483647, %v2301
          %vm3257 = vcmp.eq.f32.partialorder %v3256, 8.507059e+37
          %v3258 = vand.u32 %v2301, 2147483648
          %v3259 = vor.u32 1.1754944e-38, %v3258
          %v3260 = vsel %vm3257, %v3259, %v3255
          %v3261 = vmul.f32 1.0, %v3260
          %v3262 = vmul.f32 %v1397, %v2316
          %v3263 = vmul.f32 %v1398, %v2331
          %v3264 = vmul.f32 %v1399, %v2346
          %v3265 = vmul.f32 %v1400, %v2361
          %v3266 = vmul.f32 %v1401, %v2376
          %v3267 = vmul.f32 %v1402, %v2391
          %v3268 = vmul.f32 %v1403, %v2406
          %v3269 = vmul.f32 %v1404, %v2421
          %v3270 = vmul.f32 %v1405, %v2436
          %v3271 = vmul.f32 %v1406, %v2451
          %v3272 = vmul.f32 %v1407, %v2466
          %v3273 = vmul.f32 %v1408, %v2481
          %v3274 = vmul.f32 %v1409, %v2496
          %v3275 = vmul.f32 %v1410, %v2511
          %v3276 = vmul.f32 %v1411, %v2526
          %v3277 = vmul.f32 %v1412, %v2541
          %v3278 = vmul.f32 %v1413, %v2556
          %v3279 = vmul.f32 %v1414, %v2571
          %v3280 = vmul.f32 %v1415, %v2586
          %v3281 = vmul.f32 %v1416, %v2601
          %v3282 = vmul.f32 %v1417, %v2616
          %v3283 = vmul.f32 %v1418, %v2631
          %v3284 = vmul.f32 %v1419, %v2646
          %v3285 = vmul.f32 %v1420, %v2661
          %v3286 = vmul.f32 %v1421, %v2676
          %v3287 = vmul.f32 %v1422, %v2691
          %v3288 = vmul.f32 %v1423, %v2706
          %v3289 = vmul.f32 %v1424, %v2721
          %v3290 = vmul.f32 %v1425, %v2736
          %v3291 = vmul.f32 %v1426, %v2751
          %v3292 = vmul.f32 %v1427, %v2766
          %v3293 = vmul.f32 %v1428, %v2781
          %v3294 = vmul.f32 %v1429, %v2796
          %v3295 = vmul.f32 %v1430, %v2811
          %v3296 = vmul.f32 %v1431, %v2826
          %v3297 = vmul.f32 %v1432, %v2841
          %v3298 = vmul.f32 %v1433, %v2856
          %v3299 = vmul.f32 %v1434, %v2871
          %v3300 = vmul.f32 %v1435, %v2886
          %v3301 = vmul.f32 %v1436, %v2901
          %v3302 = vmul.f32 %v1437, %v2916
          %v3303 = vmul.f32 %v1438, %v2931
          %v3304 = vmul.f32 %v1439, %v2946
          %v3305 = vmul.f32 %v1440, %v2961
          %v3306 = vmul.f32 %v1441, %v2976
          %v3307 = vmul.f32 %v1442, %v2991
          %v3308 = vmul.f32 %v1443, %v3006
          %v3309 = vmul.f32 %v1444, %v3021
          %v3310 = vmul.f32 %v1445, %v3036
          %v3311 = vmul.f32 %v1446, %v3051
          %v3312 = vmul.f32 %v1447, %v3066
          %v3313 = vmul.f32 %v1448, %v3081
          %v3314 = vmul.f32 %v1449, %v3096
          %v3315 = vmul.f32 %v1450, %v3111
          %v3316 = vmul.f32 %v1451, %v3126
          %v3317 = vmul.f32 %v1452, %v3141
          %v3318 = vmul.f32 %v1453, %v3156
          %v3319 = vmul.f32 %v1454, %v3171
          %v3320 = vmul.f32 %v1455, %v3186
          %v3321 = vmul.f32 %v1456, %v3201
          %v3322 = vmul.f32 %v1457, %v3216
          %v3323 = vmul.f32 %v1458, %v3231
          %v3324 = vmul.f32 %v1459, %v3246
          %v3325 = vmul.f32 %v1460, %v3261
          %3326 = vst [vmem:[#allocation2] sm:$0xff] %v3262
          %3327 = vst [vmem:[#allocation2 + $0x8] sm:$0xff] %v3263
          %3328 = vst [vmem:[#allocation2 + $0x10] sm:$0xff] %v3264
          %3329 = vst [vmem:[#allocation2 + $0x18] sm:$0xff] %v3265
          %3330 = vst [vmem:[#allocation2 + $0x20] sm:$0xff] %v3266
          %3331 = vst [vmem:[#allocation2 + $0x28] sm:$0xff] %v3267
          %3332 = vst [vmem:[#allocation2 + $0x30] sm:$0xff] %v3268
          %3333 = vst [vmem:[#allocation2 + $0x38] sm:$0xff] %v3269
          %3334 = vst [vmem:[#allocation2 + $0x40] sm:$0xff] %v3270
          %3335 = vst [vmem:[#allocation2 + $0x48] sm:$0xff] %v3271
          %3336 = vst [vmem:[#allocation2 + $0x50] sm:$0xff] %v3272
          %3337 = vst [vmem:[#allocation2 + $0x58] sm:$0xff] %v3273
          %3338 = vst [vmem:[#allocation2 + $0x60] sm:$0xff] %v3274
          %3339 = vst [vmem:[#allocation2 + $0x68] sm:$0xff] %v3275
          %3340 = vst [vmem:[#allocation2 + $0x70] sm:$0xff] %v3276
          %3341 = vst [vmem:[#allocation2 + $0x78] sm:$0xff] %v3277
          %3342 = vst [vmem:[#allocation2 + $0x80] sm:$0xff] %v3278
          %3343 = vst [vmem:[#allocation2 + $0x88] sm:$0xff] %v3279
          %3344 = vst [vmem:[#allocation2 + $0x90] sm:$0xff] %v3280
          %3345 = vst [vmem:[#allocation2 + $0x98] sm:$0xff] %v3281
          %3346 = vst [vmem:[#allocation2 + $0xa0] sm:$0xff] %v3282
          %3347 = vst [vmem:[#allocation2 + $0xa8] sm:$0xff] %v3283
          %3348 = vst [vmem:[#allocation2 + $0xb0] sm:$0xff] %v3284
          %3349 = vst [vmem:[#allocation2 + $0xb8] sm:$0xff] %v3285
          %3350 = vst [vmem:[#allocation2 + $0xc0] sm:$0xff] %v3286
          %3351 = vst [vmem:[#allocation2 + $0xc8] sm:$0xff] %v3287
          %3352 = vst [vmem:[#allocation2 + $0xd0] sm:$0xff] %v3288
          %3353 = vst [vmem:[#allocation2 + $0xd8] sm:$0xff] %v3289
          %3354 = vst [vmem:[#allocation2 + $0xe0] sm:$0xff] %v3290
          %3355 = vst [vmem:[#allocation2 + $0xe8] sm:$0xff] %v3291
          %3356 = vst [vmem:[#allocation2 + $0xf0] sm:$0xff] %v3292
          %3357 = vst [vmem:[#allocation2 + $0xf8] sm:$0xff] %v3293
          %3358 = vst [vmem:[#allocation2 + $0x100] sm:$0xff] %v3294
          %3359 = vst [vmem:[#allocation2 + $0x108] sm:$0xff] %v3295
          %3360 = vst [vmem:[#allocation2 + $0x110] sm:$0xff] %v3296
          %3361 = vst [vmem:[#allocation2 + $0x118] sm:$0xff] %v3297
          %3362 = vst [vmem:[#allocation2 + $0x120] sm:$0xff] %v3298
          %3363 = vst [vmem:[#allocation2 + $0x128] sm:$0xff] %v3299
          %3364 = vst [vmem:[#allocation2 + $0x130] sm:$0xff] %v3300
          %3365 = vst [vmem:[#allocation2 + $0x138] sm:$0xff] %v3301
          %3366 = vst [vmem:[#allocation2 + $0x140] sm:$0xff] %v3302
          %3367 = vst [vmem:[#allocation2 + $0x148] sm:$0xff] %v3303
          %3368 = vst [vmem:[#allocation2 + $0x150] sm:$0xff] %v3304
          %3369 = vst [vmem:[#allocation2 + $0x158] sm:$0xff] %v3305
          %3370 = vst [vmem:[#allocation2 + $0x160] sm:$0xff] %v3306
          %3371 = vst [vmem:[#allocation2 + $0x168] sm:$0xff] %v3307
          %3372 = vst [vmem:[#allocation2 + $0x170] sm:$0xff] %v3308
          %3373 = vst [vmem:[#allocation2 + $0x178] sm:$0xff] %v3309
          %3374 = vst [vmem:[#allocation2 + $0x180] sm:$0xff] %v3310
          %3375 = vst [vmem:[#allocation2 + $0x188] sm:$0xff] %v3311
          %3376 = vst [vmem:[#allocation2 + $0x190] sm:$0xff] %v3312
          %3377 = vst [vmem:[#allocation2 + $0x198] sm:$0xff] %v3313
          %3378 = vst [vmem:[#allocation2 + $0x1a0] sm:$0xff] %v3314
          %3379 = vst [vmem:[#allocation2 + $0x1a8] sm:$0xff] %v3315
          %3380 = vst [vmem:[#allocation2 + $0x1b0] sm:$0xff] %v3316
          %3381 = vst [vmem:[#allocation2 + $0x1b8] sm:$0xff] %v3317
          %3382 = vst [vmem:[#allocation2 + $0x1c0] sm:$0xff] %v3318
          %3383 = vst [vmem:[#allocation2 + $0x1c8] sm:$0xff] %v3319
          %3384 = vst [vmem:[#allocation2 + $0x1d0] sm:$0xff] %v3320
          %3385 = vst [vmem:[#allocation2 + $0x1d8] sm:$0xff] %v3321
          %3386 = vst [vmem:[#allocation2 + $0x1e0] sm:$0xff] %v3322
          %3387 = vst [vmem:[#allocation2 + $0x1e8] sm:$0xff] %v3323
          %3388 = vst [vmem:[#allocation2 + $0x1f0] sm:$0xff] %v3324
          %3389 = vst [vmem:[#allocation2 + $0x1f8] sm:$0xff] %v3325
          %v3390 = vld [vmem:[#allocation2] sm:$0xff]
          %v3391 = vld [vmem:[#allocation2 + $0x8] sm:$0xff]
          %v3392 = vld [vmem:[#allocation2 + $0x10] sm:$0xff]
          %v3393 = vld [vmem:[#allocation2 + $0x18] sm:$0xff]
          %v3394 = vld [vmem:[#allocation2 + $0x20] sm:$0xff]
          %v3395 = vld [vmem:[#allocation2 + $0x28] sm:$0xff]
          %v3396 = vld [vmem:[#allocation2 + $0x30] sm:$0xff]
          %v3397 = vld [vmem:[#allocation2 + $0x38] sm:$0xff]
          %v3398 = vld [vmem:[#allocation2 + $0x40] sm:$0xff]
          %v3399 = vld [vmem:[#allocation2 + $0x48] sm:$0xff]
          %v3400 = vld [vmem:[#allocation2 + $0x50] sm:$0xff]
          %v3401 = vld [vmem:[#allocation2 + $0x58] sm:$0xff]
          %v3402 = vld [vmem:[#allocation2 + $0x60] sm:$0xff]
          %v3403 = vld [vmem:[#allocation2 + $0x68] sm:$0xff]
          %v3404 = vld [vmem:[#allocation2 + $0x70] sm:$0xff]
          %v3405 = vld [vmem:[#allocation2 + $0x78] sm:$0xff]
          %v3406 = vld [vmem:[#allocation2 + $0x80] sm:$0xff]
          %v3407 = vld [vmem:[#allocation2 + $0x88] sm:$0xff]
          %v3408 = vld [vmem:[#allocation2 + $0x90] sm:$0xff]
          %v3409 = vld [vmem:[#allocation2 + $0x98] sm:$0xff]
          %v3410 = vld [vmem:[#allocation2 + $0xa0] sm:$0xff]
          %v3411 = vld [vmem:[#allocation2 + $0xa8] sm:$0xff]
          %v3412 = vld [vmem:[#allocation2 + $0xb0] sm:$0xff]
          %v3413 = vld [vmem:[#allocation2 + $0xb8] sm:$0xff]
          %v3414 = vld [vmem:[#allocation2 + $0xc0] sm:$0xff]
          %v3415 = vld [vmem:[#allocation2 + $0xc8] sm:$0xff]
          %v3416 = vld [vmem:[#allocation2 + $0xd0] sm:$0xff]
          %v3417 = vld [vmem:[#allocation2 + $0xd8] sm:$0xff]
          %v3418 = vld [vmem:[#allocation2 + $0xe0] sm:$0xff]
          %v3419 = vld [vmem:[#allocation2 + $0xe8] sm:$0xff]
          %v3420 = vld [vmem:[#allocation2 + $0xf0] sm:$0xff]
          %v3421 = vld [vmem:[#allocation2 + $0xf8] sm:$0xff]
          %v3422 = vld [vmem:[#allocation2 + $0x100] sm:$0xff]
          %v3423 = vld [vmem:[#allocation2 + $0x108] sm:$0xff]
          %v3424 = vld [vmem:[#allocation2 + $0x110] sm:$0xff]
          %v3425 = vld [vmem:[#allocation2 + $0x118] sm:$0xff]
          %v3426 = vld [vmem:[#allocation2 + $0x120] sm:$0xff]
          %v3427 = vld [vmem:[#allocation2 + $0x128] sm:$0xff]
          %v3428 = vld [vmem:[#allocation2 + $0x130] sm:$0xff]
          %v3429 = vld [vmem:[#allocation2 + $0x138] sm:$0xff]
          %v3430 = vld [vmem:[#allocation2 + $0x140] sm:$0xff]
          %v3431 = vld [vmem:[#allocation2 + $0x148] sm:$0xff]
          %v3432 = vld [vmem:[#allocation2 + $0x150] sm:$0xff]
          %v3433 = vld [vmem:[#allocation2 + $0x158] sm:$0xff]
          %v3434 = vld [vmem:[#allocation2 + $0x160] sm:$0xff]
          %v3435 = vld [vmem:[#allocation2 + $0x168] sm:$0xff]
          %v3436 = vld [vmem:[#allocation2 + $0x170] sm:$0xff]
          %v3437 = vld [vmem:[#allocation2 + $0x178] sm:$0xff]
          %v3438 = vld [vmem:[#allocation2 + $0x180] sm:$0xff]
          %v3439 = vld [vmem:[#allocation2 + $0x188] sm:$0xff]
          %v3440 = vld [vmem:[#allocation2 + $0x190] sm:$0xff]
          %v3441 = vld [vmem:[#allocation2 + $0x198] sm:$0xff]
          %v3442 = vld [vmem:[#allocation2 + $0x1a0] sm:$0xff]
          %v3443 = vld [vmem:[#allocation2 + $0x1a8] sm:$0xff]
          %v3444 = vld [vmem:[#allocation2 + $0x1b0] sm:$0xff]
          %v3445 = vld [vmem:[#allocation2 + $0x1b8] sm:$0xff]
          %v3446 = vld [vmem:[#allocation2 + $0x1c0] sm:$0xff]
          %v3447 = vld [vmem:[#allocation2 + $0x1c8] sm:$0xff]
          %v3448 = vld [vmem:[#allocation2 + $0x1d0] sm:$0xff]
          %v3449 = vld [vmem:[#allocation2 + $0x1d8] sm:$0xff]
          %v3450 = vld [vmem:[#allocation2 + $0x1e0] sm:$0xff]
          %v3451 = vld [vmem:[#allocation2 + $0x1e8] sm:$0xff]
          %v3452 = vld [vmem:[#allocation2 + $0x1f0] sm:$0xff]
          %v3453 = vld [vmem:[#allocation2 + $0x1f8] sm:$0xff]
          %v3454 = vadd.f32 %v3390, %v3391
          %3455 = vadd.xlane.f32.xlu0 %v3454
          %v3456 = vpop.xlane.xlu0 %3455
          %v3457 = vadd.f32 %v3392, %v3393
          %3458 = vadd.xlane.f32.xlu0 %v3457
          %v3459 = vpop.xlane.xlu0 %3458
          %v3460 = vadd.f32 %v3394, %v3395
          %3461 = vadd.xlane.f32.xlu0 %v3460
          %v3462 = vpop.xlane.xlu0 %3461
          %v3463 = vadd.f32 %v3396, %v3397
          %3464 = vadd.xlane.f32.xlu0 %v3463
          %v3465 = vpop.xlane.xlu0 %3464
          %v3466 = vadd.f32 %v3398, %v3399
          %3467 = vadd.xlane.f32.xlu0 %v3466
          %v3468 = vpop.xlane.xlu0 %3467
          %v3469 = vadd.f32 %v3400, %v3401
          %3470 = vadd.xlane.f32.xlu0 %v3469
          %v3471 = vpop.xlane.xlu0 %3470
          %v3472 = vadd.f32 %v3402, %v3403
          %3473 = vadd.xlane.f32.xlu0 %v3472
          %v3474 = vpop.xlane.xlu0 %3473
          %v3475 = vadd.f32 %v3404, %v3405
          %3476 = vadd.xlane.f32.xlu0 %v3475
          %v3477 = vpop.xlane.xlu0 %3476
          %v3478 = vadd.f32 %v3406, %v3407
          %3479 = vadd.xlane.f32.xlu0 %v3478
          %v3480 = vpop.xlane.xlu0 %3479
          %v3481 = vadd.f32 %v3408, %v3409
          %3482 = vadd.xlane.f32.xlu0 %v3481
          %v3483 = vpop.xlane.xlu0 %3482
          %v3484 = vadd.f32 %v3410, %v3411
          %3485 = vadd.xlane.f32.xlu0 %v3484
          %v3486 = vpop.xlane.xlu0 %3485
          %v3487 = vadd.f32 %v3412, %v3413
          %3488 = vadd.xlane.f32.xlu0 %v3487
          %v3489 = vpop.xlane.xlu0 %3488
          %v3490 = vadd.f32 %v3414, %v3415
          %3491 = vadd.xlane.f32.xlu0 %v3490
          %v3492 = vpop.xlane.xlu0 %3491
          %v3493 = vadd.f32 %v3416, %v3417
          %3494 = vadd.xlane.f32.xlu0 %v3493
          %v3495 = vpop.xlane.xlu0 %3494
          %v3496 = vadd.f32 %v3418, %v3419
          %3497 = vadd.xlane.f32.xlu0 %v3496
          %v3498 = vpop.xlane.xlu0 %3497
          %v3499 = vadd.f32 %v3420, %v3421
          %3500 = vadd.xlane.f32.xlu0 %v3499
          %v3501 = vpop.xlane.xlu0 %3500
          %v3502 = vadd.f32 %v3422, %v3423
          %3503 = vadd.xlane.f32.xlu0 %v3502
          %v3504 = vpop.xlane.xlu0 %3503
          %v3505 = vadd.f32 %v3424, %v3425
          %3506 = vadd.xlane.f32.xlu0 %v3505
          %v3507 = vpop.xlane.xlu0 %3506
          %v3508 = vadd.f32 %v3426, %v3427
          %3509 = vadd.xlane.f32.xlu0 %v3508
          %v3510 = vpop.xlane.xlu0 %3509
          %v3511 = vadd.f32 %v3428, %v3429
          %3512 = vadd.xlane.f32.xlu0 %v3511
          %v3513 = vpop.xlane.xlu0 %3512
          %v3514 = vadd.f32 %v3430, %v3431
          %3515 = vadd.xlane.f32.xlu0 %v3514
          %v3516 = vpop.xlane.xlu0 %3515
          %v3517 = vadd.f32 %v3432, %v3433
          %3518 = vadd.xlane.f32.xlu0 %v3517
          %v3519 = vpop.xlane.xlu0 %3518
          %v3520 = vadd.f32 %v3434, %v3435
          %3521 = vadd.xlane.f32.xlu0 %v3520
          %v3522 = vpop.xlane.xlu0 %3521
          %v3523 = vadd.f32 %v3436, %v3437
          %3524 = vadd.xlane.f32.xlu0 %v3523
          %v3525 = vpop.xlane.xlu0 %3524
          %v3526 = vadd.f32 %v3438, %v3439
          %3527 = vadd.xlane.f32.xlu0 %v3526
          %v3528 = vpop.xlane.xlu0 %3527
          %v3529 = vadd.f32 %v3440, %v3441
          %3530 = vadd.xlane.f32.xlu0 %v3529
          %v3531 = vpop.xlane.xlu0 %3530
          %v3532 = vadd.f32 %v3442, %v3443
          %3533 = vadd.xlane.f32.xlu0 %v3532
          %v3534 = vpop.xlane.xlu0 %3533
          %v3535 = vadd.f32 %v3444, %v3445
          %3536 = vadd.xlane.f32.xlu0 %v3535
          %v3537 = vpop.xlane.xlu0 %3536
          %v3538 = vadd.f32 %v3446, %v3447
          %3539 = vadd.xlane.f32.xlu0 %v3538
          %v3540 = vpop.xlane.xlu0 %3539
          %v3541 = vadd.f32 %v3448, %v3449
          %3542 = vadd.xlane.f32.xlu0 %v3541
          %v3543 = vpop.xlane.xlu0 %3542
          %v3544 = vadd.f32 %v3450, %v3451
          %3545 = vadd.xlane.f32.xlu0 %v3544
          %v3546 = vpop.xlane.xlu0 %3545
          %v3547 = vadd.f32 %v3452, %v3453
          %3548 = vadd.xlane.f32.xlu0 %v3547
          %v3549 = vpop.xlane.xlu0 %3548
          %v3550 = vmul.f32 %v3456, 0.00390625
          %v3551 = vmul.f32 %v3459, 0.00390625
          %v3552 = vmul.f32 %v3462, 0.00390625
          %v3553 = vmul.f32 %v3465, 0.00390625
          %v3554 = vmul.f32 %v3468, 0.00390625
          %v3555 = vmul.f32 %v3471, 0.00390625
          %v3556 = vmul.f32 %v3474, 0.00390625
          %v3557 = vmul.f32 %v3477, 0.00390625
          %v3558 = vmul.f32 %v3480, 0.00390625
          %v3559 = vmul.f32 %v3483, 0.00390625
          %v3560 = vmul.f32 %v3486, 0.00390625
          %v3561 = vmul.f32 %v3489, 0.00390625
          %v3562 = vmul.f32 %v3492, 0.00390625
          %v3563 = vmul.f32 %v3495, 0.00390625
          %v3564 = vmul.f32 %v3498, 0.00390625
          %v3565 = vmul.f32 %v3501, 0.00390625
          %v3566 = vmul.f32 %v3504, 0.00390625
          %v3567 = vmul.f32 %v3507, 0.00390625
          %v3568 = vmul.f32 %v3510, 0.00390625
          %v3569 = vmul.f32 %v3513, 0.00390625
          %v3570 = vmul.f32 %v3516, 0.00390625
          %v3571 = vmul.f32 %v3519, 0.00390625
          %v3572 = vmul.f32 %v3522, 0.00390625
          %v3573 = vmul.f32 %v3525, 0.00390625
          %v3574 = vmul.f32 %v3528, 0.00390625
          %v3575 = vmul.f32 %v3531, 0.00390625
          %v3576 = vmul.f32 %v3534, 0.00390625
          %v3577 = vmul.f32 %v3537, 0.00390625
          %v3578 = vmul.f32 %v3540, 0.00390625
          %v3579 = vmul.f32 %v3543, 0.00390625
          %v3580 = vmul.f32 %v3546, 0.00390625
          %v3581 = vmul.f32 %v3549, 0.00390625
          %v3582 = vmul.f32 %v3390, %v3390
          %v3583 = vmul.f32 %v3391, %v3391
          %v3584 = vmul.f32 %v3392, %v3392
          %v3585 = vmul.f32 %v3393, %v3393
          %v3586 = vmul.f32 %v3394, %v3394
          %v3587 = vmul.f32 %v3395, %v3395
          %v3588 = vmul.f32 %v3396, %v3396
          %v3589 = vmul.f32 %v3397, %v3397
          %v3590 = vmul.f32 %v3398, %v3398
          %v3591 = vmul.f32 %v3399, %v3399
          %v3592 = vmul.f32 %v3400, %v3400
          %v3593 = vmul.f32 %v3401, %v3401
          %v3594 = vmul.f32 %v3402, %v3402
          %v3595 = vmul.f32 %v3403, %v3403
          %v3596 = vmul.f32 %v3404, %v3404
          %v3597 = vmul.f32 %v3405, %v3405
          %v3598 = vmul.f32 %v3406, %v3406
          %v3599 = vmul.f32 %v3407, %v3407
          %v3600 = vmul.f32 %v3408, %v3408
          %v3601 = vmul.f32 %v3409, %v3409
          %v3602 = vmul.f32 %v3410, %v3410
          %v3603 = vmul.f32 %v3411, %v3411
          %v3604 = vmul.f32 %v3412, %v3412
          %v3605 = vmul.f32 %v3413, %v3413
          %v3606 = vmul.f32 %v3414, %v3414
          %v3607 = vmul.f32 %v3415, %v3415
          %v3608 = vmul.f32 %v3416, %v3416
          %v3609 = vmul.f32 %v3417, %v3417
          %v3610 = vmul.f32 %v3418, %v3418
          %v3611 = vmul.f32 %v3419, %v3419
          %v3612 = vmul.f32 %v3420, %v3420
          %v3613 = vmul.f32 %v3421, %v3421
          %v3614 = vmul.f32 %v3422, %v3422
          %v3615 = vmul.f32 %v3423, %v3423
          %v3616 = vmul.f32 %v3424, %v3424
          %v3617 = vmul.f32 %v3425, %v3425
          %v3618 = vmul.f32 %v3426, %v3426
          %v3619 = vmul.f32 %v3427, %v3427
          %v3620 = vmul.f32 %v3428, %v3428
          %v3621 = vmul.f32 %v3429, %v3429
          %v3622 = vmul.f32 %v3430, %v3430
          %v3623 = vmul.f32 %v3431, %v3431
          %v3624 = vmul.f32 %v3432, %v3432
          %v3625 = vmul.f32 %v3433, %v3433
          %v3626 = vmul.f32 %v3434, %v3434
          %v3627 = vmul.f32 %v3435, %v3435
          %v3628 = vmul.f32 %v3436, %v3436
          %v3629 = vmul.f32 %v3437, %v3437
          %v3630 = vmul.f32 %v3438, %v3438
          %v3631 = vmul.f32 %v3439, %v3439
          %v3632 = vmul.f32 %v3440, %v3440
          %v3633 = vmul.f32 %v3441, %v3441
          %v3634 = vmul.f32 %v3442, %v3442
          %v3635 = vmul.f32 %v3443, %v3443
          %v3636 = vmul.f32 %v3444, %v3444
          %v3637 = vmul.f32 %v3445, %v3445
          %v3638 = vmul.f32 %v3446, %v3446
          %v3639 = vmul.f32 %v3447, %v3447
          %v3640 = vmul.f32 %v3448, %v3448
          %v3641 = vmul.f32 %v3449, %v3449
          %v3642 = vmul.f32 %v3450, %v3450
          %v3643 = vmul.f32 %v3451, %v3451
          %v3644 = vmul.f32 %v3452, %v3452
          %v3645 = vmul.f32 %v3453, %v3453
          %v3646 = vadd.f32 %v3582, %v3583
          %3647 = vadd.xlane.f32.xlu0 %v3646
          %v3648 = vpop.xlane.xlu0 %3647
          %v3649 = vadd.f32 %v3584, %v3585
          %3650 = vadd.xlane.f32.xlu0 %v3649
          %v3651 = vpop.xlane.xlu0 %3650
          %v3652 = vadd.f32 %v3586, %v3587
          %3653 = vadd.xlane.f32.xlu0 %v3652
          %v3654 = vpop.xlane.xlu0 %3653
          %v3655 = vadd.f32 %v3588, %v3589
          %3656 = vadd.xlane.f32.xlu0 %v3655
          %v3657 = vpop.xlane.xlu0 %3656
          %v3658 = vadd.f32 %v3590, %v3591
          %3659 = vadd.xlane.f32.xlu0 %v3658
          %v3660 = vpop.xlane.xlu0 %3659
          %v3661 = vadd.f32 %v3592, %v3593
          %3662 = vadd.xlane.f32.xlu0 %v3661
          %v3663 = vpop.xlane.xlu0 %3662
          %v3664 = vadd.f32 %v3594, %v3595
          %3665 = vadd.xlane.f32.xlu0 %v3664
          %v3666 = vpop.xlane.xlu0 %3665
          %v3667 = vadd.f32 %v3596, %v3597
          %3668 = vadd.xlane.f32.xlu0 %v3667
          %v3669 = vpop.xlane.xlu0 %3668
          %v3670 = vadd.f32 %v3598, %v3599
          %3671 = vadd.xlane.f32.xlu0 %v3670
          %v3672 = vpop.xlane.xlu0 %3671
          %v3673 = vadd.f32 %v3600, %v3601
          %3674 = vadd.xlane.f32.xlu0 %v3673
          %v3675 = vpop.xlane.xlu0 %3674
          %v3676 = vadd.f32 %v3602, %v3603
          %3677 = vadd.xlane.f32.xlu0 %v3676
          %v3678 = vpop.xlane.xlu0 %3677
          %v3679 = vadd.f32 %v3604, %v3605
          %3680 = vadd.xlane.f32.xlu0 %v3679
          %v3681 = vpop.xlane.xlu0 %3680
          %v3682 = vadd.f32 %v3606, %v3607
          %3683 = vadd.xlane.f32.xlu0 %v3682
          %v3684 = vpop.xlane.xlu0 %3683
          %v3685 = vadd.f32 %v3608, %v3609
          %3686 = vadd.xlane.f32.xlu0 %v3685
          %v3687 = vpop.xlane.xlu0 %3686
          %v3688 = vadd.f32 %v3610, %v3611
          %3689 = vadd.xlane.f32.xlu0 %v3688
          %v3690 = vpop.xlane.xlu0 %3689
          %v3691 = vadd.f32 %v3612, %v3613
          %3692 = vadd.xlane.f32.xlu0 %v3691
          %v3693 = vpop.xlane.xlu0 %3692
          %v3694 = vadd.f32 %v3614, %v3615
          %3695 = vadd.xlane.f32.xlu0 %v3694
          %v3696 = vpop.xlane.xlu0 %3695
          %v3697 = vadd.f32 %v3616, %v3617
          %3698 = vadd.xlane.f32.xlu0 %v3697
          %v3699 = vpop.xlane.xlu0 %3698
          %v3700 = vadd.f32 %v3618, %v3619
          %3701 = vadd.xlane.f32.xlu0 %v3700
          %v3702 = vpop.xlane.xlu0 %3701
          %v3703 = vadd.f32 %v3620, %v3621
          %3704 = vadd.xlane.f32.xlu0 %v3703
          %v3705 = vpop.xlane.xlu0 %3704
          %v3706 = vadd.f32 %v3622, %v3623
          %3707 = vadd.xlane.f32.xlu0 %v3706
          %v3708 = vpop.xlane.xlu0 %3707
          %v3709 = vadd.f32 %v3624, %v3625
          %3710 = vadd.xlane.f32.xlu0 %v3709
          %v3711 = vpop.xlane.xlu0 %3710
          %v3712 = vadd.f32 %v3626, %v3627
          %3713 = vadd.xlane.f32.xlu0 %v3712
          %v3714 = vpop.xlane.xlu0 %3713
          %v3715 = vadd.f32 %v3628, %v3629
          %3716 = vadd.xlane.f32.xlu0 %v3715
          %v3717 = vpop.xlane.xlu0 %3716
          %v3718 = vadd.f32 %v3630, %v3631
          %3719 = vadd.xlane.f32.xlu0 %v3718
          %v3720 = vpop.xlane.xlu0 %3719
          %v3721 = vadd.f32 %v3632, %v3633
          %3722 = vadd.xlane.f32.xlu0 %v3721
          %v3723 = vpop.xlane.xlu0 %3722
          %v3724 = vadd.f32 %v3634, %v3635
          %3725 = vadd.xlane.f32.xlu0 %v3724
          %v3726 = vpop.xlane.xlu0 %3725
          %v3727 = vadd.f32 %v3636, %v3637
          %3728 = vadd.xlane.f32.xlu0 %v3727
          %v3729 = vpop.xlane.xlu0 %3728
          %v3730 = vadd.f32 %v3638, %v3639
          %3731 = vadd.xlane.f32.xlu0 %v3730
          %v3732 = vpop.xlane.xlu0 %3731
          %v3733 = vadd.f32 %v3640, %v3641
          %3734 = vadd.xlane.f32.xlu0 %v3733
          %v3735 = vpop.xlane.xlu0 %3734
          %v3736 = vadd.f32 %v3642, %v3643
          %3737 = vadd.xlane.f32.xlu0 %v3736
          %v3738 = vpop.xlane.xlu0 %3737
          %v3739 = vadd.f32 %v3644, %v3645
          %3740 = vadd.xlane.f32.xlu0 %v3739
          %v3741 = vpop.xlane.xlu0 %3740
          %v3742 = vmul.f32 %v3648, 0.00390625
          %v3743 = vmul.f32 %v3651, 0.00390625
          %v3744 = vmul.f32 %v3654, 0.00390625
          %v3745 = vmul.f32 %v3657, 0.00390625
          %v3746 = vmul.f32 %v3660, 0.00390625
          %v3747 = vmul.f32 %v3663, 0.00390625
          %v3748 = vmul.f32 %v3666, 0.00390625
          %v3749 = vmul.f32 %v3669, 0.00390625
          %v3750 = vmul.f32 %v3672, 0.00390625
          %v3751 = vmul.f32 %v3675, 0.00390625
          %v3752 = vmul.f32 %v3678, 0.00390625
          %v3753 = vmul.f32 %v3681, 0.00390625
          %v3754 = vmul.f32 %v3684, 0.00390625
          %v3755 = vmul.f32 %v3687, 0.00390625
          %v3756 = vmul.f32 %v3690, 0.00390625
          %v3757 = vmul.f32 %v3693, 0.00390625
          %v3758 = vmul.f32 %v3696, 0.00390625
          %v3759 = vmul.f32 %v3699, 0.00390625
          %v3760 = vmul.f32 %v3702, 0.00390625
          %v3761 = vmul.f32 %v3705, 0.00390625
          %v3762 = vmul.f32 %v3708, 0.00390625
          %v3763 = vmul.f32 %v3711, 0.00390625
          %v3764 = vmul.f32 %v3714, 0.00390625
          %v3765 = vmul.f32 %v3717, 0.00390625
          %v3766 = vmul.f32 %v3720, 0.00390625
          %v3767 = vmul.f32 %v3723, 0.00390625
          %v3768 = vmul.f32 %v3726, 0.00390625
          %v3769 = vmul.f32 %v3729, 0.00390625
          %v3770 = vmul.f32 %v3732, 0.00390625
          %v3771 = vmul.f32 %v3735, 0.00390625
          %v3772 = vmul.f32 %v3738, 0.00390625
          %v3773 = vmul.f32 %v3741, 0.00390625
          %v3774 = vmul.f32 %v3550, %v3550
          %v3775 = vmul.f32 %v3551, %v3551
          %v3776 = vmul.f32 %v3552, %v3552
          %v3777 = vmul.f32 %v3553, %v3553
          %v3778 = vmul.f32 %v3554, %v3554
          %v3779 = vmul.f32 %v3555, %v3555
          %v3780 = vmul.f32 %v3556, %v3556
          %v3781 = vmul.f32 %v3557, %v3557
          %v3782 = vmul.f32 %v3558, %v3558
          %v3783 = vmul.f32 %v3559, %v3559
          %v3784 = vmul.f32 %v3560, %v3560
          %v3785 = vmul.f32 %v3561, %v3561
          %v3786 = vmul.f32 %v3562, %v3562
          %v3787 = vmul.f32 %v3563, %v3563
          %v3788 = vmul.f32 %v3564, %v3564
          %v3789 = vmul.f32 %v3565, %v3565
          %v3790 = vmul.f32 %v3566, %v3566
          %v3791 = vmul.f32 %v3567, %v3567
          %v3792 = vmul.f32 %v3568, %v3568
          %v3793 = vmul.f32 %v3569, %v3569
          %v3794 = vmul.f32 %v3570, %v3570
          %v3795 = vmul.f32 %v3571, %v3571
          %v3796 = vmul.f32 %v3572, %v3572
          %v3797 = vmul.f32 %v3573, %v3573
          %v3798 = vmul.f32 %v3574, %v3574
          %v3799 = vmul.f32 %v3575, %v3575
          %v3800 = vmul.f32 %v3576, %v3576
          %v3801 = vmul.f32 %v3577, %v3577
          %v3802 = vmul.f32 %v3578, %v3578
          %v3803 = vmul.f32 %v3579, %v3579
          %v3804 = vmul.f32 %v3580, %v3580
          %v3805 = vmul.f32 %v3581, %v3581
          %v3806 = vsub.f32 %v3742, %v3774
          %v3807 = vsub.f32 %v3743, %v3775
          %v3808 = vsub.f32 %v3744, %v3776
          %v3809 = vsub.f32 %v3745, %v3777
          %v3810 = vsub.f32 %v3746, %v3778
          %v3811 = vsub.f32 %v3747, %v3779
          %v3812 = vsub.f32 %v3748, %v3780
          %v3813 = vsub.f32 %v3749, %v3781
          %v3814 = vsub.f32 %v3750, %v3782
          %v3815 = vsub.f32 %v3751, %v3783
          %v3816 = vsub.f32 %v3752, %v3784
          %v3817 = vsub.f32 %v3753, %v3785
          %v3818 = vsub.f32 %v3754, %v3786
          %v3819 = vsub.f32 %v3755, %v3787
          %v3820 = vsub.f32 %v3756, %v3788
          %v3821 = vsub.f32 %v3757, %v3789
          %v3822 = vsub.f32 %v3758, %v3790
          %v3823 = vsub.f32 %v3759, %v3791
          %v3824 = vsub.f32 %v3760, %v3792
          %v3825 = vsub.f32 %v3761, %v3793
          %v3826 = vsub.f32 %v3762, %v3794
          %v3827 = vsub.f32 %v3763, %v3795
          %v3828 = vsub.f32 %v3764, %v3796
          %v3829 = vsub.f32 %v3765, %v3797
          %v3830 = vsub.f32 %v3766, %v3798
          %v3831 = vsub.f32 %v3767, %v3799
          %v3832 = vsub.f32 %v3768, %v3800
          %v3833 = vsub.f32 %v3769, %v3801
          %v3834 = vsub.f32 %v3770, %v3802
          %v3835 = vsub.f32 %v3771, %v3803
          %v3836 = vsub.f32 %v3772, %v3804
          %v3837 = vsub.f32 %v3773, %v3805
          %v3838 = vmax.f32 %v3806, 0.0
          %v3839 = vmax.f32 %v3807, 0.0
          %v3840 = vmax.f32 %v3808, 0.0
          %v3841 = vmax.f32 %v3809, 0.0
          %v3842 = vmax.f32 %v3810, 0.0
          %v3843 = vmax.f32 %v3811, 0.0
          %v3844 = vmax.f32 %v3812, 0.0
          %v3845 = vmax.f32 %v3813, 0.0
          %v3846 = vmax.f32 %v3814, 0.0
          %v3847 = vmax.f32 %v3815, 0.0
          %v3848 = vmax.f32 %v3816, 0.0
          %v3849 = vmax.f32 %v3817, 0.0
          %v3850 = vmax.f32 %v3818, 0.0
          %v3851 = vmax.f32 %v3819, 0.0
          %v3852 = vmax.f32 %v3820, 0.0
          %v3853 = vmax.f32 %v3821, 0.0
          %v3854 = vmax.f32 %v3822, 0.0
          %v3855 = vmax.f32 %v3823, 0.0
          %v3856 = vmax.f32 %v3824, 0.0
          %v3857 = vmax.f32 %v3825, 0.0
          %v3858 = vmax.f32 %v3826, 0.0
          %v3859 = vmax.f32 %v3827, 0.0
          %v3860 = vmax.f32 %v3828, 0.0
          %v3861 = vmax.f32 %v3829, 0.0
          %v3862 = vmax.f32 %v3830, 0.0
          %v3863 = vmax.f32 %v3831, 0.0
          %v3864 = vmax.f32 %v3832, 0.0
          %v3865 = vmax.f32 %v3833, 0.0
          %v3866 = vmax.f32 %v3834, 0.0
          %v3867 = vmax.f32 %v3835, 0.0
          %v3868 = vmax.f32 %v3836, 0.0
          %v3869 = vmax.f32 %v3837, 0.0
          %v3870 = vsub.f32 %v3390, %v3550
          %v3871 = vsub.f32 %v3391, %v3550
          %v3872 = vsub.f32 %v3392, %v3551
          %v3873 = vsub.f32 %v3393, %v3551
          %v3874 = vsub.f32 %v3394, %v3552
          %v3875 = vsub.f32 %v3395, %v3552
          %v3876 = vsub.f32 %v3396, %v3553
          %v3877 = vsub.f32 %v3397, %v3553
          %v3878 = vsub.f32 %v3398, %v3554
          %v3879 = vsub.f32 %v3399, %v3554
          %v3880 = vsub.f32 %v3400, %v3555
          %v3881 = vsub.f32 %v3401, %v3555
          %v3882 = vsub.f32 %v3402, %v3556
          %v3883 = vsub.f32 %v3403, %v3556
          %v3884 = vsub.f32 %v3404, %v3557
          %v3885 = vsub.f32 %v3405, %v3557
          %v3886 = vsub.f32 %v3406, %v3558
          %v3887 = vsub.f32 %v3407, %v3558
          %v3888 = vsub.f32 %v3408, %v3559
          %v3889 = vsub.f32 %v3409, %v3559
          %v3890 = vsub.f32 %v3410, %v3560
          %v3891 = vsub.f32 %v3411, %v3560
          %v3892 = vsub.f32 %v3412, %v3561
          %v3893 = vsub.f32 %v3413, %v3561
          %v3894 = vsub.f32 %v3414, %v3562
          %v3895 = vsub.f32 %v3415, %v3562
          %v3896 = vsub.f32 %v3416, %v3563
          %v3897 = vsub.f32 %v3417, %v3563
          %v3898 = vsub.f32 %v3418, %v3564
          %v3899 = vsub.f32 %v3419, %v3564
          %v3900 = vsub.f32 %v3420, %v3565
          %v3901 = vsub.f32 %v3421, %v3565
          %v3902 = vsub.f32 %v3422, %v3566
          %v3903 = vsub.f32 %v3423, %v3566
          %v3904 = vsub.f32 %v3424, %v3567
          %v3905 = vsub.f32 %v3425, %v3567
          %v3906 = vsub.f32 %v3426, %v3568
          %v3907 = vsub.f32 %v3427, %v3568
          %v3908 = vsub.f32 %v3428, %v3569
          %v3909 = vsub.f32 %v3429, %v3569
          %v3910 = vsub.f32 %v3430, %v3570
          %v3911 = vsub.f32 %v3431, %v3570
          %v3912 = vsub.f32 %v3432, %v3571
          %v3913 = vsub.f32 %v3433, %v3571
          %v3914 = vsub.f32 %v3434, %v3572
          %v3915 = vsub.f32 %v3435, %v3572
          %v3916 = vsub.f32 %v3436, %v3573
          %v3917 = vsub.f32 %v3437, %v3573
          %v3918 = vsub.f32 %v3438, %v3574
          %v3919 = vsub.f32 %v3439, %v3574
          %v3920 = vsub.f32 %v3440, %v3575
          %v3921 = vsub.f32 %v3441, %v3575
          %v3922 = vsub.f32 %v3442, %v3576
          %v3923 = vsub.f32 %v3443, %v3576
          %v3924 = vsub.f32 %v3444, %v3577
          %v3925 = vsub.f32 %v3445, %v3577
          %v3926 = vsub.f32 %v3446, %v3578
          %v3927 = vsub.f32 %v3447, %v3578
          %v3928 = vsub.f32 %v3448, %v3579
          %v3929 = vsub.f32 %v3449, %v3579
          %v3930 = vsub.f32 %v3450, %v3580
          %v3931 = vsub.f32 %v3451, %v3580
          %v3932 = vsub.f32 %v3452, %v3581
          %v3933 = vsub.f32 %v3453, %v3581
          %v3934 = vadd.f32 %v3838, 1e-06
          %v3935 = vadd.f32 %v3839, 1e-06
          %v3936 = vadd.f32 %v3840, 1e-06
          %v3937 = vadd.f32 %v3841, 1e-06
          %v3938 = vadd.f32 %v3842, 1e-06
          %v3939 = vadd.f32 %v3843, 1e-06
          %v3940 = vadd.f32 %v3844, 1e-06
          %v3941 = vadd.f32 %v3845, 1e-06
          %v3942 = vadd.f32 %v3846, 1e-06
          %v3943 = vadd.f32 %v3847, 1e-06
          %v3944 = vadd.f32 %v3848, 1e-06
          %v3945 = vadd.f32 %v3849, 1e-06
          %v3946 = vadd.f32 %v3850, 1e-06
          %v3947 = vadd.f32 %v3851, 1e-06
          %v3948 = vadd.f32 %v3852, 1e-06
          %v3949 = vadd.f32 %v3853, 1e-06
          %v3950 = vadd.f32 %v3854, 1e-06
          %v3951 = vadd.f32 %v3855, 1e-06
          %v3952 = vadd.f32 %v3856, 1e-06
          %v3953 = vadd.f32 %v3857, 1e-06
          %v3954 = vadd.f32 %v3858, 1e-06
          %v3955 = vadd.f32 %v3859, 1e-06
          %v3956 = vadd.f32 %v3860, 1e-06
          %v3957 = vadd.f32 %v3861, 1e-06
          %v3958 = vadd.f32 %v3862, 1e-06
          %v3959 = vadd.f32 %v3863, 1e-06
          %v3960 = vadd.f32 %v3864, 1e-06
          %v3961 = vadd.f32 %v3865, 1e-06
          %v3962 = vadd.f32 %v3866, 1e-06
          %v3963 = vadd.f32 %v3867, 1e-06
          %v3964 = vadd.f32 %v3868, 1e-06
          %v3965 = vadd.f32 %v3869, 1e-06
          %v3966 = vrsqrt.pop %v3934
          %v3967 = vmul.f32 %v3966, %v3934
          %v3968 = vmul.f32 %v3967, %v3966
          %v3969 = vmul.f32 0.5, %v3968
          %v3970 = vsub.f32 1.5, %v3969
          %v3971 = vmul.f32 %v3966, %v3970
          %vm3972 = vweird.f32 %v3934
          %vm3973 = vweird.f32 %v3966
          %vm3974 = vmor %vm3972, %vm3973
          %v3975 = vsel %vm3974, %v3966, %v3971
          %v3976 = vrsqrt.pop %v3935
          %v3977 = vmul.f32 %v3976, %v3935
          %v3978 = vmul.f32 %v3977, %v3976
          %v3979 = vmul.f32 0.5, %v3978
          %v3980 = vsub.f32 1.5, %v3979
          %v3981 = vmul.f32 %v3976, %v3980
          %vm3982 = vweird.f32 %v3935
          %vm3983 = vweird.f32 %v3976
          %vm3984 = vmor %vm3982, %vm3983
          %v3985 = vsel %vm3984, %v3976, %v3981
          %v3986 = vrsqrt.pop %v3936
          %v3987 = vmul.f32 %v3986, %v3936
          %v3988 = vmul.f32 %v3987, %v3986
          %v3989 = vmul.f32 0.5, %v3988
          %v3990 = vsub.f32 1.5, %v3989
          %v3991 = vmul.f32 %v3986, %v3990
          %vm3992 = vweird.f32 %v3936
          %vm3993 = vweird.f32 %v3986
          %vm3994 = vmor %vm3992, %vm3993
          %v3995 = vsel %vm3994, %v3986, %v3991
          %v3996 = vrsqrt.pop %v3937
          %v3997 = vmul.f32 %v3996, %v3937
          %v3998 = vmul.f32 %v3997, %v3996
          %v3999 = vmul.f32 0.5, %v3998
          %v4000 = vsub.f32 1.5, %v3999
          %v4001 = vmul.f32 %v3996, %v4000
          %vm4002 = vweird.f32 %v3937
          %vm4003 = vweird.f32 %v3996
          %vm4004 = vmor %vm4002, %vm4003
          %v4005 = vsel %vm4004, %v3996, %v4001
          %v4006 = vrsqrt.pop %v3938
          %v4007 = vmul.f32 %v4006, %v3938
          %v4008 = vmul.f32 %v4007, %v4006
          %v4009 = vmul.f32 0.5, %v4008
          %v4010 = vsub.f32 1.5, %v4009
          %v4011 = vmul.f32 %v4006, %v4010
          %vm4012 = vweird.f32 %v3938
          %vm4013 = vweird.f32 %v4006
          %vm4014 = vmor %vm4012, %vm4013
          %v4015 = vsel %vm4014, %v4006, %v4011
          %v4016 = vrsqrt.pop %v3939
          %v4017 = vmul.f32 %v4016, %v3939
          %v4018 = vmul.f32 %v4017, %v4016
          %v4019 = vmul.f32 0.5, %v4018
          %v4020 = vsub.f32 1.5, %v4019
          %v4021 = vmul.f32 %v4016, %v4020
          %vm4022 = vweird.f32 %v3939
          %vm4023 = vweird.f32 %v4016
          %vm4024 = vmor %vm4022, %vm4023
          %v4025 = vsel %vm4024, %v4016, %v4021
          %v4026 = vrsqrt.pop %v3940
          %v4027 = vmul.f32 %v4026, %v3940
          %v4028 = vmul.f32 %v4027, %v4026
          %v4029 = vmul.f32 0.5, %v4028
          %v4030 = vsub.f32 1.5, %v4029
          %v4031 = vmul.f32 %v4026, %v4030
          %vm4032 = vweird.f32 %v3940
          %vm4033 = vweird.f32 %v4026
          %vm4034 = vmor %vm4032, %vm4033
          %v4035 = vsel %vm4034, %v4026, %v4031
          %v4036 = vrsqrt.pop %v3941
          %v4037 = vmul.f32 %v4036, %v3941
          %v4038 = vmul.f32 %v4037, %v4036
          %v4039 = vmul.f32 0.5, %v4038
          %v4040 = vsub.f32 1.5, %v4039
          %v4041 = vmul.f32 %v4036, %v4040
          %vm4042 = vweird.f32 %v3941
          %vm4043 = vweird.f32 %v4036
          %vm4044 = vmor %vm4042, %vm4043
          %v4045 = vsel %vm4044, %v4036, %v4041
          %v4046 = vrsqrt.pop %v3942
          %v4047 = vmul.f32 %v4046, %v3942
          %v4048 = vmul.f32 %v4047, %v4046
          %v4049 = vmul.f32 0.5, %v4048
          %v4050 = vsub.f32 1.5, %v4049
          %v4051 = vmul.f32 %v4046, %v4050
          %vm4052 = vweird.f32 %v3942
          %vm4053 = vweird.f32 %v4046
          %vm4054 = vmor %vm4052, %vm4053
          %v4055 = vsel %vm4054, %v4046, %v4051
          %v4056 = vrsqrt.pop %v3943
          %v4057 = vmul.f32 %v4056, %v3943
          %v4058 = vmul.f32 %v4057, %v4056
          %v4059 = vmul.f32 0.5, %v4058
          %v4060 = vsub.f32 1.5, %v4059
          %v4061 = vmul.f32 %v4056, %v4060
          %vm4062 = vweird.f32 %v3943
          %vm4063 = vweird.f32 %v4056
          %vm4064 = vmor %vm4062, %vm4063
          %v4065 = vsel %vm4064, %v4056, %v4061
          %v4066 = vrsqrt.pop %v3944
          %v4067 = vmul.f32 %v4066, %v3944
          %v4068 = vmul.f32 %v4067, %v4066
          %v4069 = vmul.f32 0.5, %v4068
          %v4070 = vsub.f32 1.5, %v4069
          %v4071 = vmul.f32 %v4066, %v4070
          %vm4072 = vweird.f32 %v3944
          %vm4073 = vweird.f32 %v4066
          %vm4074 = vmor %vm4072, %vm4073
          %v4075 = vsel %vm4074, %v4066, %v4071
          %v4076 = vrsqrt.pop %v3945
          %v4077 = vmul.f32 %v4076, %v3945
          %v4078 = vmul.f32 %v4077, %v4076
          %v4079 = vmul.f32 0.5, %v4078
          %v4080 = vsub.f32 1.5, %v4079
          %v4081 = vmul.f32 %v4076, %v4080
          %vm4082 = vweird.f32 %v3945
          %vm4083 = vweird.f32 %v4076
          %vm4084 = vmor %vm4082, %vm4083
          %v4085 = vsel %vm4084, %v4076, %v4081
          %v4086 = vrsqrt.pop %v3946
          %v4087 = vmul.f32 %v4086, %v3946
          %v4088 = vmul.f32 %v4087, %v4086
          %v4089 = vmul.f32 0.5, %v4088
          %v4090 = vsub.f32 1.5, %v4089
          %v4091 = vmul.f32 %v4086, %v4090
          %vm4092 = vweird.f32 %v3946
          %vm4093 = vweird.f32 %v4086
          %vm4094 = vmor %vm4092, %vm4093
          %v4095 = vsel %vm4094, %v4086, %v4091
          %v4096 = vrsqrt.pop %v3947
          %v4097 = vmul.f32 %v4096, %v3947
          %v4098 = vmul.f32 %v4097, %v4096
          %v4099 = vmul.f32 0.5, %v4098
          %v4100 = vsub.f32 1.5, %v4099
          %v4101 = vmul.f32 %v4096, %v4100
          %vm4102 = vweird.f32 %v3947
          %vm4103 = vweird.f32 %v4096
          %vm4104 = vmor %vm4102, %vm4103
          %v4105 = vsel %vm4104, %v4096, %v4101
          %v4106 = vrsqrt.pop %v3948
          %v4107 = vmul.f32 %v4106, %v3948
          %v4108 = vmul.f32 %v4107, %v4106
          %v4109 = vmul.f32 0.5, %v4108
          %v4110 = vsub.f32 1.5, %v4109
          %v4111 = vmul.f32 %v4106, %v4110
          %vm4112 = vweird.f32 %v3948
          %vm4113 = vweird.f32 %v4106
          %vm4114 = vmor %vm4112, %vm4113
          %v4115 = vsel %vm4114, %v4106, %v4111
          %v4116 = vrsqrt.pop %v3949
          %v4117 = vmul.f32 %v4116, %v3949
          %v4118 = vmul.f32 %v4117, %v4116
          %v4119 = vmul.f32 0.5, %v4118
          %v4120 = vsub.f32 1.5, %v4119
          %v4121 = vmul.f32 %v4116, %v4120
          %vm4122 = vweird.f32 %v3949
          %vm4123 = vweird.f32 %v4116
          %vm4124 = vmor %vm4122, %vm4123
          %v4125 = vsel %vm4124, %v4116, %v4121
          %v4126 = vrsqrt.pop %v3950
          %v4127 = vmul.f32 %v4126, %v3950
          %v4128 = vmul.f32 %v4127, %v4126
          %v4129 = vmul.f32 0.5, %v4128
          %v4130 = vsub.f32 1.5, %v4129
          %v4131 = vmul.f32 %v4126, %v4130
          %vm4132 = vweird.f32 %v3950
          %vm4133 = vweird.f32 %v4126
          %vm4134 = vmor %vm4132, %vm4133
          %v4135 = vsel %vm4134, %v4126, %v4131
          %v4136 = vrsqrt.pop %v3951
          %v4137 = vmul.f32 %v4136, %v3951
          %v4138 = vmul.f32 %v4137, %v4136
          %v4139 = vmul.f32 0.5, %v4138
          %v4140 = vsub.f32 1.5, %v4139
          %v4141 = vmul.f32 %v4136, %v4140
          %vm4142 = vweird.f32 %v3951
          %vm4143 = vweird.f32 %v4136
          %vm4144 = vmor %vm4142, %vm4143
          %v4145 = vsel %vm4144, %v4136, %v4141
          %v4146 = vrsqrt.pop %v3952
          %v4147 = vmul.f32 %v4146, %v3952
          %v4148 = vmul.f32 %v4147, %v4146
          %v4149 = vmul.f32 0.5, %v4148
          %v4150 = vsub.f32 1.5, %v4149
          %v4151 = vmul.f32 %v4146, %v4150
          %vm4152 = vweird.f32 %v3952
          %vm4153 = vweird.f32 %v4146
          %vm4154 = vmor %vm4152, %vm4153
          %v4155 = vsel %vm4154, %v4146, %v4151
          %v4156 = vrsqrt.pop %v3953
          %v4157 = vmul.f32 %v4156, %v3953
          %v4158 = vmul.f32 %v4157, %v4156
          %v4159 = vmul.f32 0.5, %v4158
          %v4160 = vsub.f32 1.5, %v4159
          %v4161 = vmul.f32 %v4156, %v4160
          %vm4162 = vweird.f32 %v3953
          %vm4163 = vweird.f32 %v4156
          %vm4164 = vmor %vm4162, %vm4163
          %v4165 = vsel %vm4164, %v4156, %v4161
          %v4166 = vrsqrt.pop %v3954
          %v4167 = vmul.f32 %v4166, %v3954
          %v4168 = vmul.f32 %v4167, %v4166
          %v4169 = vmul.f32 0.5, %v4168
          %v4170 = vsub.f32 1.5, %v4169
          %v4171 = vmul.f32 %v4166, %v4170
          %vm4172 = vweird.f32 %v3954
          %vm4173 = vweird.f32 %v4166
          %vm4174 = vmor %vm4172, %vm4173
          %v4175 = vsel %vm4174, %v4166, %v4171
          %v4176 = vrsqrt.pop %v3955
          %v4177 = vmul.f32 %v4176, %v3955
          %v4178 = vmul.f32 %v4177, %v4176
          %v4179 = vmul.f32 0.5, %v4178
          %v4180 = vsub.f32 1.5, %v4179
          %v4181 = vmul.f32 %v4176, %v4180
          %vm4182 = vweird.f32 %v3955
          %vm4183 = vweird.f32 %v4176
          %vm4184 = vmor %vm4182, %vm4183
          %v4185 = vsel %vm4184, %v4176, %v4181
          %v4186 = vrsqrt.pop %v3956
          %v4187 = vmul.f32 %v4186, %v3956
          %v4188 = vmul.f32 %v4187, %v4186
          %v4189 = vmul.f32 0.5, %v4188
          %v4190 = vsub.f32 1.5, %v4189
          %v4191 = vmul.f32 %v4186, %v4190
          %vm4192 = vweird.f32 %v3956
          %vm4193 = vweird.f32 %v4186
          %vm4194 = vmor %vm4192, %vm4193
          %v4195 = vsel %vm4194, %v4186, %v4191
          %v4196 = vrsqrt.pop %v3957
          %v4197 = vmul.f32 %v4196, %v3957
          %v4198 = vmul.f32 %v4197, %v4196
          %v4199 = vmul.f32 0.5, %v4198
          %v4200 = vsub.f32 1.5, %v4199
          %v4201 = vmul.f32 %v4196, %v4200
          %vm4202 = vweird.f32 %v3957
          %vm4203 = vweird.f32 %v4196
          %vm4204 = vmor %vm4202, %vm4203
          %v4205 = vsel %vm4204, %v4196, %v4201
          %v4206 = vrsqrt.pop %v3958
          %v4207 = vmul.f32 %v4206, %v3958
          %v4208 = vmul.f32 %v4207, %v4206
          %v4209 = vmul.f32 0.5, %v4208
          %v4210 = vsub.f32 1.5, %v4209
          %v4211 = vmul.f32 %v4206, %v4210
          %vm4212 = vweird.f32 %v3958
          %vm4213 = vweird.f32 %v4206
          %vm4214 = vmor %vm4212, %vm4213
          %v4215 = vsel %vm4214, %v4206, %v4211
          %v4216 = vrsqrt.pop %v3959
          %v4217 = vmul.f32 %v4216, %v3959
          %v4218 = vmul.f32 %v4217, %v4216
          %v4219 = vmul.f32 0.5, %v4218
          %v4220 = vsub.f32 1.5, %v4219
          %v4221 = vmul.f32 %v4216, %v4220
          %vm4222 = vweird.f32 %v3959
          %vm4223 = vweird.f32 %v4216
          %vm4224 = vmor %vm4222, %vm4223
          %v4225 = vsel %vm4224, %v4216, %v4221
          %v4226 = vrsqrt.pop %v3960
          %v4227 = vmul.f32 %v4226, %v3960
          %v4228 = vmul.f32 %v4227, %v4226
          %v4229 = vmul.f32 0.5, %v4228
          %v4230 = vsub.f32 1.5, %v4229
          %v4231 = vmul.f32 %v4226, %v4230
          %vm4232 = vweird.f32 %v3960
          %vm4233 = vweird.f32 %v4226
          %vm4234 = vmor %vm4232, %vm4233
          %v4235 = vsel %vm4234, %v4226, %v4231
          %v4236 = vrsqrt.pop %v3961
          %v4237 = vmul.f32 %v4236, %v3961
          %v4238 = vmul.f32 %v4237, %v4236
          %v4239 = vmul.f32 0.5, %v4238
          %v4240 = vsub.f32 1.5, %v4239
          %v4241 = vmul.f32 %v4236, %v4240
          %vm4242 = vweird.f32 %v3961
          %vm4243 = vweird.f32 %v4236
          %vm4244 = vmor %vm4242, %vm4243
          %v4245 = vsel %vm4244, %v4236, %v4241
          %v4246 = vrsqrt.pop %v3962
          %v4247 = vmul.f32 %v4246, %v3962
          %v4248 = vmul.f32 %v4247, %v4246
          %v4249 = vmul.f32 0.5, %v4248
          %v4250 = vsub.f32 1.5, %v4249
          %v4251 = vmul.f32 %v4246, %v4250
          %vm4252 = vweird.f32 %v3962
          %vm4253 = vweird.f32 %v4246
          %vm4254 = vmor %vm4252, %vm4253
          %v4255 = vsel %vm4254, %v4246, %v4251
          %v4256 = vrsqrt.pop %v3963
          %v4257 = vmul.f32 %v4256, %v3963
          %v4258 = vmul.f32 %v4257, %v4256
          %v4259 = vmul.f32 0.5, %v4258
          %v4260 = vsub.f32 1.5, %v4259
          %v4261 = vmul.f32 %v4256, %v4260
          %vm4262 = vweird.f32 %v3963
          %vm4263 = vweird.f32 %v4256
          %vm4264 = vmor %vm4262, %vm4263
          %v4265 = vsel %vm4264, %v4256, %v4261
          %v4266 = vrsqrt.pop %v3964
          %v4267 = vmul.f32 %v4266, %v3964
          %v4268 = vmul.f32 %v4267, %v4266
          %v4269 = vmul.f32 0.5, %v4268
          %v4270 = vsub.f32 1.5, %v4269
          %v4271 = vmul.f32 %v4266, %v4270
          %vm4272 = vweird.f32 %v3964
          %vm4273 = vweird.f32 %v4266
          %vm4274 = vmor %vm4272, %vm4273
          %v4275 = vsel %vm4274, %v4266, %v4271
          %v4276 = vrsqrt.pop %v3965
          %v4277 = vmul.f32 %v4276, %v3965
          %v4278 = vmul.f32 %v4277, %v4276
          %v4279 = vmul.f32 0.5, %v4278
          %v4280 = vsub.f32 1.5, %v4279
          %v4281 = vmul.f32 %v4276, %v4280
          %vm4282 = vweird.f32 %v3965
          %vm4283 = vweird.f32 %v4276
          %vm4284 = vmor %vm4282, %vm4283
          %v4285 = vsel %vm4284, %v4276, %v4281
          %v4286 = vmul.f32 %v3870, %v3975
          %v4287 = vmul.f32 %v3871, %v3975
          %v4288 = vmul.f32 %v3872, %v3985
          %v4289 = vmul.f32 %v3873, %v3985
          %v4290 = vmul.f32 %v3874, %v3995
          %v4291 = vmul.f32 %v3875, %v3995
          %v4292 = vmul.f32 %v3876, %v4005
          %v4293 = vmul.f32 %v3877, %v4005
          %v4294 = vmul.f32 %v3878, %v4015
          %v4295 = vmul.f32 %v3879, %v4015
          %v4296 = vmul.f32 %v3880, %v4025
          %v4297 = vmul.f32 %v3881, %v4025
          %v4298 = vmul.f32 %v3882, %v4035
          %v4299 = vmul.f32 %v3883, %v4035
          %v4300 = vmul.f32 %v3884, %v4045
          %v4301 = vmul.f32 %v3885, %v4045
          %v4302 = vmul.f32 %v3886, %v4055
          %v4303 = vmul.f32 %v3887, %v4055
          %v4304 = vmul.f32 %v3888, %v4065
          %v4305 = vmul.f32 %v3889, %v4065
          %v4306 = vmul.f32 %v3890, %v4075
          %v4307 = vmul.f32 %v3891, %v4075
          %v4308 = vmul.f32 %v3892, %v4085
          %v4309 = vmul.f32 %v3893, %v4085
          %v4310 = vmul.f32 %v3894, %v4095
          %v4311 = vmul.f32 %v3895, %v4095
          %v4312 = vmul.f32 %v3896, %v4105
          %v4313 = vmul.f32 %v3897, %v4105
          %v4314 = vmul.f32 %v3898, %v4115
          %v4315 = vmul.f32 %v3899, %v4115
          %v4316 = vmul.f32 %v3900, %v4125
          %v4317 = vmul.f32 %v3901, %v4125
          %v4318 = vmul.f32 %v3902, %v4135
          %v4319 = vmul.f32 %v3903, %v4135
          %v4320 = vmul.f32 %v3904, %v4145
          %v4321 = vmul.f32 %v3905, %v4145
          %v4322 = vmul.f32 %v3906, %v4155
          %v4323 = vmul.f32 %v3907, %v4155
          %v4324 = vmul.f32 %v3908, %v4165
          %v4325 = vmul.f32 %v3909, %v4165
          %v4326 = vmul.f32 %v3910, %v4175
          %v4327 = vmul.f32 %v3911, %v4175
          %v4328 = vmul.f32 %v3912, %v4185
          %v4329 = vmul.f32 %v3913, %v4185
          %v4330 = vmul.f32 %v3914, %v4195
          %v4331 = vmul.f32 %v3915, %v4195
          %v4332 = vmul.f32 %v3916, %v4205
          %v4333 = vmul.f32 %v3917, %v4205
          %v4334 = vmul.f32 %v3918, %v4215
          %v4335 = vmul.f32 %v3919, %v4215
          %v4336 = vmul.f32 %v3920, %v4225
          %v4337 = vmul.f32 %v3921, %v4225
          %v4338 = vmul.f32 %v3922, %v4235
          %v4339 = vmul.f32 %v3923, %v4235
          %v4340 = vmul.f32 %v3924, %v4245
          %v4341 = vmul.f32 %v3925, %v4245
          %v4342 = vmul.f32 %v3926, %v4255
          %v4343 = vmul.f32 %v3927, %v4255
          %v4344 = vmul.f32 %v3928, %v4265
          %v4345 = vmul.f32 %v3929, %v4265
          %v4346 = vmul.f32 %v3930, %v4275
          %v4347 = vmul.f32 %v3931, %v4275
          %v4348 = vmul.f32 %v3932, %v4285
          %v4349 = vmul.f32 %v3933, %v4285
          %v4351 = vperm.slane %v1197, 0
          %v4352 = vperm.slane %v1197, 1
          %v4355 = vmul.f32 %v4286, %v4351
          %v4356 = vmul.f32 %v4287, %v4352
          %v4357 = vmul.f32 %v4288, %v4351
          %v4358 = vmul.f32 %v4289, %v4352
          %v4359 = vmul.f32 %v4290, %v4351
          %v4360 = vmul.f32 %v4291, %v4352
          %v4361 = vmul.f32 %v4292, %v4351
          %v4362 = vmul.f32 %v4293, %v4352
          %v4363 = vmul.f32 %v4294, %v4351
          %v4364 = vmul.f32 %v4295, %v4352
          %v4365 = vmul.f32 %v4296, %v4351
          %v4366 = vmul.f32 %v4297, %v4352
          %v4367 = vmul.f32 %v4298, %v4351
          %v4368 = vmul.f32 %v4299, %v4352
          %v4369 = vmul.f32 %v4300, %v4351
          %v4370 = vmul.f32 %v4301, %v4352
          %v4371 = vmul.f32 %v4302, %v4351
          %v4372 = vmul.f32 %v4303, %v4352
          %v4373 = vmul.f32 %v4304, %v4351
          %v4374 = vmul.f32 %v4305, %v4352
          %v4375 = vmul.f32 %v4306, %v4351
          %v4376 = vmul.f32 %v4307, %v4352
          %v4377 = vmul.f32 %v4308, %v4351
          %v4378 = vmul.f32 %v4309, %v4352
          %v4379 = vmul.f32 %v4310, %v4351
          %v4380 = vmul.f32 %v4311, %v4352
          %v4381 = vmul.f32 %v4312, %v4351
          %v4382 = vmul.f32 %v4313, %v4352
          %v4383 = vmul.f32 %v4314, %v4351
          %v4384 = vmul.f32 %v4315, %v4352
          %v4385 = vmul.f32 %v4316, %v4351
          %v4386 = vmul.f32 %v4317, %v4352
          %v4387 = vmul.f32 %v4318, %v4351
          %v4388 = vmul.f32 %v4319, %v4352
          %v4389 = vmul.f32 %v4320, %v4351
          %v4390 = vmul.f32 %v4321, %v4352
          %v4391 = vmul.f32 %v4322, %v4351
          %v4392 = vmul.f32 %v4323, %v4352
          %v4393 = vmul.f32 %v4324, %v4351
          %v4394 = vmul.f32 %v4325, %v4352
          %v4395 = vmul.f32 %v4326, %v4351
          %v4396 = vmul.f32 %v4327, %v4352
          %v4397 = vmul.f32 %v4328, %v4351
          %v4398 = vmul.f32 %v4329, %v4352
          %v4399 = vmul.f32 %v4330, %v4351
          %v4400 = vmul.f32 %v4331, %v4352
          %v4401 = vmul.f32 %v4332, %v4351
          %v4402 = vmul.f32 %v4333, %v4352
          %v4403 = vmul.f32 %v4334, %v4351
          %v4404 = vmul.f32 %v4335, %v4352
          %v4405 = vmul.f32 %v4336, %v4351
          %v4406 = vmul.f32 %v4337, %v4352
          %v4407 = vmul.f32 %v4338, %v4351
          %v4408 = vmul.f32 %v4339, %v4352
          %v4409 = vmul.f32 %v4340, %v4351
          %v4410 = vmul.f32 %v4341, %v4352
          %v4411 = vmul.f32 %v4342, %v4351
          %v4412 = vmul.f32 %v4343, %v4352
          %v4413 = vmul.f32 %v4344, %v4351
          %v4414 = vmul.f32 %v4345, %v4352
          %v4415 = vmul.f32 %v4346, %v4351
          %v4416 = vmul.f32 %v4347, %v4352
          %v4417 = vmul.f32 %v4348, %v4351
          %v4418 = vmul.f32 %v4349, %v4352
          %v4420 = vperm.slane %v1199, 0
          %v4421 = vperm.slane %v1199, 1
          %v4424 = vadd.f32 %v4355, %v4420
          %v4425 = vadd.f32 %v4356, %v4421
          %v4426 = vadd.f32 %v4357, %v4420
          %v4427 = vadd.f32 %v4358, %v4421
          %v4428 = vadd.f32 %v4359, %v4420
          %v4429 = vadd.f32 %v4360, %v4421
          %v4430 = vadd.f32 %v4361, %v4420
          %v4431 = vadd.f32 %v4362, %v4421
          %v4432 = vadd.f32 %v4363, %v4420
          %v4433 = vadd.f32 %v4364, %v4421
          %v4434 = vadd.f32 %v4365, %v4420
          %v4435 = vadd.f32 %v4366, %v4421
          %v4436 = vadd.f32 %v4367, %v4420
          %v4437 = vadd.f32 %v4368, %v4421
          %v4438 = vadd.f32 %v4369, %v4420
          %v4439 = vadd.f32 %v4370, %v4421
          %v4440 = vadd.f32 %v4371, %v4420
          %v4441 = vadd.f32 %v4372, %v4421
          %v4442 = vadd.f32 %v4373, %v4420
          %v4443 = vadd.f32 %v4374, %v4421
          %v4444 = vadd.f32 %v4375, %v4420
          %v4445 = vadd.f32 %v4376, %v4421
          %v4446 = vadd.f32 %v4377, %v4420
          %v4447 = vadd.f32 %v4378, %v4421
          %v4448 = vadd.f32 %v4379, %v4420
          %v4449 = vadd.f32 %v4380, %v4421
          %v4450 = vadd.f32 %v4381, %v4420
          %v4451 = vadd.f32 %v4382, %v4421
          %v4452 = vadd.f32 %v4383, %v4420
          %v4453 = vadd.f32 %v4384, %v4421
          %v4454 = vadd.f32 %v4385, %v4420
          %v4455 = vadd.f32 %v4386, %v4421
          %v4456 = vadd.f32 %v4387, %v4420
          %v4457 = vadd.f32 %v4388, %v4421
          %v4458 = vadd.f32 %v4389, %v4420
          %v4459 = vadd.f32 %v4390, %v4421
          %v4460 = vadd.f32 %v4391, %v4420
          %v4461 = vadd.f32 %v4392, %v4421
          %v4462 = vadd.f32 %v4393, %v4420
          %v4463 = vadd.f32 %v4394, %v4421
          %v4464 = vadd.f32 %v4395, %v4420
          %v4465 = vadd.f32 %v4396, %v4421
          %v4466 = vadd.f32 %v4397, %v4420
          %v4467 = vadd.f32 %v4398, %v4421
          %v4468 = vadd.f32 %v4399, %v4420
          %v4469 = vadd.f32 %v4400, %v4421
          %v4470 = vadd.f32 %v4401, %v4420
          %v4471 = vadd.f32 %v4402, %v4421
          %v4472 = vadd.f32 %v4403, %v4420
          %v4473 = vadd.f32 %v4404, %v4421
          %v4474 = vadd.f32 %v4405, %v4420
          %v4475 = vadd.f32 %v4406, %v4421
          %v4476 = vadd.f32 %v4407, %v4420
          %v4477 = vadd.f32 %v4408, %v4421
          %v4478 = vadd.f32 %v4409, %v4420
          %v4479 = vadd.f32 %v4410, %v4421
          %v4480 = vadd.f32 %v4411, %v4420
          %v4481 = vadd.f32 %v4412, %v4421
          %v4482 = vadd.f32 %v4413, %v4420
          %v4483 = vadd.f32 %v4414, %v4421
          %v4484 = vadd.f32 %v4415, %v4420
          %v4485 = vadd.f32 %v4416, %v4421
          %v4486 = vadd.f32 %v4417, %v4420
          %v4487 = vadd.f32 %v4418, %v4421
          %4488 = vst [vmem:[%s282] sm:$0xff] %v4424
          %4489 = vst [vmem:[%s282 + $0x8] sm:$0xff] %v4425
          %4490 = vst [vmem:[%s282 + $0x10] sm:$0xff] %v4426
          %4491 = vst [vmem:[%s282 + $0x18] sm:$0xff] %v4427
          %4492 = vst [vmem:[%s282 + $0x20] sm:$0xff] %v4428
          %4493 = vst [vmem:[%s282 + $0x28] sm:$0xff] %v4429
          %4494 = vst [vmem:[%s282 + $0x30] sm:$0xff] %v4430
          %4495 = vst [vmem:[%s282 + $0x38] sm:$0xff] %v4431
          %4496 = vst [vmem:[%s282 + $0x40] sm:$0xff] %v4432
          %4497 = vst [vmem:[%s282 + $0x48] sm:$0xff] %v4433
          %4498 = vst [vmem:[%s282 + $0x50] sm:$0xff] %v4434
          %4499 = vst [vmem:[%s282 + $0x58] sm:$0xff] %v4435
          %4500 = vst [vmem:[%s282 + $0x60] sm:$0xff] %v4436
          %4501 = vst [vmem:[%s282 + $0x68] sm:$0xff] %v4437
          %4502 = vst [vmem:[%s282 + $0x70] sm:$0xff] %v4438
          %4503 = vst [vmem:[%s282 + $0x78] sm:$0xff] %v4439
          %4504 = vst [vmem:[%s282 + $0x80] sm:$0xff] %v4440
          %4505 = vst [vmem:[%s282 + $0x88] sm:$0xff] %v4441
          %4506 = vst [vmem:[%s282 + $0x90] sm:$0xff] %v4442
          %4507 = vst [vmem:[%s282 + $0x98] sm:$0xff] %v4443
          %4508 = vst [vmem:[%s282 + $0xa0] sm:$0xff] %v4444
          %4509 = vst [vmem:[%s282 + $0xa8] sm:$0xff] %v4445
          %4510 = vst [vmem:[%s282 + $0xb0] sm:$0xff] %v4446
          %4511 = vst [vmem:[%s282 + $0xb8] sm:$0xff] %v4447
          %4512 = vst [vmem:[%s282 + $0xc0] sm:$0xff] %v4448
          %4513 = vst [vmem:[%s282 + $0xc8] sm:$0xff] %v4449
          %4514 = vst [vmem:[%s282 + $0xd0] sm:$0xff] %v4450
          %4515 = vst [vmem:[%s282 + $0xd8] sm:$0xff] %v4451
          %4516 = vst [vmem:[%s282 + $0xe0] sm:$0xff] %v4452
          %4517 = vst [vmem:[%s282 + $0xe8] sm:$0xff] %v4453
          %4518 = vst [vmem:[%s282 + $0xf0] sm:$0xff] %v4454
          %4519 = vst [vmem:[%s282 + $0xf8] sm:$0xff] %v4455
          %4520 = vst [vmem:[%s282 + $0x100] sm:$0xff] %v4456
          %4521 = vst [vmem:[%s282 + $0x108] sm:$0xff] %v4457
          %4522 = vst [vmem:[%s282 + $0x110] sm:$0xff] %v4458
          %4523 = vst [vmem:[%s282 + $0x118] sm:$0xff] %v4459
          %4524 = vst [vmem:[%s282 + $0x120] sm:$0xff] %v4460
          %4525 = vst [vmem:[%s282 + $0x128] sm:$0xff] %v4461
          %4526 = vst [vmem:[%s282 + $0x130] sm:$0xff] %v4462
          %4527 = vst [vmem:[%s282 + $0x138] sm:$0xff] %v4463
          %4528 = vst [vmem:[%s282 + $0x140] sm:$0xff] %v4464
          %4529 = vst [vmem:[%s282 + $0x148] sm:$0xff] %v4465
          %4530 = vst [vmem:[%s282 + $0x150] sm:$0xff] %v4466
          %4531 = vst [vmem:[%s282 + $0x158] sm:$0xff] %v4467
          %4532 = vst [vmem:[%s282 + $0x160] sm:$0xff] %v4468
          %4533 = vst [vmem:[%s282 + $0x168] sm:$0xff] %v4469
          %4534 = vst [vmem:[%s282 + $0x170] sm:$0xff] %v4470
          %4535 = vst [vmem:[%s282 + $0x178] sm:$0xff] %v4471
          %4536 = vst [vmem:[%s282 + $0x180] sm:$0xff] %v4472
          %4537 = vst [vmem:[%s282 + $0x188] sm:$0xff] %v4473
          %4538 = vst [vmem:[%s282 + $0x190] sm:$0xff] %v4474
          %4539 = vst [vmem:[%s282 + $0x198] sm:$0xff] %v4475
          %4540 = vst [vmem:[%s282 + $0x1a0] sm:$0xff] %v4476
          %4541 = vst [vmem:[%s282 + $0x1a8] sm:$0xff] %v4477
          %4542 = vst [vmem:[%s282 + $0x1b0] sm:$0xff] %v4478
          %4543 = vst [vmem:[%s282 + $0x1b8] sm:$0xff] %v4479
          %4544 = vst [vmem:[%s282 + $0x1c0] sm:$0xff] %v4480
          %4545 = vst [vmem:[%s282 + $0x1c8] sm:$0xff] %v4481
          %4546 = vst [vmem:[%s282 + $0x1d0] sm:$0xff] %v4482
          %4547 = vst [vmem:[%s282 + $0x1d8] sm:$0xff] %v4483
          %4548 = vst [vmem:[%s282 + $0x1e0] sm:$0xff] %v4484
          %4549 = vst [vmem:[%s282 + $0x1e8] sm:$0xff] %v4485
          %4550 = vst [vmem:[%s282 + $0x1f0] sm:$0xff] %v4486
          %4551 = vst [vmem:[%s282 + $0x1f8] sm:$0xff] %v4487
        $region60: #{tpu_custom_call.1} parent=35 // pred_fallthru
          _
        %s4552 = sand.u32 %s134, 1
        %s4553 = scalar_lea.sflag [#allocation5], %s4552
        %s4554 = sand.u32 %s134, 1
        %s4555 = smul.addr %s4554, 512
        %s4556 = scalar_lea.vmem [#allocation11], %s4555
        // Predicated region
        $region61: #{tpu_custom_call.1} parent=35 // pred_check
          %p4557 = pneg %p144
        $region62: #{tpu_custom_call.1} parent=35 // pred_check_branch
          %4559 = sbr.rel (%p4557) target = $region64
        $region63: #{tpu_custom_call.1} parent=35 // pred_region
          %s4560 = smul.u32 32, %s27
          %4562 = vsyncadd %s4553, 0
          %s4563 = smul.addr %s4560, 2
          %s4564 = smul.addr %s4563, 8
          %s4565 = scalar_lea.hbm %s4, %s4564
          %s4566 = sshll.u32 %s4556, 4
          %s4567 = int_to_ptr.vmem [resolvable:$true] %s4566
          %s4568 = sshll.u32 %s4565, 4
          %s4569 = int_to_ptr.hbm [resolvable:$true] %s4568
          %4574 = dma.vmem_to_hbm [thread:$0]  %s4567, 8192, %s4569, %s4553, 256, 256, 16
        $region64: #{tpu_custom_call.1} parent=35 // pred_fallthru
          _
      $region36: #{tpu_custom_call.1} parent=5 // pred_fallthru
        _
      %p4575 = scmp.le.s32.totalorder 2, %s18
      // Predicated region
      $region65: #{tpu_custom_call.1} parent=5 // pred_check
        %p4576 = pneg %p4575
      $region66: #{tpu_custom_call.1} parent=5 // pred_check_branch
        %4578 = sbr.rel (%p4576) target = $region68
      $region67: #{tpu_custom_call.1} parent=5 // pred_region
        %s4579 = ssub.s32 %s18, 2
        // Predicated region
        $region69: #{tpu_custom_call.1} parent=67 // pred_check
          %p4580 = pneg %p150
        $region70: #{tpu_custom_call.1} parent=67 // pred_check_branch
          %4582 = sbr.rel (%p4580) target = $region72
        $region71: #{tpu_custom_call.1} parent=67 // pred_region
          %s4583 = sand.u32 %s135, 1
          %s4584 = scalar_lea.sflag [#allocation5], %s4583
          %s4585 = sand.u32 %s135, 1
          %s4586 = smul.addr %s4585, 512
          %s4587 = scalar_lea.vmem [#allocation11], %s4586
          %4589 = dma.done %s4584, 8192
        $region72: #{tpu_custom_call.1} parent=67 // pred_fallthru
          _
      $region68: #{tpu_custom_call.1} parent=5 // pred_fallthru
        _
    $region6: #{tpu_custom_call.1} parent=1 // loop_footer
      %s22 = sadd.s32 1, %s18
    $region7: #{tpu_custom_call.1} parent=1 // loop_footer_branch
      %17 = sbr.rel target = $region3
    $region8: #{tpu_custom_call.1} parent=1 // loop_exit
      _
    %4590 = vsyncpa [#allocation4], 1
    %s4591 = scalar_lea.sflag [#allocation4], 1
    %4592 = vsyncpa %s4591, 1
    %4593 = vsyncpa [#allocation7], 1
    %4594 = vsyncpa [#allocation10], 1
    %4595 = vsyncpa [#allocation5], 1
    %s4596 = scalar_lea.sflag [#allocation5], 1
    %4597 = vsyncpa %s4596, 1

// kernel: tpu_custom_call.1
$region0: #{tpu_custom_call.1}
  #allocation0 [shape = 'u32[]', space=smem, size = 0x4, offset = 0x4, fixed_abs, tag = 'smem constant byte address 0x4 - core index']
  #allocation1 [shape = 'u32[72,128]{1,0:T(1,128)}', space=vmem, size = 0x9000, scoped, tag = 'internal scratch']
  #allocation2 [shape = 'f32[256,256]{1,0:T(8,128)}', space=vmem, size = 0x40000, scoped, tag = 'scratch operand']
  %s0 = inlined_call_operand.hbm [shape: f32[512,256], index: 0, kind: input, shape index: {}]
  %s1 = inlined_call_operand.hbm [shape: bf16[256,256], index: 1, kind: input, shape index: {}]
  %s2 = inlined_call_operand.hbm [shape: bf16[256,256], index: 2, kind: input, shape index: {}]
  %s3 = inlined_call_operand.hbm [shape: f32[4,256], index: 3, kind: input, shape index: {}]
  %s4 = inlined_call_operand.hbm [shape: f32[512,256], index: 4, kind: output, shape index: {}]
  %s5 = sld [smem:[#allocation0]]
  $region73: #{tpu_custom_call.1} parent=0
    _
  %s7 = ssub.s32 1, %s5
  %s8 = scalar_select 0, %s7, %s5
  $region1: #{tpu_custom_call.1} parent=0
    #allocation3 [shape = 'u8[524288]{0}', space=vmem, size = 0x80000, scoped, tag = 'input window, operand 0']
    #allocation4 [shape = 's32[2]{0}', space=sflag, size = 0x8, scoped, tag = 'scoped memory for tpu_custom_call.1']
    #allocation5 [shape = 's32[2]{0}', space=sflag, size = 0x8, scoped, tag = 'scoped memory for tpu_custom_call.1']
    #allocation6 [shape = 'u8[131072]{0}', space=vmem, size = 0x20000, scoped, tag = 'input window, operand 1, single buffered']
    #allocation7 [shape = 's32[1]{0}', space=sflag, size = 0x4, scoped, tag = 'scoped memory for tpu_custom_call.1']
    #allocation8 [shape = 'u8[131072]{0}', space=vmem, size = 0x20000, scoped, tag = 'input window, operand 2, single buffered']
    #allocation9 [shape = 'u8[4096]{0}', space=vmem, size = 0x1000, scoped, tag = 'input window, operand 3, single buffered']
    #allocation10 [shape = 's32[1]{0}', space=sflag, size = 0x4, scoped, tag = 'scoped memory for tpu_custom_call.1']
    #allocation11 [shape = 'u8[524288]{0}', space=vmem, size = 0x80000, scoped, tag = 'output window, operand 0']
    %9 = vsyncpa [#allocation4], 0
    %s10 = scalar_lea.sflag [#allocation4], 1
    %11 = vsyncpa %s10, 0
    %12 = vsyncpa [#allocation7], 0
    %13 = vsyncpa [#allocation10], 0
    %14 = vsyncpa [#allocation5], 0
    %s15 = scalar_lea.sflag [#allocation5], 1
    %16 = vsyncpa %s15, 0
    loop: start=0, step=1, limit=4
    $region2: #{tpu_custom_call.1} parent=1 // loop_pre_header
      _
    $region3: #{tpu_custom_call.1} parent=1 // loop_header
      %s18 = sphi 0, %s22
      %p19 = scmp.ge.s32.totalorder %s18, 4
      %s25 = sphi 0, %s37
      %s26 = sphi 0, %s33
      %s27 = sphi 0, %s25
      %s28 = sphi 0, %s26
      %s29 = sphi 0, %s27
      %s30 = sphi 0, %s28
      %s42 = sphi 0, %s44
      %s45 = sphi 0, %s42
      %s46 = sphi 0, %s45
      %s62 = sphi 0, %s46
      %s66 = sphi 0, %s66
      %s68 = sphi 0, %s66
      %s69 = sphi 0, %s68
      %s83 = sphi 0, %s69
      %s87 = sphi 0, %s87
      %s89 = sphi 0, %s87
      %s90 = sphi 0, %s89
      %s104 = sphi 0, %s90
      %s108 = sphi 0, %s108
      %s110 = sphi 0, %s108
      %s111 = sphi 0, %s110
      %s125 = sphi 0, %s111
      %s131 = sphi 0, %s133
      %s134 = sphi 0, %s131
      %s135 = sphi 0, %s134
      %s151 = sphi 0, %s135
    $region4: #{tpu_custom_call.1} parent=1 // loop_header_branch
      %21 = sbr.rel (%p19) target = $region8
    $region5: #{tpu_custom_call.1} parent=1 // loop_body
      %s23 = ssub.s32 %s18, 1
      %s24 = ssub.s32 %s18, 2
      %s31 = sadd.s32 1, %s26
      %p32 = scmp.ge.s32.totalorder %s31, 1
      %s33 = scalar_select %p32, 0, %s31
      %s34 = sadd.s32 1, %s25
      %s35 = scalar_select %p32, %s34, %s25
      %p36 = scmp.ge.s32.totalorder %s35, 2
      %s37 = scalar_select %p36, 0, %s35
      %s38 = ssub.s32 %s25, %s37
      %s39 = ssub.s32 %s26, %s33
      %s40 = sor.u32 %s38, %s39
      %p41 = scmp.eq.s32.totalorder %s40, 0
      %s43 = sadd.s32 %s42, 1
      %s44 = scalar_select %p41, %s42, %s43
      %p47 = pneg %p41
      %p48 = scmp.eq.s32.totalorder %s18, 1
      %p49 = por %p47, %p48
      %p50 = scmp.ne.s32.totalorder %s42, %s45
      %p51 = scmp.eq.s32.totalorder %s18, 0
      %p52 = por %p50, %p51
      %p53 = scmp.ne.s32.totalorder %s42, %s45
      %p54 = scmp.eq.s32.totalorder %s23, 1
      %p55 = por %p53, %p54
      %p56 = scmp.ne.s32.totalorder %s45, %s46
      %p57 = scmp.eq.s32.totalorder %s23, 0
      %p58 = por %p56, %p57
      %p59 = scmp.ne.s32.totalorder %s45, %s46
      %p60 = scmp.eq.s32.totalorder %s24, 1
      %p61 = por %p59, %p60
      %p63 = scmp.ne.s32.totalorder %s46, %s62
      %p64 = scmp.eq.s32.totalorder %s24, 0
      %p65 = por %p63, %p64
      %s67 = sadd.s32 %s66, 1
      %p70 = scmp.eq.s32.totalorder %s18, 1
      %p71 = scmp.ne.s32.totalorder %s66, %s68
      %p72 = scmp.eq.s32.totalorder %s18, 0
      %p73 = por %p71, %p72
      %p74 = scmp.ne.s32.totalorder %s66, %s68
      %p75 = scmp.eq.s32.totalorder %s23, 1
      %p76 = por %p74, %p75
      %p77 = scmp.ne.s32.totalorder %s68, %s69
      %p78 = scmp.eq.s32.totalorder %s23, 0
      %p79 = por %p77, %p78
      %p80 = scmp.ne.s32.totalorder %s68, %s69
      %p81 = scmp.eq.s32.totalorder %s24, 1
      %p82 = por %p80, %p81
      %p84 = scmp.ne.s32.totalorder %s69, %s83
      %p85 = scmp.eq.s32.totalorder %s24, 0
      %p86 = por %p84, %p85
      %s88 = sadd.s32 %s87, 1
      %p91 = scmp.eq.s32.totalorder %s18, 1
      %p92 = scmp.ne.s32.totalorder %s87, %s89
      %p93 = scmp.eq.s32.totalorder %s18, 0
      %p94 = por %p92, %p93
      %p95 = scmp.ne.s32.totalorder %s87, %s89
      %p96 = scmp.eq.s32.totalorder %s23, 1
      %p97 = por %p95, %p96
      %p98 = scmp.ne.s32.totalorder %s89, %s90
      %p99 = scmp.eq.s32.totalorder %s23, 0
      %p100 = por %p98, %p99
      %p101 = scmp.ne.s32.totalorder %s89, %s90
      %p102 = scmp.eq.s32.totalorder %s24, 1
      %p103 = por %p101, %p102
      %p105 = scmp.ne.s32.totalorder %s90, %s104
      %p106 = scmp.eq.s32.totalorder %s24, 0
      %p107 = por %p105, %p106
      %s109 = sadd.s32 %s108, 1
      %p112 = scmp.eq.s32.totalorder %s18, 1
      %p113 = scmp.ne.s32.totalorder %s108, %s110
      %p114 = scmp.eq.s32.totalorder %s18, 0
      %p115 = por %p113, %p114
      %p116 = scmp.ne.s32.totalorder %s108, %s110
      %p117 = scmp.eq.s32.totalorder %s23, 1
      %p118 = por %p116, %p117
      %p119 = scmp.ne.s32.totalorder %s110, %s111
      %p120 = scmp.eq.s32.totalorder %s23, 0
      %p121 = por %p119, %p120
      %p122 = scmp.ne.s32.totalorder %s110, %s111
      %p123 = scmp.eq.s32.totalorder %s24, 1
      %p124 = por %p122, %p123
      %p126 = scmp.ne.s32.totalorder %s111, %s125
      %p127 = scmp.eq.s32.totalorder %s24, 0
      %p128 = por %p126, %p127
      %s129 = ssub.s32 %s25, %s37
      %p130 = scmp.eq.s32.totalorder %s129, 0
      %s132 = sadd.s32 %s131, 1
      %s133 = scalar_select %p130, %s131, %s132
      %p136 = pneg %p130
      %p137 = scmp.eq.s32.totalorder %s18, 1
      %p138 = por %p136, %p137
      %p139 = scmp.ne.s32.totalorder %s131, %s134
      %p140 = scmp.eq.s32.totalorder %s18, 0
      %p141 = por %p139, %p140
      %p142 = scmp.ne.s32.totalorder %s131, %s134
      %p143 = scmp.eq.s32.totalorder %s23, 1
      %p144 = por %p142, %p143
      %p145 = scmp.ne.s32.totalorder %s134, %s135
      %p146 = scmp.eq.s32.totalorder %s23, 0
      %p147 = por %p145, %p146
      %p148 = scmp.ne.s32.totalorder %s134, %s135
      %p149 = scmp.eq.s32.totalorder %s24, 1
      %p150 = por %p148, %p149
      %p152 = scmp.ne.s32.totalorder %s135, %s151
      %p153 = scmp.eq.s32.totalorder %s24, 0
      %p154 = por %p152, %p153
      %p155 = scmp.le.s32.totalorder 1, %s18
      %p156 = scmp.lt.s32.totalorder %s18, 3
      %p157 = pnand %p155, %p156
      %p158 = pneg %p157
      // Predicated region
      $region9: #{tpu_custom_call.1} parent=5 // pred_check
        _
      $region10: #{tpu_custom_call.1} parent=5 // pred_check_branch
        %160 = sbr.rel (%p157) target = $region12
      $region11: #{tpu_custom_call.1} parent=5 // pred_region
        %s161 = ssub.s32 %s18, 1
        // Predicated region
        $region13: #{tpu_custom_call.1} parent=11 // pred_check
          %p162 = pneg %p79
        $region14: #{tpu_custom_call.1} parent=11 // pred_check_branch
          %164 = sbr.rel (%p162) target = $region16
        $region15: #{tpu_custom_call.1} parent=11 // pred_region
          %166 = vsyncadd [#allocation7], 0
          %s167 = sshll.u32 %s1, 4
          %s168 = int_to_ptr.hbm [resolvable:$true] %s167
          %s169 = sshll.u32 [#allocation6], 4
          %s170 = int_to_ptr.vmem [resolvable:$true] %s169
          %175 = dma.hbm_to_vmem [thread:$0]  %s168, 4096, %s170, [#allocation7], 128, 128, 8
        $region16: #{tpu_custom_call.1} parent=11 // pred_fallthru
          _
        // Predicated region
        $region17: #{tpu_custom_call.1} parent=11 // pred_check
          %p176 = pneg %p100
        $region18: #{tpu_custom_call.1} parent=11 // pred_check_branch
          %178 = sbr.rel (%p176) target = $region20
        $region19: #{tpu_custom_call.1} parent=11 // pred_region
          %180 = vsyncadd [#allocation7], 0
          %s181 = sshll.u32 %s2, 4
          %s182 = int_to_ptr.hbm [resolvable:$true] %s181
          %s183 = sshll.u32 [#allocation8], 4
          %s184 = int_to_ptr.vmem [resolvable:$true] %s183
          %189 = dma.hbm_to_vmem [thread:$0]  %s182, 4096, %s184, [#allocation7], 128, 128, 8
        $region20: #{tpu_custom_call.1} parent=11 // pred_fallthru
          _
        // Predicated region
        $region21: #{tpu_custom_call.1} parent=11 // pred_check
          %p190 = pneg %p121
        $region22: #{tpu_custom_call.1} parent=11 // pred_check_branch
          %192 = sbr.rel (%p190) target = $region24
        $region23: #{tpu_custom_call.1} parent=11 // pred_region
          %194 = vsyncadd [#allocation10], 0
          %s196 = sshll.u32 %s3, 4
          %s197 = int_to_ptr.hbm [resolvable:$true] %s196
          %s198 = sshll.u32 [#allocation9], 4
          %s199 = int_to_ptr.vmem [resolvable:$true] %s198
          %201 = dma.hbm_to_vmem [thread:$0]  %s197, 128, %s199, [#allocation10]
        $region24: #{tpu_custom_call.1} parent=11 // pred_fallthru
          _
      $region12: #{tpu_custom_call.1} parent=5 // pred_fallthru
        _
      %p202 = scmp.lt.s32.totalorder %s18, 2
      // Predicated region
      $region25: #{tpu_custom_call.1} parent=5 // pred_check
        %p203 = pneg %p202
      $region26: #{tpu_custom_call.1} parent=5 // pred_check_branch
        %205 = sbr.rel (%p203) target = $region28
      $region27: #{tpu_custom_call.1} parent=5 // pred_region
        // Predicated region
        $region29: #{tpu_custom_call.1} parent=27 // pred_check
          %p206 = pneg %p52
        $region30: #{tpu_custom_call.1} parent=27 // pred_check_branch
          %208 = sbr.rel (%p206) target = $region32
        $region31: #{tpu_custom_call.1} parent=27 // pred_region
          %s209 = sand.u32 %s42, 1
          %s210 = scalar_lea.sflag [#allocation4], %s209
          %s211 = sand.u32 %s42, 1
          %s212 = smul.addr %s211, 512
          %s213 = scalar_lea.vmem [#allocation3], %s212
          %s214 = smul.u32 32, %s25
          %s215 = smul.u32 2, %s26
          %217 = vsyncadd %s210, 0
          %s218 = smul.addr %s214, 2
          %s219 = sadd.s32 %s215, %s218
          %s220 = smul.addr %s219, 8
          %s221 = scalar_lea.hbm %s0, %s220
          %s222 = sshll.u32 %s221, 4
          %s223 = int_to_ptr.hbm [resolvable:$true] %s222
          %s224 = sshll.u32 %s213, 4
          %s225 = int_to_ptr.vmem [resolvable:$true] %s224
          %230 = dma.hbm_to_vmem [thread:$0]  %s223, 8192, %s225, %s210, 256, 256, 16
        $region32: #{tpu_custom_call.1} parent=27 // pred_fallthru
          _
      $region28: #{tpu_custom_call.1} parent=5 // pred_fallthru
        _
      %p231 = scmp.le.s32.totalorder 1, %s18
      %p232 = scmp.lt.s32.totalorder %s18, 3
      %p233 = pnand %p231, %p232
      %p234 = pneg %p233
      // Predicated region
      $region33: #{tpu_custom_call.1} parent=5 // pred_check
        _
      $region34: #{tpu_custom_call.1} parent=5 // pred_check_branch
        %236 = sbr.rel (%p233) target = $region36
      $region35: #{tpu_custom_call.1} parent=5 // pred_region
        %s237 = ssub.s32 %s18, 1
        %s238 = sand.u32 %s45, 1
        %s239 = scalar_lea.sflag [#allocation4], %s238
        %s240 = sand.u32 %s45, 1
        %s241 = smul.addr %s240, 512
        %s242 = scalar_lea.vmem [#allocation3], %s241
        // Predicated region
        $region37: #{tpu_custom_call.1} parent=35 // pred_check
          %p243 = pneg %p58
        $region38: #{tpu_custom_call.1} parent=35 // pred_check_branch
          %245 = sbr.rel (%p243) target = $region40
        $region39: #{tpu_custom_call.1} parent=35 // pred_region
          %247 = dma.done %s239, 8192
        $region40: #{tpu_custom_call.1} parent=35 // pred_fallthru
          _
        // Predicated region
        $region41: #{tpu_custom_call.1} parent=35 // pred_check
          %p248 = pneg %p79
        $region42: #{tpu_custom_call.1} parent=35 // pred_check_branch
          %250 = sbr.rel (%p248) target = $region44
        $region43: #{tpu_custom_call.1} parent=35 // pred_region
          %252 = dma.done [#allocation7], 4096
        $region44: #{tpu_custom_call.1} parent=35 // pred_fallthru
          _
        // Predicated region
        $region45: #{tpu_custom_call.1} parent=35 // pred_check
          %p253 = pneg %p100
        $region46: #{tpu_custom_call.1} parent=35 // pred_check_branch
          %255 = sbr.rel (%p253) target = $region48
        $region47: #{tpu_custom_call.1} parent=35 // pred_region
          %257 = dma.done [#allocation7], 4096
        $region48: #{tpu_custom_call.1} parent=35 // pred_fallthru
          _
        // Predicated region
        $region49: #{tpu_custom_call.1} parent=35 // pred_check
          %p258 = pneg %p121
        $region50: #{tpu_custom_call.1} parent=35 // pred_check_branch
          %260 = sbr.rel (%p258) target = $region52
        $region51: #{tpu_custom_call.1} parent=35 // pred_region
          %262 = dma.done [#allocation10], 128
        $region52: #{tpu_custom_call.1} parent=35 // pred_fallthru
          _
        %s263 = sand.u32 %s45, 1
        %s264 = scalar_lea.sflag [#allocation4], %s263
        %s265 = sand.u32 %s45, 1
        %s266 = smul.addr %s265, 512
        %s267 = scalar_lea.vmem [#allocation3], %s266
        %p268 = pneg %p58
        %p269 = pneg %p55
        %p270 = pneg %p79
        %p271 = pneg %p76
        %p272 = pneg %p100
        %p273 = pneg %p97
        %p274 = pneg %p121
        %p275 = pneg %p118
        %p276 = pneg %p147
        %p277 = pneg %p144
        %s278 = sand.u32 %s134, 1
        %s279 = scalar_lea.sflag [#allocation5], %s278
        %s280 = sand.u32 %s134, 1
        %s281 = smul.addr %s280, 512
        %s282 = scalar_lea.vmem [#allocation11], %s281
        %s283 = smul.u32 32, %s27
        %s284 = smul.u32 2, %s28
        %s285 = smul.u32 32, %s27
        %p286 = scmp.eq.s32.totalorder %s28, 0
        // Predicated region
        $region53: #{tpu_custom_call.1} parent=35 // pred_check
          %p287 = pneg %p286
        $region54: #{tpu_custom_call.1} parent=35 // pred_check_branch
          %289 = sbr.rel (%p287) target = $region56
        $region55: #{tpu_custom_call.1} parent=35 // pred_region
          %290 = vst [vmem:[#allocation2] sm:$0xff] 0.0
          %291 = vst [vmem:[#allocation2 + $0x8] sm:$0xff] 0.0
          %292 = vst [vmem:[#allocation2 + $0x10] sm:$0xff] 0.0
          %293 = vst [vmem:[#allocation2 + $0x18] sm:$0xff] 0.0
          %294 = vst [vmem:[#allocation2 + $0x20] sm:$0xff] 0.0
          %295 = vst [vmem:[#allocation2 + $0x28] sm:$0xff] 0.0
          %296 = vst [vmem:[#allocation2 + $0x30] sm:$0xff] 0.0
          %297 = vst [vmem:[#allocation2 + $0x38] sm:$0xff] 0.0
          %298 = vst [vmem:[#allocation2 + $0x40] sm:$0xff] 0.0
          %299 = vst [vmem:[#allocation2 + $0x48] sm:$0xff] 0.0
          %300 = vst [vmem:[#allocation2 + $0x50] sm:$0xff] 0.0
          %301 = vst [vmem:[#allocation2 + $0x58] sm:$0xff] 0.0
          %302 = vst [vmem:[#allocation2 + $0x60] sm:$0xff] 0.0
          %303 = vst [vmem:[#allocation2 + $0x68] sm:$0xff] 0.0
          %304 = vst [vmem:[#allocation2 + $0x70] sm:$0xff] 0.0
          %305 = vst [vmem:[#allocation2 + $0x78] sm:$0xff] 0.0
          %306 = vst [vmem:[#allocation2 + $0x80] sm:$0xff] 0.0
          %307 = vst [vmem:[#allocation2 + $0x88] sm:$0xff] 0.0
          %308 = vst [vmem:[#allocation2 + $0x90] sm:$0xff] 0.0
          %309 = vst [vmem:[#allocation2 + $0x98] sm:$0xff] 0.0
          %310 = vst [vmem:[#allocation2 + $0xa0] sm:$0xff] 0.0
          %311 = vst [vmem:[#allocation2 + $0xa8] sm:$0xff] 0.0
          %312 = vst [vmem:[#allocation2 + $0xb0] sm:$0xff] 0.0
          %313 = vst [vmem:[#allocation2 + $0xb8] sm:$0xff] 0.0
          %314 = vst [vmem:[#allocation2 + $0xc0] sm:$0xff] 0.0
          %315 = vst [vmem:[#allocation2 + $0xc8] sm:$0xff] 0.0
          %316 = vst [vmem:[#allocation2 + $0xd0] sm:$0xff] 0.0
          %317 = vst [vmem:[#allocation2 + $0xd8] sm:$0xff] 0.0
          %318 = vst [vmem:[#allocation2 + $0xe0] sm:$0xff] 0.0
          %319 = vst [vmem:[#allocation2 + $0xe8] sm:$0xff] 0.0
          %320 = vst [vmem:[#allocation2 + $0xf0] sm:$0xff] 0.0
          %321 = vst [vmem:[#allocation2 + $0xf8] sm:$0xff] 0.0
          %322 = vst [vmem:[#allocation2 + $0x100] sm:$0xff] 0.0
          %323 = vst [vmem:[#allocation2 + $0x108] sm:$0xff] 0.0
          %324 = vst [vmem:[#allocation2 + $0x110] sm:$0xff] 0.0
          %325 = vst [vmem:[#allocation2 + $0x118] sm:$0xff] 0.0
          %326 = vst [vmem:[#allocation2 + $0x120] sm:$0xff] 0.0
          %327 = vst [vmem:[#allocation2 + $0x128] sm:$0xff] 0.0
          %328 = vst [vmem:[#allocation2 + $0x130] sm:$0xff] 0.0
          %329 = vst [vmem:[#allocation2 + $0x138] sm:$0xff] 0.0
          %330 = vst [vmem:[#allocation2 + $0x140] sm:$0xff] 0.0
          %331 = vst [vmem:[#allocation2 + $0x148] sm:$0xff] 0.0
          %332 = vst [vmem:[#allocation2 + $0x150] sm:$0xff] 0.0
          %333 = vst [vmem:[#allocation2 + $0x158] sm:$0xff] 0.0
          %334 = vst [vmem:[#allocation2 + $0x160] sm:$0xff] 0.0
          %335 = vst [vmem:[#allocation2 + $0x168] sm:$0xff] 0.0
          %336 = vst [vmem:[#allocation2 + $0x170] sm:$0xff] 0.0
          %337 = vst [vmem:[#allocation2 + $0x178] sm:$0xff] 0.0
          %338 = vst [vmem:[#allocation2 + $0x180] sm:$0xff] 0.0
          %339 = vst [vmem:[#allocation2 + $0x188] sm:$0xff] 0.0
          %340 = vst [vmem:[#allocation2 + $0x190] sm:$0xff] 0.0
          %341 = vst [vmem:[#allocation2 + $0x198] sm:$0xff] 0.0
          %342 = vst [vmem:[#allocation2 + $0x1a0] sm:$0xff] 0.0
          %343 = vst [vmem:[#allocation2 + $0x1a8] sm:$0xff] 0.0
          %344 = vst [vmem:[#allocation2 + $0x1b0] sm:$0xff] 0.0
          %345 = vst [vmem:[#allocation2 + $0x1b8] sm:$0xff] 0.0
          %346 = vst [vmem:[#allocation2 + $0x1c0] sm:$0xff] 0.0
          %347 = vst [vmem:[#allocation2 + $0x1c8] sm:$0xff] 0.0
          %348 = vst [vmem:[#allocation2 + $0x1d0] sm:$0xff] 0.0
          %349 = vst [vmem:[#allocation2 + $0x1d8] sm:$0xff] 0.0
          %350 = vst [vmem:[#allocation2 + $0x1e0] sm:$0xff] 0.0
          %351 = vst [vmem:[#allocation2 + $0x1e8] sm:$0xff] 0.0
          %352 = vst [vmem:[#allocation2 + $0x1f0] sm:$0xff] 0.0
          %353 = vst [vmem:[#allocation2 + $0x1f8] sm:$0xff] 0.0
        $region56: #{tpu_custom_call.1} parent=35 // pred_fallthru
          _
        %v354 = vld [vmem:[#allocation2] sm:$0xff]
        %v355 = vld [vmem:[#allocation2 + $0x8] sm:$0xff]
        %v356 = vld [vmem:[#allocation2 + $0x10] sm:$0xff]
        %v357 = vld [vmem:[#allocation2 + $0x18] sm:$0xff]
        %v358 = vld [vmem:[#allocation2 + $0x20] sm:$0xff]
        %v359 = vld [vmem:[#allocation2 + $0x28] sm:$0xff]
        %v360 = vld [vmem:[#allocation2 + $0x30] sm:$0xff]
        %v361 = vld [vmem:[#allocation2 + $0x38] sm:$0xff]
        %v362 = vld [vmem:[#allocation2 + $0x40] sm:$0xff]
        %v363 = vld [vmem:[#allocation2 + $0x48] sm:$0xff]
        %v364 = vld [vmem:[#allocation2 + $0x50] sm:$0xff]
        %v365 = vld [vmem:[#allocation2 + $0x58] sm:$0xff]
        %v366 = vld [vmem:[#allocation2 + $0x60] sm:$0xff]
        %v367 = vld [vmem:[#allocation2 + $0x68] sm:$0xff]
        %v368 = vld [vmem:[#allocation2 + $0x70] sm:$0xff]
        %v369 = vld [vmem:[#allocation2 + $0x78] sm:$0xff]
        %v370 = vld [vmem:[#allocation2 + $0x80] sm:$0xff]
        %v371 = vld [vmem:[#allocation2 + $0x88] sm:$0xff]
        %v372 = vld [vmem:[#allocation2 + $0x90] sm:$0xff]
        %v373 = vld [vmem:[#allocation2 + $0x98] sm:$0xff]
        %v374 = vld [vmem:[#allocation2 + $0xa0] sm:$0xff]
        %v375 = vld [vmem:[#allocation2 + $0xa8] sm:$0xff]
        %v376 = vld [vmem:[#allocation2 + $0xb0] sm:$0xff]
        %v377 = vld [vmem:[#allocation2 + $0xb8] sm:$0xff]
        %v378 = vld [vmem:[#allocation2 + $0xc0] sm:$0xff]
        %v379 = vld [vmem:[#allocation2 + $0xc8] sm:$0xff]
        %v380 = vld [vmem:[#allocation2 + $0xd0] sm:$0xff]
        %v381 = vld [vmem:[#allocation2 + $0xd8] sm:$0xff]
        %v382 = vld [vmem:[#allocation2 + $0xe0] sm:$0xff]
        %v383 = vld [vmem:[#allocation2 + $0xe8] sm:$0xff]
        %v384 = vld [vmem:[#allocation2 + $0xf0] sm:$0xff]
        %v385 = vld [vmem:[#allocation2 + $0xf8] sm:$0xff]
        %v386 = vld [vmem:[#allocation2 + $0x100] sm:$0xff]
        %v387 = vld [vmem:[#allocation2 + $0x108] sm:$0xff]
        %v388 = vld [vmem:[#allocation2 + $0x110] sm:$0xff]
        %v389 = vld [vmem:[#allocation2 + $0x118] sm:$0xff]
        %v390 = vld [vmem:[#allocation2 + $0x120] sm:$0xff]
        %v391 = vld [vmem:[#allocation2 + $0x128] sm:$0xff]
        %v392 = vld [vmem:[#allocation2 + $0x130] sm:$0xff]
        %v393 = vld [vmem:[#allocation2 + $0x138] sm:$0xff]
        %v394 = vld [vmem:[#allocation2 + $0x140] sm:$0xff]
        %v395 = vld [vmem:[#allocation2 + $0x148] sm:$0xff]
        %v396 = vld [vmem:[#allocation2 + $0x150] sm:$0xff]
        %v397 = vld [vmem:[#allocation2 + $0x158] sm:$0xff]
        %v398 = vld [vmem:[#allocation2 + $0x160] sm:$0xff]
        %v399 = vld [vmem:[#allocation2 + $0x168] sm:$0xff]
        %v400 = vld [vmem:[#allocation2 + $0x170] sm:$0xff]
        %v401 = vld [vmem:[#allocation2 + $0x178] sm:$0xff]
        %v402 = vld [vmem:[#allocation2 + $0x180] sm:$0xff]
        %v403 = vld [vmem:[#allocation2 + $0x188] sm:$0xff]
        %v404 = vld [vmem:[#allocation2 + $0x190] sm:$0xff]
        %v405 = vld [vmem:[#allocation2 + $0x198] sm:$0xff]
        %v406 = vld [vmem:[#allocation2 + $0x1a0] sm:$0xff]
        %v407 = vld [vmem:[#allocation2 + $0x1a8] sm:$0xff]
        %v408 = vld [vmem:[#allocation2 + $0x1b0] sm:$0xff]
        %v409 = vld [vmem:[#allocation2 + $0x1b8] sm:$0xff]
        %v410 = vld [vmem:[#allocation2 + $0x1c0] sm:$0xff]
        %v411 = vld [vmem:[#allocation2 + $0x1c8] sm:$0xff]
        %v412 = vld [vmem:[#allocation2 + $0x1d0] sm:$0xff]
        %v413 = vld [vmem:[#allocation2 + $0x1d8] sm:$0xff]
        %v414 = vld [vmem:[#allocation2 + $0x1e0] sm:$0xff]
        %v415 = vld [vmem:[#allocation2 + $0x1e8] sm:$0xff]
        %v416 = vld [vmem:[#allocation2 + $0x1f0] sm:$0xff]
        %v417 = vld [vmem:[#allocation2 + $0x1f8] sm:$0xff]
        %v418 = vld [vmem:[%s242] sm:$0xff]
        %v419 = vld [vmem:[%s242 + $0x8] sm:$0xff]
        %v420 = vld [vmem:[%s242 + $0x10] sm:$0xff]
        %v421 = vld [vmem:[%s242 + $0x18] sm:$0xff]
        %v422 = vld [vmem:[%s242 + $0x20] sm:$0xff]
        %v423 = vld [vmem:[%s242 + $0x28] sm:$0xff]
        %v424 = vld [vmem:[%s242 + $0x30] sm:$0xff]
        %v425 = vld [vmem:[%s242 + $0x38] sm:$0xff]
        %v426 = vld [vmem:[%s242 + $0x40] sm:$0xff]
        %v427 = vld [vmem:[%s242 + $0x48] sm:$0xff]
        %v428 = vld [vmem:[%s242 + $0x50] sm:$0xff]
        %v429 = vld [vmem:[%s242 + $0x58] sm:$0xff]
        %v430 = vld [vmem:[%s242 + $0x60] sm:$0xff]
        %v431 = vld [vmem:[%s242 + $0x68] sm:$0xff]
        %v432 = vld [vmem:[%s242 + $0x70] sm:$0xff]
        %v433 = vld [vmem:[%s242 + $0x78] sm:$0xff]
        %v434 = vld [vmem:[%s242 + $0x80] sm:$0xff]
        %v435 = vld [vmem:[%s242 + $0x88] sm:$0xff]
        %v436 = vld [vmem:[%s242 + $0x90] sm:$0xff]
        %v437 = vld [vmem:[%s242 + $0x98] sm:$0xff]
        %v438 = vld [vmem:[%s242 + $0xa0] sm:$0xff]
        %v439 = vld [vmem:[%s242 + $0xa8] sm:$0xff]
        %v440 = vld [vmem:[%s242 + $0xb0] sm:$0xff]
        %v441 = vld [vmem:[%s242 + $0xb8] sm:$0xff]
        %v442 = vld [vmem:[%s242 + $0xc0] sm:$0xff]
        %v443 = vld [vmem:[%s242 + $0xc8] sm:$0xff]
        %v444 = vld [vmem:[%s242 + $0xd0] sm:$0xff]
        %v445 = vld [vmem:[%s242 + $0xd8] sm:$0xff]
        %v446 = vld [vmem:[%s242 + $0xe0] sm:$0xff]
        %v447 = vld [vmem:[%s242 + $0xe8] sm:$0xff]
        %v448 = vld [vmem:[%s242 + $0xf0] sm:$0xff]
        %v449 = vld [vmem:[%s242 + $0xf8] sm:$0xff]
        %v450 = vld [vmem:[%s242 + $0x100] sm:$0xff]
        %v451 = vld [vmem:[%s242 + $0x108] sm:$0xff]
        %v452 = vld [vmem:[%s242 + $0x110] sm:$0xff]
        %v453 = vld [vmem:[%s242 + $0x118] sm:$0xff]
        %v454 = vld [vmem:[%s242 + $0x120] sm:$0xff]
        %v455 = vld [vmem:[%s242 + $0x128] sm:$0xff]
        %v456 = vld [vmem:[%s242 + $0x130] sm:$0xff]
        %v457 = vld [vmem:[%s242 + $0x138] sm:$0xff]
        %v458 = vld [vmem:[%s242 + $0x140] sm:$0xff]
        %v459 = vld [vmem:[%s242 + $0x148] sm:$0xff]
        %v460 = vld [vmem:[%s242 + $0x150] sm:$0xff]
        %v461 = vld [vmem:[%s242 + $0x158] sm:$0xff]
        %v462 = vld [vmem:[%s242 + $0x160] sm:$0xff]
        %v463 = vld [vmem:[%s242 + $0x168] sm:$0xff]
        %v464 = vld [vmem:[%s242 + $0x170] sm:$0xff]
        %v465 = vld [vmem:[%s242 + $0x178] sm:$0xff]
        %v466 = vld [vmem:[%s242 + $0x180] sm:$0xff]
        %v467 = vld [vmem:[%s242 + $0x188] sm:$0xff]
        %v468 = vld [vmem:[%s242 + $0x190] sm:$0xff]
        %v469 = vld [vmem:[%s242 + $0x198] sm:$0xff]
        %v470 = vld [vmem:[%s242 + $0x1a0] sm:$0xff]
        %v471 = vld [vmem:[%s242 + $0x1a8] sm:$0xff]
        %v472 = vld [vmem:[%s242 + $0x1b0] sm:$0xff]
        %v473 = vld [vmem:[%s242 + $0x1b8] sm:$0xff]
        %v474 = vld [vmem:[%s242 + $0x1c0] sm:$0xff]
        %v475 = vld [vmem:[%s242 + $0x1c8] sm:$0xff]
        %v476 = vld [vmem:[%s242 + $0x1d0] sm:$0xff]
        %v477 = vld [vmem:[%s242 + $0x1d8] sm:$0xff]
        %v478 = vld [vmem:[%s242 + $0x1e0] sm:$0xff]
        %v479 = vld [vmem:[%s242 + $0x1e8] sm:$0xff]
        %v480 = vld [vmem:[%s242 + $0x1f0] sm:$0xff]
        %v481 = vld [vmem:[%s242 + $0x1f8] sm:$0xff]
        %v482 = vpack.c.bf16 %v420, %v418
        %v483 = vpack.c.bf16 %v421, %v419
        %v484 = vpack.c.bf16 %v424, %v422
        %v485 = vpack.c.bf16 %v425, %v423
        %v486 = vpack.c.bf16 %v428, %v426
        %v487 = vpack.c.bf16 %v429, %v427
        %v488 = vpack.c.bf16 %v432, %v430
        %v489 = vpack.c.bf16 %v433, %v431
        %v490 = vpack.c.bf16 %v436, %v434
        %v491 = vpack.c.bf16 %v437, %v435
        %v492 = vpack.c.bf16 %v440, %v438
        %v493 = vpack.c.bf16 %v441, %v439
        %v494 = vpack.c.bf16 %v444, %v442
        %v495 = vpack.c.bf16 %v445, %v443
        %v496 = vpack.c.bf16 %v448, %v446
        %v497 = vpack.c.bf16 %v449, %v447
        %v498 = vpack.c.bf16 %v452, %v450
        %v499 = vpack.c.bf16 %v453, %v451
        %v500 = vpack.c.bf16 %v456, %v454
        %v501 = vpack.c.bf16 %v457, %v455
        %v502 = vpack.c.bf16 %v460, %v458
        %v503 = vpack.c.bf16 %v461, %v459
        %v504 = vpack.c.bf16 %v464, %v462
        %v505 = vpack.c.bf16 %v465, %v463
        %v506 = vpack.c.bf16 %v468, %v466
        %v507 = vpack.c.bf16 %v469, %v467
        %v508 = vpack.c.bf16 %v472, %v470
        %v509 = vpack.c.bf16 %v473, %v471
        %v510 = vpack.c.bf16 %v476, %v474
        %v511 = vpack.c.bf16 %v477, %v475
        %v512 = vpack.c.bf16 %v480, %v478
        %v513 = vpack.c.bf16 %v481, %v479
        %v514 = vld [vmem:[#allocation6] sm:$0xff]
        %v515 = vld [vmem:[#allocation6 + $0x8] sm:$0xff]
        %v516 = vld [vmem:[#allocation6 + $0x10] sm:$0xff]
        %v517 = vld [vmem:[#allocation6 + $0x18] sm:$0xff]
        %v518 = vld [vmem:[#allocation6 + $0x20] sm:$0xff]
        %v519 = vld [vmem:[#allocation6 + $0x28] sm:$0xff]
        %v520 = vld [vmem:[#allocation6 + $0x30] sm:$0xff]
        %v521 = vld [vmem:[#allocation6 + $0x38] sm:$0xff]
        %v522 = vld [vmem:[#allocation6 + $0x40] sm:$0xff]
        %v523 = vld [vmem:[#allocation6 + $0x48] sm:$0xff]
        %v524 = vld [vmem:[#allocation6 + $0x50] sm:$0xff]
        %v525 = vld [vmem:[#allocation6 + $0x58] sm:$0xff]
        %v526 = vld [vmem:[#allocation6 + $0x60] sm:$0xff]
        %v527 = vld [vmem:[#allocation6 + $0x68] sm:$0xff]
        %v528 = vld [vmem:[#allocation6 + $0x70] sm:$0xff]
        %v529 = vld [vmem:[#allocation6 + $0x78] sm:$0xff]
        %v530 = vld [vmem:[#allocation6 + $0x80] sm:$0xff]
        %v531 = vld [vmem:[#allocation6 + $0x88] sm:$0xff]
        %v532 = vld [vmem:[#allocation6 + $0x90] sm:$0xff]
        %v533 = vld [vmem:[#allocation6 + $0x98] sm:$0xff]
        %v534 = vld [vmem:[#allocation6 + $0xa0] sm:$0xff]
        %v535 = vld [vmem:[#allocation6 + $0xa8] sm:$0xff]
        %v536 = vld [vmem:[#allocation6 + $0xb0] sm:$0xff]
        %v537 = vld [vmem:[#allocation6 + $0xb8] sm:$0xff]
        %v538 = vld [vmem:[#allocation6 + $0xc0] sm:$0xff]
        %v539 = vld [vmem:[#allocation6 + $0xc8] sm:$0xff]
        %v540 = vld [vmem:[#allocation6 + $0xd0] sm:$0xff]
        %v541 = vld [vmem:[#allocation6 + $0xd8] sm:$0xff]
        %v542 = vld [vmem:[#allocation6 + $0xe0] sm:$0xff]
        %v543 = vld [vmem:[#allocation6 + $0xe8] sm:$0xff]
        %v544 = vld [vmem:[#allocation6 + $0xf0] sm:$0xff]
        %v545 = vld [vmem:[#allocation6 + $0xf8] sm:$0xff]
        %v578 = vunpack.c.l.b16 %v514
        %v579 = vunpack.c.h.b16 %v514
        %v580 = vunpack.c.l.b16 %v515
        %v581 = vunpack.c.h.b16 %v515
        %v582 = vunpack.c.l.b16 %v516
        %v583 = vunpack.c.h.b16 %v516
        %v584 = vunpack.c.l.b16 %v517
        %v585 = vunpack.c.h.b16 %v517
        %v586 = vunpack.c.l.b16 %v518
        %v587 = vunpack.c.h.b16 %v518
        %v588 = vunpack.c.l.b16 %v519
        %v589 = vunpack.c.h.b16 %v519
        %v590 = vunpack.c.l.b16 %v520
        %v591 = vunpack.c.h.b16 %v520
        %v592 = vunpack.c.l.b16 %v521
        %v593 = vunpack.c.h.b16 %v521
        %v594 = vunpack.c.l.b16 %v522
        %v595 = vunpack.c.h.b16 %v522
        %v596 = vunpack.c.l.b16 %v523
        %v597 = vunpack.c.h.b16 %v523
        %v598 = vunpack.c.l.b16 %v524
        %v599 = vunpack.c.h.b16 %v524
        %v600 = vunpack.c.l.b16 %v525
        %v601 = vunpack.c.h.b16 %v525
        %v602 = vunpack.c.l.b16 %v526
        %v603 = vunpack.c.h.b16 %v526
        %v604 = vunpack.c.l.b16 %v527
        %v605 = vunpack.c.h.b16 %v527
        %v606 = vunpack.c.l.b16 %v528
        %v607 = vunpack.c.h.b16 %v528
        %v608 = vunpack.c.l.b16 %v529
        %v609 = vunpack.c.h.b16 %v529
        %v610 = vunpack.c.l.b16 %v530
        %v611 = vunpack.c.h.b16 %v530
        %v612 = vunpack.c.l.b16 %v531
        %v613 = vunpack.c.h.b16 %v531
        %v614 = vunpack.c.l.b16 %v532
        %v615 = vunpack.c.h.b16 %v532
        %v616 = vunpack.c.l.b16 %v533
        %v617 = vunpack.c.h.b16 %v533
        %v618 = vunpack.c.l.b16 %v534
        %v619 = vunpack.c.h.b16 %v534
        %v620 = vunpack.c.l.b16 %v535
        %v621 = vunpack.c.h.b16 %v535
        %v622 = vunpack.c.l.b16 %v536
        %v623 = vunpack.c.h.b16 %v536
        %v624 = vunpack.c.l.b16 %v537
        %v625 = vunpack.c.h.b16 %v537
        %v626 = vunpack.c.l.b16 %v538
        %v627 = vunpack.c.h.b16 %v538
        %v628 = vunpack.c.l.b16 %v539
        %v629 = vunpack.c.h.b16 %v539
        %v630 = vunpack.c.l.b16 %v540
        %v631 = vunpack.c.h.b16 %v540
        %v632 = vunpack.c.l.b16 %v541
        %v633 = vunpack.c.h.b16 %v541
        %v634 = vunpack.c.l.b16 %v542
        %v635 = vunpack.c.h.b16 %v542
        %v636 = vunpack.c.l.b16 %v543
        %v637 = vunpack.c.h.b16 %v543
        %v638 = vunpack.c.l.b16 %v544
        %v639 = vunpack.c.h.b16 %v544
        %v640 = vunpack.c.l.b16 %v545
        %v641 = vunpack.c.h.b16 %v545
        %v642 = vpack.c.b16 %v580, %v578
        %v643 = vpack.c.b16 %v581, %v579
        %v644 = vpack.c.b16 %v584, %v582
        %v645 = vpack.c.b16 %v585, %v583
        %v646 = vpack.c.b16 %v588, %v586
        %v647 = vpack.c.b16 %v589, %v587
        %v648 = vpack.c.b16 %v592, %v590
        %v649 = vpack.c.b16 %v593, %v591
        %v650 = vpack.c.b16 %v596, %v594
        %v651 = vpack.c.b16 %v597, %v595
        %v652 = vpack.c.b16 %v600, %v598
        %v653 = vpack.c.b16 %v601, %v599
        %v654 = vpack.c.b16 %v604, %v602
        %v655 = vpack.c.b16 %v605, %v603
        %v656 = vpack.c.b16 %v608, %v606
        %v657 = vpack.c.b16 %v609, %v607
        %v658 = vpack.c.b16 %v612, %v610
        %v659 = vpack.c.b16 %v613, %v611
        %v660 = vpack.c.b16 %v616, %v614
        %v661 = vpack.c.b16 %v617, %v615
        %v662 = vpack.c.b16 %v620, %v618
        %v663 = vpack.c.b16 %v621, %v619
        %v664 = vpack.c.b16 %v624, %v622
        %v665 = vpack.c.b16 %v625, %v623
        %v666 = vpack.c.b16 %v628, %v626
        %v667 = vpack.c.b16 %v629, %v627
        %v668 = vpack.c.b16 %v632, %v630
        %v669 = vpack.c.b16 %v633, %v631
        %v670 = vpack.c.b16 %v636, %v634
        %v671 = vpack.c.b16 %v637, %v635
        %v672 = vpack.c.b16 %v640, %v638
        %v673 = vpack.c.b16 %v641, %v639
        %706 = vmatpush.bf16.msra.mxu0 %v656
        %707 = vmatpush.bf16.msra.mxu0 %v654
        %708 = vmatpush.bf16.msra.mxu0 %v652
        %709 = vmatpush.bf16.msra.mxu0 %v650
        %710 = vmatpush.bf16.msra.mxu0 %v648
        %711 = vmatpush.bf16.msra.mxu0 %v646
        %712 = vmatpush.bf16.msra.mxu0 %v644
        %713 = vmatpush.bf16.msra.mxu0 %v642
        %714 = vmatmul.bf16.gmra.mxu0 %v482
        %v715 = vpop.f32.mrf.mxu0
        %v716 = vadd.f32 0.0, %v715
        %v717 = vpop.f32.mrf.mxu0
        %v718 = vadd.f32 0.0, %v717
        %719 = vmatmul.bf16.gmra.mxu0 %v484
        %v720 = vpop.f32.mrf.mxu0
        %v721 = vadd.f32 0.0, %v720
        %v722 = vpop.f32.mrf.mxu0
        %v723 = vadd.f32 0.0, %v722
        %724 = vmatmul.bf16.gmra.mxu0 %v486
        %v725 = vpop.f32.mrf.mxu0
        %v726 = vadd.f32 0.0, %v725
        %v727 = vpop.f32.mrf.mxu0
        %v728 = vadd.f32 0.0, %v727
        %729 = vmatmul.bf16.gmra.mxu0 %v488
        %v730 = vpop.f32.mrf.mxu0
        %v731 = vadd.f32 0.0, %v730
        %v732 = vpop.f32.mrf.mxu0
        %v733 = vadd.f32 0.0, %v732
        %734 = vmatmul.bf16.gmra.mxu0 %v490
        %v735 = vpop.f32.mrf.mxu0
        %v736 = vadd.f32 0.0, %v735
        %v737 = vpop.f32.mrf.mxu0
        %v738 = vadd.f32 0.0, %v737
        %739 = vmatmul.bf16.gmra.mxu0 %v492
        %v740 = vpop.f32.mrf.mxu0
        %v741 = vadd.f32 0.0, %v740
        %v742 = vpop.f32.mrf.mxu0
        %v743 = vadd.f32 0.0, %v742
        %744 = vmatmul.bf16.gmra.mxu0 %v494
        %v745 = vpop.f32.mrf.mxu0
        %v746 = vadd.f32 0.0, %v745
        %v747 = vpop.f32.mrf.mxu0
        %v748 = vadd.f32 0.0, %v747
        %749 = vmatmul.bf16.gmra.mxu0 %v496
        %v750 = vpop.f32.mrf.mxu0
        %v751 = vadd.f32 0.0, %v750
        %v752 = vpop.f32.mrf.mxu0
        %v753 = vadd.f32 0.0, %v752
        %754 = vmatmul.bf16.gmra.mxu0 %v498
        %v755 = vpop.f32.mrf.mxu0
        %v756 = vadd.f32 0.0, %v755
        %v757 = vpop.f32.mrf.mxu0
        %v758 = vadd.f32 0.0, %v757
        %759 = vmatmul.bf16.gmra.mxu0 %v500
        %v760 = vpop.f32.mrf.mxu0
        %v761 = vadd.f32 0.0, %v760
        %v762 = vpop.f32.mrf.mxu0
        %v763 = vadd.f32 0.0, %v762
        %764 = vmatmul.bf16.gmra.mxu0 %v502
        %v765 = vpop.f32.mrf.mxu0
        %v766 = vadd.f32 0.0, %v765
        %v767 = vpop.f32.mrf.mxu0
        %v768 = vadd.f32 0.0, %v767
        %769 = vmatmul.bf16.gmra.mxu0 %v504
        %v770 = vpop.f32.mrf.mxu0
        %v771 = vadd.f32 0.0, %v770
        %v772 = vpop.f32.mrf.mxu0
        %v773 = vadd.f32 0.0, %v772
        %774 = vmatmul.bf16.gmra.mxu0 %v506
        %v775 = vpop.f32.mrf.mxu0
        %v776 = vadd.f32 0.0, %v775
        %v777 = vpop.f32.mrf.mxu0
        %v778 = vadd.f32 0.0, %v777
        %779 = vmatmul.bf16.gmra.mxu0 %v508
        %v780 = vpop.f32.mrf.mxu0
        %v781 = vadd.f32 0.0, %v780
        %v782 = vpop.f32.mrf.mxu0
        %v783 = vadd.f32 0.0, %v782
        %784 = vmatmul.bf16.gmra.mxu0 %v510
        %v785 = vpop.f32.mrf.mxu0
        %v786 = vadd.f32 0.0, %v785
        %v787 = vpop.f32.mrf.mxu0
        %v788 = vadd.f32 0.0, %v787
        %789 = vmatmul.bf16.gmra.mxu0 %v512
        %v790 = vpop.f32.mrf.mxu0
        %v791 = vadd.f32 0.0, %v790
        %v792 = vpop.f32.mrf.mxu0
        %v793 = vadd.f32 0.0, %v792
        %794 = vdwg.mxu0
        %795 = vmatpush.bf16.msra.mxu0 %v672
        %796 = vmatpush.bf16.msra.mxu0 %v670
        %797 = vmatpush.bf16.msra.mxu0 %v668
        %798 = vmatpush.bf16.msra.mxu0 %v666
        %799 = vmatpush.bf16.msra.mxu0 %v664
        %800 = vmatpush.bf16.msra.mxu0 %v662
        %801 = vmatpush.bf16.msra.mxu0 %v660
        %802 = vmatpush.bf16.msra.mxu0 %v658
        %803 = vmatmul.bf16.gmra.mxu0 %v483
        %v804 = vpop.f32.mrf.mxu0
        %v805 = vadd.f32 %v716, %v804
        %v806 = vpop.f32.mrf.mxu0
        %v807 = vadd.f32 %v718, %v806
        %808 = vmatmul.bf16.gmra.mxu0 %v485
        %v809 = vpop.f32.mrf.mxu0
        %v810 = vadd.f32 %v721, %v809
        %v811 = vpop.f32.mrf.mxu0
        %v812 = vadd.f32 %v723, %v811
        %813 = vmatmul.bf16.gmra.mxu0 %v487
        %v814 = vpop.f32.mrf.mxu0
        %v815 = vadd.f32 %v726, %v814
        %v816 = vpop.f32.mrf.mxu0
        %v817 = vadd.f32 %v728, %v816
        %818 = vmatmul.bf16.gmra.mxu0 %v489
        %v819 = vpop.f32.mrf.mxu0
        %v820 = vadd.f32 %v731, %v819
        %v821 = vpop.f32.mrf.mxu0
        %v822 = vadd.f32 %v733, %v821
        %823 = vmatmul.bf16.gmra.mxu0 %v491
        %v824 = vpop.f32.mrf.mxu0
        %v825 = vadd.f32 %v736, %v824
        %v826 = vpop.f32.mrf.mxu0
        %v827 = vadd.f32 %v738, %v826
        %828 = vmatmul.bf16.gmra.mxu0 %v493
        %v829 = vpop.f32.mrf.mxu0
        %v830 = vadd.f32 %v741, %v829
        %v831 = vpop.f32.mrf.mxu0
        %v832 = vadd.f32 %v743, %v831
        %833 = vmatmul.bf16.gmra.mxu0 %v495
        %v834 = vpop.f32.mrf.mxu0
        %v835 = vadd.f32 %v746, %v834
        %v836 = vpop.f32.mrf.mxu0
        %v837 = vadd.f32 %v748, %v836
        %838 = vmatmul.bf16.gmra.mxu0 %v497
        %v839 = vpop.f32.mrf.mxu0
        %v840 = vadd.f32 %v751, %v839
        %v841 = vpop.f32.mrf.mxu0
        %v842 = vadd.f32 %v753, %v841
        %843 = vmatmul.bf16.gmra.mxu0 %v499
        %v844 = vpop.f32.mrf.mxu0
        %v845 = vadd.f32 %v756, %v844
        %v846 = vpop.f32.mrf.mxu0
        %v847 = vadd.f32 %v758, %v846
        %848 = vmatmul.bf16.gmra.mxu0 %v501
        %v849 = vpop.f32.mrf.mxu0
        %v850 = vadd.f32 %v761, %v849
        %v851 = vpop.f32.mrf.mxu0
        %v852 = vadd.f32 %v763, %v851
        %853 = vmatmul.bf16.gmra.mxu0 %v503
        %v854 = vpop.f32.mrf.mxu0
        %v855 = vadd.f32 %v766, %v854
        %v856 = vpop.f32.mrf.mxu0
        %v857 = vadd.f32 %v768, %v856
        %858 = vmatmul.bf16.gmra.mxu0 %v505
        %v859 = vpop.f32.mrf.mxu0
        %v860 = vadd.f32 %v771, %v859
        %v861 = vpop.f32.mrf.mxu0
        %v862 = vadd.f32 %v773, %v861
        %863 = vmatmul.bf16.gmra.mxu0 %v507
        %v864 = vpop.f32.mrf.mxu0
        %v865 = vadd.f32 %v776, %v864
        %v866 = vpop.f32.mrf.mxu0
        %v867 = vadd.f32 %v778, %v866
        %868 = vmatmul.bf16.gmra.mxu0 %v509
        %v869 = vpop.f32.mrf.mxu0
        %v870 = vadd.f32 %v781, %v869
        %v871 = vpop.f32.mrf.mxu0
        %v872 = vadd.f32 %v783, %v871
        %873 = vmatmul.bf16.gmra.mxu0 %v511
        %v874 = vpop.f32.mrf.mxu0
        %v875 = vadd.f32 %v786, %v874
        %v876 = vpop.f32.mrf.mxu0
        %v877 = vadd.f32 %v788, %v876
        %878 = vmatmul.bf16.gmra.mxu0 %v513
        %v879 = vpop.f32.mrf.mxu0
        %v880 = vadd.f32 %v791, %v879
        %v881 = vpop.f32.mrf.mxu0
        %v882 = vadd.f32 %v793, %v881
        %883 = vdwg.mxu0
        %884 = vmatpush.bf16.msra.mxu0 %v657
        %885 = vmatpush.bf16.msra.mxu0 %v655
        %886 = vmatpush.bf16.msra.mxu0 %v653
        %887 = vmatpush.bf16.msra.mxu0 %v651
        %888 = vmatpush.bf16.msra.mxu0 %v649
        %889 = vmatpush.bf16.msra.mxu0 %v647
        %890 = vmatpush.bf16.msra.mxu0 %v645
        %891 = vmatpush.bf16.msra.mxu0 %v643
        %892 = vmatmul.bf16.gmra.mxu0 %v482
        %v893 = vpop.f32.mrf.mxu0
        %v894 = vadd.f32 0.0, %v893
        %v895 = vpop.f32.mrf.mxu0
        %v896 = vadd.f32 0.0, %v895
        %897 = vmatmul.bf16.gmra.mxu0 %v484
        %v898 = vpop.f32.mrf.mxu0
        %v899 = vadd.f32 0.0, %v898
        %v900 = vpop.f32.mrf.mxu0
        %v901 = vadd.f32 0.0, %v900
        %902 = vmatmul.bf16.gmra.mxu0 %v486
        %v903 = vpop.f32.mrf.mxu0
        %v904 = vadd.f32 0.0, %v903
        %v905 = vpop.f32.mrf.mxu0
        %v906 = vadd.f32 0.0, %v905
        %907 = vmatmul.bf16.gmra.mxu0 %v488
        %v908 = vpop.f32.mrf.mxu0
        %v909 = vadd.f32 0.0, %v908
        %v910 = vpop.f32.mrf.mxu0
        %v911 = vadd.f32 0.0, %v910
        %912 = vmatmul.bf16.gmra.mxu0 %v490
        %v913 = vpop.f32.mrf.mxu0
        %v914 = vadd.f32 0.0, %v913
        %v915 = vpop.f32.mrf.mxu0
        %v916 = vadd.f32 0.0, %v915
        %917 = vmatmul.bf16.gmra.mxu0 %v492
        %v918 = vpop.f32.mrf.mxu0
        %v919 = vadd.f32 0.0, %v918
        %v920 = vpop.f32.mrf.mxu0
        %v921 = vadd.f32 0.0, %v920
        %922 = vmatmul.bf16.gmra.mxu0 %v494
        %v923 = vpop.f32.mrf.mxu0
        %v924 = vadd.f32 0.0, %v923
        %v925 = vpop.f32.mrf.mxu0
        %v926 = vadd.f32 0.0, %v925
        %927 = vmatmul.bf16.gmra.mxu0 %v496
        %v928 = vpop.f32.mrf.mxu0
        %v929 = vadd.f32 0.0, %v928
        %v930 = vpop.f32.mrf.mxu0
        %v931 = vadd.f32 0.0, %v930
        %932 = vmatmul.bf16.gmra.mxu0 %v498
        %v933 = vpop.f32.mrf.mxu0
        %v934 = vadd.f32 0.0, %v933
        %v935 = vpop.f32.mrf.mxu0
        %v936 = vadd.f32 0.0, %v935
        %937 = vmatmul.bf16.gmra.mxu0 %v500
        %v938 = vpop.f32.mrf.mxu0
        %v939 = vadd.f32 0.0, %v938
        %v940 = vpop.f32.mrf.mxu0
        %v941 = vadd.f32 0.0, %v940
        %942 = vmatmul.bf16.gmra.mxu0 %v502
        %v943 = vpop.f32.mrf.mxu0
        %v944 = vadd.f32 0.0, %v943
        %v945 = vpop.f32.mrf.mxu0
        %v946 = vadd.f32 0.0, %v945
        %947 = vmatmul.bf16.gmra.mxu0 %v504
        %v948 = vpop.f32.mrf.mxu0
        %v949 = vadd.f32 0.0, %v948
        %v950 = vpop.f32.mrf.mxu0
        %v951 = vadd.f32 0.0, %v950
        %952 = vmatmul.bf16.gmra.mxu0 %v506
        %v953 = vpop.f32.mrf.mxu0
        %v954 = vadd.f32 0.0, %v953
        %v955 = vpop.f32.mrf.mxu0
        %v956 = vadd.f32 0.0, %v955
        %957 = vmatmul.bf16.gmra.mxu0 %v508
        %v958 = vpop.f32.mrf.mxu0
        %v959 = vadd.f32 0.0, %v958
        %v960 = vpop.f32.mrf.mxu0
        %v961 = vadd.f32 0.0, %v960
        %962 = vmatmul.bf16.gmra.mxu0 %v510
        %v963 = vpop.f32.mrf.mxu0
        %v964 = vadd.f32 0.0, %v963
        %v965 = vpop.f32.mrf.mxu0
        %v966 = vadd.f32 0.0, %v965
        %967 = vmatmul.bf16.gmra.mxu0 %v512
        %v968 = vpop.f32.mrf.mxu0
        %v969 = vadd.f32 0.0, %v968
        %v970 = vpop.f32.mrf.mxu0
        %v971 = vadd.f32 0.0, %v970
        %972 = vdwg.mxu0
        %973 = vmatpush.bf16.msra.mxu0 %v673
        %974 = vmatpush.bf16.msra.mxu0 %v671
        %975 = vmatpush.bf16.msra.mxu0 %v669
        %976 = vmatpush.bf16.msra.mxu0 %v667
        %977 = vmatpush.bf16.msra.mxu0 %v665
        %978 = vmatpush.bf16.msra.mxu0 %v663
        %979 = vmatpush.bf16.msra.mxu0 %v661
        %980 = vmatpush.bf16.msra.mxu0 %v659
        %981 = vmatmul.bf16.gmra.mxu0 %v483
        %v982 = vpop.f32.mrf.mxu0
        %v983 = vadd.f32 %v894, %v982
        %v984 = vpop.f32.mrf.mxu0
        %v985 = vadd.f32 %v896, %v984
        %986 = vmatmul.bf16.gmra.mxu0 %v485
        %v987 = vpop.f32.mrf.mxu0
        %v988 = vadd.f32 %v899, %v987
        %v989 = vpop.f32.mrf.mxu0
        %v990 = vadd.f32 %v901, %v989
        %991 = vmatmul.bf16.gmra.mxu0 %v487
        %v992 = vpop.f32.mrf.mxu0
        %v993 = vadd.f32 %v904, %v992
        %v994 = vpop.f32.mrf.mxu0
        %v995 = vadd.f32 %v906, %v994
        %996 = vmatmul.bf16.gmra.mxu0 %v489
        %v997 = vpop.f32.mrf.mxu0
        %v998 = vadd.f32 %v909, %v997
        %v999 = vpop.f32.mrf.mxu0
        %v1000 = vadd.f32 %v911, %v999
        %1001 = vmatmul.bf16.gmra.mxu0 %v491
        %v1002 = vpop.f32.mrf.mxu0
        %v1003 = vadd.f32 %v914, %v1002
        %v1004 = vpop.f32.mrf.mxu0
        %v1005 = vadd.f32 %v916, %v1004
        %1006 = vmatmul.bf16.gmra.mxu0 %v493
        %v1007 = vpop.f32.mrf.mxu0
        %v1008 = vadd.f32 %v919, %v1007
        %v1009 = vpop.f32.mrf.mxu0
        %v1010 = vadd.f32 %v921, %v1009
        %1011 = vmatmul.bf16.gmra.mxu0 %v495
        %v1012 = vpop.f32.mrf.mxu0
        %v1013 = vadd.f32 %v924, %v1012
        %v1014 = vpop.f32.mrf.mxu0
        %v1015 = vadd.f32 %v926, %v1014
        %1016 = vmatmul.bf16.gmra.mxu0 %v497
        %v1017 = vpop.f32.mrf.mxu0
        %v1018 = vadd.f32 %v929, %v1017
        %v1019 = vpop.f32.mrf.mxu0
        %v1020 = vadd.f32 %v931, %v1019
        %1021 = vmatmul.bf16.gmra.mxu0 %v499
        %v1022 = vpop.f32.mrf.mxu0
        %v1023 = vadd.f32 %v934, %v1022
        %v1024 = vpop.f32.mrf.mxu0
        %v1025 = vadd.f32 %v936, %v1024
        %1026 = vmatmul.bf16.gmra.mxu0 %v501
        %v1027 = vpop.f32.mrf.mxu0
        %v1028 = vadd.f32 %v939, %v1027
        %v1029 = vpop.f32.mrf.mxu0
        %v1030 = vadd.f32 %v941, %v1029
        %1031 = vmatmul.bf16.gmra.mxu0 %v503
        %v1032 = vpop.f32.mrf.mxu0
        %v1033 = vadd.f32 %v944, %v1032
        %v1034 = vpop.f32.mrf.mxu0
        %v1035 = vadd.f32 %v946, %v1034
        %1036 = vmatmul.bf16.gmra.mxu0 %v505
        %v1037 = vpop.f32.mrf.mxu0
        %v1038 = vadd.f32 %v949, %v1037
        %v1039 = vpop.f32.mrf.mxu0
        %v1040 = vadd.f32 %v951, %v1039
        %1041 = vmatmul.bf16.gmra.mxu0 %v507
        %v1042 = vpop.f32.mrf.mxu0
        %v1043 = vadd.f32 %v954, %v1042
        %v1044 = vpop.f32.mrf.mxu0
        %v1045 = vadd.f32 %v956, %v1044
        %1046 = vmatmul.bf16.gmra.mxu0 %v509
        %v1047 = vpop.f32.mrf.mxu0
        %v1048 = vadd.f32 %v959, %v1047
        %v1049 = vpop.f32.mrf.mxu0
        %v1050 = vadd.f32 %v961, %v1049
        %1051 = vmatmul.bf16.gmra.mxu0 %v511
        %v1052 = vpop.f32.mrf.mxu0
        %v1053 = vadd.f32 %v964, %v1052
        %v1054 = vpop.f32.mrf.mxu0
        %v1055 = vadd.f32 %v966, %v1054
        %1056 = vmatmul.bf16.gmra.mxu0 %v513
        %v1057 = vpop.f32.mrf.mxu0
        %v1058 = vadd.f32 %v969, %v1057
        %v1059 = vpop.f32.mrf.mxu0
        %v1060 = vadd.f32 %v971, %v1059
        %1061 = vdwg.mxu0
        %v1062 = vadd.f32 %v354, %v805
        %v1063 = vadd.f32 %v355, %v983
        %v1064 = vadd.f32 %v356, %v807
        %v1065 = vadd.f32 %v357, %v985
        %v1066 = vadd.f32 %v358, %v810
        %v1067 = vadd.f32 %v359, %v988
        %v1068 = vadd.f32 %v360, %v812
        %v1069 = vadd.f32 %v361, %v990
        %v1070 = vadd.f32 %v362, %v815
        %v1071 = vadd.f32 %v363, %v993
        %v1072 = vadd.f32 %v364, %v817
        %v1073 = vadd.f32 %v365, %v995
        %v1074 = vadd.f32 %v366, %v820
        %v1075 = vadd.f32 %v367, %v998
        %v1076 = vadd.f32 %v368, %v822
        %v1077 = vadd.f32 %v369, %v1000
        %v1078 = vadd.f32 %v370, %v825
        %v1079 = vadd.f32 %v371, %v1003
        %v1080 = vadd.f32 %v372, %v827
        %v1081 = vadd.f32 %v373, %v1005
        %v1082 = vadd.f32 %v374, %v830
        %v1083 = vadd.f32 %v375, %v1008
        %v1084 = vadd.f32 %v376, %v832
        %v1085 = vadd.f32 %v377, %v1010
        %v1086 = vadd.f32 %v378, %v835
        %v1087 = vadd.f32 %v379, %v1013
        %v1088 = vadd.f32 %v380, %v837
        %v1089 = vadd.f32 %v381, %v1015
        %v1090 = vadd.f32 %v382, %v840
        %v1091 = vadd.f32 %v383, %v1018
        %v1092 = vadd.f32 %v384, %v842
        %v1093 = vadd.f32 %v385, %v1020
        %v1094 = vadd.f32 %v386, %v845
        %v1095 = vadd.f32 %v387, %v1023
        %v1096 = vadd.f32 %v388, %v847
        %v1097 = vadd.f32 %v389, %v1025
        %v1098 = vadd.f32 %v390, %v850
        %v1099 = vadd.f32 %v391, %v1028
        %v1100 = vadd.f32 %v392, %v852
        %v1101 = vadd.f32 %v393, %v1030
        %v1102 = vadd.f32 %v394, %v855
        %v1103 = vadd.f32 %v395, %v1033
        %v1104 = vadd.f32 %v396, %v857
        %v1105 = vadd.f32 %v397, %v1035
        %v1106 = vadd.f32 %v398, %v860
        %v1107 = vadd.f32 %v399, %v1038
        %v1108 = vadd.f32 %v400, %v862
        %v1109 = vadd.f32 %v401, %v1040
        %v1110 = vadd.f32 %v402, %v865
        %v1111 = vadd.f32 %v403, %v1043
        %v1112 = vadd.f32 %v404, %v867
        %v1113 = vadd.f32 %v405, %v1045
        %v1114 = vadd.f32 %v406, %v870
        %v1115 = vadd.f32 %v407, %v1048
        %v1116 = vadd.f32 %v408, %v872
        %v1117 = vadd.f32 %v409, %v1050
        %v1118 = vadd.f32 %v410, %v875
        %v1119 = vadd.f32 %v411, %v1053
        %v1120 = vadd.f32 %v412, %v877
        %v1121 = vadd.f32 %v413, %v1055
        %v1122 = vadd.f32 %v414, %v880
        %v1123 = vadd.f32 %v415, %v1058
        %v1124 = vadd.f32 %v416, %v882
        %v1125 = vadd.f32 %v417, %v1060
        %1126 = vst [vmem:[#allocation2] sm:$0xff] %v1062
        %1127 = vst [vmem:[#allocation2 + $0x8] sm:$0xff] %v1063
        %1128 = vst [vmem:[#allocation2 + $0x10] sm:$0xff] %v1064
        %1129 = vst [vmem:[#allocation2 + $0x18] sm:$0xff] %v1065
        %1130 = vst [vmem:[#allocation2 + $0x20] sm:$0xff] %v1066
        %1131 = vst [vmem:[#allocation2 + $0x28] sm:$0xff] %v1067
        %1132 = vst [vmem:[#allocation2 + $0x30] sm:$0xff] %v1068
        %1133 = vst [vmem:[#allocation2 + $0x38] sm:$0xff] %v1069
        %1134 = vst [vmem:[#allocation2 + $0x40] sm:$0xff] %v1070
        %1135 = vst [vmem:[#allocation2 + $0x48] sm:$0xff] %v1071
        %1136 = vst [vmem:[#allocation2 + $0x50] sm:$0xff] %v1072
        %1137 = vst [vmem:[#allocation2 + $0x58] sm:$0xff] %v1073
        %1138 = vst [vmem:[#allocation2 + $0x60] sm:$0xff] %v1074
        %1139 = vst [vmem:[#allocation2 + $0x68] sm:$0xff] %v1075
        %1140 = vst [vmem:[#allocation2 + $0x70] sm:$0xff] %v1076
        %1141 = vst [vmem:[#allocation2 + $0x78] sm:$0xff] %v1077
        %1142 = vst [vmem:[#allocation2 + $0x80] sm:$0xff] %v1078
        %1143 = vst [vmem:[#allocation2 + $0x88] sm:$0xff] %v1079
        %1144 = vst [vmem:[#allocation2 + $0x90] sm:$0xff] %v1080
        %1145 = vst [vmem:[#allocation2 + $0x98] sm:$0xff] %v1081
        %1146 = vst [vmem:[#allocation2 + $0xa0] sm:$0xff] %v1082
        %1147 = vst [vmem:[#allocation2 + $0xa8] sm:$0xff] %v1083
        %1148 = vst [vmem:[#allocation2 + $0xb0] sm:$0xff] %v1084
        %1149 = vst [vmem:[#allocation2 + $0xb8] sm:$0xff] %v1085
        %1150 = vst [vmem:[#allocation2 + $0xc0] sm:$0xff] %v1086
        %1151 = vst [vmem:[#allocation2 + $0xc8] sm:$0xff] %v1087
        %1152 = vst [vmem:[#allocation2 + $0xd0] sm:$0xff] %v1088
        %1153 = vst [vmem:[#allocation2 + $0xd8] sm:$0xff] %v1089
        %1154 = vst [vmem:[#allocation2 + $0xe0] sm:$0xff] %v1090
        %1155 = vst [vmem:[#allocation2 + $0xe8] sm:$0xff] %v1091
        %1156 = vst [vmem:[#allocation2 + $0xf0] sm:$0xff] %v1092
        %1157 = vst [vmem:[#allocation2 + $0xf8] sm:$0xff] %v1093
        %1158 = vst [vmem:[#allocation2 + $0x100] sm:$0xff] %v1094
        %1159 = vst [vmem:[#allocation2 + $0x108] sm:$0xff] %v1095
        %1160 = vst [vmem:[#allocation2 + $0x110] sm:$0xff] %v1096
        %1161 = vst [vmem:[#allocation2 + $0x118] sm:$0xff] %v1097
        %1162 = vst [vmem:[#allocation2 + $0x120] sm:$0xff] %v1098
        %1163 = vst [vmem:[#allocation2 + $0x128] sm:$0xff] %v1099
        %1164 = vst [vmem:[#allocation2 + $0x130] sm:$0xff] %v1100
        %1165 = vst [vmem:[#allocation2 + $0x138] sm:$0xff] %v1101
        %1166 = vst [vmem:[#allocation2 + $0x140] sm:$0xff] %v1102
        %1167 = vst [vmem:[#allocation2 + $0x148] sm:$0xff] %v1103
        %1168 = vst [vmem:[#allocation2 + $0x150] sm:$0xff] %v1104
        %1169 = vst [vmem:[#allocation2 + $0x158] sm:$0xff] %v1105
        %1170 = vst [vmem:[#allocation2 + $0x160] sm:$0xff] %v1106
        %1171 = vst [vmem:[#allocation2 + $0x168] sm:$0xff] %v1107
        %1172 = vst [vmem:[#allocation2 + $0x170] sm:$0xff] %v1108
        %1173 = vst [vmem:[#allocation2 + $0x178] sm:$0xff] %v1109
        %1174 = vst [vmem:[#allocation2 + $0x180] sm:$0xff] %v1110
        %1175 = vst [vmem:[#allocation2 + $0x188] sm:$0xff] %v1111
        %1176 = vst [vmem:[#allocation2 + $0x190] sm:$0xff] %v1112
        %1177 = vst [vmem:[#allocation2 + $0x198] sm:$0xff] %v1113
        %1178 = vst [vmem:[#allocation2 + $0x1a0] sm:$0xff] %v1114
        %1179 = vst [vmem:[#allocation2 + $0x1a8] sm:$0xff] %v1115
        %1180 = vst [vmem:[#allocation2 + $0x1b0] sm:$0xff] %v1116
        %1181 = vst [vmem:[#allocation2 + $0x1b8] sm:$0xff] %v1117
        %1182 = vst [vmem:[#allocation2 + $0x1c0] sm:$0xff] %v1118
        %1183 = vst [vmem:[#allocation2 + $0x1c8] sm:$0xff] %v1119
        %1184 = vst [vmem:[#allocation2 + $0x1d0] sm:$0xff] %v1120
        %1185 = vst [vmem:[#allocation2 + $0x1d8] sm:$0xff] %v1121
        %1186 = vst [vmem:[#allocation2 + $0x1e0] sm:$0xff] %v1122
        %1187 = vst [vmem:[#allocation2 + $0x1e8] sm:$0xff] %v1123
        %1188 = vst [vmem:[#allocation2 + $0x1f0] sm:$0xff] %v1124
        %1189 = vst [vmem:[#allocation2 + $0x1f8] sm:$0xff] %v1125
        // Predicated region
        $region57: #{tpu_custom_call.1} parent=35 // pred_check
          %p1190 = pneg %p286
        $region58: #{tpu_custom_call.1} parent=35 // pred_check_branch
          %1192 = sbr.rel (%p1190) target = $region60
        $region59: #{tpu_custom_call.1} parent=35 // pred_region
          %v1193 = vld [vmem:[#allocation9] ss:$4 sm:$0x3]
          %s1194 = scalar_lea.vmem [#allocation9], 1
          %v1195 = vld [vmem:[%s1194] ss:$4 sm:$0x3]
          %s1196 = scalar_lea.vmem [#allocation9], 2
          %v1197 = vld [vmem:[%s1196] ss:$4 sm:$0x3]
          %s1198 = scalar_lea.vmem [#allocation9], 3
          %v1199 = vld [vmem:[%s1198] ss:$4 sm:$0x3]
          %v1200 = vld [vmem:[#allocation2] sm:$0xff]
          %v1201 = vld [vmem:[#allocation2 + $0x8] sm:$0xff]
          %v1202 = vld [vmem:[#allocation2 + $0x10] sm:$0xff]
          %v1203 = vld [vmem:[#allocation2 + $0x18] sm:$0xff]
          %v1204 = vld [vmem:[#allocation2 + $0x20] sm:$0xff]
          %v1205 = vld [vmem:[#allocation2 + $0x28] sm:$0xff]
          %v1206 = vld [vmem:[#allocation2 + $0x30] sm:$0xff]
          %v1207 = vld [vmem:[#allocation2 + $0x38] sm:$0xff]
          %v1208 = vld [vmem:[#allocation2 + $0x40] sm:$0xff]
          %v1209 = vld [vmem:[#allocation2 + $0x48] sm:$0xff]
          %v1210 = vld [vmem:[#allocation2 + $0x50] sm:$0xff]
          %v1211 = vld [vmem:[#allocation2 + $0x58] sm:$0xff]
          %v1212 = vld [vmem:[#allocation2 + $0x60] sm:$0xff]
          %v1213 = vld [vmem:[#allocation2 + $0x68] sm:$0xff]
          %v1214 = vld [vmem:[#allocation2 + $0x70] sm:$0xff]
          %v1215 = vld [vmem:[#allocation2 + $0x78] sm:$0xff]
          %v1216 = vld [vmem:[#allocation2 + $0x80] sm:$0xff]
          %v1217 = vld [vmem:[#allocation2 + $0x88] sm:$0xff]
          %v1218 = vld [vmem:[#allocation2 + $0x90] sm:$0xff]
          %v1219 = vld [vmem:[#allocation2 + $0x98] sm:$0xff]
          %v1220 = vld [vmem:[#allocation2 + $0xa0] sm:$0xff]
          %v1221 = vld [vmem:[#allocation2 + $0xa8] sm:$0xff]
          %v1222 = vld [vmem:[#allocation2 + $0xb0] sm:$0xff]
          %v1223 = vld [vmem:[#allocation2 + $0xb8] sm:$0xff]
          %v1224 = vld [vmem:[#allocation2 + $0xc0] sm:$0xff]
          %v1225 = vld [vmem:[#allocation2 + $0xc8] sm:$0xff]
          %v1226 = vld [vmem:[#allocation2 + $0xd0] sm:$0xff]
          %v1227 = vld [vmem:[#allocation2 + $0xd8] sm:$0xff]
          %v1228 = vld [vmem:[#allocation2 + $0xe0] sm:$0xff]
          %v1229 = vld [vmem:[#allocation2 + $0xe8] sm:$0xff]
          %v1230 = vld [vmem:[#allocation2 + $0xf0] sm:$0xff]
          %v1231 = vld [vmem:[#allocation2 + $0xf8] sm:$0xff]
          %v1232 = vld [vmem:[#allocation2 + $0x100] sm:$0xff]
          %v1233 = vld [vmem:[#allocation2 + $0x108] sm:$0xff]
          %v1234 = vld [vmem:[#allocation2 + $0x110] sm:$0xff]
          %v1235 = vld [vmem:[#allocation2 + $0x118] sm:$0xff]
          %v1236 = vld [vmem:[#allocation2 + $0x120] sm:$0xff]
          %v1237 = vld [vmem:[#allocation2 + $0x128] sm:$0xff]
          %v1238 = vld [vmem:[#allocation2 + $0x130] sm:$0xff]
          %v1239 = vld [vmem:[#allocation2 + $0x138] sm:$0xff]
          %v1240 = vld [vmem:[#allocation2 + $0x140] sm:$0xff]
          %v1241 = vld [vmem:[#allocation2 + $0x148] sm:$0xff]
          %v1242 = vld [vmem:[#allocation2 + $0x150] sm:$0xff]
          %v1243 = vld [vmem:[#allocation2 + $0x158] sm:$0xff]
          %v1244 = vld [vmem:[#allocation2 + $0x160] sm:$0xff]
          %v1245 = vld [vmem:[#allocation2 + $0x168] sm:$0xff]
          %v1246 = vld [vmem:[#allocation2 + $0x170] sm:$0xff]
          %v1247 = vld [vmem:[#allocation2 + $0x178] sm:$0xff]
          %v1248 = vld [vmem:[#allocation2 + $0x180] sm:$0xff]
          %v1249 = vld [vmem:[#allocation2 + $0x188] sm:$0xff]
          %v1250 = vld [vmem:[#allocation2 + $0x190] sm:$0xff]
          %v1251 = vld [vmem:[#allocation2 + $0x198] sm:$0xff]
          %v1252 = vld [vmem:[#allocation2 + $0x1a0] sm:$0xff]
          %v1253 = vld [vmem:[#allocation2 + $0x1a8] sm:$0xff]
          %v1254 = vld [vmem:[#allocation2 + $0x1b0] sm:$0xff]
          %v1255 = vld [vmem:[#allocation2 + $0x1b8] sm:$0xff]
          %v1256 = vld [vmem:[#allocation2 + $0x1c0] sm:$0xff]
          %v1257 = vld [vmem:[#allocation2 + $0x1c8] sm:$0xff]
          %v1258 = vld [vmem:[#allocation2 + $0x1d0] sm:$0xff]
          %v1259 = vld [vmem:[#allocation2 + $0x1d8] sm:$0xff]
          %v1260 = vld [vmem:[#allocation2 + $0x1e0] sm:$0xff]
          %v1261 = vld [vmem:[#allocation2 + $0x1e8] sm:$0xff]
          %v1262 = vld [vmem:[#allocation2 + $0x1f0] sm:$0xff]
          %v1263 = vld [vmem:[#allocation2 + $0x1f8] sm:$0xff]
          %v1265 = vperm.slane %v1193, 0
          %v1266 = vperm.slane %v1193, 1
          %v1269 = vadd.f32 %v1200, %v1265
          %v1270 = vadd.f32 %v1201, %v1266
          %v1271 = vadd.f32 %v1202, %v1265
          %v1272 = vadd.f32 %v1203, %v1266
          %v1273 = vadd.f32 %v1204, %v1265
          %v1274 = vadd.f32 %v1205, %v1266
          %v1275 = vadd.f32 %v1206, %v1265
          %v1276 = vadd.f32 %v1207, %v1266
          %v1277 = vadd.f32 %v1208, %v1265
          %v1278 = vadd.f32 %v1209, %v1266
          %v1279 = vadd.f32 %v1210, %v1265
          %v1280 = vadd.f32 %v1211, %v1266
          %v1281 = vadd.f32 %v1212, %v1265
          %v1282 = vadd.f32 %v1213, %v1266
          %v1283 = vadd.f32 %v1214, %v1265
          %v1284 = vadd.f32 %v1215, %v1266
          %v1285 = vadd.f32 %v1216, %v1265
          %v1286 = vadd.f32 %v1217, %v1266
          %v1287 = vadd.f32 %v1218, %v1265
          %v1288 = vadd.f32 %v1219, %v1266
          %v1289 = vadd.f32 %v1220, %v1265
          %v1290 = vadd.f32 %v1221, %v1266
          %v1291 = vadd.f32 %v1222, %v1265
          %v1292 = vadd.f32 %v1223, %v1266
          %v1293 = vadd.f32 %v1224, %v1265
          %v1294 = vadd.f32 %v1225, %v1266
          %v1295 = vadd.f32 %v1226, %v1265
          %v1296 = vadd.f32 %v1227, %v1266
          %v1297 = vadd.f32 %v1228, %v1265
          %v1298 = vadd.f32 %v1229, %v1266
          %v1299 = vadd.f32 %v1230, %v1265
          %v1300 = vadd.f32 %v1231, %v1266
          %v1301 = vadd.f32 %v1232, %v1265
          %v1302 = vadd.f32 %v1233, %v1266
          %v1303 = vadd.f32 %v1234, %v1265
          %v1304 = vadd.f32 %v1235, %v1266
          %v1305 = vadd.f32 %v1236, %v1265
          %v1306 = vadd.f32 %v1237, %v1266
          %v1307 = vadd.f32 %v1238, %v1265
          %v1308 = vadd.f32 %v1239, %v1266
          %v1309 = vadd.f32 %v1240, %v1265
          %v1310 = vadd.f32 %v1241, %v1266
          %v1311 = vadd.f32 %v1242, %v1265
          %v1312 = vadd.f32 %v1243, %v1266
          %v1313 = vadd.f32 %v1244, %v1265
          %v1314 = vadd.f32 %v1245, %v1266
          %v1315 = vadd.f32 %v1246, %v1265
          %v1316 = vadd.f32 %v1247, %v1266
          %v1317 = vadd.f32 %v1248, %v1265
          %v1318 = vadd.f32 %v1249, %v1266
          %v1319 = vadd.f32 %v1250, %v1265
          %v1320 = vadd.f32 %v1251, %v1266
          %v1321 = vadd.f32 %v1252, %v1265
          %v1322 = vadd.f32 %v1253, %v1266
          %v1323 = vadd.f32 %v1254, %v1265
          %v1324 = vadd.f32 %v1255, %v1266
          %v1325 = vadd.f32 %v1256, %v1265
          %v1326 = vadd.f32 %v1257, %v1266
          %v1327 = vadd.f32 %v1258, %v1265
          %v1328 = vadd.f32 %v1259, %v1266
          %v1329 = vadd.f32 %v1260, %v1265
          %v1330 = vadd.f32 %v1261, %v1266
          %v1331 = vadd.f32 %v1262, %v1265
          %v1332 = vadd.f32 %v1263, %v1266
          %1333 = vst [vmem:[#allocation2] sm:$0xff] %v1269
          %1334 = vst [vmem:[#allocation2 + $0x8] sm:$0xff] %v1270
          %1335 = vst [vmem:[#allocation2 + $0x10] sm:$0xff] %v1271
          %1336 = vst [vmem:[#allocation2 + $0x18] sm:$0xff] %v1272
          %1337 = vst [vmem:[#allocation2 + $0x20] sm:$0xff] %v1273
          %1338 = vst [vmem:[#allocation2 + $0x28] sm:$0xff] %v1274
          %1339 = vst [vmem:[#allocation2 + $0x30] sm:$0xff] %v1275
          %1340 = vst [vmem:[#allocation2 + $0x38] sm:$0xff] %v1276
          %1341 = vst [vmem:[#allocation2 + $0x40] sm:$0xff] %v1277
          %1342 = vst [vmem:[#allocation2 + $0x48] sm:$0xff] %v1278
          %1343 = vst [vmem:[#allocation2 + $0x50] sm:$0xff] %v1279
          %1344 = vst [vmem:[#allocation2 + $0x58] sm:$0xff] %v1280
          %1345 = vst [vmem:[#allocation2 + $0x60] sm:$0xff] %v1281
          %1346 = vst [vmem:[#allocation2 + $0x68] sm:$0xff] %v1282
          %1347 = vst [vmem:[#allocation2 + $0x70] sm:$0xff] %v1283
          %1348 = vst [vmem:[#allocation2 + $0x78] sm:$0xff] %v1284
          %1349 = vst [vmem:[#allocation2 + $0x80] sm:$0xff] %v1285
          %1350 = vst [vmem:[#allocation2 + $0x88] sm:$0xff] %v1286
          %1351 = vst [vmem:[#allocation2 + $0x90] sm:$0xff] %v1287
          %1352 = vst [vmem:[#allocation2 + $0x98] sm:$0xff] %v1288
          %1353 = vst [vmem:[#allocation2 + $0xa0] sm:$0xff] %v1289
          %1354 = vst [vmem:[#allocation2 + $0xa8] sm:$0xff] %v1290
          %1355 = vst [vmem:[#allocation2 + $0xb0] sm:$0xff] %v1291
          %1356 = vst [vmem:[#allocation2 + $0xb8] sm:$0xff] %v1292
          %1357 = vst [vmem:[#allocation2 + $0xc0] sm:$0xff] %v1293
          %1358 = vst [vmem:[#allocation2 + $0xc8] sm:$0xff] %v1294
          %1359 = vst [vmem:[#allocation2 + $0xd0] sm:$0xff] %v1295
          %1360 = vst [vmem:[#allocation2 + $0xd8] sm:$0xff] %v1296
          %1361 = vst [vmem:[#allocation2 + $0xe0] sm:$0xff] %v1297
          %1362 = vst [vmem:[#allocation2 + $0xe8] sm:$0xff] %v1298
          %1363 = vst [vmem:[#allocation2 + $0xf0] sm:$0xff] %v1299
          %1364 = vst [vmem:[#allocation2 + $0xf8] sm:$0xff] %v1300
          %1365 = vst [vmem:[#allocation2 + $0x100] sm:$0xff] %v1301
          %1366 = vst [vmem:[#allocation2 + $0x108] sm:$0xff] %v1302
          %1367 = vst [vmem:[#allocation2 + $0x110] sm:$0xff] %v1303
          %1368 = vst [vmem:[#allocation2 + $0x118] sm:$0xff] %v1304
          %1369 = vst [vmem:[#allocation2 + $0x120] sm:$0xff] %v1305
          %1370 = vst [vmem:[#allocation2 + $0x128] sm:$0xff] %v1306
          %1371 = vst [vmem:[#allocation2 + $0x130] sm:$0xff] %v1307
          %1372 = vst [vmem:[#allocation2 + $0x138] sm:$0xff] %v1308
          %1373 = vst [vmem:[#allocation2 + $0x140] sm:$0xff] %v1309
          %1374 = vst [vmem:[#allocation2 + $0x148] sm:$0xff] %v1310
          %1375 = vst [vmem:[#allocation2 + $0x150] sm:$0xff] %v1311
          %1376 = vst [vmem:[#allocation2 + $0x158] sm:$0xff] %v1312
          %1377 = vst [vmem:[#allocation2 + $0x160] sm:$0xff] %v1313
          %1378 = vst [vmem:[#allocation2 + $0x168] sm:$0xff] %v1314
          %1379 = vst [vmem:[#allocation2 + $0x170] sm:$0xff] %v1315
          %1380 = vst [vmem:[#allocation2 + $0x178] sm:$0xff] %v1316
          %1381 = vst [vmem:[#allocation2 + $0x180] sm:$0xff] %v1317
          %1382 = vst [vmem:[#allocation2 + $0x188] sm:$0xff] %v1318
          %1383 = vst [vmem:[#allocation2 + $0x190] sm:$0xff] %v1319
          %1384 = vst [vmem:[#allocation2 + $0x198] sm:$0xff] %v1320
          %1385 = vst [vmem:[#allocation2 + $0x1a0] sm:$0xff] %v1321
          %1386 = vst [vmem:[#allocation2 + $0x1a8] sm:$0xff] %v1322
          %1387 = vst [vmem:[#allocation2 + $0x1b0] sm:$0xff] %v1323
          %1388 = vst [vmem:[#allocation2 + $0x1b8] sm:$0xff] %v1324
          %1389 = vst [vmem:[#allocation2 + $0x1c0] sm:$0xff] %v1325
          %1390 = vst [vmem:[#allocation2 + $0x1c8] sm:$0xff] %v1326
          %1391 = vst [vmem:[#allocation2 + $0x1d0] sm:$0xff] %v1327
          %1392 = vst [vmem:[#allocation2 + $0x1d8] sm:$0xff] %v1328
          %1393 = vst [vmem:[#allocation2 + $0x1e0] sm:$0xff] %v1329
          %1394 = vst [vmem:[#allocation2 + $0x1e8] sm:$0xff] %v1330
          %1395 = vst [vmem:[#allocation2 + $0x1f0] sm:$0xff] %v1331
          %1396 = vst [vmem:[#allocation2 + $0x1f8] sm:$0xff] %v1332
          %v1397 = vld [vmem:[#allocation2] sm:$0xff]
          %v1398 = vld [vmem:[#allocation2 + $0x8] sm:$0xff]
          %v1399 = vld [vmem:[#allocation2 + $0x10] sm:$0xff]
          %v1400 = vld [vmem:[#allocation2 + $0x18] sm:$0xff]
          %v1401 = vld [vmem:[#allocation2 + $0x20] sm:$0xff]
          %v1402 = vld [vmem:[#allocation2 + $0x28] sm:$0xff]
          %v1403 = vld [vmem:[#allocation2 + $0x30] sm:$0xff]
          %v1404 = vld [vmem:[#allocation2 + $0x38] sm:$0xff]
          %v1405 = vld [vmem:[#allocation2 + $0x40] sm:$0xff]
          %v1406 = vld [vmem:[#allocation2 + $0x48] sm:$0xff]
          %v1407 = vld [vmem:[#allocation2 + $0x50] sm:$0xff]
          %v1408 = vld [vmem:[#allocation2 + $0x58] sm:$0xff]
          %v1409 = vld [vmem:[#allocation2 + $0x60] sm:$0xff]
          %v1410 = vld [vmem:[#allocation2 + $0x68] sm:$0xff]
          %v1411 = vld [vmem:[#allocation2 + $0x70] sm:$0xff]
          %v1412 = vld [vmem:[#allocation2 + $0x78] sm:$0xff]
          %v1413 = vld [vmem:[#allocation2 + $0x80] sm:$0xff]
          %v1414 = vld [vmem:[#allocation2 + $0x88] sm:$0xff]
          %v1415 = vld [vmem:[#allocation2 + $0x90] sm:$0xff]
          %v1416 = vld [vmem:[#allocation2 + $0x98] sm:$0xff]
          %v1417 = vld [vmem:[#allocation2 + $0xa0] sm:$0xff]
          %v1418 = vld [vmem:[#allocation2 + $0xa8] sm:$0xff]
          %v1419 = vld [vmem:[#allocation2 + $0xb0] sm:$0xff]
          %v1420 = vld [vmem:[#allocation2 + $0xb8] sm:$0xff]
          %v1421 = vld [vmem:[#allocation2 + $0xc0] sm:$0xff]
          %v1422 = vld [vmem:[#allocation2 + $0xc8] sm:$0xff]
          %v1423 = vld [vmem:[#allocation2 + $0xd0] sm:$0xff]
          %v1424 = vld [vmem:[#allocation2 + $0xd8] sm:$0xff]
          %v1425 = vld [vmem:[#allocation2 + $0xe0] sm:$0xff]
          %v1426 = vld [vmem:[#allocation2 + $0xe8] sm:$0xff]
          %v1427 = vld [vmem:[#allocation2 + $0xf0] sm:$0xff]
          %v1428 = vld [vmem:[#allocation2 + $0xf8] sm:$0xff]
          %v1429 = vld [vmem:[#allocation2 + $0x100] sm:$0xff]
          %v1430 = vld [vmem:[#allocation2 + $0x108] sm:$0xff]
          %v1431 = vld [vmem:[#allocation2 + $0x110] sm:$0xff]
          %v1432 = vld [vmem:[#allocation2 + $0x118] sm:$0xff]
          %v1433 = vld [vmem:[#allocation2 + $0x120] sm:$0xff]
          %v1434 = vld [vmem:[#allocation2 + $0x128] sm:$0xff]
          %v1435 = vld [vmem:[#allocation2 + $0x130] sm:$0xff]
          %v1436 = vld [vmem:[#allocation2 + $0x138] sm:$0xff]
          %v1437 = vld [vmem:[#allocation2 + $0x140] sm:$0xff]
          %v1438 = vld [vmem:[#allocation2 + $0x148] sm:$0xff]
          %v1439 = vld [vmem:[#allocation2 + $0x150] sm:$0xff]
          %v1440 = vld [vmem:[#allocation2 + $0x158] sm:$0xff]
          %v1441 = vld [vmem:[#allocation2 + $0x160] sm:$0xff]
          %v1442 = vld [vmem:[#allocation2 + $0x168] sm:$0xff]
          %v1443 = vld [vmem:[#allocation2 + $0x170] sm:$0xff]
          %v1444 = vld [vmem:[#allocation2 + $0x178] sm:$0xff]
          %v1445 = vld [vmem:[#allocation2 + $0x180] sm:$0xff]
          %v1446 = vld [vmem:[#allocation2 + $0x188] sm:$0xff]
          %v1447 = vld [vmem:[#allocation2 + $0x190] sm:$0xff]
          %v1448 = vld [vmem:[#allocation2 + $0x198] sm:$0xff]
          %v1449 = vld [vmem:[#allocation2 + $0x1a0] sm:$0xff]
          %v1450 = vld [vmem:[#allocation2 + $0x1a8] sm:$0xff]
          %v1451 = vld [vmem:[#allocation2 + $0x1b0] sm:$0xff]
          %v1452 = vld [vmem:[#allocation2 + $0x1b8] sm:$0xff]
          %v1453 = vld [vmem:[#allocation2 + $0x1c0] sm:$0xff]
          %v1454 = vld [vmem:[#allocation2 + $0x1c8] sm:$0xff]
          %v1455 = vld [vmem:[#allocation2 + $0x1d0] sm:$0xff]
          %v1456 = vld [vmem:[#allocation2 + $0x1d8] sm:$0xff]
          %v1457 = vld [vmem:[#allocation2 + $0x1e0] sm:$0xff]
          %v1458 = vld [vmem:[#allocation2 + $0x1e8] sm:$0xff]
          %v1459 = vld [vmem:[#allocation2 + $0x1f0] sm:$0xff]
          %v1460 = vld [vmem:[#allocation2 + $0x1f8] sm:$0xff]
          %v1461 = vpack.c.bf16 %v1399, %v1397
          %v1462 = vpack.c.bf16 %v1400, %v1398
          %v1463 = vpack.c.bf16 %v1403, %v1401
          %v1464 = vpack.c.bf16 %v1404, %v1402
          %v1465 = vpack.c.bf16 %v1407, %v1405
          %v1466 = vpack.c.bf16 %v1408, %v1406
          %v1467 = vpack.c.bf16 %v1411, %v1409
          %v1468 = vpack.c.bf16 %v1412, %v1410
          %v1469 = vpack.c.bf16 %v1415, %v1413
          %v1470 = vpack.c.bf16 %v1416, %v1414
          %v1471 = vpack.c.bf16 %v1419, %v1417
          %v1472 = vpack.c.bf16 %v1420, %v1418
          %v1473 = vpack.c.bf16 %v1423, %v1421
          %v1474 = vpack.c.bf16 %v1424, %v1422
          %v1475 = vpack.c.bf16 %v1427, %v1425
          %v1476 = vpack.c.bf16 %v1428, %v1426
          %v1477 = vpack.c.bf16 %v1431, %v1429
          %v1478 = vpack.c.bf16 %v1432, %v1430
          %v1479 = vpack.c.bf16 %v1435, %v1433
          %v1480 = vpack.c.bf16 %v1436, %v1434
          %v1481 = vpack.c.bf16 %v1439, %v1437
          %v1482 = vpack.c.bf16 %v1440, %v1438
          %v1483 = vpack.c.bf16 %v1443, %v1441
          %v1484 = vpack.c.bf16 %v1444, %v1442
          %v1485 = vpack.c.bf16 %v1447, %v1445
          %v1486 = vpack.c.bf16 %v1448, %v1446
          %v1487 = vpack.c.bf16 %v1451, %v1449
          %v1488 = vpack.c.bf16 %v1452, %v1450
          %v1489 = vpack.c.bf16 %v1455, %v1453
          %v1490 = vpack.c.bf16 %v1456, %v1454
          %v1491 = vpack.c.bf16 %v1459, %v1457
          %v1492 = vpack.c.bf16 %v1460, %v1458
          %v1493 = vld [vmem:[#allocation8] sm:$0xff]
          %v1494 = vld [vmem:[#allocation8 + $0x8] sm:$0xff]
          %v1495 = vld [vmem:[#allocation8 + $0x10] sm:$0xff]
          %v1496 = vld [vmem:[#allocation8 + $0x18] sm:$0xff]
          %v1497 = vld [vmem:[#allocation8 + $0x20] sm:$0xff]
          %v1498 = vld [vmem:[#allocation8 + $0x28] sm:$0xff]
          %v1499 = vld [vmem:[#allocation8 + $0x30] sm:$0xff]
          %v1500 = vld [vmem:[#allocation8 + $0x38] sm:$0xff]
          %v1501 = vld [vmem:[#allocation8 + $0x40] sm:$0xff]
          %v1502 = vld [vmem:[#allocation8 + $0x48] sm:$0xff]
          %v1503 = vld [vmem:[#allocation8 + $0x50] sm:$0xff]
          %v1504 = vld [vmem:[#allocation8 + $0x58] sm:$0xff]
          %v1505 = vld [vmem:[#allocation8 + $0x60] sm:$0xff]
          %v1506 = vld [vmem:[#allocation8 + $0x68] sm:$0xff]
          %v1507 = vld [vmem:[#allocation8 + $0x70] sm:$0xff]
          %v1508 = vld [vmem:[#allocation8 + $0x78] sm:$0xff]
          %v1509 = vld [vmem:[#allocation8 + $0x80] sm:$0xff]
          %v1510 = vld [vmem:[#allocation8 + $0x88] sm:$0xff]
          %v1511 = vld [vmem:[#allocation8 + $0x90] sm:$0xff]
          %v1512 = vld [vmem:[#allocation8 + $0x98] sm:$0xff]
          %v1513 = vld [vmem:[#allocation8 + $0xa0] sm:$0xff]
          %v1514 = vld [vmem:[#allocation8 + $0xa8] sm:$0xff]
          %v1515 = vld [vmem:[#allocation8 + $0xb0] sm:$0xff]
          %v1516 = vld [vmem:[#allocation8 + $0xb8] sm:$0xff]
          %v1517 = vld [vmem:[#allocation8 + $0xc0] sm:$0xff]
          %v1518 = vld [vmem:[#allocation8 + $0xc8] sm:$0xff]
          %v1519 = vld [vmem:[#allocation8 + $0xd0] sm:$0xff]
          %v1520 = vld [vmem:[#allocation8 + $0xd8] sm:$0xff]
          %v1521 = vld [vmem:[#allocation8 + $0xe0] sm:$0xff]
          %v1522 = vld [vmem:[#allocation8 + $0xe8] sm:$0xff]
          %v1523 = vld [vmem:[#allocation8 + $0xf0] sm:$0xff]
          %v1524 = vld [vmem:[#allocation8 + $0xf8] sm:$0xff]
          %v1526 = vperm.slane %v1195, 0
          %v1527 = vperm.slane %v1195, 1
          %v1562 = vunpack.c.l.b16 %v1493
          %v1563 = vunpack.c.h.b16 %v1493
          %v1564 = vunpack.c.l.b16 %v1494
          %v1565 = vunpack.c.h.b16 %v1494
          %v1566 = vunpack.c.l.b16 %v1495
          %v1567 = vunpack.c.h.b16 %v1495
          %v1568 = vunpack.c.l.b16 %v1496
          %v1569 = vunpack.c.h.b16 %v1496
          %v1570 = vunpack.c.l.b16 %v1497
          %v1571 = vunpack.c.h.b16 %v1497
          %v1572 = vunpack.c.l.b16 %v1498
          %v1573 = vunpack.c.h.b16 %v1498
          %v1574 = vunpack.c.l.b16 %v1499
          %v1575 = vunpack.c.h.b16 %v1499
          %v1576 = vunpack.c.l.b16 %v1500
          %v1577 = vunpack.c.h.b16 %v1500
          %v1578 = vunpack.c.l.b16 %v1501
          %v1579 = vunpack.c.h.b16 %v1501
          %v1580 = vunpack.c.l.b16 %v1502
          %v1581 = vunpack.c.h.b16 %v1502
          %v1582 = vunpack.c.l.b16 %v1503
          %v1583 = vunpack.c.h.b16 %v1503
          %v1584 = vunpack.c.l.b16 %v1504
          %v1585 = vunpack.c.h.b16 %v1504
          %v1586 = vunpack.c.l.b16 %v1505
          %v1587 = vunpack.c.h.b16 %v1505
          %v1588 = vunpack.c.l.b16 %v1506
          %v1589 = vunpack.c.h.b16 %v1506
          %v1590 = vunpack.c.l.b16 %v1507
          %v1591 = vunpack.c.h.b16 %v1507
          %v1592 = vunpack.c.l.b16 %v1508
          %v1593 = vunpack.c.h.b16 %v1508
          %v1594 = vunpack.c.l.b16 %v1509
          %v1595 = vunpack.c.h.b16 %v1509
          %v1596 = vunpack.c.l.b16 %v1510
          %v1597 = vunpack.c.h.b16 %v1510
          %v1598 = vunpack.c.l.b16 %v1511
          %v1599 = vunpack.c.h.b16 %v1511
          %v1600 = vunpack.c.l.b16 %v1512
          %v1601 = vunpack.c.h.b16 %v1512
          %v1602 = vunpack.c.l.b16 %v1513
          %v1603 = vunpack.c.h.b16 %v1513
          %v1604 = vunpack.c.l.b16 %v1514
          %v1605 = vunpack.c.h.b16 %v1514
          %v1606 = vunpack.c.l.b16 %v1515
          %v1607 = vunpack.c.h.b16 %v1515
          %v1608 = vunpack.c.l.b16 %v1516
          %v1609 = vunpack.c.h.b16 %v1516
          %v1610 = vunpack.c.l.b16 %v1517
          %v1611 = vunpack.c.h.b16 %v1517
          %v1612 = vunpack.c.l.b16 %v1518
          %v1613 = vunpack.c.h.b16 %v1518
          %v1614 = vunpack.c.l.b16 %v1519
          %v1615 = vunpack.c.h.b16 %v1519
          %v1616 = vunpack.c.l.b16 %v1520
          %v1617 = vunpack.c.h.b16 %v1520
          %v1618 = vunpack.c.l.b16 %v1521
          %v1619 = vunpack.c.h.b16 %v1521
          %v1620 = vunpack.c.l.b16 %v1522
          %v1621 = vunpack.c.h.b16 %v1522
          %v1622 = vunpack.c.l.b16 %v1523
          %v1623 = vunpack.c.h.b16 %v1523
          %v1624 = vunpack.c.l.b16 %v1524
          %v1625 = vunpack.c.h.b16 %v1524
          %v1626 = vpack.c.b16 %v1564, %v1562
          %v1627 = vpack.c.b16 %v1565, %v1563
          %v1628 = vpack.c.b16 %v1568, %v1566
          %v1629 = vpack.c.b16 %v1569, %v1567
          %v1630 = vpack.c.b16 %v1572, %v1570
          %v1631 = vpack.c.b16 %v1573, %v1571
          %v1632 = vpack.c.b16 %v1576, %v1574
          %v1633 = vpack.c.b16 %v1577, %v1575
          %v1634 = vpack.c.b16 %v1580, %v1578
          %v1635 = vpack.c.b16 %v1581, %v1579
          %v1636 = vpack.c.b16 %v1584, %v1582
          %v1637 = vpack.c.b16 %v1585, %v1583
          %v1638 = vpack.c.b16 %v1588, %v1586
          %v1639 = vpack.c.b16 %v1589, %v1587
          %v1640 = vpack.c.b16 %v1592, %v1590
          %v1641 = vpack.c.b16 %v1593, %v1591
          %v1642 = vpack.c.b16 %v1596, %v1594
          %v1643 = vpack.c.b16 %v1597, %v1595
          %v1644 = vpack.c.b16 %v1600, %v1598
          %v1645 = vpack.c.b16 %v1601, %v1599
          %v1646 = vpack.c.b16 %v1604, %v1602
          %v1647 = vpack.c.b16 %v1605, %v1603
          %v1648 = vpack.c.b16 %v1608, %v1606
          %v1649 = vpack.c.b16 %v1609, %v1607
          %v1650 = vpack.c.b16 %v1612, %v1610
          %v1651 = vpack.c.b16 %v1613, %v1611
          %v1652 = vpack.c.b16 %v1616, %v1614
          %v1653 = vpack.c.b16 %v1617, %v1615
          %v1654 = vpack.c.b16 %v1620, %v1618
          %v1655 = vpack.c.b16 %v1621, %v1619
          %v1656 = vpack.c.b16 %v1624, %v1622
          %v1657 = vpack.c.b16 %v1625, %v1623
          %1690 = vmatpush.bf16.msra.mxu0 %v1640
          %1691 = vmatpush.bf16.msra.mxu0 %v1638
          %1692 = vmatpush.bf16.msra.mxu0 %v1636
          %1693 = vmatpush.bf16.msra.mxu0 %v1634
          %1694 = vmatpush.bf16.msra.mxu0 %v1632
          %1695 = vmatpush.bf16.msra.mxu0 %v1630
          %1696 = vmatpush.bf16.msra.mxu0 %v1628
          %1697 = vmatpush.bf16.msra.mxu0 %v1626
          %1698 = vmatmul.bf16.gmra.mxu0 %v1461
          %v1699 = vpop.f32.mrf.mxu0
          %v1700 = vadd.f32 %v1526, %v1699
          %v1701 = vpop.f32.mrf.mxu0
          %v1702 = vadd.f32 %v1526, %v1701
          %1703 = vmatmul.bf16.gmra.mxu0 %v1463
          %v1704 = vpop.f32.mrf.mxu0
          %v1705 = vadd.f32 %v1526, %v1704
          %v1706 = vpop.f32.mrf.mxu0
          %v1707 = vadd.f32 %v1526, %v1706
          %1708 = vmatmul.bf16.gmra.mxu0 %v1465
          %v1709 = vpop.f32.mrf.mxu0
          %v1710 = vadd.f32 %v1526, %v1709
          %v1711 = vpop.f32.mrf.mxu0
          %v1712 = vadd.f32 %v1526, %v1711
          %1713 = vmatmul.bf16.gmra.mxu0 %v1467
          %v1714 = vpop.f32.mrf.mxu0
          %v1715 = vadd.f32 %v1526, %v1714
          %v1716 = vpop.f32.mrf.mxu0
          %v1717 = vadd.f32 %v1526, %v1716
          %1718 = vmatmul.bf16.gmra.mxu0 %v1469
          %v1719 = vpop.f32.mrf.mxu0
          %v1720 = vadd.f32 %v1526, %v1719
          %v1721 = vpop.f32.mrf.mxu0
          %v1722 = vadd.f32 %v1526, %v1721
          %1723 = vmatmul.bf16.gmra.mxu0 %v1471
          %v1724 = vpop.f32.mrf.mxu0
          %v1725 = vadd.f32 %v1526, %v1724
          %v1726 = vpop.f32.mrf.mxu0
          %v1727 = vadd.f32 %v1526, %v1726
          %1728 = vmatmul.bf16.gmra.mxu0 %v1473
          %v1729 = vpop.f32.mrf.mxu0
          %v1730 = vadd.f32 %v1526, %v1729
          %v1731 = vpop.f32.mrf.mxu0
          %v1732 = vadd.f32 %v1526, %v1731
          %1733 = vmatmul.bf16.gmra.mxu0 %v1475
          %v1734 = vpop.f32.mrf.mxu0
          %v1735 = vadd.f32 %v1526, %v1734
          %v1736 = vpop.f32.mrf.mxu0
          %v1737 = vadd.f32 %v1526, %v1736
          %1738 = vmatmul.bf16.gmra.mxu0 %v1477
          %v1739 = vpop.f32.mrf.mxu0
          %v1740 = vadd.f32 %v1526, %v1739
          %v1741 = vpop.f32.mrf.mxu0
          %v1742 = vadd.f32 %v1526, %v1741
          %1743 = vmatmul.bf16.gmra.mxu0 %v1479
          %v1744 = vpop.f32.mrf.mxu0
          %v1745 = vadd.f32 %v1526, %v1744
          %v1746 = vpop.f32.mrf.mxu0
          %v1747 = vadd.f32 %v1526, %v1746
          %1748 = vmatmul.bf16.gmra.mxu0 %v1481
          %v1749 = vpop.f32.mrf.mxu0
          %v1750 = vadd.f32 %v1526, %v1749
          %v1751 = vpop.f32.mrf.mxu0
          %v1752 = vadd.f32 %v1526, %v1751
          %1753 = vmatmul.bf16.gmra.mxu0 %v1483
          %v1754 = vpop.f32.mrf.mxu0
          %v1755 = vadd.f32 %v1526, %v1754
          %v1756 = vpop.f32.mrf.mxu0
          %v1757 = vadd.f32 %v1526, %v1756
          %1758 = vmatmul.bf16.gmra.mxu0 %v1485
          %v1759 = vpop.f32.mrf.mxu0
          %v1760 = vadd.f32 %v1526, %v1759
          %v1761 = vpop.f32.mrf.mxu0
          %v1762 = vadd.f32 %v1526, %v1761
          %1763 = vmatmul.bf16.gmra.mxu0 %v1487
          %v1764 = vpop.f32.mrf.mxu0
          %v1765 = vadd.f32 %v1526, %v1764
          %v1766 = vpop.f32.mrf.mxu0
          %v1767 = vadd.f32 %v1526, %v1766
          %1768 = vmatmul.bf16.gmra.mxu0 %v1489
          %v1769 = vpop.f32.mrf.mxu0
          %v1770 = vadd.f32 %v1526, %v1769
          %v1771 = vpop.f32.mrf.mxu0
          %v1772 = vadd.f32 %v1526, %v1771
          %1773 = vmatmul.bf16.gmra.mxu0 %v1491
          %v1774 = vpop.f32.mrf.mxu0
          %v1775 = vadd.f32 %v1526, %v1774
          %v1776 = vpop.f32.mrf.mxu0
          %v1777 = vadd.f32 %v1526, %v1776
          %1778 = vdwg.mxu0
          %1779 = vmatpush.bf16.msra.mxu0 %v1656
          %1780 = vmatpush.bf16.msra.mxu0 %v1654
          %1781 = vmatpush.bf16.msra.mxu0 %v1652
          %1782 = vmatpush.bf16.msra.mxu0 %v1650
          %1783 = vmatpush.bf16.msra.mxu0 %v1648
          %1784 = vmatpush.bf16.msra.mxu0 %v1646
          %1785 = vmatpush.bf16.msra.mxu0 %v1644
          %1786 = vmatpush.bf16.msra.mxu0 %v1642
          %1787 = vmatmul.bf16.gmra.mxu0 %v1462
          %v1788 = vpop.f32.mrf.mxu0
          %v1789 = vadd.f32 %v1700, %v1788
          %v1790 = vpop.f32.mrf.mxu0
          %v1791 = vadd.f32 %v1702, %v1790
          %1792 = vmatmul.bf16.gmra.mxu0 %v1464
          %v1793 = vpop.f32.mrf.mxu0
          %v1794 = vadd.f32 %v1705, %v1793
          %v1795 = vpop.f32.mrf.mxu0
          %v1796 = vadd.f32 %v1707, %v1795
          %1797 = vmatmul.bf16.gmra.mxu0 %v1466
          %v1798 = vpop.f32.mrf.mxu0
          %v1799 = vadd.f32 %v1710, %v1798
          %v1800 = vpop.f32.mrf.mxu0
          %v1801 = vadd.f32 %v1712, %v1800
          %1802 = vmatmul.bf16.gmra.mxu0 %v1468
          %v1803 = vpop.f32.mrf.mxu0
          %v1804 = vadd.f32 %v1715, %v1803
          %v1805 = vpop.f32.mrf.mxu0
          %v1806 = vadd.f32 %v1717, %v1805
          %1807 = vmatmul.bf16.gmra.mxu0 %v1470
          %v1808 = vpop.f32.mrf.mxu0
          %v1809 = vadd.f32 %v1720, %v1808
          %v1810 = vpop.f32.mrf.mxu0
          %v1811 = vadd.f32 %v1722, %v1810
          %1812 = vmatmul.bf16.gmra.mxu0 %v1472
          %v1813 = vpop.f32.mrf.mxu0
          %v1814 = vadd.f32 %v1725, %v1813
          %v1815 = vpop.f32.mrf.mxu0
          %v1816 = vadd.f32 %v1727, %v1815
          %1817 = vmatmul.bf16.gmra.mxu0 %v1474
          %v1818 = vpop.f32.mrf.mxu0
          %v1819 = vadd.f32 %v1730, %v1818
          %v1820 = vpop.f32.mrf.mxu0
          %v1821 = vadd.f32 %v1732, %v1820
          %1822 = vmatmul.bf16.gmra.mxu0 %v1476
          %v1823 = vpop.f32.mrf.mxu0
          %v1824 = vadd.f32 %v1735, %v1823
          %v1825 = vpop.f32.mrf.mxu0
          %v1826 = vadd.f32 %v1737, %v1825
          %1827 = vmatmul.bf16.gmra.mxu0 %v1478
          %v1828 = vpop.f32.mrf.mxu0
          %v1829 = vadd.f32 %v1740, %v1828
          %v1830 = vpop.f32.mrf.mxu0
          %v1831 = vadd.f32 %v1742, %v1830
          %1832 = vmatmul.bf16.gmra.mxu0 %v1480
          %v1833 = vpop.f32.mrf.mxu0
          %v1834 = vadd.f32 %v1745, %v1833
          %v1835 = vpop.f32.mrf.mxu0
          %v1836 = vadd.f32 %v1747, %v1835
          %1837 = vmatmul.bf16.gmra.mxu0 %v1482
          %v1838 = vpop.f32.mrf.mxu0
          %v1839 = vadd.f32 %v1750, %v1838
          %v1840 = vpop.f32.mrf.mxu0
          %v1841 = vadd.f32 %v1752, %v1840
          %1842 = vmatmul.bf16.gmra.mxu0 %v1484
          %v1843 = vpop.f32.mrf.mxu0
          %v1844 = vadd.f32 %v1755, %v1843
          %v1845 = vpop.f32.mrf.mxu0
          %v1846 = vadd.f32 %v1757, %v1845
          %1847 = vmatmul.bf16.gmra.mxu0 %v1486
          %v1848 = vpop.f32.mrf.mxu0
          %v1849 = vadd.f32 %v1760, %v1848
          %v1850 = vpop.f32.mrf.mxu0
          %v1851 = vadd.f32 %v1762, %v1850
          %1852 = vmatmul.bf16.gmra.mxu0 %v1488
          %v1853 = vpop.f32.mrf.mxu0
          %v1854 = vadd.f32 %v1765, %v1853
          %v1855 = vpop.f32.mrf.mxu0
          %v1856 = vadd.f32 %v1767, %v1855
          %1857 = vmatmul.bf16.gmra.mxu0 %v1490
          %v1858 = vpop.f32.mrf.mxu0
          %v1859 = vadd.f32 %v1770, %v1858
          %v1860 = vpop.f32.mrf.mxu0
          %v1861 = vadd.f32 %v1772, %v1860
          %1862 = vmatmul.bf16.gmra.mxu0 %v1492
          %v1863 = vpop.f32.mrf.mxu0
          %v1864 = vadd.f32 %v1775, %v1863
          %v1865 = vpop.f32.mrf.mxu0
          %v1866 = vadd.f32 %v1777, %v1865
          %1867 = vdwg.mxu0
          %1868 = vmatpush.bf16.msra.mxu0 %v1641
          %1869 = vmatpush.bf16.msra.mxu0 %v1639
          %1870 = vmatpush.bf16.msra.mxu0 %v1637
          %1871 = vmatpush.bf16.msra.mxu0 %v1635
          %1872 = vmatpush.bf16.msra.mxu0 %v1633
          %1873 = vmatpush.bf16.msra.mxu0 %v1631
          %1874 = vmatpush.bf16.msra.mxu0 %v1629
          %1875 = vmatpush.bf16.msra.mxu0 %v1627
          %1876 = vmatmul.bf16.gmra.mxu0 %v1461
          %v1877 = vpop.f32.mrf.mxu0
          %v1878 = vadd.f32 %v1527, %v1877
          %v1879 = vpop.f32.mrf.mxu0
          %v1880 = vadd.f32 %v1527, %v1879
          %1881 = vmatmul.bf16.gmra.mxu0 %v1463
          %v1882 = vpop.f32.mrf.mxu0
          %v1883 = vadd.f32 %v1527, %v1882
          %v1884 = vpop.f32.mrf.mxu0
          %v1885 = vadd.f32 %v1527, %v1884
          %1886 = vmatmul.bf16.gmra.mxu0 %v1465
          %v1887 = vpop.f32.mrf.mxu0
          %v1888 = vadd.f32 %v1527, %v1887
          %v1889 = vpop.f32.mrf.mxu0
          %v1890 = vadd.f32 %v1527, %v1889
          %1891 = vmatmul.bf16.gmra.mxu0 %v1467
          %v1892 = vpop.f32.mrf.mxu0
          %v1893 = vadd.f32 %v1527, %v1892
          %v1894 = vpop.f32.mrf.mxu0
          %v1895 = vadd.f32 %v1527, %v1894
          %1896 = vmatmul.bf16.gmra.mxu0 %v1469
          %v1897 = vpop.f32.mrf.mxu0
          %v1898 = vadd.f32 %v1527, %v1897
          %v1899 = vpop.f32.mrf.mxu0
          %v1900 = vadd.f32 %v1527, %v1899
          %1901 = vmatmul.bf16.gmra.mxu0 %v1471
          %v1902 = vpop.f32.mrf.mxu0
          %v1903 = vadd.f32 %v1527, %v1902
          %v1904 = vpop.f32.mrf.mxu0
          %v1905 = vadd.f32 %v1527, %v1904
          %1906 = vmatmul.bf16.gmra.mxu0 %v1473
          %v1907 = vpop.f32.mrf.mxu0
          %v1908 = vadd.f32 %v1527, %v1907
          %v1909 = vpop.f32.mrf.mxu0
          %v1910 = vadd.f32 %v1527, %v1909
          %1911 = vmatmul.bf16.gmra.mxu0 %v1475
          %v1912 = vpop.f32.mrf.mxu0
          %v1913 = vadd.f32 %v1527, %v1912
          %v1914 = vpop.f32.mrf.mxu0
          %v1915 = vadd.f32 %v1527, %v1914
          %1916 = vmatmul.bf16.gmra.mxu0 %v1477
          %v1917 = vpop.f32.mrf.mxu0
          %v1918 = vadd.f32 %v1527, %v1917
          %v1919 = vpop.f32.mrf.mxu0
          %v1920 = vadd.f32 %v1527, %v1919
          %1921 = vmatmul.bf16.gmra.mxu0 %v1479
          %v1922 = vpop.f32.mrf.mxu0
          %v1923 = vadd.f32 %v1527, %v1922
          %v1924 = vpop.f32.mrf.mxu0
          %v1925 = vadd.f32 %v1527, %v1924
          %1926 = vmatmul.bf16.gmra.mxu0 %v1481
          %v1927 = vpop.f32.mrf.mxu0
          %v1928 = vadd.f32 %v1527, %v1927
          %v1929 = vpop.f32.mrf.mxu0
          %v1930 = vadd.f32 %v1527, %v1929
          %1931 = vmatmul.bf16.gmra.mxu0 %v1483
          %v1932 = vpop.f32.mrf.mxu0
          %v1933 = vadd.f32 %v1527, %v1932
          %v1934 = vpop.f32.mrf.mxu0
          %v1935 = vadd.f32 %v1527, %v1934
          %1936 = vmatmul.bf16.gmra.mxu0 %v1485
          %v1937 = vpop.f32.mrf.mxu0
          %v1938 = vadd.f32 %v1527, %v1937
          %v1939 = vpop.f32.mrf.mxu0
          %v1940 = vadd.f32 %v1527, %v1939
          %1941 = vmatmul.bf16.gmra.mxu0 %v1487
          %v1942 = vpop.f32.mrf.mxu0
          %v1943 = vadd.f32 %v1527, %v1942
          %v1944 = vpop.f32.mrf.mxu0
          %v1945 = vadd.f32 %v1527, %v1944
          %1946 = vmatmul.bf16.gmra.mxu0 %v1489
          %v1947 = vpop.f32.mrf.mxu0
          %v1948 = vadd.f32 %v1527, %v1947
          %v1949 = vpop.f32.mrf.mxu0
          %v1950 = vadd.f32 %v1527, %v1949
          %1951 = vmatmul.bf16.gmra.mxu0 %v1491
          %v1952 = vpop.f32.mrf.mxu0
          %v1953 = vadd.f32 %v1527, %v1952
          %v1954 = vpop.f32.mrf.mxu0
          %v1955 = vadd.f32 %v1527, %v1954
          %1956 = vdwg.mxu0
          %1957 = vmatpush.bf16.msra.mxu0 %v1657
          %1958 = vmatpush.bf16.msra.mxu0 %v1655
          %1959 = vmatpush.bf16.msra.mxu0 %v1653
          %1960 = vmatpush.bf16.msra.mxu0 %v1651
          %1961 = vmatpush.bf16.msra.mxu0 %v1649
          %1962 = vmatpush.bf16.msra.mxu0 %v1647
          %1963 = vmatpush.bf16.msra.mxu0 %v1645
          %1964 = vmatpush.bf16.msra.mxu0 %v1643
          %1965 = vmatmul.bf16.gmra.mxu0 %v1462
          %v1966 = vpop.f32.mrf.mxu0
          %v1967 = vadd.f32 %v1878, %v1966
          %v1968 = vpop.f32.mrf.mxu0
          %v1969 = vadd.f32 %v1880, %v1968
          %1970 = vmatmul.bf16.gmra.mxu0 %v1464
          %v1971 = vpop.f32.mrf.mxu0
          %v1972 = vadd.f32 %v1883, %v1971
          %v1973 = vpop.f32.mrf.mxu0
          %v1974 = vadd.f32 %v1885, %v1973
          %1975 = vmatmul.bf16.gmra.mxu0 %v1466
          %v1976 = vpop.f32.mrf.mxu0
          %v1977 = vadd.f32 %v1888, %v1976
          %v1978 = vpop.f32.mrf.mxu0
          %v1979 = vadd.f32 %v1890, %v1978
          %1980 = vmatmul.bf16.gmra.mxu0 %v1468
          %v1981 = vpop.f32.mrf.mxu0
          %v1982 = vadd.f32 %v1893, %v1981
          %v1983 = vpop.f32.mrf.mxu0
          %v1984 = vadd.f32 %v1895, %v1983
          %1985 = vmatmul.bf16.gmra.mxu0 %v1470
          %v1986 = vpop.f32.mrf.mxu0
          %v1987 = vadd.f32 %v1898, %v1986
          %v1988 = vpop.f32.mrf.mxu0
          %v1989 = vadd.f32 %v1900, %v1988
          %1990 = vmatmul.bf16.gmra.mxu0 %v1472
          %v1991 = vpop.f32.mrf.mxu0
          %v1992 = vadd.f32 %v1903, %v1991
          %v1993 = vpop.f32.mrf.mxu0
          %v1994 = vadd.f32 %v1905, %v1993
          %1995 = vmatmul.bf16.gmra.mxu0 %v1474
          %v1996 = vpop.f32.mrf.mxu0
          %v1997 = vadd.f32 %v1908, %v1996
          %v1998 = vpop.f32.mrf.mxu0
          %v1999 = vadd.f32 %v1910, %v1998
          %2000 = vmatmul.bf16.gmra.mxu0 %v1476
          %v2001 = vpop.f32.mrf.mxu0
          %v2002 = vadd.f32 %v1913, %v2001
          %v2003 = vpop.f32.mrf.mxu0
          %v2004 = vadd.f32 %v1915, %v2003
          %2005 = vmatmul.bf16.gmra.mxu0 %v1478
          %v2006 = vpop.f32.mrf.mxu0
          %v2007 = vadd.f32 %v1918, %v2006
          %v2008 = vpop.f32.mrf.mxu0
          %v2009 = vadd.f32 %v1920, %v2008
          %2010 = vmatmul.bf16.gmra.mxu0 %v1480
          %v2011 = vpop.f32.mrf.mxu0
          %v2012 = vadd.f32 %v1923, %v2011
          %v2013 = vpop.f32.mrf.mxu0
          %v2014 = vadd.f32 %v1925, %v2013
          %2015 = vmatmul.bf16.gmra.mxu0 %v1482
          %v2016 = vpop.f32.mrf.mxu0
          %v2017 = vadd.f32 %v1928, %v2016
          %v2018 = vpop.f32.mrf.mxu0
          %v2019 = vadd.f32 %v1930, %v2018
          %2020 = vmatmul.bf16.gmra.mxu0 %v1484
          %v2021 = vpop.f32.mrf.mxu0
          %v2022 = vadd.f32 %v1933, %v2021
          %v2023 = vpop.f32.mrf.mxu0
          %v2024 = vadd.f32 %v1935, %v2023
          %2025 = vmatmul.bf16.gmra.mxu0 %v1486
          %v2026 = vpop.f32.mrf.mxu0
          %v2027 = vadd.f32 %v1938, %v2026
          %v2028 = vpop.f32.mrf.mxu0
          %v2029 = vadd.f32 %v1940, %v2028
          %2030 = vmatmul.bf16.gmra.mxu0 %v1488
          %v2031 = vpop.f32.mrf.mxu0
          %v2032 = vadd.f32 %v1943, %v2031
          %v2033 = vpop.f32.mrf.mxu0
          %v2034 = vadd.f32 %v1945, %v2033
          %2035 = vmatmul.bf16.gmra.mxu0 %v1490
          %v2036 = vpop.f32.mrf.mxu0
          %v2037 = vadd.f32 %v1948, %v2036
          %v2038 = vpop.f32.mrf.mxu0
          %v2039 = vadd.f32 %v1950, %v2038
          %2040 = vmatmul.bf16.gmra.mxu0 %v1492
          %v2041 = vpop.f32.mrf.mxu0
          %v2042 = vadd.f32 %v1953, %v2041
          %v2043 = vpop.f32.mrf.mxu0
          %v2044 = vadd.f32 %v1955, %v2043
          %2045 = vdwg.mxu0
          %v2046 = vxor.u32 %v1789, 2147483648
          %v2047 = vxor.u32 %v1967, 2147483648
          %v2048 = vxor.u32 %v1791, 2147483648
          %v2049 = vxor.u32 %v1969, 2147483648
          %v2050 = vxor.u32 %v1794, 2147483648
          %v2051 = vxor.u32 %v1972, 2147483648
          %v2052 = vxor.u32 %v1796, 2147483648
          %v2053 = vxor.u32 %v1974, 2147483648
          %v2054 = vxor.u32 %v1799, 2147483648
          %v2055 = vxor.u32 %v1977, 2147483648
          %v2056 = vxor.u32 %v1801, 2147483648
          %v2057 = vxor.u32 %v1979, 2147483648
          %v2058 = vxor.u32 %v1804, 2147483648
          %v2059 = vxor.u32 %v1982, 2147483648
          %v2060 = vxor.u32 %v1806, 2147483648
          %v2061 = vxor.u32 %v1984, 2147483648
          %v2062 = vxor.u32 %v1809, 2147483648
          %v2063 = vxor.u32 %v1987, 2147483648
          %v2064 = vxor.u32 %v1811, 2147483648
          %v2065 = vxor.u32 %v1989, 2147483648
          %v2066 = vxor.u32 %v1814, 2147483648
          %v2067 = vxor.u32 %v1992, 2147483648
          %v2068 = vxor.u32 %v1816, 2147483648
          %v2069 = vxor.u32 %v1994, 2147483648
          %v2070 = vxor.u32 %v1819, 2147483648
          %v2071 = vxor.u32 %v1997, 2147483648
          %v2072 = vxor.u32 %v1821, 2147483648
          %v2073 = vxor.u32 %v1999, 2147483648
          %v2074 = vxor.u32 %v1824, 2147483648
          %v2075 = vxor.u32 %v2002, 2147483648
          %v2076 = vxor.u32 %v1826, 2147483648
          %v2077 = vxor.u32 %v2004, 2147483648
          %v2078 = vxor.u32 %v1829, 2147483648
          %v2079 = vxor.u32 %v2007, 2147483648
          %v2080 = vxor.u32 %v1831, 2147483648
          %v2081 = vxor.u32 %v2009, 2147483648
          %v2082 = vxor.u32 %v1834, 2147483648
          %v2083 = vxor.u32 %v2012, 2147483648
          %v2084 = vxor.u32 %v1836, 2147483648
          %v2085 = vxor.u32 %v2014, 2147483648
          %v2086 = vxor.u32 %v1839, 2147483648
          %v2087 = vxor.u32 %v2017, 2147483648
          %v2088 = vxor.u32 %v1841, 2147483648
          %v2089 = vxor.u32 %v2019, 2147483648
          %v2090 = vxor.u32 %v1844, 2147483648
          %v2091 = vxor.u32 %v2022, 2147483648
          %v2092 = vxor.u32 %v1846, 2147483648
          %v2093 = vxor.u32 %v2024, 2147483648
          %v2094 = vxor.u32 %v1849, 2147483648
          %v2095 = vxor.u32 %v2027, 2147483648
          %v2096 = vxor.u32 %v1851, 2147483648
          %v2097 = vxor.u32 %v2029, 2147483648
          %v2098 = vxor.u32 %v1854, 2147483648
          %v2099 = vxor.u32 %v2032, 2147483648
          %v2100 = vxor.u32 %v1856, 2147483648
          %v2101 = vxor.u32 %v2034, 2147483648
          %v2102 = vxor.u32 %v1859, 2147483648
          %v2103 = vxor.u32 %v2037, 2147483648
          %v2104 = vxor.u32 %v1861, 2147483648
          %v2105 = vxor.u32 %v2039, 2147483648
          %v2106 = vxor.u32 %v1864, 2147483648
          %v2107 = vxor.u32 %v2042, 2147483648
          %v2108 = vxor.u32 %v1866, 2147483648
          %v2109 = vxor.u32 %v2044, 2147483648
          %v2110 = vmul.f32 %v2046, 1.442695
          %v2111 = vpow.pop %v2110
          %v2112 = vmul.f32 %v2047, 1.442695
          %v2113 = vpow.pop %v2112
          %v2114 = vmul.f32 %v2048, 1.442695
          %v2115 = vpow.pop %v2114
          %v2116 = vmul.f32 %v2049, 1.442695
          %v2117 = vpow.pop %v2116
          %v2118 = vmul.f32 %v2050, 1.442695
          %v2119 = vpow.pop %v2118
          %v2120 = vmul.f32 %v2051, 1.442695
          %v2121 = vpow.pop %v2120
          %v2122 = vmul.f32 %v2052, 1.442695
          %v2123 = vpow.pop %v2122
          %v2124 = vmul.f32 %v2053, 1.442695
          %v2125 = vpow.pop %v2124
          %v2126 = vmul.f32 %v2054, 1.442695
          %v2127 = vpow.pop %v2126
          %v2128 = vmul.f32 %v2055, 1.442695
          %v2129 = vpow.pop %v2128
          %v2130 = vmul.f32 %v2056, 1.442695
          %v2131 = vpow.pop %v2130
          %v2132 = vmul.f32 %v2057, 1.442695
          %v2133 = vpow.pop %v2132
          %v2134 = vmul.f32 %v2058, 1.442695
          %v2135 = vpow.pop %v2134
          %v2136 = vmul.f32 %v2059, 1.442695
          %v2137 = vpow.pop %v2136
          %v2138 = vmul.f32 %v2060, 1.442695
          %v2139 = vpow.pop %v2138
          %v2140 = vmul.f32 %v2061, 1.442695
          %v2141 = vpow.pop %v2140
          %v2142 = vmul.f32 %v2062, 1.442695
          %v2143 = vpow.pop %v2142
          %v2144 = vmul.f32 %v2063, 1.442695
          %v2145 = vpow.pop %v2144
          %v2146 = vmul.f32 %v2064, 1.442695
          %v2147 = vpow.pop %v2146
          %v2148 = vmul.f32 %v2065, 1.442695
          %v2149 = vpow.pop %v2148
          %v2150 = vmul.f32 %v2066, 1.442695
          %v2151 = vpow.pop %v2150
          %v2152 = vmul.f32 %v2067, 1.442695
          %v2153 = vpow.pop %v2152
          %v2154 = vmul.f32 %v2068, 1.442695
          %v2155 = vpow.pop %v2154
          %v2156 = vmul.f32 %v2069, 1.442695
          %v2157 = vpow.pop %v2156
          %v2158 = vmul.f32 %v2070, 1.442695
          %v2159 = vpow.pop %v2158
          %v2160 = vmul.f32 %v2071, 1.442695
          %v2161 = vpow.pop %v2160
          %v2162 = vmul.f32 %v2072, 1.442695
          %v2163 = vpow.pop %v2162
          %v2164 = vmul.f32 %v2073, 1.442695
          %v2165 = vpow.pop %v2164
          %v2166 = vmul.f32 %v2074, 1.442695
          %v2167 = vpow.pop %v2166
          %v2168 = vmul.f32 %v2075, 1.442695
          %v2169 = vpow.pop %v2168
          %v2170 = vmul.f32 %v2076, 1.442695
          %v2171 = vpow.pop %v2170
          %v2172 = vmul.f32 %v2077, 1.442695
          %v2173 = vpow.pop %v2172
          %v2174 = vmul.f32 %v2078, 1.442695
          %v2175 = vpow.pop %v2174
          %v2176 = vmul.f32 %v2079, 1.442695
          %v2177 = vpow.pop %v2176
          %v2178 = vmul.f32 %v2080, 1.442695
          %v2179 = vpow.pop %v2178
          %v2180 = vmul.f32 %v2081, 1.442695
          %v2181 = vpow.pop %v2180
          %v2182 = vmul.f32 %v2082, 1.442695
          %v2183 = vpow.pop %v2182
          %v2184 = vmul.f32 %v2083, 1.442695
          %v2185 = vpow.pop %v2184
          %v2186 = vmul.f32 %v2084, 1.442695
          %v2187 = vpow.pop %v2186
          %v2188 = vmul.f32 %v2085, 1.442695
          %v2189 = vpow.pop %v2188
          %v2190 = vmul.f32 %v2086, 1.442695
          %v2191 = vpow.pop %v2190
          %v2192 = vmul.f32 %v2087, 1.442695
          %v2193 = vpow.pop %v2192
          %v2194 = vmul.f32 %v2088, 1.442695
          %v2195 = vpow.pop %v2194
          %v2196 = vmul.f32 %v2089, 1.442695
          %v2197 = vpow.pop %v2196
          %v2198 = vmul.f32 %v2090, 1.442695
          %v2199 = vpow.pop %v2198
          %v2200 = vmul.f32 %v2091, 1.442695
          %v2201 = vpow.pop %v2200
          %v2202 = vmul.f32 %v2092, 1.442695
          %v2203 = vpow.pop %v2202
          %v2204 = vmul.f32 %v2093, 1.442695
          %v2205 = vpow.pop %v2204
          %v2206 = vmul.f32 %v2094, 1.442695
          %v2207 = vpow.pop %v2206
          %v2208 = vmul.f32 %v2095, 1.442695
          %v2209 = vpow.pop %v2208
          %v2210 = vmul.f32 %v2096, 1.442695
          %v2211 = vpow.pop %v2210
          %v2212 = vmul.f32 %v2097, 1.442695
          %v2213 = vpow.pop %v2212
          %v2214 = vmul.f32 %v2098, 1.442695
          %v2215 = vpow.pop %v2214
          %v2216 = vmul.f32 %v2099, 1.442695
          %v2217 = vpow.pop %v2216
          %v2218 = vmul.f32 %v2100, 1.442695
          %v2219 = vpow.pop %v2218
          %v2220 = vmul.f32 %v2101, 1.442695
          %v2221 = vpow.pop %v2220
          %v2222 = vmul.f32 %v2102, 1.442695
          %v2223 = vpow.pop %v2222
          %v2224 = vmul.f32 %v2103, 1.442695
          %v2225 = vpow.pop %v2224
          %v2226 = vmul.f32 %v2104, 1.442695
          %v2227 = vpow.pop %v2226
          %v2228 = vmul.f32 %v2105, 1.442695
          %v2229 = vpow.pop %v2228
          %v2230 = vmul.f32 %v2106, 1.442695
          %v2231 = vpow.pop %v2230
          %v2232 = vmul.f32 %v2107, 1.442695
          %v2233 = vpow.pop %v2232
          %v2234 = vmul.f32 %v2108, 1.442695
          %v2235 = vpow.pop %v2234
          %v2236 = vmul.f32 %v2109, 1.442695
          %v2237 = vpow.pop %v2236
          %v2238 = vadd.f32 %v2111, 1.0
          %v2239 = vadd.f32 %v2113, 1.0
          %v2240 = vadd.f32 %v2115, 1.0
          %v2241 = vadd.f32 %v2117, 1.0
          %v2242 = vadd.f32 %v2119, 1.0
          %v2243 = vadd.f32 %v2121, 1.0
          %v2244 = vadd.f32 %v2123, 1.0
          %v2245 = vadd.f32 %v2125, 1.0
          %v2246 = vadd.f32 %v2127, 1.0
          %v2247 = vadd.f32 %v2129, 1.0
          %v2248 = vadd.f32 %v2131, 1.0
          %v2249 = vadd.f32 %v2133, 1.0
          %v2250 = vadd.f32 %v2135, 1.0
          %v2251 = vadd.f32 %v2137, 1.0
          %v2252 = vadd.f32 %v2139, 1.0
          %v2253 = vadd.f32 %v2141, 1.0
          %v2254 = vadd.f32 %v2143, 1.0
          %v2255 = vadd.f32 %v2145, 1.0
          %v2256 = vadd.f32 %v2147, 1.0
          %v2257 = vadd.f32 %v2149, 1.0
          %v2258 = vadd.f32 %v2151, 1.0
          %v2259 = vadd.f32 %v2153, 1.0
          %v2260 = vadd.f32 %v2155, 1.0
          %v2261 = vadd.f32 %v2157, 1.0
          %v2262 = vadd.f32 %v2159, 1.0
          %v2263 = vadd.f32 %v2161, 1.0
          %v2264 = vadd.f32 %v2163, 1.0
          %v2265 = vadd.f32 %v2165, 1.0
          %v2266 = vadd.f32 %v2167, 1.0
          %v2267 = vadd.f32 %v2169, 1.0
          %v2268 = vadd.f32 %v2171, 1.0
          %v2269 = vadd.f32 %v2173, 1.0
          %v2270 = vadd.f32 %v2175, 1.0
          %v2271 = vadd.f32 %v2177, 1.0
          %v2272 = vadd.f32 %v2179, 1.0
          %v2273 = vadd.f32 %v2181, 1.0
          %v2274 = vadd.f32 %v2183, 1.0
          %v2275 = vadd.f32 %v2185, 1.0
          %v2276 = vadd.f32 %v2187, 1.0
          %v2277 = vadd.f32 %v2189, 1.0
          %v2278 = vadd.f32 %v2191, 1.0
          %v2279 = vadd.f32 %v2193, 1.0
          %v2280 = vadd.f32 %v2195, 1.0
          %v2281 = vadd.f32 %v2197, 1.0
          %v2282 = vadd.f32 %v2199, 1.0
          %v2283 = vadd.f32 %v2201, 1.0
          %v2284 = vadd.f32 %v2203, 1.0
          %v2285 = vadd.f32 %v2205, 1.0
          %v2286 = vadd.f32 %v2207, 1.0
          %v2287 = vadd.f32 %v2209, 1.0
          %v2288 = vadd.f32 %v2211, 1.0
          %v2289 = vadd.f32 %v2213, 1.0
          %v2290 = vadd.f32 %v2215, 1.0
          %v2291 = vadd.f32 %v2217, 1.0
          %v2292 = vadd.f32 %v2219, 1.0
          %v2293 = vadd.f32 %v2221, 1.0
          %v2294 = vadd.f32 %v2223, 1.0
          %v2295 = vadd.f32 %v2225, 1.0
          %v2296 = vadd.f32 %v2227, 1.0
          %v2297 = vadd.f32 %v2229, 1.0
          %v2298 = vadd.f32 %v2231, 1.0
          %v2299 = vadd.f32 %v2233, 1.0
          %v2300 = vadd.f32 %v2235, 1.0
          %v2301 = vadd.f32 %v2237, 1.0
          %v2302 = vrcp.pop %v2238
          %v2303 = vmul.f32 %v2238, %v2302
          %v2304 = vsub.f32 1.0, %v2303
          %v2305 = vmul.f32 %v2302, %v2304
          %v2306 = vadd.f32 %v2302, %v2305
          %vm2307 = vweird.f32 %v2238
          %vm2308 = vweird.f32 %v2302
          %vm2309 = vmor %vm2307, %vm2308
          %v2310 = vsel %vm2309, %v2302, %v2306
          %v2311 = vand.u32 2147483647, %v2238
          %vm2312 = vcmp.eq.f32.partialorder %v2311, 8.507059e+37
          %v2313 = vand.u32 %v2238, 2147483648
          %v2314 = vor.u32 1.1754944e-38, %v2313
          %v2315 = vsel %vm2312, %v2314, %v2310
          %v2316 = vmul.f32 1.0, %v2315
          %v2317 = vrcp.pop %v2239
          %v2318 = vmul.f32 %v2239, %v2317
          %v2319 = vsub.f32 1.0, %v2318
          %v2320 = vmul.f32 %v2317, %v2319
          %v2321 = vadd.f32 %v2317, %v2320
          %vm2322 = vweird.f32 %v2239
          %vm2323 = vweird.f32 %v2317
          %vm2324 = vmor %vm2322, %vm2323
          %v2325 = vsel %vm2324, %v2317, %v2321
          %v2326 = vand.u32 2147483647, %v2239
          %vm2327 = vcmp.eq.f32.partialorder %v2326, 8.507059e+37
          %v2328 = vand.u32 %v2239, 2147483648
          %v2329 = vor.u32 1.1754944e-38, %v2328
          %v2330 = vsel %vm2327, %v2329, %v2325
          %v2331 = vmul.f32 1.0, %v2330
          %v2332 = vrcp.pop %v2240
          %v2333 = vmul.f32 %v2240, %v2332
          %v2334 = vsub.f32 1.0, %v2333
          %v2335 = vmul.f32 %v2332, %v2334
          %v2336 = vadd.f32 %v2332, %v2335
          %vm2337 = vweird.f32 %v2240
          %vm2338 = vweird.f32 %v2332
          %vm2339 = vmor %vm2337, %vm2338
          %v2340 = vsel %vm2339, %v2332, %v2336
          %v2341 = vand.u32 2147483647, %v2240
          %vm2342 = vcmp.eq.f32.partialorder %v2341, 8.507059e+37
          %v2343 = vand.u32 %v2240, 2147483648
          %v2344 = vor.u32 1.1754944e-38, %v2343
          %v2345 = vsel %vm2342, %v2344, %v2340
          %v2346 = vmul.f32 1.0, %v2345
          %v2347 = vrcp.pop %v2241
          %v2348 = vmul.f32 %v2241, %v2347
          %v2349 = vsub.f32 1.0, %v2348
          %v2350 = vmul.f32 %v2347, %v2349
          %v2351 = vadd.f32 %v2347, %v2350
          %vm2352 = vweird.f32 %v2241
          %vm2353 = vweird.f32 %v2347
          %vm2354 = vmor %vm2352, %vm2353
          %v2355 = vsel %vm2354, %v2347, %v2351
          %v2356 = vand.u32 2147483647, %v2241
          %vm2357 = vcmp.eq.f32.partialorder %v2356, 8.507059e+37
          %v2358 = vand.u32 %v2241, 2147483648
          %v2359 = vor.u32 1.1754944e-38, %v2358
          %v2360 = vsel %vm2357, %v2359, %v2355
          %v2361 = vmul.f32 1.0, %v2360
          %v2362 = vrcp.pop %v2242
          %v2363 = vmul.f32 %v2242, %v2362
          %v2364 = vsub.f32 1.0, %v2363
          %v2365 = vmul.f32 %v2362, %v2364
          %v2366 = vadd.f32 %v2362, %v2365
          %vm2367 = vweird.f32 %v2242
          %vm2368 = vweird.f32 %v2362
          %vm2369 = vmor %vm2367, %vm2368
          %v2370 = vsel %vm2369, %v2362, %v2366
          %v2371 = vand.u32 2147483647, %v2242
          %vm2372 = vcmp.eq.f32.partialorder %v2371, 8.507059e+37
          %v2373 = vand.u32 %v2242, 2147483648
          %v2374 = vor.u32 1.1754944e-38, %v2373
          %v2375 = vsel %vm2372, %v2374, %v2370
          %v2376 = vmul.f32 1.0, %v2375
          %v2377 = vrcp.pop %v2243
          %v2378 = vmul.f32 %v2243, %v2377
          %v2379 = vsub.f32 1.0, %v2378
          %v2380 = vmul.f32 %v2377, %v2379
          %v2381 = vadd.f32 %v2377, %v2380
          %vm2382 = vweird.f32 %v2243
          %vm2383 = vweird.f32 %v2377
          %vm2384 = vmor %vm2382, %vm2383
          %v2385 = vsel %vm2384, %v2377, %v2381
          %v2386 = vand.u32 2147483647, %v2243
          %vm2387 = vcmp.eq.f32.partialorder %v2386, 8.507059e+37
          %v2388 = vand.u32 %v2243, 2147483648
          %v2389 = vor.u32 1.1754944e-38, %v2388
          %v2390 = vsel %vm2387, %v2389, %v2385
          %v2391 = vmul.f32 1.0, %v2390
          %v2392 = vrcp.pop %v2244
          %v2393 = vmul.f32 %v2244, %v2392
          %v2394 = vsub.f32 1.0, %v2393
          %v2395 = vmul.f32 %v2392, %v2394
          %v2396 = vadd.f32 %v2392, %v2395
          %vm2397 = vweird.f32 %v2244
          %vm2398 = vweird.f32 %v2392
          %vm2399 = vmor %vm2397, %vm2398
          %v2400 = vsel %vm2399, %v2392, %v2396
          %v2401 = vand.u32 2147483647, %v2244
          %vm2402 = vcmp.eq.f32.partialorder %v2401, 8.507059e+37
          %v2403 = vand.u32 %v2244, 2147483648
          %v2404 = vor.u32 1.1754944e-38, %v2403
          %v2405 = vsel %vm2402, %v2404, %v2400
          %v2406 = vmul.f32 1.0, %v2405
          %v2407 = vrcp.pop %v2245
          %v2408 = vmul.f32 %v2245, %v2407
          %v2409 = vsub.f32 1.0, %v2408
          %v2410 = vmul.f32 %v2407, %v2409
          %v2411 = vadd.f32 %v2407, %v2410
          %vm2412 = vweird.f32 %v2245
          %vm2413 = vweird.f32 %v2407
          %vm2414 = vmor %vm2412, %vm2413
          %v2415 = vsel %vm2414, %v2407, %v2411
          %v2416 = vand.u32 2147483647, %v2245
          %vm2417 = vcmp.eq.f32.partialorder %v2416, 8.507059e+37
          %v2418 = vand.u32 %v2245, 2147483648
          %v2419 = vor.u32 1.1754944e-38, %v2418
          %v2420 = vsel %vm2417, %v2419, %v2415
          %v2421 = vmul.f32 1.0, %v2420
          %v2422 = vrcp.pop %v2246
          %v2423 = vmul.f32 %v2246, %v2422
          %v2424 = vsub.f32 1.0, %v2423
          %v2425 = vmul.f32 %v2422, %v2424
          %v2426 = vadd.f32 %v2422, %v2425
          %vm2427 = vweird.f32 %v2246
          %vm2428 = vweird.f32 %v2422
          %vm2429 = vmor %vm2427, %vm2428
          %v2430 = vsel %vm2429, %v2422, %v2426
          %v2431 = vand.u32 2147483647, %v2246
          %vm2432 = vcmp.eq.f32.partialorder %v2431, 8.507059e+37
          %v2433 = vand.u32 %v2246, 2147483648
          %v2434 = vor.u32 1.1754944e-38, %v2433
          %v2435 = vsel %vm2432, %v2434, %v2430
          %v2436 = vmul.f32 1.0, %v2435
          %v2437 = vrcp.pop %v2247
          %v2438 = vmul.f32 %v2247, %v2437
          %v2439 = vsub.f32 1.0, %v2438
          %v2440 = vmul.f32 %v2437, %v2439
          %v2441 = vadd.f32 %v2437, %v2440
          %vm2442 = vweird.f32 %v2247
          %vm2443 = vweird.f32 %v2437
          %vm2444 = vmor %vm2442, %vm2443
          %v2445 = vsel %vm2444, %v2437, %v2441
          %v2446 = vand.u32 2147483647, %v2247
          %vm2447 = vcmp.eq.f32.partialorder %v2446, 8.507059e+37
          %v2448 = vand.u32 %v2247, 2147483648
          %v2449 = vor.u32 1.1754944e-38, %v2448
          %v2450 = vsel %vm2447, %v2449, %v2445
          %v2451 = vmul.f32 1.0, %v2450
          %v2452 = vrcp.pop %v2248
          %v2453 = vmul.f32 %v2248, %v2452
          %v2454 = vsub.f32 1.0, %v2453
          %v2455 = vmul.f32 %v2452, %v2454
          %v2456 = vadd.f32 %v2452, %v2455
          %vm2457 = vweird.f32 %v2248
          %vm2458 = vweird.f32 %v2452
          %vm2459 = vmor %vm2457, %vm2458
          %v2460 = vsel %vm2459, %v2452, %v2456
          %v2461 = vand.u32 2147483647, %v2248
          %vm2462 = vcmp.eq.f32.partialorder %v2461, 8.507059e+37
          %v2463 = vand.u32 %v2248, 2147483648
          %v2464 = vor.u32 1.1754944e-38, %v2463
          %v2465 = vsel %vm2462, %v2464, %v2460
          %v2466 = vmul.f32 1.0, %v2465
          %v2467 = vrcp.pop %v2249
          %v2468 = vmul.f32 %v2249, %v2467
          %v2469 = vsub.f32 1.0, %v2468
          %v2470 = vmul.f32 %v2467, %v2469
          %v2471 = vadd.f32 %v2467, %v2470
          %vm2472 = vweird.f32 %v2249
          %vm2473 = vweird.f32 %v2467
          %vm2474 = vmor %vm2472, %vm2473
          %v2475 = vsel %vm2474, %v2467, %v2471
          %v2476 = vand.u32 2147483647, %v2249
          %vm2477 = vcmp.eq.f32.partialorder %v2476, 8.507059e+37
          %v2478 = vand.u32 %v2249, 2147483648
          %v2479 = vor.u32 1.1754944e-38, %v2478
          %v2480 = vsel %vm2477, %v2479, %v2475
          %v2481 = vmul.f32 1.0, %v2480
          %v2482 = vrcp.pop %v2250
          %v2483 = vmul.f32 %v2250, %v2482
          %v2484 = vsub.f32 1.0, %v2483
          %v2485 = vmul.f32 %v2482, %v2484
          %v2486 = vadd.f32 %v2482, %v2485
          %vm2487 = vweird.f32 %v2250
          %vm2488 = vweird.f32 %v2482
          %vm2489 = vmor %vm2487, %vm2488
          %v2490 = vsel %vm2489, %v2482, %v2486
          %v2491 = vand.u32 2147483647, %v2250
          %vm2492 = vcmp.eq.f32.partialorder %v2491, 8.507059e+37
          %v2493 = vand.u32 %v2250, 2147483648
          %v2494 = vor.u32 1.1754944e-38, %v2493
          %v2495 = vsel %vm2492, %v2494, %v2490
          %v2496 = vmul.f32 1.0, %v2495
          %v2497 = vrcp.pop %v2251
          %v2498 = vmul.f32 %v2251, %v2497
          %v2499 = vsub.f32 1.0, %v2498
          %v2500 = vmul.f32 %v2497, %v2499
          %v2501 = vadd.f32 %v2497, %v2500
          %vm2502 = vweird.f32 %v2251
          %vm2503 = vweird.f32 %v2497
          %vm2504 = vmor %vm2502, %vm2503
          %v2505 = vsel %vm2504, %v2497, %v2501
          %v2506 = vand.u32 2147483647, %v2251
          %vm2507 = vcmp.eq.f32.partialorder %v2506, 8.507059e+37
          %v2508 = vand.u32 %v2251, 2147483648
          %v2509 = vor.u32 1.1754944e-38, %v2508
          %v2510 = vsel %vm2507, %v2509, %v2505
          %v2511 = vmul.f32 1.0, %v2510
          %v2512 = vrcp.pop %v2252
          %v2513 = vmul.f32 %v2252, %v2512
          %v2514 = vsub.f32 1.0, %v2513
          %v2515 = vmul.f32 %v2512, %v2514
          %v2516 = vadd.f32 %v2512, %v2515
          %vm2517 = vweird.f32 %v2252
          %vm2518 = vweird.f32 %v2512
          %vm2519 = vmor %vm2517, %vm2518
          %v2520 = vsel %vm2519, %v2512, %v2516
          %v2521 = vand.u32 2147483647, %v2252
          %vm2522 = vcmp.eq.f32.partialorder %v2521, 8.507059e+37
          %v2523 = vand.u32 %v2252, 2147483648
          %v2524 = vor.u32 1.1754944e-38, %v2523
          %v2525 = vsel %vm2522, %v2524, %v2520
          %v2526 = vmul.f32 1.0, %v2525
          %v2527 = vrcp.pop %v2253
          %v2528 = vmul.f32 %v2253, %v2527
          %v2529 = vsub.f32 1.0, %v2528
          %v2530 = vmul.f32 %v2527, %v2529
          %v2531 = vadd.f32 %v2527, %v2530
          %vm2532 = vweird.f32 %v2253
          %vm2533 = vweird.f32 %v2527
          %vm2534 = vmor %vm2532, %vm2533
          %v2535 = vsel %vm2534, %v2527, %v2531
          %v2536 = vand.u32 2147483647, %v2253
          %vm2537 = vcmp.eq.f32.partialorder %v2536, 8.507059e+37
          %v2538 = vand.u32 %v2253, 2147483648
          %v2539 = vor.u32 1.1754944e-38, %v2538
          %v2540 = vsel %vm2537, %v2539, %v2535
          %v2541 = vmul.f32 1.0, %v2540
          %v2542 = vrcp.pop %v2254
          %v2543 = vmul.f32 %v2254, %v2542
          %v2544 = vsub.f32 1.0, %v2543
          %v2545 = vmul.f32 %v2542, %v2544
          %v2546 = vadd.f32 %v2542, %v2545
          %vm2547 = vweird.f32 %v2254
          %vm2548 = vweird.f32 %v2542
          %vm2549 = vmor %vm2547, %vm2548
          %v2550 = vsel %vm2549, %v2542, %v2546
          %v2551 = vand.u32 2147483647, %v2254
          %vm2552 = vcmp.eq.f32.partialorder %v2551, 8.507059e+37
          %v2553 = vand.u32 %v2254, 2147483648
          %v2554 = vor.u32 1.1754944e-38, %v2553
          %v2555 = vsel %vm2552, %v2554, %v2550
          %v2556 = vmul.f32 1.0, %v2555
          %v2557 = vrcp.pop %v2255
          %v2558 = vmul.f32 %v2255, %v2557
          %v2559 = vsub.f32 1.0, %v2558
          %v2560 = vmul.f32 %v2557, %v2559
          %v2561 = vadd.f32 %v2557, %v2560
          %vm2562 = vweird.f32 %v2255
          %vm2563 = vweird.f32 %v2557
          %vm2564 = vmor %vm2562, %vm2563
          %v2565 = vsel %vm2564, %v2557, %v2561
          %v2566 = vand.u32 2147483647, %v2255
          %vm2567 = vcmp.eq.f32.partialorder %v2566, 8.507059e+37
          %v2568 = vand.u32 %v2255, 2147483648
          %v2569 = vor.u32 1.1754944e-38, %v2568
          %v2570 = vsel %vm2567, %v2569, %v2565
          %v2571 = vmul.f32 1.0, %v2570
          %v2572 = vrcp.pop %v2256
          %v2573 = vmul.f32 %v2256, %v2572
          %v2574 = vsub.f32 1.0, %v2573
          %v2575 = vmul.f32 %v2572, %v2574
          %v2576 = vadd.f32 %v2572, %v2575
          %vm2577 = vweird.f32 %v2256
          %vm2578 = vweird.f32 %v2572
          %vm2579 = vmor %vm2577, %vm2578
          %v2580 = vsel %vm2579, %v2572, %v2576
          %v2581 = vand.u32 2147483647, %v2256
          %vm2582 = vcmp.eq.f32.partialorder %v2581, 8.507059e+37
          %v2583 = vand.u32 %v2256, 2147483648
          %v2584 = vor.u32 1.1754944e-38, %v2583
          %v2585 = vsel %vm2582, %v2584, %v2580
          %v2586 = vmul.f32 1.0, %v2585
          %v2587 = vrcp.pop %v2257
          %v2588 = vmul.f32 %v2257, %v2587
          %v2589 = vsub.f32 1.0, %v2588
          %v2590 = vmul.f32 %v2587, %v2589
          %v2591 = vadd.f32 %v2587, %v2590
          %vm2592 = vweird.f32 %v2257
          %vm2593 = vweird.f32 %v2587
          %vm2594 = vmor %vm2592, %vm2593
          %v2595 = vsel %vm2594, %v2587, %v2591
          %v2596 = vand.u32 2147483647, %v2257
          %vm2597 = vcmp.eq.f32.partialorder %v2596, 8.507059e+37
          %v2598 = vand.u32 %v2257, 2147483648
          %v2599 = vor.u32 1.1754944e-38, %v2598
          %v2600 = vsel %vm2597, %v2599, %v2595
          %v2601 = vmul.f32 1.0, %v2600
          %v2602 = vrcp.pop %v2258
          %v2603 = vmul.f32 %v2258, %v2602
          %v2604 = vsub.f32 1.0, %v2603
          %v2605 = vmul.f32 %v2602, %v2604
          %v2606 = vadd.f32 %v2602, %v2605
          %vm2607 = vweird.f32 %v2258
          %vm2608 = vweird.f32 %v2602
          %vm2609 = vmor %vm2607, %vm2608
          %v2610 = vsel %vm2609, %v2602, %v2606
          %v2611 = vand.u32 2147483647, %v2258
          %vm2612 = vcmp.eq.f32.partialorder %v2611, 8.507059e+37
          %v2613 = vand.u32 %v2258, 2147483648
          %v2614 = vor.u32 1.1754944e-38, %v2613
          %v2615 = vsel %vm2612, %v2614, %v2610
          %v2616 = vmul.f32 1.0, %v2615
          %v2617 = vrcp.pop %v2259
          %v2618 = vmul.f32 %v2259, %v2617
          %v2619 = vsub.f32 1.0, %v2618
          %v2620 = vmul.f32 %v2617, %v2619
          %v2621 = vadd.f32 %v2617, %v2620
          %vm2622 = vweird.f32 %v2259
          %vm2623 = vweird.f32 %v2617
          %vm2624 = vmor %vm2622, %vm2623
          %v2625 = vsel %vm2624, %v2617, %v2621
          %v2626 = vand.u32 2147483647, %v2259
          %vm2627 = vcmp.eq.f32.partialorder %v2626, 8.507059e+37
          %v2628 = vand.u32 %v2259, 2147483648
          %v2629 = vor.u32 1.1754944e-38, %v2628
          %v2630 = vsel %vm2627, %v2629, %v2625
          %v2631 = vmul.f32 1.0, %v2630
          %v2632 = vrcp.pop %v2260
          %v2633 = vmul.f32 %v2260, %v2632
          %v2634 = vsub.f32 1.0, %v2633
          %v2635 = vmul.f32 %v2632, %v2634
          %v2636 = vadd.f32 %v2632, %v2635
          %vm2637 = vweird.f32 %v2260
          %vm2638 = vweird.f32 %v2632
          %vm2639 = vmor %vm2637, %vm2638
          %v2640 = vsel %vm2639, %v2632, %v2636
          %v2641 = vand.u32 2147483647, %v2260
          %vm2642 = vcmp.eq.f32.partialorder %v2641, 8.507059e+37
          %v2643 = vand.u32 %v2260, 2147483648
          %v2644 = vor.u32 1.1754944e-38, %v2643
          %v2645 = vsel %vm2642, %v2644, %v2640
          %v2646 = vmul.f32 1.0, %v2645
          %v2647 = vrcp.pop %v2261
          %v2648 = vmul.f32 %v2261, %v2647
          %v2649 = vsub.f32 1.0, %v2648
          %v2650 = vmul.f32 %v2647, %v2649
          %v2651 = vadd.f32 %v2647, %v2650
          %vm2652 = vweird.f32 %v2261
          %vm2653 = vweird.f32 %v2647
          %vm2654 = vmor %vm2652, %vm2653
          %v2655 = vsel %vm2654, %v2647, %v2651
          %v2656 = vand.u32 2147483647, %v2261
          %vm2657 = vcmp.eq.f32.partialorder %v2656, 8.507059e+37
          %v2658 = vand.u32 %v2261, 2147483648
          %v2659 = vor.u32 1.1754944e-38, %v2658
          %v2660 = vsel %vm2657, %v2659, %v2655
          %v2661 = vmul.f32 1.0, %v2660
          %v2662 = vrcp.pop %v2262
          %v2663 = vmul.f32 %v2262, %v2662
          %v2664 = vsub.f32 1.0, %v2663
          %v2665 = vmul.f32 %v2662, %v2664
          %v2666 = vadd.f32 %v2662, %v2665
          %vm2667 = vweird.f32 %v2262
          %vm2668 = vweird.f32 %v2662
          %vm2669 = vmor %vm2667, %vm2668
          %v2670 = vsel %vm2669, %v2662, %v2666
          %v2671 = vand.u32 2147483647, %v2262
          %vm2672 = vcmp.eq.f32.partialorder %v2671, 8.507059e+37
          %v2673 = vand.u32 %v2262, 2147483648
          %v2674 = vor.u32 1.1754944e-38, %v2673
          %v2675 = vsel %vm2672, %v2674, %v2670
          %v2676 = vmul.f32 1.0, %v2675
          %v2677 = vrcp.pop %v2263
          %v2678 = vmul.f32 %v2263, %v2677
          %v2679 = vsub.f32 1.0, %v2678
          %v2680 = vmul.f32 %v2677, %v2679
          %v2681 = vadd.f32 %v2677, %v2680
          %vm2682 = vweird.f32 %v2263
          %vm2683 = vweird.f32 %v2677
          %vm2684 = vmor %vm2682, %vm2683
          %v2685 = vsel %vm2684, %v2677, %v2681
          %v2686 = vand.u32 2147483647, %v2263
          %vm2687 = vcmp.eq.f32.partialorder %v2686, 8.507059e+37
          %v2688 = vand.u32 %v2263, 2147483648
          %v2689 = vor.u32 1.1754944e-38, %v2688
          %v2690 = vsel %vm2687, %v2689, %v2685
          %v2691 = vmul.f32 1.0, %v2690
          %v2692 = vrcp.pop %v2264
          %v2693 = vmul.f32 %v2264, %v2692
          %v2694 = vsub.f32 1.0, %v2693
          %v2695 = vmul.f32 %v2692, %v2694
          %v2696 = vadd.f32 %v2692, %v2695
          %vm2697 = vweird.f32 %v2264
          %vm2698 = vweird.f32 %v2692
          %vm2699 = vmor %vm2697, %vm2698
          %v2700 = vsel %vm2699, %v2692, %v2696
          %v2701 = vand.u32 2147483647, %v2264
          %vm2702 = vcmp.eq.f32.partialorder %v2701, 8.507059e+37
          %v2703 = vand.u32 %v2264, 2147483648
          %v2704 = vor.u32 1.1754944e-38, %v2703
          %v2705 = vsel %vm2702, %v2704, %v2700
          %v2706 = vmul.f32 1.0, %v2705
          %v2707 = vrcp.pop %v2265
          %v2708 = vmul.f32 %v2265, %v2707
          %v2709 = vsub.f32 1.0, %v2708
          %v2710 = vmul.f32 %v2707, %v2709
          %v2711 = vadd.f32 %v2707, %v2710
          %vm2712 = vweird.f32 %v2265
          %vm2713 = vweird.f32 %v2707
          %vm2714 = vmor %vm2712, %vm2713
          %v2715 = vsel %vm2714, %v2707, %v2711
          %v2716 = vand.u32 2147483647, %v2265
          %vm2717 = vcmp.eq.f32.partialorder %v2716, 8.507059e+37
          %v2718 = vand.u32 %v2265, 2147483648
          %v2719 = vor.u32 1.1754944e-38, %v2718
          %v2720 = vsel %vm2717, %v2719, %v2715
          %v2721 = vmul.f32 1.0, %v2720
          %v2722 = vrcp.pop %v2266
          %v2723 = vmul.f32 %v2266, %v2722
          %v2724 = vsub.f32 1.0, %v2723
          %v2725 = vmul.f32 %v2722, %v2724
          %v2726 = vadd.f32 %v2722, %v2725
          %vm2727 = vweird.f32 %v2266
          %vm2728 = vweird.f32 %v2722
          %vm2729 = vmor %vm2727, %vm2728
          %v2730 = vsel %vm2729, %v2722, %v2726
          %v2731 = vand.u32 2147483647, %v2266
          %vm2732 = vcmp.eq.f32.partialorder %v2731, 8.507059e+37
          %v2733 = vand.u32 %v2266, 2147483648
          %v2734 = vor.u32 1.1754944e-38, %v2733
          %v2735 = vsel %vm2732, %v2734, %v2730
          %v2736 = vmul.f32 1.0, %v2735
          %v2737 = vrcp.pop %v2267
          %v2738 = vmul.f32 %v2267, %v2737
          %v2739 = vsub.f32 1.0, %v2738
          %v2740 = vmul.f32 %v2737, %v2739
          %v2741 = vadd.f32 %v2737, %v2740
          %vm2742 = vweird.f32 %v2267
          %vm2743 = vweird.f32 %v2737
          %vm2744 = vmor %vm2742, %vm2743
          %v2745 = vsel %vm2744, %v2737, %v2741
          %v2746 = vand.u32 2147483647, %v2267
          %vm2747 = vcmp.eq.f32.partialorder %v2746, 8.507059e+37
          %v2748 = vand.u32 %v2267, 2147483648
          %v2749 = vor.u32 1.1754944e-38, %v2748
          %v2750 = vsel %vm2747, %v2749, %v2745
          %v2751 = vmul.f32 1.0, %v2750
          %v2752 = vrcp.pop %v2268
          %v2753 = vmul.f32 %v2268, %v2752
          %v2754 = vsub.f32 1.0, %v2753
          %v2755 = vmul.f32 %v2752, %v2754
          %v2756 = vadd.f32 %v2752, %v2755
          %vm2757 = vweird.f32 %v2268
          %vm2758 = vweird.f32 %v2752
          %vm2759 = vmor %vm2757, %vm2758
          %v2760 = vsel %vm2759, %v2752, %v2756
          %v2761 = vand.u32 2147483647, %v2268
          %vm2762 = vcmp.eq.f32.partialorder %v2761, 8.507059e+37
          %v2763 = vand.u32 %v2268, 2147483648
          %v2764 = vor.u32 1.1754944e-38, %v2763
          %v2765 = vsel %vm2762, %v2764, %v2760
          %v2766 = vmul.f32 1.0, %v2765
          %v2767 = vrcp.pop %v2269
          %v2768 = vmul.f32 %v2269, %v2767
          %v2769 = vsub.f32 1.0, %v2768
          %v2770 = vmul.f32 %v2767, %v2769
          %v2771 = vadd.f32 %v2767, %v2770
          %vm2772 = vweird.f32 %v2269
          %vm2773 = vweird.f32 %v2767
          %vm2774 = vmor %vm2772, %vm2773
          %v2775 = vsel %vm2774, %v2767, %v2771
          %v2776 = vand.u32 2147483647, %v2269
          %vm2777 = vcmp.eq.f32.partialorder %v2776, 8.507059e+37
          %v2778 = vand.u32 %v2269, 2147483648
          %v2779 = vor.u32 1.1754944e-38, %v2778
          %v2780 = vsel %vm2777, %v2779, %v2775
          %v2781 = vmul.f32 1.0, %v2780
          %v2782 = vrcp.pop %v2270
          %v2783 = vmul.f32 %v2270, %v2782
          %v2784 = vsub.f32 1.0, %v2783
          %v2785 = vmul.f32 %v2782, %v2784
          %v2786 = vadd.f32 %v2782, %v2785
          %vm2787 = vweird.f32 %v2270
          %vm2788 = vweird.f32 %v2782
          %vm2789 = vmor %vm2787, %vm2788
          %v2790 = vsel %vm2789, %v2782, %v2786
          %v2791 = vand.u32 2147483647, %v2270
          %vm2792 = vcmp.eq.f32.partialorder %v2791, 8.507059e+37
          %v2793 = vand.u32 %v2270, 2147483648
          %v2794 = vor.u32 1.1754944e-38, %v2793
          %v2795 = vsel %vm2792, %v2794, %v2790
          %v2796 = vmul.f32 1.0, %v2795
          %v2797 = vrcp.pop %v2271
          %v2798 = vmul.f32 %v2271, %v2797
          %v2799 = vsub.f32 1.0, %v2798
          %v2800 = vmul.f32 %v2797, %v2799
          %v2801 = vadd.f32 %v2797, %v2800
          %vm2802 = vweird.f32 %v2271
          %vm2803 = vweird.f32 %v2797
          %vm2804 = vmor %vm2802, %vm2803
          %v2805 = vsel %vm2804, %v2797, %v2801
          %v2806 = vand.u32 2147483647, %v2271
          %vm2807 = vcmp.eq.f32.partialorder %v2806, 8.507059e+37
          %v2808 = vand.u32 %v2271, 2147483648
          %v2809 = vor.u32 1.1754944e-38, %v2808
          %v2810 = vsel %vm2807, %v2809, %v2805
          %v2811 = vmul.f32 1.0, %v2810
          %v2812 = vrcp.pop %v2272
          %v2813 = vmul.f32 %v2272, %v2812
          %v2814 = vsub.f32 1.0, %v2813
          %v2815 = vmul.f32 %v2812, %v2814
          %v2816 = vadd.f32 %v2812, %v2815
          %vm2817 = vweird.f32 %v2272
          %vm2818 = vweird.f32 %v2812
          %vm2819 = vmor %vm2817, %vm2818
          %v2820 = vsel %vm2819, %v2812, %v2816
          %v2821 = vand.u32 2147483647, %v2272
          %vm2822 = vcmp.eq.f32.partialorder %v2821, 8.507059e+37
          %v2823 = vand.u32 %v2272, 2147483648
          %v2824 = vor.u32 1.1754944e-38, %v2823
          %v2825 = vsel %vm2822, %v2824, %v2820
          %v2826 = vmul.f32 1.0, %v2825
          %v2827 = vrcp.pop %v2273
          %v2828 = vmul.f32 %v2273, %v2827
          %v2829 = vsub.f32 1.0, %v2828
          %v2830 = vmul.f32 %v2827, %v2829
          %v2831 = vadd.f32 %v2827, %v2830
          %vm2832 = vweird.f32 %v2273
          %vm2833 = vweird.f32 %v2827
          %vm2834 = vmor %vm2832, %vm2833
          %v2835 = vsel %vm2834, %v2827, %v2831
          %v2836 = vand.u32 2147483647, %v2273
          %vm2837 = vcmp.eq.f32.partialorder %v2836, 8.507059e+37
          %v2838 = vand.u32 %v2273, 2147483648
          %v2839 = vor.u32 1.1754944e-38, %v2838
          %v2840 = vsel %vm2837, %v2839, %v2835
          %v2841 = vmul.f32 1.0, %v2840
          %v2842 = vrcp.pop %v2274
          %v2843 = vmul.f32 %v2274, %v2842
          %v2844 = vsub.f32 1.0, %v2843
          %v2845 = vmul.f32 %v2842, %v2844
          %v2846 = vadd.f32 %v2842, %v2845
          %vm2847 = vweird.f32 %v2274
          %vm2848 = vweird.f32 %v2842
          %vm2849 = vmor %vm2847, %vm2848
          %v2850 = vsel %vm2849, %v2842, %v2846
          %v2851 = vand.u32 2147483647, %v2274
          %vm2852 = vcmp.eq.f32.partialorder %v2851, 8.507059e+37
          %v2853 = vand.u32 %v2274, 2147483648
          %v2854 = vor.u32 1.1754944e-38, %v2853
          %v2855 = vsel %vm2852, %v2854, %v2850
          %v2856 = vmul.f32 1.0, %v2855
          %v2857 = vrcp.pop %v2275
          %v2858 = vmul.f32 %v2275, %v2857
          %v2859 = vsub.f32 1.0, %v2858
          %v2860 = vmul.f32 %v2857, %v2859
          %v2861 = vadd.f32 %v2857, %v2860
          %vm2862 = vweird.f32 %v2275
          %vm2863 = vweird.f32 %v2857
          %vm2864 = vmor %vm2862, %vm2863
          %v2865 = vsel %vm2864, %v2857, %v2861
          %v2866 = vand.u32 2147483647, %v2275
          %vm2867 = vcmp.eq.f32.partialorder %v2866, 8.507059e+37
          %v2868 = vand.u32 %v2275, 2147483648
          %v2869 = vor.u32 1.1754944e-38, %v2868
          %v2870 = vsel %vm2867, %v2869, %v2865
          %v2871 = vmul.f32 1.0, %v2870
          %v2872 = vrcp.pop %v2276
          %v2873 = vmul.f32 %v2276, %v2872
          %v2874 = vsub.f32 1.0, %v2873
          %v2875 = vmul.f32 %v2872, %v2874
          %v2876 = vadd.f32 %v2872, %v2875
          %vm2877 = vweird.f32 %v2276
          %vm2878 = vweird.f32 %v2872
          %vm2879 = vmor %vm2877, %vm2878
          %v2880 = vsel %vm2879, %v2872, %v2876
          %v2881 = vand.u32 2147483647, %v2276
          %vm2882 = vcmp.eq.f32.partialorder %v2881, 8.507059e+37
          %v2883 = vand.u32 %v2276, 2147483648
          %v2884 = vor.u32 1.1754944e-38, %v2883
          %v2885 = vsel %vm2882, %v2884, %v2880
          %v2886 = vmul.f32 1.0, %v2885
          %v2887 = vrcp.pop %v2277
          %v2888 = vmul.f32 %v2277, %v2887
          %v2889 = vsub.f32 1.0, %v2888
          %v2890 = vmul.f32 %v2887, %v2889
          %v2891 = vadd.f32 %v2887, %v2890
          %vm2892 = vweird.f32 %v2277
          %vm2893 = vweird.f32 %v2887
          %vm2894 = vmor %vm2892, %vm2893
          %v2895 = vsel %vm2894, %v2887, %v2891
          %v2896 = vand.u32 2147483647, %v2277
          %vm2897 = vcmp.eq.f32.partialorder %v2896, 8.507059e+37
          %v2898 = vand.u32 %v2277, 2147483648
          %v2899 = vor.u32 1.1754944e-38, %v2898
          %v2900 = vsel %vm2897, %v2899, %v2895
          %v2901 = vmul.f32 1.0, %v2900
          %v2902 = vrcp.pop %v2278
          %v2903 = vmul.f32 %v2278, %v2902
          %v2904 = vsub.f32 1.0, %v2903
          %v2905 = vmul.f32 %v2902, %v2904
          %v2906 = vadd.f32 %v2902, %v2905
          %vm2907 = vweird.f32 %v2278
          %vm2908 = vweird.f32 %v2902
          %vm2909 = vmor %vm2907, %vm2908
          %v2910 = vsel %vm2909, %v2902, %v2906
          %v2911 = vand.u32 2147483647, %v2278
          %vm2912 = vcmp.eq.f32.partialorder %v2911, 8.507059e+37
          %v2913 = vand.u32 %v2278, 2147483648
          %v2914 = vor.u32 1.1754944e-38, %v2913
          %v2915 = vsel %vm2912, %v2914, %v2910
          %v2916 = vmul.f32 1.0, %v2915
          %v2917 = vrcp.pop %v2279
          %v2918 = vmul.f32 %v2279, %v2917
          %v2919 = vsub.f32 1.0, %v2918
          %v2920 = vmul.f32 %v2917, %v2919
          %v2921 = vadd.f32 %v2917, %v2920
          %vm2922 = vweird.f32 %v2279
          %vm2923 = vweird.f32 %v2917
          %vm2924 = vmor %vm2922, %vm2923
          %v2925 = vsel %vm2924, %v2917, %v2921
          %v2926 = vand.u32 2147483647, %v2279
          %vm2927 = vcmp.eq.f32.partialorder %v2926, 8.507059e+37
          %v2928 = vand.u32 %v2279, 2147483648
          %v2929 = vor.u32 1.1754944e-38, %v2928
          %v2930 = vsel %vm2927, %v2929, %v2925
          %v2931 = vmul.f32 1.0, %v2930
          %v2932 = vrcp.pop %v2280
          %v2933 = vmul.f32 %v2280, %v2932
          %v2934 = vsub.f32 1.0, %v2933
          %v2935 = vmul.f32 %v2932, %v2934
          %v2936 = vadd.f32 %v2932, %v2935
          %vm2937 = vweird.f32 %v2280
          %vm2938 = vweird.f32 %v2932
          %vm2939 = vmor %vm2937, %vm2938
          %v2940 = vsel %vm2939, %v2932, %v2936
          %v2941 = vand.u32 2147483647, %v2280
          %vm2942 = vcmp.eq.f32.partialorder %v2941, 8.507059e+37
          %v2943 = vand.u32 %v2280, 2147483648
          %v2944 = vor.u32 1.1754944e-38, %v2943
          %v2945 = vsel %vm2942, %v2944, %v2940
          %v2946 = vmul.f32 1.0, %v2945
          %v2947 = vrcp.pop %v2281
          %v2948 = vmul.f32 %v2281, %v2947
          %v2949 = vsub.f32 1.0, %v2948
          %v2950 = vmul.f32 %v2947, %v2949
          %v2951 = vadd.f32 %v2947, %v2950
          %vm2952 = vweird.f32 %v2281
          %vm2953 = vweird.f32 %v2947
          %vm2954 = vmor %vm2952, %vm2953
          %v2955 = vsel %vm2954, %v2947, %v2951
          %v2956 = vand.u32 2147483647, %v2281
          %vm2957 = vcmp.eq.f32.partialorder %v2956, 8.507059e+37
          %v2958 = vand.u32 %v2281, 2147483648
          %v2959 = vor.u32 1.1754944e-38, %v2958
          %v2960 = vsel %vm2957, %v2959, %v2955
          %v2961 = vmul.f32 1.0, %v2960
          %v2962 = vrcp.pop %v2282
          %v2963 = vmul.f32 %v2282, %v2962
          %v2964 = vsub.f32 1.0, %v2963
          %v2965 = vmul.f32 %v2962, %v2964
          %v2966 = vadd.f32 %v2962, %v2965
          %vm2967 = vweird.f32 %v2282
          %vm2968 = vweird.f32 %v2962
          %vm2969 = vmor %vm2967, %vm2968
          %v2970 = vsel %vm2969, %v2962, %v2966
          %v2971 = vand.u32 2147483647, %v2282
          %vm2972 = vcmp.eq.f32.partialorder %v2971, 8.507059e+37
          %v2973 = vand.u32 %v2282, 2147483648
          %v2974 = vor.u32 1.1754944e-38, %v2973
          %v2975 = vsel %vm2972, %v2974, %v2970
          %v2976 = vmul.f32 1.0, %v2975
          %v2977 = vrcp.pop %v2283
          %v2978 = vmul.f32 %v2283, %v2977
          %v2979 = vsub.f32 1.0, %v2978
          %v2980 = vmul.f32 %v2977, %v2979
          %v2981 = vadd.f32 %v2977, %v2980
          %vm2982 = vweird.f32 %v2283
          %vm2983 = vweird.f32 %v2977
          %vm2984 = vmor %vm2982, %vm2983
          %v2985 = vsel %vm2984, %v2977, %v2981
          %v2986 = vand.u32 2147483647, %v2283
          %vm2987 = vcmp.eq.f32.partialorder %v2986, 8.507059e+37
          %v2988 = vand.u32 %v2283, 2147483648
          %v2989 = vor.u32 1.1754944e-38, %v2988
          %v2990 = vsel %vm2987, %v2989, %v2985
          %v2991 = vmul.f32 1.0, %v2990
          %v2992 = vrcp.pop %v2284
          %v2993 = vmul.f32 %v2284, %v2992
          %v2994 = vsub.f32 1.0, %v2993
          %v2995 = vmul.f32 %v2992, %v2994
          %v2996 = vadd.f32 %v2992, %v2995
          %vm2997 = vweird.f32 %v2284
          %vm2998 = vweird.f32 %v2992
          %vm2999 = vmor %vm2997, %vm2998
          %v3000 = vsel %vm2999, %v2992, %v2996
          %v3001 = vand.u32 2147483647, %v2284
          %vm3002 = vcmp.eq.f32.partialorder %v3001, 8.507059e+37
          %v3003 = vand.u32 %v2284, 2147483648
          %v3004 = vor.u32 1.1754944e-38, %v3003
          %v3005 = vsel %vm3002, %v3004, %v3000
          %v3006 = vmul.f32 1.0, %v3005
          %v3007 = vrcp.pop %v2285
          %v3008 = vmul.f32 %v2285, %v3007
          %v3009 = vsub.f32 1.0, %v3008
          %v3010 = vmul.f32 %v3007, %v3009
          %v3011 = vadd.f32 %v3007, %v3010
          %vm3012 = vweird.f32 %v2285
          %vm3013 = vweird.f32 %v3007
          %vm3014 = vmor %vm3012, %vm3013
          %v3015 = vsel %vm3014, %v3007, %v3011
          %v3016 = vand.u32 2147483647, %v2285
          %vm3017 = vcmp.eq.f32.partialorder %v3016, 8.507059e+37
          %v3018 = vand.u32 %v2285, 2147483648
          %v3019 = vor.u32 1.1754944e-38, %v3018
          %v3020 = vsel %vm3017, %v3019, %v3015
          %v3021 = vmul.f32 1.0, %v3020
          %v3022 = vrcp.pop %v2286
          %v3023 = vmul.f32 %v2286, %v3022
          %v3024 = vsub.f32 1.0, %v3023
          %v3025 = vmul.f32 %v3022, %v3024
          %v3026 = vadd.f32 %v3022, %v3025
          %vm3027 = vweird.f32 %v2286
          %vm3028 = vweird.f32 %v3022
          %vm3029 = vmor %vm3027, %vm3028
          %v3030 = vsel %vm3029, %v3022, %v3026
          %v3031 = vand.u32 2147483647, %v2286
          %vm3032 = vcmp.eq.f32.partialorder %v3031, 8.507059e+37
          %v3033 = vand.u32 %v2286, 2147483648
          %v3034 = vor.u32 1.1754944e-38, %v3033
          %v3035 = vsel %vm3032, %v3034, %v3030
          %v3036 = vmul.f32 1.0, %v3035
          %v3037 = vrcp.pop %v2287
          %v3038 = vmul.f32 %v2287, %v3037
          %v3039 = vsub.f32 1.0, %v3038
          %v3040 = vmul.f32 %v3037, %v3039
          %v3041 = vadd.f32 %v3037, %v3040
          %vm3042 = vweird.f32 %v2287
          %vm3043 = vweird.f32 %v3037
          %vm3044 = vmor %vm3042, %vm3043
          %v3045 = vsel %vm3044, %v3037, %v3041
          %v3046 = vand.u32 2147483647, %v2287
          %vm3047 = vcmp.eq.f32.partialorder %v3046, 8.507059e+37
          %v3048 = vand.u32 %v2287, 2147483648
          %v3049 = vor.u32 1.1754944e-38, %v3048
          %v3050 = vsel %vm3047, %v3049, %v3045
          %v3051 = vmul.f32 1.0, %v3050
          %v3052 = vrcp.pop %v2288
          %v3053 = vmul.f32 %v2288, %v3052
          %v3054 = vsub.f32 1.0, %v3053
          %v3055 = vmul.f32 %v3052, %v3054
          %v3056 = vadd.f32 %v3052, %v3055
          %vm3057 = vweird.f32 %v2288
          %vm3058 = vweird.f32 %v3052
          %vm3059 = vmor %vm3057, %vm3058
          %v3060 = vsel %vm3059, %v3052, %v3056
          %v3061 = vand.u32 2147483647, %v2288
          %vm3062 = vcmp.eq.f32.partialorder %v3061, 8.507059e+37
          %v3063 = vand.u32 %v2288, 2147483648
          %v3064 = vor.u32 1.1754944e-38, %v3063
          %v3065 = vsel %vm3062, %v3064, %v3060
          %v3066 = vmul.f32 1.0, %v3065
          %v3067 = vrcp.pop %v2289
          %v3068 = vmul.f32 %v2289, %v3067
          %v3069 = vsub.f32 1.0, %v3068
          %v3070 = vmul.f32 %v3067, %v3069
          %v3071 = vadd.f32 %v3067, %v3070
          %vm3072 = vweird.f32 %v2289
          %vm3073 = vweird.f32 %v3067
          %vm3074 = vmor %vm3072, %vm3073
          %v3075 = vsel %vm3074, %v3067, %v3071
          %v3076 = vand.u32 2147483647, %v2289
          %vm3077 = vcmp.eq.f32.partialorder %v3076, 8.507059e+37
          %v3078 = vand.u32 %v2289, 2147483648
          %v3079 = vor.u32 1.1754944e-38, %v3078
          %v3080 = vsel %vm3077, %v3079, %v3075
          %v3081 = vmul.f32 1.0, %v3080
          %v3082 = vrcp.pop %v2290
          %v3083 = vmul.f32 %v2290, %v3082
          %v3084 = vsub.f32 1.0, %v3083
          %v3085 = vmul.f32 %v3082, %v3084
          %v3086 = vadd.f32 %v3082, %v3085
          %vm3087 = vweird.f32 %v2290
          %vm3088 = vweird.f32 %v3082
          %vm3089 = vmor %vm3087, %vm3088
          %v3090 = vsel %vm3089, %v3082, %v3086
          %v3091 = vand.u32 2147483647, %v2290
          %vm3092 = vcmp.eq.f32.partialorder %v3091, 8.507059e+37
          %v3093 = vand.u32 %v2290, 2147483648
          %v3094 = vor.u32 1.1754944e-38, %v3093
          %v3095 = vsel %vm3092, %v3094, %v3090
          %v3096 = vmul.f32 1.0, %v3095
          %v3097 = vrcp.pop %v2291
          %v3098 = vmul.f32 %v2291, %v3097
          %v3099 = vsub.f32 1.0, %v3098
          %v3100 = vmul.f32 %v3097, %v3099
          %v3101 = vadd.f32 %v3097, %v3100
          %vm3102 = vweird.f32 %v2291
          %vm3103 = vweird.f32 %v3097
          %vm3104 = vmor %vm3102, %vm3103
          %v3105 = vsel %vm3104, %v3097, %v3101
          %v3106 = vand.u32 2147483647, %v2291
          %vm3107 = vcmp.eq.f32.partialorder %v3106, 8.507059e+37
          %v3108 = vand.u32 %v2291, 2147483648
          %v3109 = vor.u32 1.1754944e-38, %v3108
          %v3110 = vsel %vm3107, %v3109, %v3105
          %v3111 = vmul.f32 1.0, %v3110
          %v3112 = vrcp.pop %v2292
          %v3113 = vmul.f32 %v2292, %v3112
          %v3114 = vsub.f32 1.0, %v3113
          %v3115 = vmul.f32 %v3112, %v3114
          %v3116 = vadd.f32 %v3112, %v3115
          %vm3117 = vweird.f32 %v2292
          %vm3118 = vweird.f32 %v3112
          %vm3119 = vmor %vm3117, %vm3118
          %v3120 = vsel %vm3119, %v3112, %v3116
          %v3121 = vand.u32 2147483647, %v2292
          %vm3122 = vcmp.eq.f32.partialorder %v3121, 8.507059e+37
          %v3123 = vand.u32 %v2292, 2147483648
          %v3124 = vor.u32 1.1754944e-38, %v3123
          %v3125 = vsel %vm3122, %v3124, %v3120
          %v3126 = vmul.f32 1.0, %v3125
          %v3127 = vrcp.pop %v2293
          %v3128 = vmul.f32 %v2293, %v3127
          %v3129 = vsub.f32 1.0, %v3128
          %v3130 = vmul.f32 %v3127, %v3129
          %v3131 = vadd.f32 %v3127, %v3130
          %vm3132 = vweird.f32 %v2293
          %vm3133 = vweird.f32 %v3127
          %vm3134 = vmor %vm3132, %vm3133
          %v3135 = vsel %vm3134, %v3127, %v3131
          %v3136 = vand.u32 2147483647, %v2293
          %vm3137 = vcmp.eq.f32.partialorder %v3136, 8.507059e+37
          %v3138 = vand.u32 %v2293, 2147483648
          %v3139 = vor.u32 1.1754944e-38, %v3138
          %v3140 = vsel %vm3137, %v3139, %v3135
          %v3141 = vmul.f32 1.0, %v3140
          %v3142 = vrcp.pop %v2294
          %v3143 = vmul.f32 %v2294, %v3142
          %v3144 = vsub.f32 1.0, %v3143
          %v3145 = vmul.f32 %v3142, %v3144
          %v3146 = vadd.f32 %v3142, %v3145
          %vm3147 = vweird.f32 %v2294
          %vm3148 = vweird.f32 %v3142
          %vm3149 = vmor %vm3147, %vm3148
          %v3150 = vsel %vm3149, %v3142, %v3146
          %v3151 = vand.u32 2147483647, %v2294
          %vm3152 = vcmp.eq.f32.partialorder %v3151, 8.507059e+37
          %v3153 = vand.u32 %v2294, 2147483648
          %v3154 = vor.u32 1.1754944e-38, %v3153
          %v3155 = vsel %vm3152, %v3154, %v3150
          %v3156 = vmul.f32 1.0, %v3155
          %v3157 = vrcp.pop %v2295
          %v3158 = vmul.f32 %v2295, %v3157
          %v3159 = vsub.f32 1.0, %v3158
          %v3160 = vmul.f32 %v3157, %v3159
          %v3161 = vadd.f32 %v3157, %v3160
          %vm3162 = vweird.f32 %v2295
          %vm3163 = vweird.f32 %v3157
          %vm3164 = vmor %vm3162, %vm3163
          %v3165 = vsel %vm3164, %v3157, %v3161
          %v3166 = vand.u32 2147483647, %v2295
          %vm3167 = vcmp.eq.f32.partialorder %v3166, 8.507059e+37
          %v3168 = vand.u32 %v2295, 2147483648
          %v3169 = vor.u32 1.1754944e-38, %v3168
          %v3170 = vsel %vm3167, %v3169, %v3165
          %v3171 = vmul.f32 1.0, %v3170
          %v3172 = vrcp.pop %v2296
          %v3173 = vmul.f32 %v2296, %v3172
          %v3174 = vsub.f32 1.0, %v3173
          %v3175 = vmul.f32 %v3172, %v3174
          %v3176 = vadd.f32 %v3172, %v3175
          %vm3177 = vweird.f32 %v2296
          %vm3178 = vweird.f32 %v3172
          %vm3179 = vmor %vm3177, %vm3178
          %v3180 = vsel %vm3179, %v3172, %v3176
          %v3181 = vand.u32 2147483647, %v2296
          %vm3182 = vcmp.eq.f32.partialorder %v3181, 8.507059e+37
          %v3183 = vand.u32 %v2296, 2147483648
          %v3184 = vor.u32 1.1754944e-38, %v3183
          %v3185 = vsel %vm3182, %v3184, %v3180
          %v3186 = vmul.f32 1.0, %v3185
          %v3187 = vrcp.pop %v2297
          %v3188 = vmul.f32 %v2297, %v3187
          %v3189 = vsub.f32 1.0, %v3188
          %v3190 = vmul.f32 %v3187, %v3189
          %v3191 = vadd.f32 %v3187, %v3190
          %vm3192 = vweird.f32 %v2297
          %vm3193 = vweird.f32 %v3187
          %vm3194 = vmor %vm3192, %vm3193
          %v3195 = vsel %vm3194, %v3187, %v3191
          %v3196 = vand.u32 2147483647, %v2297
          %vm3197 = vcmp.eq.f32.partialorder %v3196, 8.507059e+37
          %v3198 = vand.u32 %v2297, 2147483648
          %v3199 = vor.u32 1.1754944e-38, %v3198
          %v3200 = vsel %vm3197, %v3199, %v3195
          %v3201 = vmul.f32 1.0, %v3200
          %v3202 = vrcp.pop %v2298
          %v3203 = vmul.f32 %v2298, %v3202
          %v3204 = vsub.f32 1.0, %v3203
          %v3205 = vmul.f32 %v3202, %v3204
          %v3206 = vadd.f32 %v3202, %v3205
          %vm3207 = vweird.f32 %v2298
          %vm3208 = vweird.f32 %v3202
          %vm3209 = vmor %vm3207, %vm3208
          %v3210 = vsel %vm3209, %v3202, %v3206
          %v3211 = vand.u32 2147483647, %v2298
          %vm3212 = vcmp.eq.f32.partialorder %v3211, 8.507059e+37
          %v3213 = vand.u32 %v2298, 2147483648
          %v3214 = vor.u32 1.1754944e-38, %v3213
          %v3215 = vsel %vm3212, %v3214, %v3210
          %v3216 = vmul.f32 1.0, %v3215
          %v3217 = vrcp.pop %v2299
          %v3218 = vmul.f32 %v2299, %v3217
          %v3219 = vsub.f32 1.0, %v3218
          %v3220 = vmul.f32 %v3217, %v3219
          %v3221 = vadd.f32 %v3217, %v3220
          %vm3222 = vweird.f32 %v2299
          %vm3223 = vweird.f32 %v3217
          %vm3224 = vmor %vm3222, %vm3223
          %v3225 = vsel %vm3224, %v3217, %v3221
          %v3226 = vand.u32 2147483647, %v2299
          %vm3227 = vcmp.eq.f32.partialorder %v3226, 8.507059e+37
          %v3228 = vand.u32 %v2299, 2147483648
          %v3229 = vor.u32 1.1754944e-38, %v3228
          %v3230 = vsel %vm3227, %v3229, %v3225
          %v3231 = vmul.f32 1.0, %v3230
          %v3232 = vrcp.pop %v2300
          %v3233 = vmul.f32 %v2300, %v3232
          %v3234 = vsub.f32 1.0, %v3233
          %v3235 = vmul.f32 %v3232, %v3234
          %v3236 = vadd.f32 %v3232, %v3235
          %vm3237 = vweird.f32 %v2300
          %vm3238 = vweird.f32 %v3232
          %vm3239 = vmor %vm3237, %vm3238
          %v3240 = vsel %vm3239, %v3232, %v3236
          %v3241 = vand.u32 2147483647, %v2300
          %vm3242 = vcmp.eq.f32.partialorder %v3241, 8.507059e+37
          %v3243 = vand.u32 %v2300, 2147483648
          %v3244 = vor.u32 1.1754944e-38, %v3243
          %v3245 = vsel %vm3242, %v3244, %v3240
          %v3246 = vmul.f32 1.0, %v3245
          %v3247 = vrcp.pop %v2301
          %v3248 = vmul.f32 %v2301, %v3247
          %v3249 = vsub.f32 1.0, %v3248
          %v3250 = vmul.f32 %v3247, %v3249
          %v3251 = vadd.f32 %v3247, %v3250
          %vm3252 = vweird.f32 %v2301
          %vm3253 = vweird.f32 %v3247
          %vm3254 = vmor %vm3252, %vm3253
          %v3255 = vsel %vm3254, %v3247, %v3251
          %v3256 = vand.u32 2147483647, %v2301
          %vm3257 = vcmp.eq.f32.partialorder %v3256, 8.507059e+37
          %v3258 = vand.u32 %v2301, 2147483648
          %v3259 = vor.u32 1.1754944e-38, %v3258
          %v3260 = vsel %vm3257, %v3259, %v3255
          %v3261 = vmul.f32 1.0, %v3260
          %v3262 = vmul.f32 %v1397, %v2316
          %v3263 = vmul.f32 %v1398, %v2331
          %v3264 = vmul.f32 %v1399, %v2346
          %v3265 = vmul.f32 %v1400, %v2361
          %v3266 = vmul.f32 %v1401, %v2376
          %v3267 = vmul.f32 %v1402, %v2391
          %v3268 = vmul.f32 %v1403, %v2406
          %v3269 = vmul.f32 %v1404, %v2421
          %v3270 = vmul.f32 %v1405, %v2436
          %v3271 = vmul.f32 %v1406, %v2451
          %v3272 = vmul.f32 %v1407, %v2466
          %v3273 = vmul.f32 %v1408, %v2481
          %v3274 = vmul.f32 %v1409, %v2496
          %v3275 = vmul.f32 %v1410, %v2511
          %v3276 = vmul.f32 %v1411, %v2526
          %v3277 = vmul.f32 %v1412, %v2541
          %v3278 = vmul.f32 %v1413, %v2556
          %v3279 = vmul.f32 %v1414, %v2571
          %v3280 = vmul.f32 %v1415, %v2586
          %v3281 = vmul.f32 %v1416, %v2601
          %v3282 = vmul.f32 %v1417, %v2616
          %v3283 = vmul.f32 %v1418, %v2631
          %v3284 = vmul.f32 %v1419, %v2646
          %v3285 = vmul.f32 %v1420, %v2661
          %v3286 = vmul.f32 %v1421, %v2676
          %v3287 = vmul.f32 %v1422, %v2691
          %v3288 = vmul.f32 %v1423, %v2706
          %v3289 = vmul.f32 %v1424, %v2721
          %v3290 = vmul.f32 %v1425, %v2736
          %v3291 = vmul.f32 %v1426, %v2751
          %v3292 = vmul.f32 %v1427, %v2766
          %v3293 = vmul.f32 %v1428, %v2781
          %v3294 = vmul.f32 %v1429, %v2796
          %v3295 = vmul.f32 %v1430, %v2811
          %v3296 = vmul.f32 %v1431, %v2826
          %v3297 = vmul.f32 %v1432, %v2841
          %v3298 = vmul.f32 %v1433, %v2856
          %v3299 = vmul.f32 %v1434, %v2871
          %v3300 = vmul.f32 %v1435, %v2886
          %v3301 = vmul.f32 %v1436, %v2901
          %v3302 = vmul.f32 %v1437, %v2916
          %v3303 = vmul.f32 %v1438, %v2931
          %v3304 = vmul.f32 %v1439, %v2946
          %v3305 = vmul.f32 %v1440, %v2961
          %v3306 = vmul.f32 %v1441, %v2976
          %v3307 = vmul.f32 %v1442, %v2991
          %v3308 = vmul.f32 %v1443, %v3006
          %v3309 = vmul.f32 %v1444, %v3021
          %v3310 = vmul.f32 %v1445, %v3036
          %v3311 = vmul.f32 %v1446, %v3051
          %v3312 = vmul.f32 %v1447, %v3066
          %v3313 = vmul.f32 %v1448, %v3081
          %v3314 = vmul.f32 %v1449, %v3096
          %v3315 = vmul.f32 %v1450, %v3111
          %v3316 = vmul.f32 %v1451, %v3126
          %v3317 = vmul.f32 %v1452, %v3141
          %v3318 = vmul.f32 %v1453, %v3156
          %v3319 = vmul.f32 %v1454, %v3171
          %v3320 = vmul.f32 %v1455, %v3186
          %v3321 = vmul.f32 %v1456, %v3201
          %v3322 = vmul.f32 %v1457, %v3216
          %v3323 = vmul.f32 %v1458, %v3231
          %v3324 = vmul.f32 %v1459, %v3246
          %v3325 = vmul.f32 %v1460, %v3261
          %3326 = vst [vmem:[#allocation2] sm:$0xff] %v3262
          %3327 = vst [vmem:[#allocation2 + $0x8] sm:$0xff] %v3263
          %3328 = vst [vmem:[#allocation2 + $0x10] sm:$0xff] %v3264
          %3329 = vst [vmem:[#allocation2 + $0x18] sm:$0xff] %v3265
          %3330 = vst [vmem:[#allocation2 + $0x20] sm:$0xff] %v3266
          %3331 = vst [vmem:[#allocation2 + $0x28] sm:$0xff] %v3267
          %3332 = vst [vmem:[#allocation2 + $0x30] sm:$0xff] %v3268
          %3333 = vst [vmem:[#allocation2 + $0x38] sm:$0xff] %v3269
          %3334 = vst [vmem:[#allocation2 + $0x40] sm:$0xff] %v3270
          %3335 = vst [vmem:[#allocation2 + $0x48] sm:$0xff] %v3271
          %3336 = vst [vmem:[#allocation2 + $0x50] sm:$0xff] %v3272
          %3337 = vst [vmem:[#allocation2 + $0x58] sm:$0xff] %v3273
          %3338 = vst [vmem:[#allocation2 + $0x60] sm:$0xff] %v3274
          %3339 = vst [vmem:[#allocation2 + $0x68] sm:$0xff] %v3275
          %3340 = vst [vmem:[#allocation2 + $0x70] sm:$0xff] %v3276
          %3341 = vst [vmem:[#allocation2 + $0x78] sm:$0xff] %v3277
          %3342 = vst [vmem:[#allocation2 + $0x80] sm:$0xff] %v3278
          %3343 = vst [vmem:[#allocation2 + $0x88] sm:$0xff] %v3279
          %3344 = vst [vmem:[#allocation2 + $0x90] sm:$0xff] %v3280
          %3345 = vst [vmem:[#allocation2 + $0x98] sm:$0xff] %v3281
          %3346 = vst [vmem:[#allocation2 + $0xa0] sm:$0xff] %v3282
          %3347 = vst [vmem:[#allocation2 + $0xa8] sm:$0xff] %v3283
          %3348 = vst [vmem:[#allocation2 + $0xb0] sm:$0xff] %v3284
          %3349 = vst [vmem:[#allocation2 + $0xb8] sm:$0xff] %v3285
          %3350 = vst [vmem:[#allocation2 + $0xc0] sm:$0xff] %v3286
          %3351 = vst [vmem:[#allocation2 + $0xc8] sm:$0xff] %v3287
          %3352 = vst [vmem:[#allocation2 + $0xd0] sm:$0xff] %v3288
          %3353 = vst [vmem:[#allocation2 + $0xd8] sm:$0xff] %v3289
          %3354 = vst [vmem:[#allocation2 + $0xe0] sm:$0xff] %v3290
          %3355 = vst [vmem:[#allocation2 + $0xe8] sm:$0xff] %v3291
          %3356 = vst [vmem:[#allocation2 + $0xf0] sm:$0xff] %v3292
          %3357 = vst [vmem:[#allocation2 + $0xf8] sm:$0xff] %v3293
          %3358 = vst [vmem:[#allocation2 + $0x100] sm:$0xff] %v3294
          %3359 = vst [vmem:[#allocation2 + $0x108] sm:$0xff] %v3295
          %3360 = vst [vmem:[#allocation2 + $0x110] sm:$0xff] %v3296
          %3361 = vst [vmem:[#allocation2 + $0x118] sm:$0xff] %v3297
          %3362 = vst [vmem:[#allocation2 + $0x120] sm:$0xff] %v3298
          %3363 = vst [vmem:[#allocation2 + $0x128] sm:$0xff] %v3299
          %3364 = vst [vmem:[#allocation2 + $0x130] sm:$0xff] %v3300
          %3365 = vst [vmem:[#allocation2 + $0x138] sm:$0xff] %v3301
          %3366 = vst [vmem:[#allocation2 + $0x140] sm:$0xff] %v3302
          %3367 = vst [vmem:[#allocation2 + $0x148] sm:$0xff] %v3303
          %3368 = vst [vmem:[#allocation2 + $0x150] sm:$0xff] %v3304
          %3369 = vst [vmem:[#allocation2 + $0x158] sm:$0xff] %v3305
          %3370 = vst [vmem:[#allocation2 + $0x160] sm:$0xff] %v3306
          %3371 = vst [vmem:[#allocation2 + $0x168] sm:$0xff] %v3307
          %3372 = vst [vmem:[#allocation2 + $0x170] sm:$0xff] %v3308
          %3373 = vst [vmem:[#allocation2 + $0x178] sm:$0xff] %v3309
          %3374 = vst [vmem:[#allocation2 + $0x180] sm:$0xff] %v3310
          %3375 = vst [vmem:[#allocation2 + $0x188] sm:$0xff] %v3311
          %3376 = vst [vmem:[#allocation2 + $0x190] sm:$0xff] %v3312
          %3377 = vst [vmem:[#allocation2 + $0x198] sm:$0xff] %v3313
          %3378 = vst [vmem:[#allocation2 + $0x1a0] sm:$0xff] %v3314
          %3379 = vst [vmem:[#allocation2 + $0x1a8] sm:$0xff] %v3315
          %3380 = vst [vmem:[#allocation2 + $0x1b0] sm:$0xff] %v3316
          %3381 = vst [vmem:[#allocation2 + $0x1b8] sm:$0xff] %v3317
          %3382 = vst [vmem:[#allocation2 + $0x1c0] sm:$0xff] %v3318
          %3383 = vst [vmem:[#allocation2 + $0x1c8] sm:$0xff] %v3319
          %3384 = vst [vmem:[#allocation2 + $0x1d0] sm:$0xff] %v3320
          %3385 = vst [vmem:[#allocation2 + $0x1d8] sm:$0xff] %v3321
          %3386 = vst [vmem:[#allocation2 + $0x1e0] sm:$0xff] %v3322
          %3387 = vst [vmem:[#allocation2 + $0x1e8] sm:$0xff] %v3323
          %3388 = vst [vmem:[#allocation2 + $0x1f0] sm:$0xff] %v3324
          %3389 = vst [vmem:[#allocation2 + $0x1f8] sm:$0xff] %v3325
          %v3390 = vld [vmem:[#allocation2] sm:$0xff]
          %v3391 = vld [vmem:[#allocation2 + $0x8] sm:$0xff]
          %v3392 = vld [vmem:[#allocation2 + $0x10] sm:$0xff]
          %v3393 = vld [vmem:[#allocation2 + $0x18] sm:$0xff]
          %v3394 = vld [vmem:[#allocation2 + $0x20] sm:$0xff]
          %v3395 = vld [vmem:[#allocation2 + $0x28] sm:$0xff]
          %v3396 = vld [vmem:[#allocation2 + $0x30] sm:$0xff]
          %v3397 = vld [vmem:[#allocation2 + $0x38] sm:$0xff]
          %v3398 = vld [vmem:[#allocation2 + $0x40] sm:$0xff]
          %v3399 = vld [vmem:[#allocation2 + $0x48] sm:$0xff]
          %v3400 = vld [vmem:[#allocation2 + $0x50] sm:$0xff]
          %v3401 = vld [vmem:[#allocation2 + $0x58] sm:$0xff]
          %v3402 = vld [vmem:[#allocation2 + $0x60] sm:$0xff]
          %v3403 = vld [vmem:[#allocation2 + $0x68] sm:$0xff]
          %v3404 = vld [vmem:[#allocation2 + $0x70] sm:$0xff]
          %v3405 = vld [vmem:[#allocation2 + $0x78] sm:$0xff]
          %v3406 = vld [vmem:[#allocation2 + $0x80] sm:$0xff]
          %v3407 = vld [vmem:[#allocation2 + $0x88] sm:$0xff]
          %v3408 = vld [vmem:[#allocation2 + $0x90] sm:$0xff]
          %v3409 = vld [vmem:[#allocation2 + $0x98] sm:$0xff]
          %v3410 = vld [vmem:[#allocation2 + $0xa0] sm:$0xff]
          %v3411 = vld [vmem:[#allocation2 + $0xa8] sm:$0xff]
          %v3412 = vld [vmem:[#allocation2 + $0xb0] sm:$0xff]
          %v3413 = vld [vmem:[#allocation2 + $0xb8] sm:$0xff]
          %v3414 = vld [vmem:[#allocation2 + $0xc0] sm:$0xff]
          %v3415 = vld [vmem:[#allocation2 + $0xc8] sm:$0xff]
          %v3416 = vld [vmem:[#allocation2 + $0xd0] sm:$0xff]
          %v3417 = vld [vmem:[#allocation2 + $0xd8] sm:$0xff]
          %v3418 = vld [vmem:[#allocation2 + $0xe0] sm:$0xff]
          %v3419 = vld [vmem:[#allocation2 + $0xe8] sm:$0xff]
          %v3420 = vld [vmem:[#allocation2 + $0xf0] sm:$0xff]
          %v3421 = vld [vmem:[#allocation2 + $0xf8] sm:$0xff]
          %v3422 = vld [vmem:[#allocation2 + $0x100] sm:$0xff]
          %v3423 = vld [vmem:[#allocation2 + $0x108] sm:$0xff]
          %v3424 = vld [vmem:[#allocation2 + $0x110] sm:$0xff]
          %v3425 = vld [vmem:[#allocation2 + $0x118] sm:$0xff]
          %v3426 = vld [vmem:[#allocation2 + $0x120] sm:$0xff]
          %v3427 = vld [vmem:[#allocation2 + $0x128] sm:$0xff]
          %v3428 = vld [vmem:[#allocation2 + $0x130] sm:$0xff]
          %v3429 = vld [vmem:[#allocation2 + $0x138] sm:$0xff]
          %v3430 = vld [vmem:[#allocation2 + $0x140] sm:$0xff]
          %v3431 = vld [vmem:[#allocation2 + $0x148] sm:$0xff]
          %v3432 = vld [vmem:[#allocation2 + $0x150] sm:$0xff]
          %v3433 = vld [vmem:[#allocation2 + $0x158] sm:$0xff]
          %v3434 = vld [vmem:[#allocation2 + $0x160] sm:$0xff]
          %v3435 = vld [vmem:[#allocation2 + $0x168] sm:$0xff]
          %v3436 = vld [vmem:[#allocation2 + $0x170] sm:$0xff]
          %v3437 = vld [vmem:[#allocation2 + $0x178] sm:$0xff]
          %v3438 = vld [vmem:[#allocation2 + $0x180] sm:$0xff]
          %v3439 = vld [vmem:[#allocation2 + $0x188] sm:$0xff]
          %v3440 = vld [vmem:[#allocation2 + $0x190] sm:$0xff]
          %v3441 = vld [vmem:[#allocation2 + $0x198] sm:$0xff]
          %v3442 = vld [vmem:[#allocation2 + $0x1a0] sm:$0xff]
          %v3443 = vld [vmem:[#allocation2 + $0x1a8] sm:$0xff]
          %v3444 = vld [vmem:[#allocation2 + $0x1b0] sm:$0xff]
          %v3445 = vld [vmem:[#allocation2 + $0x1b8] sm:$0xff]
          %v3446 = vld [vmem:[#allocation2 + $0x1c0] sm:$0xff]
          %v3447 = vld [vmem:[#allocation2 + $0x1c8] sm:$0xff]
          %v3448 = vld [vmem:[#allocation2 + $0x1d0] sm:$0xff]
          %v3449 = vld [vmem:[#allocation2 + $0x1d8] sm:$0xff]
          %v3450 = vld [vmem:[#allocation2 + $0x1e0] sm:$0xff]
          %v3451 = vld [vmem:[#allocation2 + $0x1e8] sm:$0xff]
          %v3452 = vld [vmem:[#allocation2 + $0x1f0] sm:$0xff]
          %v3453 = vld [vmem:[#allocation2 + $0x1f8] sm:$0xff]
          %v3454 = vadd.f32 %v3390, %v3391
          %3455 = vadd.xlane.f32.xlu0 %v3454
          %v3456 = vpop.xlane.xlu0 %3455
          %v3457 = vadd.f32 %v3392, %v3393
          %3458 = vadd.xlane.f32.xlu0 %v3457
          %v3459 = vpop.xlane.xlu0 %3458
          %v3460 = vadd.f32 %v3394, %v3395
          %3461 = vadd.xlane.f32.xlu0 %v3460
          %v3462 = vpop.xlane.xlu0 %3461
          %v3463 = vadd.f32 %v3396, %v3397
          %3464 = vadd.xlane.f32.xlu0 %v3463
          %v3465 = vpop.xlane.xlu0 %3464
          %v3466 = vadd.f32 %v3398, %v3399
          %3467 = vadd.xlane.f32.xlu0 %v3466
          %v3468 = vpop.xlane.xlu0 %3467
          %v3469 = vadd.f32 %v3400, %v3401
          %3470 = vadd.xlane.f32.xlu0 %v3469
          %v3471 = vpop.xlane.xlu0 %3470
          %v3472 = vadd.f32 %v3402, %v3403
          %3473 = vadd.xlane.f32.xlu0 %v3472
          %v3474 = vpop.xlane.xlu0 %3473
          %v3475 = vadd.f32 %v3404, %v3405
          %3476 = vadd.xlane.f32.xlu0 %v3475
          %v3477 = vpop.xlane.xlu0 %3476
          %v3478 = vadd.f32 %v3406, %v3407
          %3479 = vadd.xlane.f32.xlu0 %v3478
          %v3480 = vpop.xlane.xlu0 %3479
          %v3481 = vadd.f32 %v3408, %v3409
          %3482 = vadd.xlane.f32.xlu0 %v3481
          %v3483 = vpop.xlane.xlu0 %3482
          %v3484 = vadd.f32 %v3410, %v3411
          %3485 = vadd.xlane.f32.xlu0 %v3484
          %v3486 = vpop.xlane.xlu0 %3485
          %v3487 = vadd.f32 %v3412, %v3413
          %3488 = vadd.xlane.f32.xlu0 %v3487
          %v3489 = vpop.xlane.xlu0 %3488
          %v3490 = vadd.f32 %v3414, %v3415
          %3491 = vadd.xlane.f32.xlu0 %v3490
          %v3492 = vpop.xlane.xlu0 %3491
          %v3493 = vadd.f32 %v3416, %v3417
          %3494 = vadd.xlane.f32.xlu0 %v3493
          %v3495 = vpop.xlane.xlu0 %3494
          %v3496 = vadd.f32 %v3418, %v3419
          %3497 = vadd.xlane.f32.xlu0 %v3496
          %v3498 = vpop.xlane.xlu0 %3497
          %v3499 = vadd.f32 %v3420, %v3421
          %3500 = vadd.xlane.f32.xlu0 %v3499
          %v3501 = vpop.xlane.xlu0 %3500
          %v3502 = vadd.f32 %v3422, %v3423
          %3503 = vadd.xlane.f32.xlu0 %v3502
          %v3504 = vpop.xlane.xlu0 %3503
          %v3505 = vadd.f32 %v3424, %v3425
          %3506 = vadd.xlane.f32.xlu0 %v3505
          %v3507 = vpop.xlane.xlu0 %3506
          %v3508 = vadd.f32 %v3426, %v3427
          %3509 = vadd.xlane.f32.xlu0 %v3508
          %v3510 = vpop.xlane.xlu0 %3509
          %v3511 = vadd.f32 %v3428, %v3429
          %3512 = vadd.xlane.f32.xlu0 %v3511
          %v3513 = vpop.xlane.xlu0 %3512
          %v3514 = vadd.f32 %v3430, %v3431
          %3515 = vadd.xlane.f32.xlu0 %v3514
          %v3516 = vpop.xlane.xlu0 %3515
          %v3517 = vadd.f32 %v3432, %v3433
          %3518 = vadd.xlane.f32.xlu0 %v3517
          %v3519 = vpop.xlane.xlu0 %3518
          %v3520 = vadd.f32 %v3434, %v3435
          %3521 = vadd.xlane.f32.xlu0 %v3520
          %v3522 = vpop.xlane.xlu0 %3521
          %v3523 = vadd.f32 %v3436, %v3437
          %3524 = vadd.xlane.f32.xlu0 %v3523
          %v3525 = vpop.xlane.xlu0 %3524
          %v3526 = vadd.f32 %v3438, %v3439
          %3527 = vadd.xlane.f32.xlu0 %v3526
          %v3528 = vpop.xlane.xlu0 %3527
          %v3529 = vadd.f32 %v3440, %v3441
          %3530 = vadd.xlane.f32.xlu0 %v3529
          %v3531 = vpop.xlane.xlu0 %3530
          %v3532 = vadd.f32 %v3442, %v3443
          %3533 = vadd.xlane.f32.xlu0 %v3532
          %v3534 = vpop.xlane.xlu0 %3533
          %v3535 = vadd.f32 %v3444, %v3445
          %3536 = vadd.xlane.f32.xlu0 %v3535
          %v3537 = vpop.xlane.xlu0 %3536
          %v3538 = vadd.f32 %v3446, %v3447
          %3539 = vadd.xlane.f32.xlu0 %v3538
          %v3540 = vpop.xlane.xlu0 %3539
          %v3541 = vadd.f32 %v3448, %v3449
          %3542 = vadd.xlane.f32.xlu0 %v3541
          %v3543 = vpop.xlane.xlu0 %3542
          %v3544 = vadd.f32 %v3450, %v3451
          %3545 = vadd.xlane.f32.xlu0 %v3544
          %v3546 = vpop.xlane.xlu0 %3545
          %v3547 = vadd.f32 %v3452, %v3453
          %3548 = vadd.xlane.f32.xlu0 %v3547
          %v3549 = vpop.xlane.xlu0 %3548
          %v3550 = vmul.f32 %v3456, 0.00390625
          %v3551 = vmul.f32 %v3459, 0.00390625
          %v3552 = vmul.f32 %v3462, 0.00390625
          %v3553 = vmul.f32 %v3465, 0.00390625
          %v3554 = vmul.f32 %v3468, 0.00390625
          %v3555 = vmul.f32 %v3471, 0.00390625
          %v3556 = vmul.f32 %v3474, 0.00390625
          %v3557 = vmul.f32 %v3477, 0.00390625
          %v3558 = vmul.f32 %v3480, 0.00390625
          %v3559 = vmul.f32 %v3483, 0.00390625
          %v3560 = vmul.f32 %v3486, 0.00390625
          %v3561 = vmul.f32 %v3489, 0.00390625
          %v3562 = vmul.f32 %v3492, 0.00390625
          %v3563 = vmul.f32 %v3495, 0.00390625
          %v3564 = vmul.f32 %v3498, 0.00390625
          %v3565 = vmul.f32 %v3501, 0.00390625
          %v3566 = vmul.f32 %v3504, 0.00390625
          %v3567 = vmul.f32 %v3507, 0.00390625
          %v3568 = vmul.f32 %v3510, 0.00390625
          %v3569 = vmul.f32 %v3513, 0.00390625
          %v3570 = vmul.f32 %v3516, 0.00390625
          %v3571 = vmul.f32 %v3519, 0.00390625
          %v3572 = vmul.f32 %v3522, 0.00390625
          %v3573 = vmul.f32 %v3525, 0.00390625
          %v3574 = vmul.f32 %v3528, 0.00390625
          %v3575 = vmul.f32 %v3531, 0.00390625
          %v3576 = vmul.f32 %v3534, 0.00390625
          %v3577 = vmul.f32 %v3537, 0.00390625
          %v3578 = vmul.f32 %v3540, 0.00390625
          %v3579 = vmul.f32 %v3543, 0.00390625
          %v3580 = vmul.f32 %v3546, 0.00390625
          %v3581 = vmul.f32 %v3549, 0.00390625
          %v3582 = vmul.f32 %v3390, %v3390
          %v3583 = vmul.f32 %v3391, %v3391
          %v3584 = vmul.f32 %v3392, %v3392
          %v3585 = vmul.f32 %v3393, %v3393
          %v3586 = vmul.f32 %v3394, %v3394
          %v3587 = vmul.f32 %v3395, %v3395
          %v3588 = vmul.f32 %v3396, %v3396
          %v3589 = vmul.f32 %v3397, %v3397
          %v3590 = vmul.f32 %v3398, %v3398
          %v3591 = vmul.f32 %v3399, %v3399
          %v3592 = vmul.f32 %v3400, %v3400
          %v3593 = vmul.f32 %v3401, %v3401
          %v3594 = vmul.f32 %v3402, %v3402
          %v3595 = vmul.f32 %v3403, %v3403
          %v3596 = vmul.f32 %v3404, %v3404
          %v3597 = vmul.f32 %v3405, %v3405
          %v3598 = vmul.f32 %v3406, %v3406
          %v3599 = vmul.f32 %v3407, %v3407
          %v3600 = vmul.f32 %v3408, %v3408
          %v3601 = vmul.f32 %v3409, %v3409
          %v3602 = vmul.f32 %v3410, %v3410
          %v3603 = vmul.f32 %v3411, %v3411
          %v3604 = vmul.f32 %v3412, %v3412
          %v3605 = vmul.f32 %v3413, %v3413
          %v3606 = vmul.f32 %v3414, %v3414
          %v3607 = vmul.f32 %v3415, %v3415
          %v3608 = vmul.f32 %v3416, %v3416
          %v3609 = vmul.f32 %v3417, %v3417
          %v3610 = vmul.f32 %v3418, %v3418
          %v3611 = vmul.f32 %v3419, %v3419
          %v3612 = vmul.f32 %v3420, %v3420
          %v3613 = vmul.f32 %v3421, %v3421
          %v3614 = vmul.f32 %v3422, %v3422
          %v3615 = vmul.f32 %v3423, %v3423
          %v3616 = vmul.f32 %v3424, %v3424
          %v3617 = vmul.f32 %v3425, %v3425
          %v3618 = vmul.f32 %v3426, %v3426
          %v3619 = vmul.f32 %v3427, %v3427
          %v3620 = vmul.f32 %v3428, %v3428
          %v3621 = vmul.f32 %v3429, %v3429
          %v3622 = vmul.f32 %v3430, %v3430
          %v3623 = vmul.f32 %v3431, %v3431
          %v3624 = vmul.f32 %v3432, %v3432
          %v3625 = vmul.f32 %v3433, %v3433
          %v3626 = vmul.f32 %v3434, %v3434
          %v3627 = vmul.f32 %v3435, %v3435
          %v3628 = vmul.f32 %v3436, %v3436
          %v3629 = vmul.f32 %v3437, %v3437
          %v3630 = vmul.f32 %v3438, %v3438
          %v3631 = vmul.f32 %v3439, %v3439
          %v3632 = vmul.f32 %v3440, %v3440
          %v3633 = vmul.f32 %v3441, %v3441
          %v3634 = vmul.f32 %v3442, %v3442
          %v3635 = vmul.f32 %v3443, %v3443
          %v3636 = vmul.f32 %v3444, %v3444
          %v3637 = vmul.f32 %v3445, %v3445
          %v3638 = vmul.f32 %v3446, %v3446
          %v3639 = vmul.f32 %v3447, %v3447
          %v3640 = vmul.f32 %v3448, %v3448
          %v3641 = vmul.f32 %v3449, %v3449
          %v3642 = vmul.f32 %v3450, %v3450
          %v3643 = vmul.f32 %v3451, %v3451
          %v3644 = vmul.f32 %v3452, %v3452
          %v3645 = vmul.f32 %v3453, %v3453
          %v3646 = vadd.f32 %v3582, %v3583
          %3647 = vadd.xlane.f32.xlu0 %v3646
          %v3648 = vpop.xlane.xlu0 %3647
          %v3649 = vadd.f32 %v3584, %v3585
          %3650 = vadd.xlane.f32.xlu0 %v3649
          %v3651 = vpop.xlane.xlu0 %3650
          %v3652 = vadd.f32 %v3586, %v3587
          %3653 = vadd.xlane.f32.xlu0 %v3652
          %v3654 = vpop.xlane.xlu0 %3653
          %v3655 = vadd.f32 %v3588, %v3589
          %3656 = vadd.xlane.f32.xlu0 %v3655
          %v3657 = vpop.xlane.xlu0 %3656
          %v3658 = vadd.f32 %v3590, %v3591
          %3659 = vadd.xlane.f32.xlu0 %v3658
          %v3660 = vpop.xlane.xlu0 %3659
          %v3661 = vadd.f32 %v3592, %v3593
          %3662 = vadd.xlane.f32.xlu0 %v3661
          %v3663 = vpop.xlane.xlu0 %3662
          %v3664 = vadd.f32 %v3594, %v3595
          %3665 = vadd.xlane.f32.xlu0 %v3664
          %v3666 = vpop.xlane.xlu0 %3665
          %v3667 = vadd.f32 %v3596, %v3597
          %3668 = vadd.xlane.f32.xlu0 %v3667
          %v3669 = vpop.xlane.xlu0 %3668
          %v3670 = vadd.f32 %v3598, %v3599
          %3671 = vadd.xlane.f32.xlu0 %v3670
          %v3672 = vpop.xlane.xlu0 %3671
          %v3673 = vadd.f32 %v3600, %v3601
          %3674 = vadd.xlane.f32.xlu0 %v3673
          %v3675 = vpop.xlane.xlu0 %3674
          %v3676 = vadd.f32 %v3602, %v3603
          %3677 = vadd.xlane.f32.xlu0 %v3676
          %v3678 = vpop.xlane.xlu0 %3677
          %v3679 = vadd.f32 %v3604, %v3605
          %3680 = vadd.xlane.f32.xlu0 %v3679
          %v3681 = vpop.xlane.xlu0 %3680
          %v3682 = vadd.f32 %v3606, %v3607
          %3683 = vadd.xlane.f32.xlu0 %v3682
          %v3684 = vpop.xlane.xlu0 %3683
          %v3685 = vadd.f32 %v3608, %v3609
          %3686 = vadd.xlane.f32.xlu0 %v3685
          %v3687 = vpop.xlane.xlu0 %3686
          %v3688 = vadd.f32 %v3610, %v3611
          %3689 = vadd.xlane.f32.xlu0 %v3688
          %v3690 = vpop.xlane.xlu0 %3689
          %v3691 = vadd.f32 %v3612, %v3613
          %3692 = vadd.xlane.f32.xlu0 %v3691
          %v3693 = vpop.xlane.xlu0 %3692
          %v3694 = vadd.f32 %v3614, %v3615
          %3695 = vadd.xlane.f32.xlu0 %v3694
          %v3696 = vpop.xlane.xlu0 %3695
          %v3697 = vadd.f32 %v3616, %v3617
          %3698 = vadd.xlane.f32.xlu0 %v3697
          %v3699 = vpop.xlane.xlu0 %3698
          %v3700 = vadd.f32 %v3618, %v3619
          %3701 = vadd.xlane.f32.xlu0 %v3700
          %v3702 = vpop.xlane.xlu0 %3701
          %v3703 = vadd.f32 %v3620, %v3621
          %3704 = vadd.xlane.f32.xlu0 %v3703
          %v3705 = vpop.xlane.xlu0 %3704
          %v3706 = vadd.f32 %v3622, %v3623
          %3707 = vadd.xlane.f32.xlu0 %v3706
          %v3708 = vpop.xlane.xlu0 %3707
          %v3709 = vadd.f32 %v3624, %v3625
          %3710 = vadd.xlane.f32.xlu0 %v3709
          %v3711 = vpop.xlane.xlu0 %3710
          %v3712 = vadd.f32 %v3626, %v3627
          %3713 = vadd.xlane.f32.xlu0 %v3712
          %v3714 = vpop.xlane.xlu0 %3713
          %v3715 = vadd.f32 %v3628, %v3629
          %3716 = vadd.xlane.f32.xlu0 %v3715
          %v3717 = vpop.xlane.xlu0 %3716
          %v3718 = vadd.f32 %v3630, %v3631
          %3719 = vadd.xlane.f32.xlu0 %v3718
          %v3720 = vpop.xlane.xlu0 %3719
          %v3721 = vadd.f32 %v3632, %v3633
          %3722 = vadd.xlane.f32.xlu0 %v3721
          %v3723 = vpop.xlane.xlu0 %3722
          %v3724 = vadd.f32 %v3634, %v3635
          %3725 = vadd.xlane.f32.xlu0 %v3724
          %v3726 = vpop.xlane.xlu0 %3725
          %v3727 = vadd.f32 %v3636, %v3637
          %3728 = vadd.xlane.f32.xlu0 %v3727
          %v3729 = vpop.xlane.xlu0 %3728
          %v3730 = vadd.f32 %v3638, %v3639
          %3731 = vadd.xlane.f32.xlu0 %v3730
          %v3732 = vpop.xlane.xlu0 %3731
          %v3733 = vadd.f32 %v3640, %v3641
          %3734 = vadd.xlane.f32.xlu0 %v3733
          %v3735 = vpop.xlane.xlu0 %3734
          %v3736 = vadd.f32 %v3642, %v3643
          %3737 = vadd.xlane.f32.xlu0 %v3736
          %v3738 = vpop.xlane.xlu0 %3737
          %v3739 = vadd.f32 %v3644, %v3645
          %3740 = vadd.xlane.f32.xlu0 %v3739
          %v3741 = vpop.xlane.xlu0 %3740
          %v3742 = vmul.f32 %v3648, 0.00390625
          %v3743 = vmul.f32 %v3651, 0.00390625
          %v3744 = vmul.f32 %v3654, 0.00390625
          %v3745 = vmul.f32 %v3657, 0.00390625
          %v3746 = vmul.f32 %v3660, 0.00390625
          %v3747 = vmul.f32 %v3663, 0.00390625
          %v3748 = vmul.f32 %v3666, 0.00390625
          %v3749 = vmul.f32 %v3669, 0.00390625
          %v3750 = vmul.f32 %v3672, 0.00390625
          %v3751 = vmul.f32 %v3675, 0.00390625
          %v3752 = vmul.f32 %v3678, 0.00390625
          %v3753 = vmul.f32 %v3681, 0.00390625
          %v3754 = vmul.f32 %v3684, 0.00390625
          %v3755 = vmul.f32 %v3687, 0.00390625
          %v3756 = vmul.f32 %v3690, 0.00390625
          %v3757 = vmul.f32 %v3693, 0.00390625
          %v3758 = vmul.f32 %v3696, 0.00390625
          %v3759 = vmul.f32 %v3699, 0.00390625
          %v3760 = vmul.f32 %v3702, 0.00390625
          %v3761 = vmul.f32 %v3705, 0.00390625
          %v3762 = vmul.f32 %v3708, 0.00390625
          %v3763 = vmul.f32 %v3711, 0.00390625
          %v3764 = vmul.f32 %v3714, 0.00390625
          %v3765 = vmul.f32 %v3717, 0.00390625
          %v3766 = vmul.f32 %v3720, 0.00390625
          %v3767 = vmul.f32 %v3723, 0.00390625
          %v3768 = vmul.f32 %v3726, 0.00390625
          %v3769 = vmul.f32 %v3729, 0.00390625
          %v3770 = vmul.f32 %v3732, 0.00390625
          %v3771 = vmul.f32 %v3735, 0.00390625
          %v3772 = vmul.f32 %v3738, 0.00390625
          %v3773 = vmul.f32 %v3741, 0.00390625
          %v3774 = vmul.f32 %v3550, %v3550
          %v3775 = vmul.f32 %v3551, %v3551
          %v3776 = vmul.f32 %v3552, %v3552
          %v3777 = vmul.f32 %v3553, %v3553
          %v3778 = vmul.f32 %v3554, %v3554
          %v3779 = vmul.f32 %v3555, %v3555
          %v3780 = vmul.f32 %v3556, %v3556
          %v3781 = vmul.f32 %v3557, %v3557
          %v3782 = vmul.f32 %v3558, %v3558
          %v3783 = vmul.f32 %v3559, %v3559
          %v3784 = vmul.f32 %v3560, %v3560
          %v3785 = vmul.f32 %v3561, %v3561
          %v3786 = vmul.f32 %v3562, %v3562
          %v3787 = vmul.f32 %v3563, %v3563
          %v3788 = vmul.f32 %v3564, %v3564
          %v3789 = vmul.f32 %v3565, %v3565
          %v3790 = vmul.f32 %v3566, %v3566
          %v3791 = vmul.f32 %v3567, %v3567
          %v3792 = vmul.f32 %v3568, %v3568
          %v3793 = vmul.f32 %v3569, %v3569
          %v3794 = vmul.f32 %v3570, %v3570
          %v3795 = vmul.f32 %v3571, %v3571
          %v3796 = vmul.f32 %v3572, %v3572
          %v3797 = vmul.f32 %v3573, %v3573
          %v3798 = vmul.f32 %v3574, %v3574
          %v3799 = vmul.f32 %v3575, %v3575
          %v3800 = vmul.f32 %v3576, %v3576
          %v3801 = vmul.f32 %v3577, %v3577
          %v3802 = vmul.f32 %v3578, %v3578
          %v3803 = vmul.f32 %v3579, %v3579
          %v3804 = vmul.f32 %v3580, %v3580
          %v3805 = vmul.f32 %v3581, %v3581
          %v3806 = vsub.f32 %v3742, %v3774
          %v3807 = vsub.f32 %v3743, %v3775
          %v3808 = vsub.f32 %v3744, %v3776
          %v3809 = vsub.f32 %v3745, %v3777
          %v3810 = vsub.f32 %v3746, %v3778
          %v3811 = vsub.f32 %v3747, %v3779
          %v3812 = vsub.f32 %v3748, %v3780
          %v3813 = vsub.f32 %v3749, %v3781
          %v3814 = vsub.f32 %v3750, %v3782
          %v3815 = vsub.f32 %v3751, %v3783
          %v3816 = vsub.f32 %v3752, %v3784
          %v3817 = vsub.f32 %v3753, %v3785
          %v3818 = vsub.f32 %v3754, %v3786
          %v3819 = vsub.f32 %v3755, %v3787
          %v3820 = vsub.f32 %v3756, %v3788
          %v3821 = vsub.f32 %v3757, %v3789
          %v3822 = vsub.f32 %v3758, %v3790
          %v3823 = vsub.f32 %v3759, %v3791
          %v3824 = vsub.f32 %v3760, %v3792
          %v3825 = vsub.f32 %v3761, %v3793
          %v3826 = vsub.f32 %v3762, %v3794
          %v3827 = vsub.f32 %v3763, %v3795
          %v3828 = vsub.f32 %v3764, %v3796
          %v3829 = vsub.f32 %v3765, %v3797
          %v3830 = vsub.f32 %v3766, %v3798
          %v3831 = vsub.f32 %v3767, %v3799
          %v3832 = vsub.f32 %v3768, %v3800
          %v3833 = vsub.f32 %v3769, %v3801
          %v3834 = vsub.f32 %v3770, %v3802
          %v3835 = vsub.f32 %v3771, %v3803
          %v3836 = vsub.f32 %v3772, %v3804
          %v3837 = vsub.f32 %v3773, %v3805
          %v3838 = vmax.f32 %v3806, 0.0
          %v3839 = vmax.f32 %v3807, 0.0
          %v3840 = vmax.f32 %v3808, 0.0
          %v3841 = vmax.f32 %v3809, 0.0
          %v3842 = vmax.f32 %v3810, 0.0
          %v3843 = vmax.f32 %v3811, 0.0
          %v3844 = vmax.f32 %v3812, 0.0
          %v3845 = vmax.f32 %v3813, 0.0
          %v3846 = vmax.f32 %v3814, 0.0
          %v3847 = vmax.f32 %v3815, 0.0
          %v3848 = vmax.f32 %v3816, 0.0
          %v3849 = vmax.f32 %v3817, 0.0
          %v3850 = vmax.f32 %v3818, 0.0
          %v3851 = vmax.f32 %v3819, 0.0
          %v3852 = vmax.f32 %v3820, 0.0
          %v3853 = vmax.f32 %v3821, 0.0
          %v3854 = vmax.f32 %v3822, 0.0
          %v3855 = vmax.f32 %v3823, 0.0
          %v3856 = vmax.f32 %v3824, 0.0
          %v3857 = vmax.f32 %v3825, 0.0
          %v3858 = vmax.f32 %v3826, 0.0
          %v3859 = vmax.f32 %v3827, 0.0
          %v3860 = vmax.f32 %v3828, 0.0
          %v3861 = vmax.f32 %v3829, 0.0
          %v3862 = vmax.f32 %v3830, 0.0
          %v3863 = vmax.f32 %v3831, 0.0
          %v3864 = vmax.f32 %v3832, 0.0
          %v3865 = vmax.f32 %v3833, 0.0
          %v3866 = vmax.f32 %v3834, 0.0
          %v3867 = vmax.f32 %v3835, 0.0
          %v3868 = vmax.f32 %v3836, 0.0
          %v3869 = vmax.f32 %v3837, 0.0
          %v3870 = vsub.f32 %v3390, %v3550
          %v3871 = vsub.f32 %v3391, %v3550
          %v3872 = vsub.f32 %v3392, %v3551
          %v3873 = vsub.f32 %v3393, %v3551
          %v3874 = vsub.f32 %v3394, %v3552
          %v3875 = vsub.f32 %v3395, %v3552
          %v3876 = vsub.f32 %v3396, %v3553
          %v3877 = vsub.f32 %v3397, %v3553
          %v3878 = vsub.f32 %v3398, %v3554
          %v3879 = vsub.f32 %v3399, %v3554
          %v3880 = vsub.f32 %v3400, %v3555
          %v3881 = vsub.f32 %v3401, %v3555
          %v3882 = vsub.f32 %v3402, %v3556
          %v3883 = vsub.f32 %v3403, %v3556
          %v3884 = vsub.f32 %v3404, %v3557
          %v3885 = vsub.f32 %v3405, %v3557
          %v3886 = vsub.f32 %v3406, %v3558
          %v3887 = vsub.f32 %v3407, %v3558
          %v3888 = vsub.f32 %v3408, %v3559
          %v3889 = vsub.f32 %v3409, %v3559
          %v3890 = vsub.f32 %v3410, %v3560
          %v3891 = vsub.f32 %v3411, %v3560
          %v3892 = vsub.f32 %v3412, %v3561
          %v3893 = vsub.f32 %v3413, %v3561
          %v3894 = vsub.f32 %v3414, %v3562
          %v3895 = vsub.f32 %v3415, %v3562
          %v3896 = vsub.f32 %v3416, %v3563
          %v3897 = vsub.f32 %v3417, %v3563
          %v3898 = vsub.f32 %v3418, %v3564
          %v3899 = vsub.f32 %v3419, %v3564
          %v3900 = vsub.f32 %v3420, %v3565
          %v3901 = vsub.f32 %v3421, %v3565
          %v3902 = vsub.f32 %v3422, %v3566
          %v3903 = vsub.f32 %v3423, %v3566
          %v3904 = vsub.f32 %v3424, %v3567
          %v3905 = vsub.f32 %v3425, %v3567
          %v3906 = vsub.f32 %v3426, %v3568
          %v3907 = vsub.f32 %v3427, %v3568
          %v3908 = vsub.f32 %v3428, %v3569
          %v3909 = vsub.f32 %v3429, %v3569
          %v3910 = vsub.f32 %v3430, %v3570
          %v3911 = vsub.f32 %v3431, %v3570
          %v3912 = vsub.f32 %v3432, %v3571
          %v3913 = vsub.f32 %v3433, %v3571
          %v3914 = vsub.f32 %v3434, %v3572
          %v3915 = vsub.f32 %v3435, %v3572
          %v3916 = vsub.f32 %v3436, %v3573
          %v3917 = vsub.f32 %v3437, %v3573
          %v3918 = vsub.f32 %v3438, %v3574
          %v3919 = vsub.f32 %v3439, %v3574
          %v3920 = vsub.f32 %v3440, %v3575
          %v3921 = vsub.f32 %v3441, %v3575
          %v3922 = vsub.f32 %v3442, %v3576
          %v3923 = vsub.f32 %v3443, %v3576
          %v3924 = vsub.f32 %v3444, %v3577
          %v3925 = vsub.f32 %v3445, %v3577
          %v3926 = vsub.f32 %v3446, %v3578
          %v3927 = vsub.f32 %v3447, %v3578
          %v3928 = vsub.f32 %v3448, %v3579
          %v3929 = vsub.f32 %v3449, %v3579
          %v3930 = vsub.f32 %v3450, %v3580
          %v3931 = vsub.f32 %v3451, %v3580
          %v3932 = vsub.f32 %v3452, %v3581
          %v3933 = vsub.f32 %v3453, %v3581
          %v3934 = vadd.f32 %v3838, 1e-06
          %v3935 = vadd.f32 %v3839, 1e-06
          %v3936 = vadd.f32 %v3840, 1e-06
          %v3937 = vadd.f32 %v3841, 1e-06
          %v3938 = vadd.f32 %v3842, 1e-06
          %v3939 = vadd.f32 %v3843, 1e-06
          %v3940 = vadd.f32 %v3844, 1e-06
          %v3941 = vadd.f32 %v3845, 1e-06
          %v3942 = vadd.f32 %v3846, 1e-06
          %v3943 = vadd.f32 %v3847, 1e-06
          %v3944 = vadd.f32 %v3848, 1e-06
          %v3945 = vadd.f32 %v3849, 1e-06
          %v3946 = vadd.f32 %v3850, 1e-06
          %v3947 = vadd.f32 %v3851, 1e-06
          %v3948 = vadd.f32 %v3852, 1e-06
          %v3949 = vadd.f32 %v3853, 1e-06
          %v3950 = vadd.f32 %v3854, 1e-06
          %v3951 = vadd.f32 %v3855, 1e-06
          %v3952 = vadd.f32 %v3856, 1e-06
          %v3953 = vadd.f32 %v3857, 1e-06
          %v3954 = vadd.f32 %v3858, 1e-06
          %v3955 = vadd.f32 %v3859, 1e-06
          %v3956 = vadd.f32 %v3860, 1e-06
          %v3957 = vadd.f32 %v3861, 1e-06
          %v3958 = vadd.f32 %v3862, 1e-06
          %v3959 = vadd.f32 %v3863, 1e-06
          %v3960 = vadd.f32 %v3864, 1e-06
          %v3961 = vadd.f32 %v3865, 1e-06
          %v3962 = vadd.f32 %v3866, 1e-06
          %v3963 = vadd.f32 %v3867, 1e-06
          %v3964 = vadd.f32 %v3868, 1e-06
          %v3965 = vadd.f32 %v3869, 1e-06
          %v3966 = vrsqrt.pop %v3934
          %v3967 = vmul.f32 %v3966, %v3934
          %v3968 = vmul.f32 %v3967, %v3966
          %v3969 = vmul.f32 0.5, %v3968
          %v3970 = vsub.f32 1.5, %v3969
          %v3971 = vmul.f32 %v3966, %v3970
          %vm3972 = vweird.f32 %v3934
          %vm3973 = vweird.f32 %v3966
          %vm3974 = vmor %vm3972, %vm3973
          %v3975 = vsel %vm3974, %v3966, %v3971
          %v3976 = vrsqrt.pop %v3935
          %v3977 = vmul.f32 %v3976, %v3935
          %v3978 = vmul.f32 %v3977, %v3976
          %v3979 = vmul.f32 0.5, %v3978
          %v3980 = vsub.f32 1.5, %v3979
          %v3981 = vmul.f32 %v3976, %v3980
          %vm3982 = vweird.f32 %v3935
          %vm3983 = vweird.f32 %v3976
          %vm3984 = vmor %vm3982, %vm3983
          %v3985 = vsel %vm3984, %v3976, %v3981
          %v3986 = vrsqrt.pop %v3936
          %v3987 = vmul.f32 %v3986, %v3936
          %v3988 = vmul.f32 %v3987, %v3986
          %v3989 = vmul.f32 0.5, %v3988
          %v3990 = vsub.f32 1.5, %v3989
          %v3991 = vmul.f32 %v3986, %v3990
          %vm3992 = vweird.f32 %v3936
          %vm3993 = vweird.f32 %v3986
          %vm3994 = vmor %vm3992, %vm3993
          %v3995 = vsel %vm3994, %v3986, %v3991
          %v3996 = vrsqrt.pop %v3937
          %v3997 = vmul.f32 %v3996, %v3937
          %v3998 = vmul.f32 %v3997, %v3996
          %v3999 = vmul.f32 0.5, %v3998
          %v4000 = vsub.f32 1.5, %v3999
          %v4001 = vmul.f32 %v3996, %v4000
          %vm4002 = vweird.f32 %v3937
          %vm4003 = vweird.f32 %v3996
          %vm4004 = vmor %vm4002, %vm4003
          %v4005 = vsel %vm4004, %v3996, %v4001
          %v4006 = vrsqrt.pop %v3938
          %v4007 = vmul.f32 %v4006, %v3938
          %v4008 = vmul.f32 %v4007, %v4006
          %v4009 = vmul.f32 0.5, %v4008
          %v4010 = vsub.f32 1.5, %v4009
          %v4011 = vmul.f32 %v4006, %v4010
          %vm4012 = vweird.f32 %v3938
          %vm4013 = vweird.f32 %v4006
          %vm4014 = vmor %vm4012, %vm4013
          %v4015 = vsel %vm4014, %v4006, %v4011
          %v4016 = vrsqrt.pop %v3939
          %v4017 = vmul.f32 %v4016, %v3939
          %v4018 = vmul.f32 %v4017, %v4016
          %v4019 = vmul.f32 0.5, %v4018
          %v4020 = vsub.f32 1.5, %v4019
          %v4021 = vmul.f32 %v4016, %v4020
          %vm4022 = vweird.f32 %v3939
          %vm4023 = vweird.f32 %v4016
          %vm4024 = vmor %vm4022, %vm4023
          %v4025 = vsel %vm4024, %v4016, %v4021
          %v4026 = vrsqrt.pop %v3940
          %v4027 = vmul.f32 %v4026, %v3940
          %v4028 = vmul.f32 %v4027, %v4026
          %v4029 = vmul.f32 0.5, %v4028
          %v4030 = vsub.f32 1.5, %v4029
          %v4031 = vmul.f32 %v4026, %v4030
          %vm4032 = vweird.f32 %v3940
          %vm4033 = vweird.f32 %v4026
          %vm4034 = vmor %vm4032, %vm4033
          %v4035 = vsel %vm4034, %v4026, %v4031
          %v4036 = vrsqrt.pop %v3941
          %v4037 = vmul.f32 %v4036, %v3941
          %v4038 = vmul.f32 %v4037, %v4036
          %v4039 = vmul.f32 0.5, %v4038
          %v4040 = vsub.f32 1.5, %v4039
          %v4041 = vmul.f32 %v4036, %v4040
          %vm4042 = vweird.f32 %v3941
          %vm4043 = vweird.f32 %v4036
          %vm4044 = vmor %vm4042, %vm4043
          %v4045 = vsel %vm4044, %v4036, %v4041
          %v4046 = vrsqrt.pop %v3942
          %v4047 = vmul.f32 %v4046, %v3942
          %v4048 = vmul.f32 %v4047, %v4046
          %v4049 = vmul.f32 0.5, %v4048
          %v4050 = vsub.f32 1.5, %v4049
          %v4051 = vmul.f32 %v4046, %v4050
          %vm4052 = vweird.f32 %v3942
          %vm4053 = vweird.f32 %v4046
          %vm4054 = vmor %vm4052, %vm4053
          %v4055 = vsel %vm4054, %v4046, %v4051
          %v4056 = vrsqrt.pop %v3943
          %v4057 = vmul.f32 %v4056, %v3943
          %v4058 = vmul.f32 %v4057, %v4056
          %v4059 = vmul.f32 0.5, %v4058
          %v4060 = vsub.f32 1.5, %v4059
          %v4061 = vmul.f32 %v4056, %v4060
          %vm4062 = vweird.f32 %v3943
          %vm4063 = vweird.f32 %v4056
          %vm4064 = vmor %vm4062, %vm4063
          %v4065 = vsel %vm4064, %v4056, %v4061
          %v4066 = vrsqrt.pop %v3944
          %v4067 = vmul.f32 %v4066, %v3944
          %v4068 = vmul.f32 %v4067, %v4066
          %v4069 = vmul.f32 0.5, %v4068
          %v4070 = vsub.f32 1.5, %v4069
          %v4071 = vmul.f32 %v4066, %v4070
          %vm4072 = vweird.f32 %v3944
          %vm4073 = vweird.f32 %v4066
          %vm4074 = vmor %vm4072, %vm4073
          %v4075 = vsel %vm4074, %v4066, %v4071
          %v4076 = vrsqrt.pop %v3945
          %v4077 = vmul.f32 %v4076, %v3945
          %v4078 = vmul.f32 %v4077, %v4076
          %v4079 = vmul.f32 0.5, %v4078
          %v4080 = vsub.f32 1.5, %v4079
          %v4081 = vmul.f32 %v4076, %v4080
          %vm4082 = vweird.f32 %v3945
          %vm4083 = vweird.f32 %v4076
          %vm4084 = vmor %vm4082, %vm4083
          %v4085 = vsel %vm4084, %v4076, %v4081
          %v4086 = vrsqrt.pop %v3946
          %v4087 = vmul.f32 %v4086, %v3946
          %v4088 = vmul.f32 %v4087, %v4086
          %v4089 = vmul.f32 0.5, %v4088
          %v4090 = vsub.f32 1.5, %v4089
          %v4091 = vmul.f32 %v4086, %v4090
          %vm4092 = vweird.f32 %v3946
          %vm4093 = vweird.f32 %v4086
          %vm4094 = vmor %vm4092, %vm4093
          %v4095 = vsel %vm4094, %v4086, %v4091
          %v4096 = vrsqrt.pop %v3947
          %v4097 = vmul.f32 %v4096, %v3947
          %v4098 = vmul.f32 %v4097, %v4096
          %v4099 = vmul.f32 0.5, %v4098
          %v4100 = vsub.f32 1.5, %v4099
          %v4101 = vmul.f32 %v4096, %v4100
          %vm4102 = vweird.f32 %v3947
          %vm4103 = vweird.f32 %v4096
          %vm4104 = vmor %vm4102, %vm4103
          %v4105 = vsel %vm4104, %v4096, %v4101
          %v4106 = vrsqrt.pop %v3948
          %v4107 = vmul.f32 %v4106, %v3948
          %v4108 = vmul.f32 %v4107, %v4106
          %v4109 = vmul.f32 0.5, %v4108
          %v4110 = vsub.f32 1.5, %v4109
          %v4111 = vmul.f32 %v4106, %v4110
          %vm4112 = vweird.f32 %v3948
          %vm4113 = vweird.f32 %v4106
          %vm4114 = vmor %vm4112, %vm4113
          %v4115 = vsel %vm4114, %v4106, %v4111
          %v4116 = vrsqrt.pop %v3949
          %v4117 = vmul.f32 %v4116, %v3949
          %v4118 = vmul.f32 %v4117, %v4116
          %v4119 = vmul.f32 0.5, %v4118
          %v4120 = vsub.f32 1.5, %v4119
          %v4121 = vmul.f32 %v4116, %v4120
          %vm4122 = vweird.f32 %v3949
          %vm4123 = vweird.f32 %v4116
          %vm4124 = vmor %vm4122, %vm4123
          %v4125 = vsel %vm4124, %v4116, %v4121
          %v4126 = vrsqrt.pop %v3950
          %v4127 = vmul.f32 %v4126, %v3950
          %v4128 = vmul.f32 %v4127, %v4126
          %v4129 = vmul.f32 0.5, %v4128
          %v4130 = vsub.f32 1.5, %v4129
          %v4131 = vmul.f32 %v4126, %v4130
          %vm4132 = vweird.f32 %v3950
          %vm4133 = vweird.f32 %v4126
          %vm4134 = vmor %vm4132, %vm4133
          %v4135 = vsel %vm4134, %v4126, %v4131
          %v4136 = vrsqrt.pop %v3951
          %v4137 = vmul.f32 %v4136, %v3951
          %v4138 = vmul.f32 %v4137, %v4136
          %v4139 = vmul.f32 0.5, %v4138
          %v4140 = vsub.f32 1.5, %v4139
          %v4141 = vmul.f32 %v4136, %v4140
          %vm4142 = vweird.f32 %v3951
          %vm4143 = vweird.f32 %v4136
          %vm4144 = vmor %vm4142, %vm4143
          %v4145 = vsel %vm4144, %v4136, %v4141
          %v4146 = vrsqrt.pop %v3952
          %v4147 = vmul.f32 %v4146, %v3952
          %v4148 = vmul.f32 %v4147, %v4146
          %v4149 = vmul.f32 0.5, %v4148
          %v4150 = vsub.f32 1.5, %v4149
          %v4151 = vmul.f32 %v4146, %v4150
          %vm4152 = vweird.f32 %v3952
          %vm4153 = vweird.f32 %v4146
          %vm4154 = vmor %vm4152, %vm4153
          %v4155 = vsel %vm4154, %v4146, %v4151
          %v4156 = vrsqrt.pop %v3953
          %v4157 = vmul.f32 %v4156, %v3953
          %v4158 = vmul.f32 %v4157, %v4156
          %v4159 = vmul.f32 0.5, %v4158
          %v4160 = vsub.f32 1.5, %v4159
          %v4161 = vmul.f32 %v4156, %v4160
          %vm4162 = vweird.f32 %v3953
          %vm4163 = vweird.f32 %v4156
          %vm4164 = vmor %vm4162, %vm4163
          %v4165 = vsel %vm4164, %v4156, %v4161
          %v4166 = vrsqrt.pop %v3954
          %v4167 = vmul.f32 %v4166, %v3954
          %v4168 = vmul.f32 %v4167, %v4166
          %v4169 = vmul.f32 0.5, %v4168
          %v4170 = vsub.f32 1.5, %v4169
          %v4171 = vmul.f32 %v4166, %v4170
          %vm4172 = vweird.f32 %v3954
          %vm4173 = vweird.f32 %v4166
          %vm4174 = vmor %vm4172, %vm4173
          %v4175 = vsel %vm4174, %v4166, %v4171
          %v4176 = vrsqrt.pop %v3955
          %v4177 = vmul.f32 %v4176, %v3955
          %v4178 = vmul.f32 %v4177, %v4176
          %v4179 = vmul.f32 0.5, %v4178
          %v4180 = vsub.f32 1.5, %v4179
          %v4181 = vmul.f32 %v4176, %v4180
          %vm4182 = vweird.f32 %v3955
          %vm4183 = vweird.f32 %v4176
          %vm4184 = vmor %vm4182, %vm4183
          %v4185 = vsel %vm4184, %v4176, %v4181
          %v4186 = vrsqrt.pop %v3956
          %v4187 = vmul.f32 %v4186, %v3956
          %v4188 = vmul.f32 %v4187, %v4186
          %v4189 = vmul.f32 0.5, %v4188
          %v4190 = vsub.f32 1.5, %v4189
          %v4191 = vmul.f32 %v4186, %v4190
          %vm4192 = vweird.f32 %v3956
          %vm4193 = vweird.f32 %v4186
          %vm4194 = vmor %vm4192, %vm4193
          %v4195 = vsel %vm4194, %v4186, %v4191
          %v4196 = vrsqrt.pop %v3957
          %v4197 = vmul.f32 %v4196, %v3957
          %v4198 = vmul.f32 %v4197, %v4196
          %v4199 = vmul.f32 0.5, %v4198
          %v4200 = vsub.f32 1.5, %v4199
          %v4201 = vmul.f32 %v4196, %v4200
          %vm4202 = vweird.f32 %v3957
          %vm4203 = vweird.f32 %v4196
          %vm4204 = vmor %vm4202, %vm4203
          %v4205 = vsel %vm4204, %v4196, %v4201
          %v4206 = vrsqrt.pop %v3958
          %v4207 = vmul.f32 %v4206, %v3958
          %v4208 = vmul.f32 %v4207, %v4206
          %v4209 = vmul.f32 0.5, %v4208
          %v4210 = vsub.f32 1.5, %v4209
          %v4211 = vmul.f32 %v4206, %v4210
          %vm4212 = vweird.f32 %v3958
          %vm4213 = vweird.f32 %v4206
          %vm4214 = vmor %vm4212, %vm4213
          %v4215 = vsel %vm4214, %v4206, %v4211
          %v4216 = vrsqrt.pop %v3959
          %v4217 = vmul.f32 %v4216, %v3959
          %v4218 = vmul.f32 %v4217, %v4216
          %v4219 = vmul.f32 0.5, %v4218
          %v4220 = vsub.f32 1.5, %v4219
          %v4221 = vmul.f32 %v4216, %v4220
          %vm4222 = vweird.f32 %v3959
          %vm4223 = vweird.f32 %v4216
          %vm4224 = vmor %vm4222, %vm4223
          %v4225 = vsel %vm4224, %v4216, %v4221
          %v4226 = vrsqrt.pop %v3960
          %v4227 = vmul.f32 %v4226, %v3960
          %v4228 = vmul.f32 %v4227, %v4226
          %v4229 = vmul.f32 0.5, %v4228
          %v4230 = vsub.f32 1.5, %v4229
          %v4231 = vmul.f32 %v4226, %v4230
          %vm4232 = vweird.f32 %v3960
          %vm4233 = vweird.f32 %v4226
          %vm4234 = vmor %vm4232, %vm4233
          %v4235 = vsel %vm4234, %v4226, %v4231
          %v4236 = vrsqrt.pop %v3961
          %v4237 = vmul.f32 %v4236, %v3961
          %v4238 = vmul.f32 %v4237, %v4236
          %v4239 = vmul.f32 0.5, %v4238
          %v4240 = vsub.f32 1.5, %v4239
          %v4241 = vmul.f32 %v4236, %v4240
          %vm4242 = vweird.f32 %v3961
          %vm4243 = vweird.f32 %v4236
          %vm4244 = vmor %vm4242, %vm4243
          %v4245 = vsel %vm4244, %v4236, %v4241
          %v4246 = vrsqrt.pop %v3962
          %v4247 = vmul.f32 %v4246, %v3962
          %v4248 = vmul.f32 %v4247, %v4246
          %v4249 = vmul.f32 0.5, %v4248
          %v4250 = vsub.f32 1.5, %v4249
          %v4251 = vmul.f32 %v4246, %v4250
          %vm4252 = vweird.f32 %v3962
          %vm4253 = vweird.f32 %v4246
          %vm4254 = vmor %vm4252, %vm4253
          %v4255 = vsel %vm4254, %v4246, %v4251
          %v4256 = vrsqrt.pop %v3963
          %v4257 = vmul.f32 %v4256, %v3963
          %v4258 = vmul.f32 %v4257, %v4256
          %v4259 = vmul.f32 0.5, %v4258
          %v4260 = vsub.f32 1.5, %v4259
          %v4261 = vmul.f32 %v4256, %v4260
          %vm4262 = vweird.f32 %v3963
          %vm4263 = vweird.f32 %v4256
          %vm4264 = vmor %vm4262, %vm4263
          %v4265 = vsel %vm4264, %v4256, %v4261
          %v4266 = vrsqrt.pop %v3964
          %v4267 = vmul.f32 %v4266, %v3964
          %v4268 = vmul.f32 %v4267, %v4266
          %v4269 = vmul.f32 0.5, %v4268
          %v4270 = vsub.f32 1.5, %v4269
          %v4271 = vmul.f32 %v4266, %v4270
          %vm4272 = vweird.f32 %v3964
          %vm4273 = vweird.f32 %v4266
          %vm4274 = vmor %vm4272, %vm4273
          %v4275 = vsel %vm4274, %v4266, %v4271
          %v4276 = vrsqrt.pop %v3965
          %v4277 = vmul.f32 %v4276, %v3965
          %v4278 = vmul.f32 %v4277, %v4276
          %v4279 = vmul.f32 0.5, %v4278
          %v4280 = vsub.f32 1.5, %v4279
          %v4281 = vmul.f32 %v4276, %v4280
          %vm4282 = vweird.f32 %v3965
          %vm4283 = vweird.f32 %v4276
          %vm4284 = vmor %vm4282, %vm4283
          %v4285 = vsel %vm4284, %v4276, %v4281
          %v4286 = vmul.f32 %v3870, %v3975
          %v4287 = vmul.f32 %v3871, %v3975
          %v4288 = vmul.f32 %v3872, %v3985
          %v4289 = vmul.f32 %v3873, %v3985
          %v4290 = vmul.f32 %v3874, %v3995
          %v4291 = vmul.f32 %v3875, %v3995
          %v4292 = vmul.f32 %v3876, %v4005
          %v4293 = vmul.f32 %v3877, %v4005
          %v4294 = vmul.f32 %v3878, %v4015
          %v4295 = vmul.f32 %v3879, %v4015
          %v4296 = vmul.f32 %v3880, %v4025
          %v4297 = vmul.f32 %v3881, %v4025
          %v4298 = vmul.f32 %v3882, %v4035
          %v4299 = vmul.f32 %v3883, %v4035
          %v4300 = vmul.f32 %v3884, %v4045
          %v4301 = vmul.f32 %v3885, %v4045
          %v4302 = vmul.f32 %v3886, %v4055
          %v4303 = vmul.f32 %v3887, %v4055
          %v4304 = vmul.f32 %v3888, %v4065
          %v4305 = vmul.f32 %v3889, %v4065
          %v4306 = vmul.f32 %v3890, %v4075
          %v4307 = vmul.f32 %v3891, %v4075
          %v4308 = vmul.f32 %v3892, %v4085
          %v4309 = vmul.f32 %v3893, %v4085
          %v4310 = vmul.f32 %v3894, %v4095
          %v4311 = vmul.f32 %v3895, %v4095
          %v4312 = vmul.f32 %v3896, %v4105
          %v4313 = vmul.f32 %v3897, %v4105
          %v4314 = vmul.f32 %v3898, %v4115
          %v4315 = vmul.f32 %v3899, %v4115
          %v4316 = vmul.f32 %v3900, %v4125
          %v4317 = vmul.f32 %v3901, %v4125
          %v4318 = vmul.f32 %v3902, %v4135
          %v4319 = vmul.f32 %v3903, %v4135
          %v4320 = vmul.f32 %v3904, %v4145
          %v4321 = vmul.f32 %v3905, %v4145
          %v4322 = vmul.f32 %v3906, %v4155
          %v4323 = vmul.f32 %v3907, %v4155
          %v4324 = vmul.f32 %v3908, %v4165
          %v4325 = vmul.f32 %v3909, %v4165
          %v4326 = vmul.f32 %v3910, %v4175
          %v4327 = vmul.f32 %v3911, %v4175
          %v4328 = vmul.f32 %v3912, %v4185
          %v4329 = vmul.f32 %v3913, %v4185
          %v4330 = vmul.f32 %v3914, %v4195
          %v4331 = vmul.f32 %v3915, %v4195
          %v4332 = vmul.f32 %v3916, %v4205
          %v4333 = vmul.f32 %v3917, %v4205
          %v4334 = vmul.f32 %v3918, %v4215
          %v4335 = vmul.f32 %v3919, %v4215
          %v4336 = vmul.f32 %v3920, %v4225
          %v4337 = vmul.f32 %v3921, %v4225
          %v4338 = vmul.f32 %v3922, %v4235
          %v4339 = vmul.f32 %v3923, %v4235
          %v4340 = vmul.f32 %v3924, %v4245
          %v4341 = vmul.f32 %v3925, %v4245
          %v4342 = vmul.f32 %v3926, %v4255
          %v4343 = vmul.f32 %v3927, %v4255
          %v4344 = vmul.f32 %v3928, %v4265
          %v4345 = vmul.f32 %v3929, %v4265
          %v4346 = vmul.f32 %v3930, %v4275
          %v4347 = vmul.f32 %v3931, %v4275
          %v4348 = vmul.f32 %v3932, %v4285
          %v4349 = vmul.f32 %v3933, %v4285
          %v4351 = vperm.slane %v1197, 0
          %v4352 = vperm.slane %v1197, 1
          %v4355 = vmul.f32 %v4286, %v4351
          %v4356 = vmul.f32 %v4287, %v4352
          %v4357 = vmul.f32 %v4288, %v4351
          %v4358 = vmul.f32 %v4289, %v4352
          %v4359 = vmul.f32 %v4290, %v4351
          %v4360 = vmul.f32 %v4291, %v4352
          %v4361 = vmul.f32 %v4292, %v4351
          %v4362 = vmul.f32 %v4293, %v4352
          %v4363 = vmul.f32 %v4294, %v4351
          %v4364 = vmul.f32 %v4295, %v4352
          %v4365 = vmul.f32 %v4296, %v4351
          %v4366 = vmul.f32 %v4297, %v4352
          %v4367 = vmul.f32 %v4298, %v4351
          %v4368 = vmul.f32 %v4299, %v4352
          %v4369 = vmul.f32 %v4300, %v4351
          %v4370 = vmul.f32 %v4301, %v4352
          %v4371 = vmul.f32 %v4302, %v4351
          %v4372 = vmul.f32 %v4303, %v4352
          %v4373 = vmul.f32 %v4304, %v4351
          %v4374 = vmul.f32 %v4305, %v4352
          %v4375 = vmul.f32 %v4306, %v4351
          %v4376 = vmul.f32 %v4307, %v4352
          %v4377 = vmul.f32 %v4308, %v4351
          %v4378 = vmul.f32 %v4309, %v4352
          %v4379 = vmul.f32 %v4310, %v4351
          %v4380 = vmul.f32 %v4311, %v4352
          %v4381 = vmul.f32 %v4312, %v4351
          %v4382 = vmul.f32 %v4313, %v4352
          %v4383 = vmul.f32 %v4314, %v4351
          %v4384 = vmul.f32 %v4315, %v4352
          %v4385 = vmul.f32 %v4316, %v4351
          %v4386 = vmul.f32 %v4317, %v4352
          %v4387 = vmul.f32 %v4318, %v4351
          %v4388 = vmul.f32 %v4319, %v4352
          %v4389 = vmul.f32 %v4320, %v4351
          %v4390 = vmul.f32 %v4321, %v4352
          %v4391 = vmul.f32 %v4322, %v4351
          %v4392 = vmul.f32 %v4323, %v4352
          %v4393 = vmul.f32 %v4324, %v4351
          %v4394 = vmul.f32 %v4325, %v4352
          %v4395 = vmul.f32 %v4326, %v4351
          %v4396 = vmul.f32 %v4327, %v4352
          %v4397 = vmul.f32 %v4328, %v4351
          %v4398 = vmul.f32 %v4329, %v4352
          %v4399 = vmul.f32 %v4330, %v4351
          %v4400 = vmul.f32 %v4331, %v4352
          %v4401 = vmul.f32 %v4332, %v4351
          %v4402 = vmul.f32 %v4333, %v4352
          %v4403 = vmul.f32 %v4334, %v4351
          %v4404 = vmul.f32 %v4335, %v4352
          %v4405 = vmul.f32 %v4336, %v4351
          %v4406 = vmul.f32 %v4337, %v4352
          %v4407 = vmul.f32 %v4338, %v4351
          %v4408 = vmul.f32 %v4339, %v4352
          %v4409 = vmul.f32 %v4340, %v4351
          %v4410 = vmul.f32 %v4341, %v4352
          %v4411 = vmul.f32 %v4342, %v4351
          %v4412 = vmul.f32 %v4343, %v4352
          %v4413 = vmul.f32 %v4344, %v4351
          %v4414 = vmul.f32 %v4345, %v4352
          %v4415 = vmul.f32 %v4346, %v4351
          %v4416 = vmul.f32 %v4347, %v4352
          %v4417 = vmul.f32 %v4348, %v4351
          %v4418 = vmul.f32 %v4349, %v4352
          %v4420 = vperm.slane %v1199, 0
          %v4421 = vperm.slane %v1199, 1
          %v4424 = vadd.f32 %v4355, %v4420
          %v4425 = vadd.f32 %v4356, %v4421
          %v4426 = vadd.f32 %v4357, %v4420
          %v4427 = vadd.f32 %v4358, %v4421
          %v4428 = vadd.f32 %v4359, %v4420
          %v4429 = vadd.f32 %v4360, %v4421
          %v4430 = vadd.f32 %v4361, %v4420
          %v4431 = vadd.f32 %v4362, %v4421
          %v4432 = vadd.f32 %v4363, %v4420
          %v4433 = vadd.f32 %v4364, %v4421
          %v4434 = vadd.f32 %v4365, %v4420
          %v4435 = vadd.f32 %v4366, %v4421
          %v4436 = vadd.f32 %v4367, %v4420
          %v4437 = vadd.f32 %v4368, %v4421
          %v4438 = vadd.f32 %v4369, %v4420
          %v4439 = vadd.f32 %v4370, %v4421
          %v4440 = vadd.f32 %v4371, %v4420
          %v4441 = vadd.f32 %v4372, %v4421
          %v4442 = vadd.f32 %v4373, %v4420
          %v4443 = vadd.f32 %v4374, %v4421
          %v4444 = vadd.f32 %v4375, %v4420
          %v4445 = vadd.f32 %v4376, %v4421
          %v4446 = vadd.f32 %v4377, %v4420
          %v4447 = vadd.f32 %v4378, %v4421
          %v4448 = vadd.f32 %v4379, %v4420
          %v4449 = vadd.f32 %v4380, %v4421
          %v4450 = vadd.f32 %v4381, %v4420
          %v4451 = vadd.f32 %v4382, %v4421
          %v4452 = vadd.f32 %v4383, %v4420
          %v4453 = vadd.f32 %v4384, %v4421
          %v4454 = vadd.f32 %v4385, %v4420
          %v4455 = vadd.f32 %v4386, %v4421
          %v4456 = vadd.f32 %v4387, %v4420
          %v4457 = vadd.f32 %v4388, %v4421
          %v4458 = vadd.f32 %v4389, %v4420
          %v4459 = vadd.f32 %v4390, %v4421
          %v4460 = vadd.f32 %v4391, %v4420
          %v4461 = vadd.f32 %v4392, %v4421
          %v4462 = vadd.f32 %v4393, %v4420
          %v4463 = vadd.f32 %v4394, %v4421
          %v4464 = vadd.f32 %v4395, %v4420
          %v4465 = vadd.f32 %v4396, %v4421
          %v4466 = vadd.f32 %v4397, %v4420
          %v4467 = vadd.f32 %v4398, %v4421
          %v4468 = vadd.f32 %v4399, %v4420
          %v4469 = vadd.f32 %v4400, %v4421
          %v4470 = vadd.f32 %v4401, %v4420
          %v4471 = vadd.f32 %v4402, %v4421
          %v4472 = vadd.f32 %v4403, %v4420
          %v4473 = vadd.f32 %v4404, %v4421
          %v4474 = vadd.f32 %v4405, %v4420
          %v4475 = vadd.f32 %v4406, %v4421
          %v4476 = vadd.f32 %v4407, %v4420
          %v4477 = vadd.f32 %v4408, %v4421
          %v4478 = vadd.f32 %v4409, %v4420
          %v4479 = vadd.f32 %v4410, %v4421
          %v4480 = vadd.f32 %v4411, %v4420
          %v4481 = vadd.f32 %v4412, %v4421
          %v4482 = vadd.f32 %v4413, %v4420
          %v4483 = vadd.f32 %v4414, %v4421
          %v4484 = vadd.f32 %v4415, %v4420
          %v4485 = vadd.f32 %v4416, %v4421
          %v4486 = vadd.f32 %v4417, %v4420
          %v4487 = vadd.f32 %v4418, %v4421
          %4488 = vst [vmem:[%s282] sm:$0xff] %v4424
          %4489 = vst [vmem:[%s282 + $0x8] sm:$0xff] %v4425
          %4490 = vst [vmem:[%s282 + $0x10] sm:$0xff] %v4426
          %4491 = vst [vmem:[%s282 + $0x18] sm:$0xff] %v4427
          %4492 = vst [vmem:[%s282 + $0x20] sm:$0xff] %v4428
          %4493 = vst [vmem:[%s282 + $0x28] sm:$0xff] %v4429
          %4494 = vst [vmem:[%s282 + $0x30] sm:$0xff] %v4430
          %4495 = vst [vmem:[%s282 + $0x38] sm:$0xff] %v4431
          %4496 = vst [vmem:[%s282 + $0x40] sm:$0xff] %v4432
          %4497 = vst [vmem:[%s282 + $0x48] sm:$0xff] %v4433
          %4498 = vst [vmem:[%s282 + $0x50] sm:$0xff] %v4434
          %4499 = vst [vmem:[%s282 + $0x58] sm:$0xff] %v4435
          %4500 = vst [vmem:[%s282 + $0x60] sm:$0xff] %v4436
          %4501 = vst [vmem:[%s282 + $0x68] sm:$0xff] %v4437
          %4502 = vst [vmem:[%s282 + $0x70] sm:$0xff] %v4438
          %4503 = vst [vmem:[%s282 + $0x78] sm:$0xff] %v4439
          %4504 = vst [vmem:[%s282 + $0x80] sm:$0xff] %v4440
          %4505 = vst [vmem:[%s282 + $0x88] sm:$0xff] %v4441
          %4506 = vst [vmem:[%s282 + $0x90] sm:$0xff] %v4442
          %4507 = vst [vmem:[%s282 + $0x98] sm:$0xff] %v4443
          %4508 = vst [vmem:[%s282 + $0xa0] sm:$0xff] %v4444
          %4509 = vst [vmem:[%s282 + $0xa8] sm:$0xff] %v4445
          %4510 = vst [vmem:[%s282 + $0xb0] sm:$0xff] %v4446
          %4511 = vst [vmem:[%s282 + $0xb8] sm:$0xff] %v4447
          %4512 = vst [vmem:[%s282 + $0xc0] sm:$0xff] %v4448
          %4513 = vst [vmem:[%s282 + $0xc8] sm:$0xff] %v4449
          %4514 = vst [vmem:[%s282 + $0xd0] sm:$0xff] %v4450
          %4515 = vst [vmem:[%s282 + $0xd8] sm:$0xff] %v4451
          %4516 = vst [vmem:[%s282 + $0xe0] sm:$0xff] %v4452
          %4517 = vst [vmem:[%s282 + $0xe8] sm:$0xff] %v4453
          %4518 = vst [vmem:[%s282 + $0xf0] sm:$0xff] %v4454
          %4519 = vst [vmem:[%s282 + $0xf8] sm:$0xff] %v4455
          %4520 = vst [vmem:[%s282 + $0x100] sm:$0xff] %v4456
          %4521 = vst [vmem:[%s282 + $0x108] sm:$0xff] %v4457
          %4522 = vst [vmem:[%s282 + $0x110] sm:$0xff] %v4458
          %4523 = vst [vmem:[%s282 + $0x118] sm:$0xff] %v4459
          %4524 = vst [vmem:[%s282 + $0x120] sm:$0xff] %v4460
          %4525 = vst [vmem:[%s282 + $0x128] sm:$0xff] %v4461
          %4526 = vst [vmem:[%s282 + $0x130] sm:$0xff] %v4462
          %4527 = vst [vmem:[%s282 + $0x138] sm:$0xff] %v4463
          %4528 = vst [vmem:[%s282 + $0x140] sm:$0xff] %v4464
          %4529 = vst [vmem:[%s282 + $0x148] sm:$0xff] %v4465
          %4530 = vst [vmem:[%s282 + $0x150] sm:$0xff] %v4466
          %4531 = vst [vmem:[%s282 + $0x158] sm:$0xff] %v4467
          %4532 = vst [vmem:[%s282 + $0x160] sm:$0xff] %v4468
          %4533 = vst [vmem:[%s282 + $0x168] sm:$0xff] %v4469
          %4534 = vst [vmem:[%s282 + $0x170] sm:$0xff] %v4470
          %4535 = vst [vmem:[%s282 + $0x178] sm:$0xff] %v4471
          %4536 = vst [vmem:[%s282 + $0x180] sm:$0xff] %v4472
          %4537 = vst [vmem:[%s282 + $0x188] sm:$0xff] %v4473
          %4538 = vst [vmem:[%s282 + $0x190] sm:$0xff] %v4474
          %4539 = vst [vmem:[%s282 + $0x198] sm:$0xff] %v4475
          %4540 = vst [vmem:[%s282 + $0x1a0] sm:$0xff] %v4476
          %4541 = vst [vmem:[%s282 + $0x1a8] sm:$0xff] %v4477
          %4542 = vst [vmem:[%s282 + $0x1b0] sm:$0xff] %v4478
          %4543 = vst [vmem:[%s282 + $0x1b8] sm:$0xff] %v4479
          %4544 = vst [vmem:[%s282 + $0x1c0] sm:$0xff] %v4480
          %4545 = vst [vmem:[%s282 + $0x1c8] sm:$0xff] %v4481
          %4546 = vst [vmem:[%s282 + $0x1d0] sm:$0xff] %v4482
          %4547 = vst [vmem:[%s282 + $0x1d8] sm:$0xff] %v4483
          %4548 = vst [vmem:[%s282 + $0x1e0] sm:$0xff] %v4484
          %4549 = vst [vmem:[%s282 + $0x1e8] sm:$0xff] %v4485
          %4550 = vst [vmem:[%s282 + $0x1f0] sm:$0xff] %v4486
          %4551 = vst [vmem:[%s282 + $0x1f8] sm:$0xff] %v4487
        $region60: #{tpu_custom_call.1} parent=35 // pred_fallthru
          _
        %s4552 = sand.u32 %s134, 1
        %s4553 = scalar_lea.sflag [#allocation5], %s4552
        %s4554 = sand.u32 %s134, 1
        %s4555 = smul.addr %s4554, 512
        %s4556 = scalar_lea.vmem [#allocation11], %s4555
        // Predicated region
        $region61: #{tpu_custom_call.1} parent=35 // pred_check
          %p4557 = pneg %p144
        $region62: #{tpu_custom_call.1} parent=35 // pred_check_branch
          %4559 = sbr.rel (%p4557) target = $region64
        $region63: #{tpu_custom_call.1} parent=35 // pred_region
          %s4560 = smul.u32 32, %s27
          %4562 = vsyncadd %s4553, 0
          %s4563 = smul.addr %s4560, 2
          %s4564 = smul.addr %s4563, 8
          %s4565 = scalar_lea.hbm %s4, %s4564
          %s4566 = sshll.u32 %s4556, 4
          %s4567 = int_to_ptr.vmem [resolvable:$true] %s4566
          %s4568 = sshll.u32 %s4565, 4
          %s4569 = int_to_ptr.hbm [resolvable:$true] %s4568
          %4574 = dma.vmem_to_hbm [thread:$0]  %s4567, 8192, %s4569, %s4553, 256, 256, 16
        $region64: #{tpu_custom_call.1} parent=35 // pred_fallthru
          _
      $region36: #{tpu_custom_call.1} parent=5 // pred_fallthru
        _
      %p4575 = scmp.le.s32.totalorder 2, %s18
      // Predicated region
      $region65: #{tpu_custom_call.1} parent=5 // pred_check
        %p4576 = pneg %p4575
      $region66: #{tpu_custom_call.1} parent=5 // pred_check_branch
        %4578 = sbr.rel (%p4576) target = $region68
      $region67: #{tpu_custom_call.1} parent=5 // pred_region
        %s4579 = ssub.s32 %s18, 2
        // Predicated region
        $region69: #{tpu_custom_call.1} parent=67 // pred_check
          %p4580 = pneg %p150
        $region70: #{tpu_custom_call.1} parent=67 // pred_check_branch
          %4582 = sbr.rel (%p4580) target = $region72
        $region71: #{tpu_custom_call.1} parent=67 // pred_region
          %s4583 = sand.u32 %s135, 1
          %s4584 = scalar_lea.sflag [#allocation5], %s4583
          %s4585 = sand.u32 %s135, 1
          %s4586 = smul.addr %s4585, 512
          %s4587 = scalar_lea.vmem [#allocation11], %s4586
          %4589 = dma.done %s4584, 8192
        $region72: #{tpu_custom_call.1} parent=67 // pred_fallthru
          _
      $region68: #{tpu_custom_call.1} parent=5 // pred_fallthru
        _
    $region6: #{tpu_custom_call.1} parent=1 // loop_footer
      %s22 = sadd.s32 1, %s18
    $region7: #{tpu_custom_call.1} parent=1 // loop_footer_branch
      %17 = sbr.rel target = $region3
    $region8: #{tpu_custom_call.1} parent=1 // loop_exit
      _
    %4590 = vsyncpa [#allocation4], 1
    %s4591 = scalar_lea.sflag [#allocation4], 1
    %4592 = vsyncpa %s4591, 1
    %4593 = vsyncpa [#allocation7], 1
    %4594 = vsyncpa [#allocation10], 1
    %4595 = vsyncpa [#allocation5], 1
    %s4596 = scalar_lea.sflag [#allocation5], 1
    %4597 = vsyncpa %s4596, 1

</llo_original>
